<compile_context>
chip_gen: v7x
topology: tpu7x:2x2x1
jax: 0.10.0
libtpu: 0.0.40
codegen_flags: <defaults>
</compile_context>

<pallas_src>
import numpy as np
import jax
import jax.numpy as jnp
from jax.experimental import pallas as pl
from jax.experimental.pallas import tpu as pltpu


_VMEM_LIMIT = 32 * 1024 * 1024   # explicit scoped-VMEM budget (v5e..v7x safe)


def _round_up(x, m):
    return (x + m - 1) // m * m


# ---------------------------------------------------------------------------
# Pallas kernels
# ---------------------------------------------------------------------------

def _conv_bn_relu_kernel(x_ref, w_ref, scale_ref, shift_ref, o_ref):
    # x_ref: (M, K) bf16   w_ref: (K, C) bf16   scale/shift: (1, C) f32
    # o_ref: (M, C) bf16
    y = jnp.dot(x_ref[...], w_ref[...], preferred_element_type=jnp.float32)
    y = y * scale_ref[...] + shift_ref[...]
    o_ref[...] = jnp.maximum(y, 0.0).astype(o_ref.dtype)


def _conv_bn_relu_pool_kernel(x_ref, w_ref, scale_ref, shift_ref, o_ref):
    # x_ref: (4, M, K) bf16 -- corner-major im2col rows for the 2x2 windows.
    # One GEMM per corner (same total FLOPs as the unpooled conv GEMM),
    # fused BN + ReLU epilogue in f32, then an element-wise VPU max.
    w = w_ref[...]
    scale = scale_ref[...]
    shift = shift_ref[...]
    best = None
    for k in range(4):                                   # static unroll
        y = jnp.dot(x_ref[k], w, preferred_element_type=jnp.float32)
        y = jnp.maximum(y * scale + shift, 0.0)
        best = y if best is None else jnp.maximum(best, y)
    o_ref[...] = best.astype(o_ref.dtype)


def _mlp_head_kernel(x_ref, w1_ref, b1_ref, w2_ref, b2_ref, w3_ref, b3_ref,
                     o_ref):
    # Fused layer6: Linear -> (Dropout=id) -> ReLU -> Linear -> ReLU -> Linear
    h = jnp.dot(x_ref[...], w1_ref[...],
                preferred_element_type=jnp.float32) + b1_ref[...]
    h = jnp.maximum(h, 0.0).astype(w2_ref.dtype)
    h = jnp.dot(h, w2_ref[...],
                preferred_element_type=jnp.float32) + b2_ref[...]
    h = jnp.maximum(h, 0.0).astype(w3_ref.dtype)
    out = jnp.dot(h, w3_ref[...],
                  preferred_element_type=jnp.float32) + b3_ref[...]
    o_ref[...] = out.astype(o_ref.dtype)


# ---------------------------------------------------------------------------
# Wrappers (glue: im2col, padding, reshapes)
# ---------------------------------------------------------------------------

def conv_bn_relu(x_nhwc, w_flat, scale, shift, *, padding=0, pool=False,
                 block_n=8):
    """Fused Conv3x3 + BN(eval) + ReLU (+ optional 2x2/2 MaxPool).

    x_nhwc: (N, H, W, Cin).  w_flat: (9*Cin, Cout) with row order (kh, kw, ci).
    Returns (N, Hout, Wout, Cout) in bfloat16.
    """
    x_nhwc = x_nhwc.astype(jnp.bfloat16)
    w_flat = w_flat.astype(jnp.bfloat16)
    scale = scale.astype(jnp.float32)
    shift = shift.astype(jnp.float32)

    N, H, W, Cin = x_nhwc.shape
    if padding:
        x_nhwc = jnp.pad(x_nhwc, ((0, 0), (padding, padding),
                                  (padding, padding), (0, 0)))
        H += 2 * padding
        W += 2 * padding
    Ho, Wo = H - 2, W - 2
    K = 9 * Cin
    Cout = w_flat.shape[1]

    # im2col (XLA glue): column order (kh, kw, ci) matches weight flattening.
    cols = [x_nhwc[:, kh:kh + Ho, kw:kw + Wo, :]
            for kh in range(3) for kw in range(3)]
    patches = jnp.concatenate(cols, axis=-1)             # (N, Ho, Wo, K) bf16

    # Batch several images per grid step.
    bn = max(1, min(block_n, N))
    n_pad = (-N) % bn
    if n_pad:
        patches = jnp.pad(patches, ((0, n_pad), (0, 0), (0, 0), (0, 0)))
    Np = N + n_pad

    cparams = pltpu.CompilerParams(dimension_semantics=("parallel",),
                                   vmem_limit_bytes=_VMEM_LIMIT)

    if pool:
        Hp, Wp = Ho // 2, Wo // 2
        Pout = Hp * Wp
        P8 = _round_up(Pout, 8)
        # Corner-major reorder: corner (dh, dw) of every 2x2 pooling window.
        corners = [patches[:, dh::2, dw::2, :].reshape(Np, Pout, K)
                   for dh in range(2) for dw in range(2)]
        p4 = jnp.stack(corners, axis=0)                  # (4, Np, Pout, K)
        if P8 != Pout:
            p4 = jnp.pad(p4, ((0, 0), (0, 0), (0, P8 - Pout), (0, 0)))
        p4 = p4.reshape(4, Np * P8, K)
        M = bn * P8

        out = pl.pallas_call(
            _conv_bn_relu_pool_kernel,
            out_shape=jax.ShapeDtypeStruct((Np * P8, Cout), jnp.bfloat16),
            grid_spec=pltpu.PrefetchScalarGridSpec(
                num_scalar_prefetch=0,
                grid=(Np // bn,),
                in_specs=[
                    pl.BlockSpec((4, M, K), lambda n: (0, n, 0)),
                    pl.BlockSpec((K, Cout), lambda n: (0, 0)),
                    pl.BlockSpec((1, Cout), lambda n: (0, 0)),
                    pl.BlockSpec((1, Cout), lambda n: (0, 0)),
                ],
                out_specs=pl.BlockSpec((M, Cout), lambda n: (n, 0)),
            ),
            compiler_params=cparams,
        )(p4, w_flat, scale, shift)
        out = out.reshape(Np, P8, Cout)[:N, :Pout]
        return out.reshape(N, Hp, Wp, Cout)

    P = Ho * Wo
    P8 = _round_up(P, 8)
    patches = patches.reshape(Np, P, K)
    if P8 != P:
        patches = jnp.pad(patches, ((0, 0), (0, P8 - P), (0, 0)))
    patches = patches.reshape(Np * P8, K)
    M = bn * P8

    out = pl.pallas_call(
        _conv_bn_relu_kernel,
        out_shape=jax.ShapeDtypeStruct((Np * P8, Cout), jnp.bfloat16),
        grid_spec=pltpu.PrefetchScalarGridSpec(
            num_scalar_prefetch=0,
            grid=(Np // bn,),
            in_specs=[
                pl.BlockSpec((M, K), lambda n: (n, 0)),
                pl.BlockSpec((K, Cout), lambda n: (0, 0)),
                pl.BlockSpec((1, Cout), lambda n: (0, 0)),
                pl.BlockSpec((1, Cout), lambda n: (0, 0)),
            ],
            out_specs=pl.BlockSpec((M, Cout), lambda n: (n, 0)),
        ),
        compiler_params=cparams,
    )(patches, w_flat, scale, shift)
    out = out.reshape(Np, P8, Cout)[:N, :P]
    return out.reshape(N, Ho, Wo, Cout)


def mlp_head(x, w1, b1, w2, b2, w3, b3, *, block_rows=8):
    """Fused layer6 (Linear->ReLU->Linear->ReLU->Linear), N tiled in parallel."""
    N, D = x.shape
    H1, H2, C = w1.shape[1], w2.shape[1], w3.shape[1]
    x = x.astype(jnp.bfloat16)
    w1 = w1.astype(jnp.bfloat16)
    w2 = w2.astype(jnp.bfloat16)
    w3 = w3.astype(jnp.bfloat16)
    b1 = b1.astype(jnp.float32)
    b2 = b2.astype(jnp.float32)
    b3 = b3.astype(jnp.float32)

    n_pad = (-N) % block_rows
    if n_pad:
        x = jnp.pad(x, ((0, n_pad), (0, 0)))
    Np = N + n_pad

    out = pl.pallas_call(
        _mlp_head_kernel,
        out_shape=jax.ShapeDtypeStruct((Np, C), jnp.float32),
        grid_spec=pltpu.PrefetchScalarGridSpec(
            num_scalar_prefetch=0,
            grid=(Np // block_rows,),
            in_specs=[
                pl.BlockSpec((block_rows, D), lambda i: (i, 0)),
                pl.BlockSpec((D, H1), lambda i: (0, 0)),
                pl.BlockSpec((1, H1), lambda i: (0, 0)),
                pl.BlockSpec((H1, H2), lambda i: (0, 0)),
                pl.BlockSpec((1, H2), lambda i: (0, 0)),
                pl.BlockSpec((H2, C), lambda i: (0, 0)),
                pl.BlockSpec((1, C), lambda i: (0, 0)),
            ],
            out_specs=pl.BlockSpec((block_rows, C), lambda i: (i, 0)),
        ),
        compiler_params=pltpu.CompilerParams(
            dimension_semantics=("parallel",),
            vmem_limit_bytes=_VMEM_LIMIT),
    )(x, w1, b1, w2, b2, w3, b3)
    return out[:N]


# ---------------------------------------------------------------------------
# Parameter construction (deterministic, synthetic)
# ---------------------------------------------------------------------------

def _uniform(key, shape, bound):
    return jax.random.uniform(key, shape, jnp.float32, -bound, bound)


def init_params(key, in_channels=1, num_classes=23):
    params = {}
    conv_cfg = [("l1", in_channels, 16), ("l2", 16, 16), ("l3", 16, 64),
                ("l4", 64, 64), ("l5", 64, 64)]
    eps = 1e-5
    for name, cin, cout in conv_cfg:
        key, k1, k2, k3, k4 = jax.random.split(key, 5)
        bound = 1.0 / np.sqrt(9 * cin)
        w = _uniform(k1, (3, 3, cin, cout), bound)       # (kh, kw, ci, co)
        b = _uniform(k2, (cout,), bound)
        gamma = 1.0 + 0.1 * jax.random.normal(k3, (cout,), jnp.float32)
        beta = 0.1 * jax.random.normal(k4, (cout,), jnp.float32)
        # eval-mode BN (running_mean=0, running_var=1) folded with conv bias
        scale = gamma / jnp.sqrt(1.0 + eps)
        shift = scale * b + beta
        params[name] = dict(w=w.reshape(9 * cin, cout).astype(jnp.bfloat16),
                            scale=scale.reshape(1, cout),
                            shift=shift.reshape(1, cout))

    # fc1: weight rows generated in PyTorch NCHW-flatten order (c*25 + h*5 + w)
    # and permuted ONCE to the NHWC flatten order ((h*5+w)*64 + c) so the
    # forward pass needs no transpose before the head.
    din = 64 * 5 * 5
    key, k1, k2 = jax.random.split(key, 3)
    bound = 1.0 / np.sqrt(din)
    w1_pt = _uniform(k1, (din, 128), bound)
    j = np.arange(din)
    p_idx, c_idx = j // 64, j % 64
    perm = c_idx * 25 + p_idx                            # NHWC row j <- PT row
    params["fc1"] = dict(w=w1_pt[perm].astype(jnp.bfloat16),
                         b=_uniform(k2, (1, 128), bound))

    for name, din2, dout in [("fc2", 128, 128), ("fc3", 128, num_classes)]:
        key, k1, k2 = jax.random.split(key, 3)
        bound = 1.0 / np.sqrt(din2)
        params[name] = dict(w=_uniform(k1, (din2, dout), bound).astype(jnp.bfloat16),
                            b=_uniform(k2, (1, dout), bound))
    return params


# ---------------------------------------------------------------------------
# CNN5 forward
# ---------------------------------------------------------------------------

def cnn5_forward(x_nchw, params, *, block_n=8):
    # NCHW -> NHWC
    x = jnp.transpose(x_nchw, (0, 2, 3, 1))
    p = params
    x = conv_bn_relu(x, p["l1"]["w"], p["l1"]["scale"], p["l1"]["shift"],
                     block_n=block_n)                              # (N,30,30,16)
    x = conv_bn_relu(x, p["l2"]["w"], p["l2"]["scale"], p["l2"]["shift"],
                     pool=True, block_n=block_n)                   # (N,14,14,16)
    x = conv_bn_relu(x, p["l3"]["w"], p["l3"]["scale"], p["l3"]["shift"],
                     block_n=block_n)                              # (N,12,12,64)
    x = conv_bn_relu(x, p["l4"]["w"], p["l4"]["scale"], p["l4"]["shift"],
                     block_n=block_n)                              # (N,10,10,64)
    x = conv_bn_relu(x, p["l5"]["w"], p["l5"]["scale"], p["l5"]["shift"],
                     padding=1, pool=True, block_n=block_n)        # (N,5,5,64)
    N = x.shape[0]
    feat = x.reshape(N, 5 * 5 * 64)   # NHWC flatten; fc1 rows pre-permuted
    # TODO(synk): self.dropout (p=0.5) and layer6 Dropout(0.25) are eval-mode
    # identity (no RNG in-kernel).
    return mlp_head(feat,
                    p["fc1"]["w"], p["fc1"]["b"],
                    p["fc2"]["w"], p["fc2"]["b"],
                    p["fc3"]["w"], p["fc3"]["b"])


if __name__ == "__main__":
    key = jax.random.PRNGKey(0)
    k_x, k_p = jax.random.split(key)
    # 32x32 input is required by the 64*5*5 flatten in layer6.
    x = jax.random.normal(k_x, (2, 1, 32, 32), jnp.float32)
    params = init_params(k_p, in_channels=1, num_classes=23)
    fwd = jax.jit(lambda xx: cnn5_forward(xx, params))
    out = jax.block_until_ready(fwd(x))
    assert out.shape == (2, 23) and out.dtype == jnp.float32
    assert bool(jnp.all(jnp.isfinite(out)))
    print("KERNEL_OK")
</pallas_src>

<mosaic_0001>
module attributes {stable_mosaic.version = 11 : i64} {
  func.func @_conv_bn_relu_kernel(%arg0: i32, %arg1: memref<1808x9xbf16, #tpu.memory_space<vmem>>, %arg2: memref<9x16xbf16, #tpu.memory_space<vmem>>, %arg3: memref<1x16xf32, #tpu.memory_space<vmem>>, %arg4: memref<1x16xf32, #tpu.memory_space<vmem>>, %arg5: memref<1808x16xbf16, #tpu.memory_space<vmem>>) attributes {dimension_semantics = [#tpu.dimension_semantics<parallel>], iteration_bounds = array<i64: 1>, scalar_prefetch = 0 : i64, scratch_operands = 0 : i64, tpu.core_type = #tpu.core_type<tc>, window_params = [{transform_indices = @transform_0, window_bounds = array<i64: 1808, 9>}, {pipeline_mode = #tpu.pipeline_mode<synchronous>, transform_indices = @transform_1, window_bounds = array<i64: 9, 16>}, {pipeline_mode = #tpu.pipeline_mode<synchronous>, transform_indices = @transform_2, window_bounds = array<i64: 1, 16>}, {pipeline_mode = #tpu.pipeline_mode<synchronous>, transform_indices = @transform_3, window_bounds = array<i64: 1, 16>}, {transform_indices = @transform_4, window_bounds = array<i64: 1808, 16>}]} {
    %c0 = arith.constant 0 : index
    %c0_0 = arith.constant 0 : index
    %0 = vector.load %arg1[%c0, %c0_0] : memref<1808x9xbf16, #tpu.memory_space<vmem>>, vector<1808x9xbf16>
    %c0_1 = arith.constant 0 : index
    %c0_2 = arith.constant 0 : index
    %1 = vector.load %arg2[%c0_1, %c0_2] : memref<9x16xbf16, #tpu.memory_space<vmem>>, vector<9x16xbf16>
    %cst = arith.constant dense<0.000000e+00> : vector<1808x16xf32>
    %2 = tpu.matmul %0, %1, %cst {dimension_numbers = #tpu.dot_dimension_numbers<[1], [0], [0], [1], [0, 0, 1, 1], [], []>} : vector<1808x9xbf16>, vector<9x16xbf16>, vector<1808x16xf32> -> vector<1808x16xf32>
    %c0_3 = arith.constant 0 : index
    %c0_4 = arith.constant 0 : index
    %3 = vector.load %arg3[%c0_3, %c0_4] : memref<1x16xf32, #tpu.memory_space<vmem>>, vector<1x16xf32>
    %4 = vector.broadcast %3 : vector<1x16xf32> to vector<1808x16xf32>
    %5 = arith.mulf %2, %4 : vector<1808x16xf32>
    %c0_5 = arith.constant 0 : index
    %c0_6 = arith.constant 0 : index
    %6 = vector.load %arg4[%c0_5, %c0_6] : memref<1x16xf32, #tpu.memory_space<vmem>>, vector<1x16xf32>
    %7 = vector.broadcast %6 : vector<1x16xf32> to vector<1808x16xf32>
    %8 = arith.addf %5, %7 : vector<1808x16xf32>
    %cst_7 = arith.constant 0.000000e+00 : f32
    %9 = vector.broadcast %cst_7 : f32 to vector<1808x16xf32>
    %10 = arith.maximumf %8, %9 : vector<1808x16xf32>
    %11 = arith.truncf %10 : vector<1808x16xf32> to vector<1808x16xbf16>
    %c0_8 = arith.constant 0 : index
    %c0_9 = arith.constant 0 : index
    %12 = vector.load %arg5[%c0_8, %c0_9] : memref<1808x16xbf16, #tpu.memory_space<vmem>>, vector<1808x16xbf16>
    tpu.vector_store %arg5[%c0_8, %c0_9], %11 {strides = array<i32>} : memref<1808x16xbf16, #tpu.memory_space<vmem>>, vector<1808x16xbf16>,
    return
  }
  func.func @transform_0(%arg0: i32) -> (i32, i32) {
    %c0_i32 = arith.constant 0 : i32
    %c0_i32_0 = arith.constant 0 : i32
    return %arg0, %c0_i32 : i32, i32
  }
  func.func @transform_1(%arg0: i32) -> (i32, i32) {
    %c0_i32 = arith.constant 0 : i32
    %c0_i32_0 = arith.constant 0 : i32
    %c0_i32_1 = arith.constant 0 : i32
    return %c0_i32, %c0_i32_0 : i32, i32
  }
  func.func @transform_2(%arg0: i32) -> (i32, i32) {
    %c0_i32 = arith.constant 0 : i32
    %c0_i32_0 = arith.constant 0 : i32
    %c0_i32_1 = arith.constant 0 : i32
    return %c0_i32, %c0_i32_0 : i32, i32
  }
  func.func @transform_3(%arg0: i32) -> (i32, i32) {
    %c0_i32 = arith.constant 0 : i32
    %c0_i32_0 = arith.constant 0 : i32
    %c0_i32_1 = arith.constant 0 : i32
    return %c0_i32, %c0_i32_0 : i32, i32
  }
  func.func @transform_4(%arg0: i32) -> (i32, i32) {
    %c0_i32 = arith.constant 0 : i32
    %c0_i32_0 = arith.constant 0 : i32
    return %arg0, %c0_i32 : i32, i32
  }
}

module attributes {stable_mosaic.version = 11 : i64} {
  func.func @_conv_bn_relu_pool_kernel(%arg0: i32, %arg1: memref<4x400x144xbf16, #tpu.memory_space<vmem>>, %arg2: memref<144x16xbf16, #tpu.memory_space<vmem>>, %arg3: memref<1x16xf32, #tpu.memory_space<vmem>>, %arg4: memref<1x16xf32, #tpu.memory_space<vmem>>, %arg5: memref<400x16xbf16, #tpu.memory_space<vmem>>) attributes {dimension_semantics = [#tpu.dimension_semantics<parallel>], iteration_bounds = array<i64: 1>, scalar_prefetch = 0 : i64, scratch_operands = 0 : i64, tpu.core_type = #tpu.core_type<tc>, window_params = [{transform_indices = @transform_0, window_bounds = array<i64: 4, 400, 144>}, {pipeline_mode = #tpu.pipeline_mode<synchronous>, transform_indices = @transform_1, window_bounds = array<i64: 144, 16>}, {pipeline_mode = #tpu.pipeline_mode<synchronous>, transform_indices = @transform_2, window_bounds = array<i64: 1, 16>}, {pipeline_mode = #tpu.pipeline_mode<synchronous>, transform_indices = @transform_3, window_bounds = array<i64: 1, 16>}, {transform_indices = @transform_4, window_bounds = array<i64: 400, 16>}]} {
    %c0 = arith.constant 0 : index
    %c0_0 = arith.constant 0 : index
    %0 = vector.load %arg2[%c0, %c0_0] : memref<144x16xbf16, #tpu.memory_space<vmem>>, vector<144x16xbf16>
    %c0_1 = arith.constant 0 : index
    %c0_2 = arith.constant 0 : index
    %1 = vector.load %arg3[%c0_1, %c0_2] : memref<1x16xf32, #tpu.memory_space<vmem>>, vector<1x16xf32>
    %c0_3 = arith.constant 0 : index
    %c0_4 = arith.constant 0 : index
    %2 = vector.load %arg4[%c0_3, %c0_4] : memref<1x16xf32, #tpu.memory_space<vmem>>, vector<1x16xf32>
    %c0_5 = arith.constant 0 : index
    %c0_6 = arith.constant 0 : index
    %c0_7 = arith.constant 0 : index
    %3 = vector.load %arg1[%c0_5, %c0_6, %c0_7] : memref<4x400x144xbf16, #tpu.memory_space<vmem>>, vector<1x400x144xbf16>
    %4 = vector.shape_cast %3 : vector<1x400x144xbf16> to vector<400x144xbf16>
    %cst = arith.constant dense<0.000000e+00> : vector<400x16xf32>
    %5 = tpu.matmul %4, %0, %cst {dimension_numbers = #tpu.dot_dimension_numbers<[1], [0], [0], [1], [0, 0, 1, 1], [], []>} : vector<400x144xbf16>, vector<144x16xbf16>, vector<400x16xf32> -> vector<400x16xf32>
    %6 = vector.broadcast %1 : vector<1x16xf32> to vector<400x16xf32>
    %7 = arith.mulf %5, %6 : vector<400x16xf32>
    %8 = vector.broadcast %2 : vector<1x16xf32> to vector<400x16xf32>
    %9 = arith.addf %7, %8 : vector<400x16xf32>
    %cst_8 = arith.constant 0.000000e+00 : f32
    %10 = vector.broadcast %cst_8 : f32 to vector<400x16xf32>
    %11 = arith.maximumf %9, %10 : vector<400x16xf32>
    %c1 = arith.constant 1 : index
    %c0_9 = arith.constant 0 : index
    %c0_10 = arith.constant 0 : index
    %12 = vector.load %arg1[%c1, %c0_9, %c0_10] : memref<4x400x144xbf16, #tpu.memory_space<vmem>>, vector<1x400x144xbf16>
    %13 = vector.shape_cast %12 : vector<1x400x144xbf16> to vector<400x144xbf16>
    %cst_11 = arith.constant dense<0.000000e+00> : vector<400x16xf32>
    %14 = tpu.matmul %13, %0, %cst_11 {dimension_numbers = #tpu.dot_dimension_numbers<[1], [0], [0], [1], [0, 0, 1, 1], [], []>} : vector<400x144xbf16>, vector<144x16xbf16>, vector<400x16xf32> -> vector<400x16xf32>
    %15 = vector.broadcast %1 : vector<1x16xf32> to vector<400x16xf32>
    %16 = arith.mulf %14, %15 : vector<400x16xf32>
    %17 = vector.broadcast %2 : vector<1x16xf32> to vector<400x16xf32>
    %18 = arith.addf %16, %17 : vector<400x16xf32>
    %cst_12 = arith.constant 0.000000e+00 : f32
    %19 = vector.broadcast %cst_12 : f32 to vector<400x16xf32>
    %20 = arith.maximumf %18, %19 : vector<400x16xf32>
    %21 = arith.maximumf %11, %20 : vector<400x16xf32>
    %c2 = arith.constant 2 : index
    %c0_13 = arith.constant 0 : index
    %c0_14 = arith.constant 0 : index
    %22 = vector.load %arg1[%c2, %c0_13, %c0_14] : memref<4x400x144xbf16, #tpu.memory_space<vmem>>, vector<1x400x144xbf16>
    %23 = vector.shape_cast %22 : vector<1x400x144xbf16> to vector<400x144xbf16>
    %cst_15 = arith.constant dense<0.000000e+00> : vector<400x16xf32>
    %24 = tpu.matmul %23, %0, %cst_15 {dimension_numbers = #tpu.dot_dimension_numbers<[1], [0], [0], [1], [0, 0, 1, 1], [], []>} : vector<400x144xbf16>, vector<144x16xbf16>, vector<400x16xf32> -> vector<400x16xf32>
    %25 = vector.broadcast %1 : vector<1x16xf32> to vector<400x16xf32>
    %26 = arith.mulf %24, %25 : vector<400x16xf32>
    %27 = vector.broadcast %2 : vector<1x16xf32> to vector<400x16xf32>
    %28 = arith.addf %26, %27 : vector<400x16xf32>
    %cst_16 = arith.constant 0.000000e+00 : f32
    %29 = vector.broadcast %cst_16 : f32 to vector<400x16xf32>
    %30 = arith.maximumf %28, %29 : vector<400x16xf32>
    %31 = arith.maximumf %21, %30 : vector<400x16xf32>
    %c3 = arith.constant 3 : index
    %c0_17 = arith.constant 0 : index
    %c0_18 = arith.constant 0 : index
    %32 = vector.load %arg1[%c3, %c0_17, %c0_18] : memref<4x400x144xbf16, #tpu.memory_space<vmem>>, vector<1x400x144xbf16>
    %33 = vector.shape_cast %32 : vector<1x400x144xbf16> to vector<400x144xbf16>
    %cst_19 = arith.constant dense<0.000000e+00> : vector<400x16xf32>
    %34 = tpu.matmul %33, %0, %cst_19 {dimension_numbers = #tpu.dot_dimension_numbers<[1], [0], [0], [1], [0, 0, 1, 1], [], []>} : vector<400x144xbf16>, vector<144x16xbf16>, vector<400x16xf32> -> vector<400x16xf32>
    %35 = vector.broadcast %1 : vector<1x16xf32> to vector<400x16xf32>
    %36 = arith.mulf %34, %35 : vector<400x16xf32>
    %37 = vector.broadcast %2 : vector<1x16xf32> to vector<400x16xf32>
    %38 = arith.addf %36, %37 : vector<400x16xf32>
    %cst_20 = arith.constant 0.000000e+00 : f32
    %39 = vector.broadcast %cst_20 : f32 to vector<400x16xf32>
    %40 = arith.maximumf %38, %39 : vector<400x16xf32>
    %41 = arith.maximumf %31, %40 : vector<400x16xf32>
    %42 = arith.truncf %41 : vector<400x16xf32> to vector<400x16xbf16>
    %c0_21 = arith.constant 0 : index
    %c0_22 = arith.constant 0 : index
    %43 = vector.load %arg5[%c0_21, %c0_22] : memref<400x16xbf16, #tpu.memory_space<vmem>>, vector<400x16xbf16>
    tpu.vector_store %arg5[%c0_21, %c0_22], %42 {strides = array<i32>} : memref<400x16xbf16, #tpu.memory_space<vmem>>, vector<400x16xbf16>,
    return
  }
  func.func @transform_0(%arg0: i32) -> (i32, i32, i32) {
    %c0_i32 = arith.constant 0 : i32
    %c0_i32_0 = arith.constant 0 : i32
    %c0_i32_1 = arith.constant 0 : i32
    return %c0_i32, %arg0, %c0_i32_0 : i32, i32, i32
  }
  func.func @transform_1(%arg0: i32) -> (i32, i32) {
    %c0_i32 = arith.constant 0 : i32
    %c0_i32_0 = arith.constant 0 : i32
    %c0_i32_1 = arith.constant 0 : i32
    return %c0_i32, %c0_i32_0 : i32, i32
  }
  func.func @transform_2(%arg0: i32) -> (i32, i32) {
    %c0_i32 = arith.constant 0 : i32
    %c0_i32_0 = arith.constant 0 : i32
    %c0_i32_1 = arith.constant 0 : i32
    return %c0_i32, %c0_i32_0 : i32, i32
  }
  func.func @transform_3(%arg0: i32) -> (i32, i32) {
    %c0_i32 = arith.constant 0 : i32
    %c0_i32_0 = arith.constant 0 : i32
    %c0_i32_1 = arith.constant 0 : i32
    return %c0_i32, %c0_i32_0 : i32, i32
  }
  func.func @transform_4(%arg0: i32) -> (i32, i32) {
    %c0_i32 = arith.constant 0 : i32
    %c0_i32_0 = arith.constant 0 : i32
    return %arg0, %c0_i32 : i32, i32
  }
}

module attributes {stable_mosaic.version = 11 : i64} {
  func.func @_conv_bn_relu_kernel(%arg0: i32, %arg1: memref<288x144xbf16, #tpu.memory_space<vmem>>, %arg2: memref<144x64xbf16, #tpu.memory_space<vmem>>, %arg3: memref<1x64xf32, #tpu.memory_space<vmem>>, %arg4: memref<1x64xf32, #tpu.memory_space<vmem>>, %arg5: memref<288x64xbf16, #tpu.memory_space<vmem>>) attributes {dimension_semantics = [#tpu.dimension_semantics<parallel>], iteration_bounds = array<i64: 1>, scalar_prefetch = 0 : i64, scratch_operands = 0 : i64, tpu.core_type = #tpu.core_type<tc>, window_params = [{transform_indices = @transform_0, window_bounds = array<i64: 288, 144>}, {pipeline_mode = #tpu.pipeline_mode<synchronous>, transform_indices = @transform_1, window_bounds = array<i64: 144, 64>}, {pipeline_mode = #tpu.pipeline_mode<synchronous>, transform_indices = @transform_2, window_bounds = array<i64: 1, 64>}, {pipeline_mode = #tpu.pipeline_mode<synchronous>, transform_indices = @transform_3, window_bounds = array<i64: 1, 64>}, {transform_indices = @transform_4, window_bounds = array<i64: 288, 64>}]} {
    %c0 = arith.constant 0 : index
    %c0_0 = arith.constant 0 : index
    %0 = vector.load %arg1[%c0, %c0_0] : memref<288x144xbf16, #tpu.memory_space<vmem>>, vector<288x144xbf16>
    %c0_1 = arith.constant 0 : index
    %c0_2 = arith.constant 0 : index
    %1 = vector.load %arg2[%c0_1, %c0_2] : memref<144x64xbf16, #tpu.memory_space<vmem>>, vector<144x64xbf16>
    %cst = arith.constant dense<0.000000e+00> : vector<288x64xf32>
    %2 = tpu.matmul %0, %1, %cst {dimension_numbers = #tpu.dot_dimension_numbers<[1], [0], [0], [1], [0, 0, 1, 1], [], []>} : vector<288x144xbf16>, vector<144x64xbf16>, vector<288x64xf32> -> vector<288x64xf32>
    %c0_3 = arith.constant 0 : index
    %c0_4 = arith.constant 0 : index
    %3 = vector.load %arg3[%c0_3, %c0_4] : memref<1x64xf32, #tpu.memory_space<vmem>>, vector<1x64xf32>
    %4 = vector.broadcast %3 : vector<1x64xf32> to vector<288x64xf32>
    %5 = arith.mulf %2, %4 : vector<288x64xf32>
    %c0_5 = arith.constant 0 : index
    %c0_6 = arith.constant 0 : index
    %6 = vector.load %arg4[%c0_5, %c0_6] : memref<1x64xf32, #tpu.memory_space<vmem>>, vector<1x64xf32>
    %7 = vector.broadcast %6 : vector<1x64xf32> to vector<288x64xf32>
    %8 = arith.addf %5, %7 : vector<288x64xf32>
    %cst_7 = arith.constant 0.000000e+00 : f32
    %9 = vector.broadcast %cst_7 : f32 to vector<288x64xf32>
    %10 = arith.maximumf %8, %9 : vector<288x64xf32>
    %11 = arith.truncf %10 : vector<288x64xf32> to vector<288x64xbf16>
    %c0_8 = arith.constant 0 : index
    %c0_9 = arith.constant 0 : index
    %12 = vector.load %arg5[%c0_8, %c0_9] : memref<288x64xbf16, #tpu.memory_space<vmem>>, vector<288x64xbf16>
    tpu.vector_store %arg5[%c0_8, %c0_9], %11 {strides = array<i32>} : memref<288x64xbf16, #tpu.memory_space<vmem>>, vector<288x64xbf16>,
    return
  }
  func.func @transform_0(%arg0: i32) -> (i32, i32) {
    %c0_i32 = arith.constant 0 : i32
    %c0_i32_0 = arith.constant 0 : i32
    return %arg0, %c0_i32 : i32, i32
  }
  func.func @transform_1(%arg0: i32) -> (i32, i32) {
    %c0_i32 = arith.constant 0 : i32
    %c0_i32_0 = arith.constant 0 : i32
    %c0_i32_1 = arith.constant 0 : i32
    return %c0_i32, %c0_i32_0 : i32, i32
  }
  func.func @transform_2(%arg0: i32) -> (i32, i32) {
    %c0_i32 = arith.constant 0 : i32
    %c0_i32_0 = arith.constant 0 : i32
    %c0_i32_1 = arith.constant 0 : i32
    return %c0_i32, %c0_i32_0 : i32, i32
  }
  func.func @transform_3(%arg0: i32) -> (i32, i32) {
    %c0_i32 = arith.constant 0 : i32
    %c0_i32_0 = arith.constant 0 : i32
    %c0_i32_1 = arith.constant 0 : i32
    return %c0_i32, %c0_i32_0 : i32, i32
  }
  func.func @transform_4(%arg0: i32) -> (i32, i32) {
    %c0_i32 = arith.constant 0 : i32
    %c0_i32_0 = arith.constant 0 : i32
    return %arg0, %c0_i32 : i32, i32
  }
}

module attributes {stable_mosaic.version = 11 : i64} {
  func.func @_conv_bn_relu_kernel(%arg0: i32, %arg1: memref<208x576xbf16, #tpu.memory_space<vmem>>, %arg2: memref<576x64xbf16, #tpu.memory_space<vmem>>, %arg3: memref<1x64xf32, #tpu.memory_space<vmem>>, %arg4: memref<1x64xf32, #tpu.memory_space<vmem>>, %arg5: memref<208x64xbf16, #tpu.memory_space<vmem>>) attributes {dimension_semantics = [#tpu.dimension_semantics<parallel>], iteration_bounds = array<i64: 1>, scalar_prefetch = 0 : i64, scratch_operands = 0 : i64, tpu.core_type = #tpu.core_type<tc>, window_params = [{transform_indices = @transform_0, window_bounds = array<i64: 208, 576>}, {pipeline_mode = #tpu.pipeline_mode<synchronous>, transform_indices = @transform_1, window_bounds = array<i64: 576, 64>}, {pipeline_mode = #tpu.pipeline_mode<synchronous>, transform_indices = @transform_2, window_bounds = array<i64: 1, 64>}, {pipeline_mode = #tpu.pipeline_mode<synchronous>, transform_indices = @transform_3, window_bounds = array<i64: 1, 64>}, {transform_indices = @transform_4, window_bounds = array<i64: 208, 64>}]} {
    %c0 = arith.constant 0 : index
    %c0_0 = arith.constant 0 : index
    %0 = vector.load %arg1[%c0, %c0_0] : memref<208x576xbf16, #tpu.memory_space<vmem>>, vector<208x576xbf16>
    %c0_1 = arith.constant 0 : index
    %c0_2 = arith.constant 0 : index
    %1 = vector.load %arg2[%c0_1, %c0_2] : memref<576x64xbf16, #tpu.memory_space<vmem>>, vector<576x64xbf16>
    %cst = arith.constant dense<0.000000e+00> : vector<208x64xf32>
    %2 = tpu.matmul %0, %1, %cst {dimension_numbers = #tpu.dot_dimension_numbers<[1], [0], [0], [1], [0, 0, 1, 1], [], []>} : vector<208x576xbf16>, vector<576x64xbf16>, vector<208x64xf32> -> vector<208x64xf32>
    %c0_3 = arith.constant 0 : index
    %c0_4 = arith.constant 0 : index
    %3 = vector.load %arg3[%c0_3, %c0_4] : memref<1x64xf32, #tpu.memory_space<vmem>>, vector<1x64xf32>
    %4 = vector.broadcast %3 : vector<1x64xf32> to vector<208x64xf32>
    %5 = arith.mulf %2, %4 : vector<208x64xf32>
    %c0_5 = arith.constant 0 : index
    %c0_6 = arith.constant 0 : index
    %6 = vector.load %arg4[%c0_5, %c0_6] : memref<1x64xf32, #tpu.memory_space<vmem>>, vector<1x64xf32>
    %7 = vector.broadcast %6 : vector<1x64xf32> to vector<208x64xf32>
    %8 = arith.addf %5, %7 : vector<208x64xf32>
    %cst_7 = arith.constant 0.000000e+00 : f32
    %9 = vector.broadcast %cst_7 : f32 to vector<208x64xf32>
    %10 = arith.maximumf %8, %9 : vector<208x64xf32>
    %11 = arith.truncf %10 : vector<208x64xf32> to vector<208x64xbf16>
    %c0_8 = arith.constant 0 : index
    %c0_9 = arith.constant 0 : index
    %12 = vector.load %arg5[%c0_8, %c0_9] : memref<208x64xbf16, #tpu.memory_space<vmem>>, vector<208x64xbf16>
    tpu.vector_store %arg5[%c0_8, %c0_9], %11 {strides = array<i32>} : memref<208x64xbf16, #tpu.memory_space<vmem>>, vector<208x64xbf16>,
    return
  }
  func.func @transform_0(%arg0: i32) -> (i32, i32) {
    %c0_i32 = arith.constant 0 : i32
    %c0_i32_0 = arith.constant 0 : i32
    return %arg0, %c0_i32 : i32, i32
  }
  func.func @transform_1(%arg0: i32) -> (i32, i32) {
    %c0_i32 = arith.constant 0 : i32
    %c0_i32_0 = arith.constant 0 : i32
    %c0_i32_1 = arith.constant 0 : i32
    return %c0_i32, %c0_i32_0 : i32, i32
  }
  func.func @transform_2(%arg0: i32) -> (i32, i32) {
    %c0_i32 = arith.constant 0 : i32
    %c0_i32_0 = arith.constant 0 : i32
    %c0_i32_1 = arith.constant 0 : i32
    return %c0_i32, %c0_i32_0 : i32, i32
  }
  func.func @transform_3(%arg0: i32) -> (i32, i32) {
    %c0_i32 = arith.constant 0 : i32
    %c0_i32_0 = arith.constant 0 : i32
    %c0_i32_1 = arith.constant 0 : i32
    return %c0_i32, %c0_i32_0 : i32, i32
  }
  func.func @transform_4(%arg0: i32) -> (i32, i32) {
    %c0_i32 = arith.constant 0 : i32
    %c0_i32_0 = arith.constant 0 : i32
    return %arg0, %c0_i32 : i32, i32
  }
}

module attributes {stable_mosaic.version = 11 : i64} {
  func.func @_conv_bn_relu_pool_kernel(%arg0: i32, %arg1: memref<4x64x576xbf16, #tpu.memory_space<vmem>>, %arg2: memref<576x64xbf16, #tpu.memory_space<vmem>>, %arg3: memref<1x64xf32, #tpu.memory_space<vmem>>, %arg4: memref<1x64xf32, #tpu.memory_space<vmem>>, %arg5: memref<64x64xbf16, #tpu.memory_space<vmem>>) attributes {dimension_semantics = [#tpu.dimension_semantics<parallel>], iteration_bounds = array<i64: 1>, scalar_prefetch = 0 : i64, scratch_operands = 0 : i64, tpu.core_type = #tpu.core_type<tc>, window_params = [{transform_indices = @transform_0, window_bounds = array<i64: 4, 64, 576>}, {pipeline_mode = #tpu.pipeline_mode<synchronous>, transform_indices = @transform_1, window_bounds = array<i64: 576, 64>}, {pipeline_mode = #tpu.pipeline_mode<synchronous>, transform_indices = @transform_2, window_bounds = array<i64: 1, 64>}, {pipeline_mode = #tpu.pipeline_mode<synchronous>, transform_indices = @transform_3, window_bounds = array<i64: 1, 64>}, {transform_indices = @transform_4, window_bounds = array<i64: 64, 64>}]} {
    %c0 = arith.constant 0 : index
    %c0_0 = arith.constant 0 : index
    %0 = vector.load %arg2[%c0, %c0_0] : memref<576x64xbf16, #tpu.memory_space<vmem>>, vector<576x64xbf16>
    %c0_1 = arith.constant 0 : index
    %c0_2 = arith.constant 0 : index
    %1 = vector.load %arg3[%c0_1, %c0_2] : memref<1x64xf32, #tpu.memory_space<vmem>>, vector<1x64xf32>
    %c0_3 = arith.constant 0 : index
    %c0_4 = arith.constant 0 : index
    %2 = vector.load %arg4[%c0_3, %c0_4] : memref<1x64xf32, #tpu.memory_space<vmem>>, vector<1x64xf32>
    %c0_5 = arith.constant 0 : index
    %c0_6 = arith.constant 0 : index
    %c0_7 = arith.constant 0 : index
    %3 = vector.load %arg1[%c0_5, %c0_6, %c0_7] : memref<4x64x576xbf16, #tpu.memory_space<vmem>>, vector<1x64x576xbf16>
    %4 = vector.shape_cast %3 : vector<1x64x576xbf16> to vector<64x576xbf16>
    %cst = arith.constant dense<0.000000e+00> : vector<64x64xf32>
    %5 = tpu.matmul %4, %0, %cst {dimension_numbers = #tpu.dot_dimension_numbers<[1], [0], [0], [1], [0, 0, 1, 1], [], []>} : vector<64x576xbf16>, vector<576x64xbf16>, vector<64x64xf32> -> vector<64x64xf32>
    %6 = vector.broadcast %1 : vector<1x64xf32> to vector<64x64xf32>
    %7 = arith.mulf %5, %6 : vector<64x64xf32>
    %8 = vector.broadcast %2 : vector<1x64xf32> to vector<64x64xf32>
    %9 = arith.addf %7, %8 : vector<64x64xf32>
    %cst_8 = arith.constant 0.000000e+00 : f32
    %10 = vector.broadcast %cst_8 : f32 to vector<64x64xf32>
    %11 = arith.maximumf %9, %10 : vector<64x64xf32>
    %c1 = arith.constant 1 : index
    %c0_9 = arith.constant 0 : index
    %c0_10 = arith.constant 0 : index
    %12 = vector.load %arg1[%c1, %c0_9, %c0_10] : memref<4x64x576xbf16, #tpu.memory_space<vmem>>, vector<1x64x576xbf16>
    %13 = vector.shape_cast %12 : vector<1x64x576xbf16> to vector<64x576xbf16>
    %cst_11 = arith.constant dense<0.000000e+00> : vector<64x64xf32>
    %14 = tpu.matmul %13, %0, %cst_11 {dimension_numbers = #tpu.dot_dimension_numbers<[1], [0], [0], [1], [0, 0, 1, 1], [], []>} : vector<64x576xbf16>, vector<576x64xbf16>, vector<64x64xf32> -> vector<64x64xf32>
    %15 = vector.broadcast %1 : vector<1x64xf32> to vector<64x64xf32>
    %16 = arith.mulf %14, %15 : vector<64x64xf32>
    %17 = vector.broadcast %2 : vector<1x64xf32> to vector<64x64xf32>
    %18 = arith.addf %16, %17 : vector<64x64xf32>
    %cst_12 = arith.constant 0.000000e+00 : f32
    %19 = vector.broadcast %cst_12 : f32 to vector<64x64xf32>
    %20 = arith.maximumf %18, %19 : vector<64x64xf32>
    %21 = arith.maximumf %11, %20 : vector<64x64xf32>
    %c2 = arith.constant 2 : index
    %c0_13 = arith.constant 0 : index
    %c0_14 = arith.constant 0 : index
    %22 = vector.load %arg1[%c2, %c0_13, %c0_14] : memref<4x64x576xbf16, #tpu.memory_space<vmem>>, vector<1x64x576xbf16>
    %23 = vector.shape_cast %22 : vector<1x64x576xbf16> to vector<64x576xbf16>
    %cst_15 = arith.constant dense<0.000000e+00> : vector<64x64xf32>
    %24 = tpu.matmul %23, %0, %cst_15 {dimension_numbers = #tpu.dot_dimension_numbers<[1], [0], [0], [1], [0, 0, 1, 1], [], []>} : vector<64x576xbf16>, vector<576x64xbf16>, vector<64x64xf32> -> vector<64x64xf32>
    %25 = vector.broadcast %1 : vector<1x64xf32> to vector<64x64xf32>
    %26 = arith.mulf %24, %25 : vector<64x64xf32>
    %27 = vector.broadcast %2 : vector<1x64xf32> to vector<64x64xf32>
    %28 = arith.addf %26, %27 : vector<64x64xf32>
    %cst_16 = arith.constant 0.000000e+00 : f32
    %29 = vector.broadcast %cst_16 : f32 to vector<64x64xf32>
    %30 = arith.maximumf %28, %29 : vector<64x64xf32>
    %31 = arith.maximumf %21, %30 : vector<64x64xf32>
    %c3 = arith.constant 3 : index
    %c0_17 = arith.constant 0 : index
    %c0_18 = arith.constant 0 : index
    %32 = vector.load %arg1[%c3, %c0_17, %c0_18] : memref<4x64x576xbf16, #tpu.memory_space<vmem>>, vector<1x64x576xbf16>
    %33 = vector.shape_cast %32 : vector<1x64x576xbf16> to vector<64x576xbf16>
    %cst_19 = arith.constant dense<0.000000e+00> : vector<64x64xf32>
    %34 = tpu.matmul %33, %0, %cst_19 {dimension_numbers = #tpu.dot_dimension_numbers<[1], [0], [0], [1], [0, 0, 1, 1], [], []>} : vector<64x576xbf16>, vector<576x64xbf16>, vector<64x64xf32> -> vector<64x64xf32>
    %35 = vector.broadcast %1 : vector<1x64xf32> to vector<64x64xf32>
    %36 = arith.mulf %34, %35 : vector<64x64xf32>
    %37 = vector.broadcast %2 : vector<1x64xf32> to vector<64x64xf32>
    %38 = arith.addf %36, %37 : vector<64x64xf32>
    %cst_20 = arith.constant 0.000000e+00 : f32
    %39 = vector.broadcast %cst_20 : f32 to vector<64x64xf32>
    %40 = arith.maximumf %38, %39 : vector<64x64xf32>
    %41 = arith.maximumf %31, %40 : vector<64x64xf32>
    %42 = arith.truncf %41 : vector<64x64xf32> to vector<64x64xbf16>
    %c0_21 = arith.constant 0 : index
    %c0_22 = arith.constant 0 : index
    %43 = vector.load %arg5[%c0_21, %c0_22] : memref<64x64xbf16, #tpu.memory_space<vmem>>, vector<64x64xbf16>
    tpu.vector_store %arg5[%c0_21, %c0_22], %42 {strides = array<i32>} : memref<64x64xbf16, #tpu.memory_space<vmem>>, vector<64x64xbf16>,
    return
  }
  func.func @transform_0(%arg0: i32) -> (i32, i32, i32) {
    %c0_i32 = arith.constant 0 : i32
    %c0_i32_0 = arith.constant 0 : i32
    %c0_i32_1 = arith.constant 0 : i32
    return %c0_i32, %arg0, %c0_i32_0 : i32, i32, i32
  }
  func.func @transform_1(%arg0: i32) -> (i32, i32) {
    %c0_i32 = arith.constant 0 : i32
    %c0_i32_0 = arith.constant 0 : i32
    %c0_i32_1 = arith.constant 0 : i32
    return %c0_i32, %c0_i32_0 : i32, i32
  }
  func.func @transform_2(%arg0: i32) -> (i32, i32) {
    %c0_i32 = arith.constant 0 : i32
    %c0_i32_0 = arith.constant 0 : i32
    %c0_i32_1 = arith.constant 0 : i32
    return %c0_i32, %c0_i32_0 : i32, i32
  }
  func.func @transform_3(%arg0: i32) -> (i32, i32) {
    %c0_i32 = arith.constant 0 : i32
    %c0_i32_0 = arith.constant 0 : i32
    %c0_i32_1 = arith.constant 0 : i32
    return %c0_i32, %c0_i32_0 : i32, i32
  }
  func.func @transform_4(%arg0: i32) -> (i32, i32) {
    %c0_i32 = arith.constant 0 : i32
    %c0_i32_0 = arith.constant 0 : i32
    return %arg0, %c0_i32 : i32, i32
  }
}

module attributes {stable_mosaic.version = 11 : i64} {
  func.func @_mlp_head_kernel(%arg0: i32, %arg1: memref<8x1600xbf16, #tpu.memory_space<vmem>>, %arg2: memref<1600x128xbf16, #tpu.memory_space<vmem>>, %arg3: memref<1x128xf32, #tpu.memory_space<vmem>>, %arg4: memref<128x128xbf16, #tpu.memory_space<vmem>>, %arg5: memref<1x128xf32, #tpu.memory_space<vmem>>, %arg6: memref<128x23xbf16, #tpu.memory_space<vmem>>, %arg7: memref<1x23xf32, #tpu.memory_space<vmem>>, %arg8: memref<8x23xf32, #tpu.memory_space<vmem>>) attributes {dimension_semantics = [#tpu.dimension_semantics<parallel>], iteration_bounds = array<i64: 1>, scalar_prefetch = 0 : i64, scratch_operands = 0 : i64, tpu.core_type = #tpu.core_type<tc>, window_params = [{transform_indices = @transform_0, window_bounds = array<i64: 8, 1600>}, {pipeline_mode = #tpu.pipeline_mode<synchronous>, transform_indices = @transform_1, window_bounds = array<i64: 1600, 128>}, {pipeline_mode = #tpu.pipeline_mode<synchronous>, transform_indices = @transform_2, window_bounds = array<i64: 1, 128>}, {pipeline_mode = #tpu.pipeline_mode<synchronous>, transform_indices = @transform_3, window_bounds = array<i64: 128, 128>}, {pipeline_mode = #tpu.pipeline_mode<synchronous>, transform_indices = @transform_4, window_bounds = array<i64: 1, 128>}, {pipeline_mode = #tpu.pipeline_mode<synchronous>, transform_indices = @transform_5, window_bounds = array<i64: 128, 23>}, {pipeline_mode = #tpu.pipeline_mode<synchronous>, transform_indices = @transform_6, window_bounds = array<i64: 1, 23>}, {transform_indices = @transform_7, window_bounds = array<i64: 8, 23>}]} {
    %c0 = arith.constant 0 : index
    %c0_0 = arith.constant 0 : index
    %0 = vector.load %arg1[%c0, %c0_0] : memref<8x1600xbf16, #tpu.memory_space<vmem>>, vector<8x1600xbf16>
    %c0_1 = arith.constant 0 : index
    %c0_2 = arith.constant 0 : index
    %1 = vector.load %arg2[%c0_1, %c0_2] : memref<1600x128xbf16, #tpu.memory_space<vmem>>, vector<1600x128xbf16>
    %cst = arith.constant dense<0.000000e+00> : vector<8x128xf32>
    %2 = tpu.matmul %0, %1, %cst {dimension_numbers = #tpu.dot_dimension_numbers<[1], [0], [0], [1], [0, 0, 1, 1], [], []>} : vector<8x1600xbf16>, vector<1600x128xbf16>, vector<8x128xf32> -> vector<8x128xf32>
    %c0_3 = arith.constant 0 : index
    %c0_4 = arith.constant 0 : index
    %3 = vector.load %arg3[%c0_3, %c0_4] : memref<1x128xf32, #tpu.memory_space<vmem>>, vector<1x128xf32>
    %4 = vector.broadcast %3 : vector<1x128xf32> to vector<8x128xf32>
    %5 = arith.addf %2, %4 : vector<8x128xf32>
    %cst_5 = arith.constant 0.000000e+00 : f32
    %6 = vector.broadcast %cst_5 : f32 to vector<8x128xf32>
    %7 = arith.maximumf %5, %6 : vector<8x128xf32>
    %8 = arith.truncf %7 : vector<8x128xf32> to vector<8x128xbf16>
    %c0_6 = arith.constant 0 : index
    %c0_7 = arith.constant 0 : index
    %9 = vector.load %arg4[%c0_6, %c0_7] : memref<128x128xbf16, #tpu.memory_space<vmem>>, vector<128x128xbf16>
    %cst_8 = arith.constant dense<0.000000e+00> : vector<8x128xf32>
    %10 = tpu.matmul %8, %9, %cst_8 {dimension_numbers = #tpu.dot_dimension_numbers<[1], [0], [0], [1], [0, 0, 1, 1], [], []>} : vector<8x128xbf16>, vector<128x128xbf16>, vector<8x128xf32> -> vector<8x128xf32>
    %c0_9 = arith.constant 0 : index
    %c0_10 = arith.constant 0 : index
    %11 = vector.load %arg5[%c0_9, %c0_10] : memref<1x128xf32, #tpu.memory_space<vmem>>, vector<1x128xf32>
    %12 = vector.broadcast %11 : vector<1x128xf32> to vector<8x128xf32>
    %13 = arith.addf %10, %12 : vector<8x128xf32>
    %cst_11 = arith.constant 0.000000e+00 : f32
    %14 = vector.broadcast %cst_11 : f32 to vector<8x128xf32>
    %15 = arith.maximumf %13, %14 : vector<8x128xf32>
    %16 = arith.truncf %15 : vector<8x128xf32> to vector<8x128xbf16>
    %c0_12 = arith.constant 0 : index
    %c0_13 = arith.constant 0 : index
    %17 = vector.load %arg6[%c0_12, %c0_13] : memref<128x23xbf16, #tpu.memory_space<vmem>>, vector<128x23xbf16>
    %cst_14 = arith.constant dense<0.000000e+00> : vector<8x23xf32>
    %18 = tpu.matmul %16, %17, %cst_14 {dimension_numbers = #tpu.dot_dimension_numbers<[1], [0], [0], [1], [0, 0, 1, 1], [], []>} : vector<8x128xbf16>, vector<128x23xbf16>, vector<8x23xf32> -> vector<8x23xf32>
    %c0_15 = arith.constant 0 : index
    %c0_16 = arith.constant 0 : index
    %19 = vector.load %arg7[%c0_15, %c0_16] : memref<1x23xf32, #tpu.memory_space<vmem>>, vector<1x23xf32>
    %20 = vector.broadcast %19 : vector<1x23xf32> to vector<8x23xf32>
    %21 = arith.addf %18, %20 : vector<8x23xf32>
    %c0_17 = arith.constant 0 : index
    %c0_18 = arith.constant 0 : index
    %22 = vector.load %arg8[%c0_17, %c0_18] : memref<8x23xf32, #tpu.memory_space<vmem>>, vector<8x23xf32>
    tpu.vector_store %arg8[%c0_17, %c0_18], %21 {strides = array<i32>} : memref<8x23xf32, #tpu.memory_space<vmem>>, vector<8x23xf32>,
    return
  }
  func.func @transform_0(%arg0: i32) -> (i32, i32) {
    %c0_i32 = arith.constant 0 : i32
    %c0_i32_0 = arith.constant 0 : i32
    return %arg0, %c0_i32 : i32, i32
  }
  func.func @transform_1(%arg0: i32) -> (i32, i32) {
    %c0_i32 = arith.constant 0 : i32
    %c0_i32_0 = arith.constant 0 : i32
    %c0_i32_1 = arith.constant 0 : i32
    return %c0_i32, %c0_i32_0 : i32, i32
  }
  func.func @transform_2(%arg0: i32) -> (i32, i32) {
    %c0_i32 = arith.constant 0 : i32
    %c0_i32_0 = arith.constant 0 : i32
    %c0_i32_1 = arith.constant 0 : i32
    return %c0_i32, %c0_i32_0 : i32, i32
  }
  func.func @transform_3(%arg0: i32) -> (i32, i32) {
    %c0_i32 = arith.constant 0 : i32
    %c0_i32_0 = arith.constant 0 : i32
    %c0_i32_1 = arith.constant 0 : i32
    return %c0_i32, %c0_i32_0 : i32, i32
  }
  func.func @transform_4(%arg0: i32) -> (i32, i32) {
    %c0_i32 = arith.constant 0 : i32
    %c0_i32_0 = arith.constant 0 : i32
    %c0_i32_1 = arith.constant 0 : i32
    return %c0_i32, %c0_i32_0 : i32, i32
  }
  func.func @transform_5(%arg0: i32) -> (i32, i32) {
    %c0_i32 = arith.constant 0 : i32
    %c0_i32_0 = arith.constant 0 : i32
    %c0_i32_1 = arith.constant 0 : i32
    return %c0_i32, %c0_i32_0 : i32, i32
  }
  func.func @transform_6(%arg0: i32) -> (i32, i32) {
    %c0_i32 = arith.constant 0 : i32
    %c0_i32_0 = arith.constant 0 : i32
    %c0_i32_1 = arith.constant 0 : i32
    return %c0_i32, %c0_i32_0 : i32, i32
  }
  func.func @transform_7(%arg0: i32) -> (i32, i32) {
    %c0_i32 = arith.constant 0 : i32
    %c0_i32_0 = arith.constant 0 : i32
    return %arg0, %c0_i32 : i32, i32
  }
}

</mosaic_0001>

<llo_original>
// kernel: _lambda_.6
$region0: #{_lambda_.6}
  #allocation0 [shape = 'u32[]', space=smem, size = 0x4, offset = 0x4, fixed_abs, tag = 'smem constant byte address 0x4 - core index']
  #allocation1 [shape = 'u32[144,128]{1,0:T(1,128)}', space=vmem, size = 0x12000, scoped, tag = 'internal scratch']
  %s0 = inlined_call_operand.vmem [shape: bf16[1808,9], index: 0, kind: input, shape index: {}]
  %s1 = inlined_call_operand.vmem [shape: bf16[9,16], index: 1, kind: input, shape index: {}]
  %s2 = inlined_call_operand.vmem [shape: f32[1,16], index: 2, kind: input, shape index: {}]
  %s3 = inlined_call_operand.vmem [shape: f32[1,16], index: 3, kind: input, shape index: {}]
  %s4 = inlined_call_operand.vmem [shape: bf16[1808,16], index: 4, kind: output, shape index: {}]
  %s5 = sld [smem:[#allocation0]]
  $region26: #{_lambda_.6} parent=0
    _
  %s7 = ssub.s32 1, %s5
  %s8 = scalar_select 0, %s7, %s5
  // Predicated region
  $region2: #{_lambda_.6} parent=0 // pred_check
    _
  $region3: #{_lambda_.6} parent=0 // pred_check_branch
    %10 = sbr.rel (0) target = $region5
  $region4: #{_lambda_.6} parent=0 // pred_region
    _
  $region5: #{_lambda_.6} parent=0 // pred_fallthru
    _
  // Predicated region
  $region6: #{_lambda_.6} parent=0 // pred_check
    _
  $region7: #{_lambda_.6} parent=0 // pred_check_branch
    %12 = sbr.rel (0) target = $region9
  $region8: #{_lambda_.6} parent=0 // pred_region
    _
  $region9: #{_lambda_.6} parent=0 // pred_fallthru
    _
  // Predicated region
  $region10: #{_lambda_.6} parent=0 // pred_check
    _
  $region11: #{_lambda_.6} parent=0 // pred_check_branch
    %14 = sbr.rel (0) target = $region13
  $region12: #{_lambda_.6} parent=0 // pred_region
    _
  $region13: #{_lambda_.6} parent=0 // pred_fallthru
    _
  // Predicated region
  $region14: #{_lambda_.6} parent=0 // pred_check
    _
  $region15: #{_lambda_.6} parent=0 // pred_check_branch
    %16 = sbr.rel (0) target = $region17
  $region16: #{_lambda_.6} parent=0 // pred_region
    _
  $region17: #{_lambda_.6} parent=0 // pred_fallthru
    _
  %v18 = vld [vmem:[%s0] sm:$0xf]
  %v19 = vld [vmem:[%s0 + $0x4] sm:$0xf]
  %v20 = vld [vmem:[%s0 + $0x8] sm:$0xf]
  %v21 = vld [vmem:[%s0 + $0xc] sm:$0xf]
  %v22 = vld [vmem:[%s0 + $0x10] sm:$0xf]
  %v23 = vld [vmem:[%s0 + $0x14] sm:$0xf]
  %v24 = vld [vmem:[%s0 + $0x18] sm:$0xf]
  %v25 = vld [vmem:[%s0 + $0x1c] sm:$0xf]
  %v26 = vld [vmem:[%s0 + $0x20] sm:$0xf]
  %v27 = vld [vmem:[%s0 + $0x24] sm:$0xf]
  %v28 = vld [vmem:[%s0 + $0x28] sm:$0xf]
  %v29 = vld [vmem:[%s0 + $0x2c] sm:$0xf]
  %v30 = vld [vmem:[%s0 + $0x30] sm:$0xf]
  %v31 = vld [vmem:[%s0 + $0x34] sm:$0xf]
  %v32 = vld [vmem:[%s0 + $0x38] sm:$0xf]
  %v33 = vld [vmem:[%s0 + $0x3c] sm:$0xf]
  %v34 = vld [vmem:[%s0 + $0x40] sm:$0xf]
  %v35 = vld [vmem:[%s0 + $0x44] sm:$0xf]
  %v36 = vld [vmem:[%s0 + $0x48] sm:$0xf]
  %v37 = vld [vmem:[%s0 + $0x4c] sm:$0xf]
  %v38 = vld [vmem:[%s0 + $0x50] sm:$0xf]
  %v39 = vld [vmem:[%s0 + $0x54] sm:$0xf]
  %v40 = vld [vmem:[%s0 + $0x58] sm:$0xf]
  %v41 = vld [vmem:[%s0 + $0x5c] sm:$0xf]
  %v42 = vld [vmem:[%s0 + $0x60] sm:$0xf]
  %v43 = vld [vmem:[%s0 + $0x64] sm:$0xf]
  %v44 = vld [vmem:[%s0 + $0x68] sm:$0xf]
  %v45 = vld [vmem:[%s0 + $0x6c] sm:$0xf]
  %v46 = vld [vmem:[%s0 + $0x70] sm:$0xf]
  %v47 = vld [vmem:[%s0 + $0x74] sm:$0xf]
  %v48 = vld [vmem:[%s0 + $0x78] sm:$0xf]
  %v49 = vld [vmem:[%s0 + $0x7c] sm:$0xf]
  %v50 = vld [vmem:[%s0 + $0x80] sm:$0xf]
  %v51 = vld [vmem:[%s0 + $0x84] sm:$0xf]
  %v52 = vld [vmem:[%s0 + $0x88] sm:$0xf]
  %v53 = vld [vmem:[%s0 + $0x8c] sm:$0xf]
  %v54 = vld [vmem:[%s0 + $0x90] sm:$0xf]
  %v55 = vld [vmem:[%s0 + $0x94] sm:$0xf]
  %v56 = vld [vmem:[%s0 + $0x98] sm:$0xf]
  %v57 = vld [vmem:[%s0 + $0x9c] sm:$0xf]
  %v58 = vld [vmem:[%s0 + $0xa0] sm:$0xf]
  %v59 = vld [vmem:[%s0 + $0xa4] sm:$0xf]
  %v60 = vld [vmem:[%s0 + $0xa8] sm:$0xf]
  %v61 = vld [vmem:[%s0 + $0xac] sm:$0xf]
  %v62 = vld [vmem:[%s0 + $0xb0] sm:$0xf]
  %v63 = vld [vmem:[%s0 + $0xb4] sm:$0xf]
  %v64 = vld [vmem:[%s0 + $0xb8] sm:$0xf]
  %v65 = vld [vmem:[%s0 + $0xbc] sm:$0xf]
  %v66 = vld [vmem:[%s0 + $0xc0] sm:$0xf]
  %v67 = vld [vmem:[%s0 + $0xc4] sm:$0xf]
  %v68 = vld [vmem:[%s0 + $0xc8] sm:$0xf]
  %v69 = vld [vmem:[%s0 + $0xcc] sm:$0xf]
  %v70 = vld [vmem:[%s0 + $0xd0] sm:$0xf]
  %v71 = vld [vmem:[%s0 + $0xd4] sm:$0xf]
  %v72 = vld [vmem:[%s0 + $0xd8] sm:$0xf]
  %v73 = vld [vmem:[%s0 + $0xdc] sm:$0xf]
  %v74 = vld [vmem:[%s0 + $0xe0] sm:$0xf]
  %v75 = vld [vmem:[%s0 + $0xe4] sm:$0xf]
  %v76 = vld [vmem:[%s0 + $0xe8] sm:$0xf]
  %v77 = vld [vmem:[%s0 + $0xec] sm:$0xf]
  %v78 = vld [vmem:[%s0 + $0xf0] sm:$0xf]
  %v79 = vld [vmem:[%s0 + $0xf4] sm:$0xf]
  %v80 = vld [vmem:[%s0 + $0xf8] sm:$0xf]
  %v81 = vld [vmem:[%s0 + $0xfc] sm:$0xf]
  %v82 = vld [vmem:[%s0 + $0x100] sm:$0xf]
  %v83 = vld [vmem:[%s0 + $0x104] sm:$0xf]
  %v84 = vld [vmem:[%s0 + $0x108] sm:$0xf]
  %v85 = vld [vmem:[%s0 + $0x10c] sm:$0xf]
  %v86 = vld [vmem:[%s0 + $0x110] sm:$0xf]
  %v87 = vld [vmem:[%s0 + $0x114] sm:$0xf]
  %v88 = vld [vmem:[%s0 + $0x118] sm:$0xf]
  %v89 = vld [vmem:[%s0 + $0x11c] sm:$0xf]
  %v90 = vld [vmem:[%s0 + $0x120] sm:$0xf]
  %v91 = vld [vmem:[%s0 + $0x124] sm:$0xf]
  %v92 = vld [vmem:[%s0 + $0x128] sm:$0xf]
  %v93 = vld [vmem:[%s0 + $0x12c] sm:$0xf]
  %v94 = vld [vmem:[%s0 + $0x130] sm:$0xf]
  %v95 = vld [vmem:[%s0 + $0x134] sm:$0xf]
  %v96 = vld [vmem:[%s0 + $0x138] sm:$0xf]
  %v97 = vld [vmem:[%s0 + $0x13c] sm:$0xf]
  %v98 = vld [vmem:[%s0 + $0x140] sm:$0xf]
  %v99 = vld [vmem:[%s0 + $0x144] sm:$0xf]
  %v100 = vld [vmem:[%s0 + $0x148] sm:$0xf]
  %v101 = vld [vmem:[%s0 + $0x14c] sm:$0xf]
  %v102 = vld [vmem:[%s0 + $0x150] sm:$0xf]
  %v103 = vld [vmem:[%s0 + $0x154] sm:$0xf]
  %v104 = vld [vmem:[%s0 + $0x158] sm:$0xf]
  %v105 = vld [vmem:[%s0 + $0x15c] sm:$0xf]
  %v106 = vld [vmem:[%s0 + $0x160] sm:$0xf]
  %v107 = vld [vmem:[%s0 + $0x164] sm:$0xf]
  %v108 = vld [vmem:[%s0 + $0x168] sm:$0xf]
  %v109 = vld [vmem:[%s0 + $0x16c] sm:$0xf]
  %v110 = vld [vmem:[%s0 + $0x170] sm:$0xf]
  %v111 = vld [vmem:[%s0 + $0x174] sm:$0xf]
  %v112 = vld [vmem:[%s0 + $0x178] sm:$0xf]
  %v113 = vld [vmem:[%s0 + $0x17c] sm:$0xf]
  %v114 = vld [vmem:[%s0 + $0x180] sm:$0xf]
  %v115 = vld [vmem:[%s0 + $0x184] sm:$0xf]
  %v116 = vld [vmem:[%s0 + $0x188] sm:$0xf]
  %v117 = vld [vmem:[%s0 + $0x18c] sm:$0xf]
  %v118 = vld [vmem:[%s0 + $0x190] sm:$0xf]
  %v119 = vld [vmem:[%s0 + $0x194] sm:$0xf]
  %v120 = vld [vmem:[%s0 + $0x198] sm:$0xf]
  %v121 = vld [vmem:[%s0 + $0x19c] sm:$0xf]
  %v122 = vld [vmem:[%s0 + $0x1a0] sm:$0xf]
  %v123 = vld [vmem:[%s0 + $0x1a4] sm:$0xf]
  %v124 = vld [vmem:[%s0 + $0x1a8] sm:$0xf]
  %v125 = vld [vmem:[%s0 + $0x1ac] sm:$0xf]
  %v126 = vld [vmem:[%s0 + $0x1b0] sm:$0xf]
  %v127 = vld [vmem:[%s0 + $0x1b4] sm:$0xf]
  %v128 = vld [vmem:[%s0 + $0x1b8] sm:$0xf]
  %v129 = vld [vmem:[%s0 + $0x1bc] sm:$0xf]
  %v130 = vld [vmem:[%s0 + $0x1c0] sm:$0xf]
  %v131 = vld [vmem:[%s0 + $0x1c4] sm:$0xf]
  %v132 = vld [vmem:[%s0 + $0x1c8] sm:$0xf]
  %v133 = vld [vmem:[%s0 + $0x1cc] sm:$0xf]
  %v134 = vld [vmem:[%s0 + $0x1d0] sm:$0xf]
  %v135 = vld [vmem:[%s0 + $0x1d4] sm:$0xf]
  %v136 = vld [vmem:[%s0 + $0x1d8] sm:$0xf]
  %v137 = vld [vmem:[%s0 + $0x1dc] sm:$0xf]
  %v138 = vld [vmem:[%s0 + $0x1e0] sm:$0xf]
  %v139 = vld [vmem:[%s0 + $0x1e4] sm:$0xf]
  %v140 = vld [vmem:[%s0 + $0x1e8] sm:$0xf]
  %v141 = vld [vmem:[%s0 + $0x1ec] sm:$0xf]
  %v142 = vld [vmem:[%s0 + $0x1f0] sm:$0xf]
  %v143 = vld [vmem:[%s0 + $0x1f4] sm:$0xf]
  %v144 = vld [vmem:[%s0 + $0x1f8] sm:$0xf]
  %v145 = vld [vmem:[%s0 + $0x1fc] sm:$0xf]
  %v146 = vld [vmem:[%s0 + $0x200] sm:$0xf]
  %v147 = vld [vmem:[%s0 + $0x204] sm:$0xf]
  %v148 = vld [vmem:[%s0 + $0x208] sm:$0xf]
  %v149 = vld [vmem:[%s0 + $0x20c] sm:$0xf]
  %v150 = vld [vmem:[%s0 + $0x210] sm:$0xf]
  %v151 = vld [vmem:[%s0 + $0x214] sm:$0xf]
  %v152 = vld [vmem:[%s0 + $0x218] sm:$0xf]
  %v153 = vld [vmem:[%s0 + $0x21c] sm:$0xf]
  %v154 = vld [vmem:[%s0 + $0x220] sm:$0xf]
  %v155 = vld [vmem:[%s0 + $0x224] sm:$0xf]
  %v156 = vld [vmem:[%s0 + $0x228] sm:$0xf]
  %v157 = vld [vmem:[%s0 + $0x22c] sm:$0xf]
  %v158 = vld [vmem:[%s0 + $0x230] sm:$0xf]
  %v159 = vld [vmem:[%s0 + $0x234] sm:$0xf]
  %v160 = vld [vmem:[%s0 + $0x238] sm:$0xf]
  %v161 = vld [vmem:[%s0 + $0x23c] sm:$0xf]
  %v162 = vld [vmem:[%s0 + $0x240] sm:$0xf]
  %v163 = vld [vmem:[%s0 + $0x244] sm:$0xf]
  %v164 = vld [vmem:[%s0 + $0x248] sm:$0xf]
  %v165 = vld [vmem:[%s0 + $0x24c] sm:$0xf]
  %v166 = vld [vmem:[%s0 + $0x250] sm:$0xf]
  %v167 = vld [vmem:[%s0 + $0x254] sm:$0xf]
  %v168 = vld [vmem:[%s0 + $0x258] sm:$0xf]
  %v169 = vld [vmem:[%s0 + $0x25c] sm:$0xf]
  %v170 = vld [vmem:[%s0 + $0x260] sm:$0xf]
  %v171 = vld [vmem:[%s0 + $0x264] sm:$0xf]
  %v172 = vld [vmem:[%s0 + $0x268] sm:$0xf]
  %v173 = vld [vmem:[%s0 + $0x26c] sm:$0xf]
  %v174 = vld [vmem:[%s0 + $0x270] sm:$0xf]
  %v175 = vld [vmem:[%s0 + $0x274] sm:$0xf]
  %v176 = vld [vmem:[%s0 + $0x278] sm:$0xf]
  %v177 = vld [vmem:[%s0 + $0x27c] sm:$0xf]
  %v178 = vld [vmem:[%s0 + $0x280] sm:$0xf]
  %v179 = vld [vmem:[%s0 + $0x284] sm:$0xf]
  %v180 = vld [vmem:[%s0 + $0x288] sm:$0xf]
  %v181 = vld [vmem:[%s0 + $0x28c] sm:$0xf]
  %v182 = vld [vmem:[%s0 + $0x290] sm:$0xf]
  %v183 = vld [vmem:[%s0 + $0x294] sm:$0xf]
  %v184 = vld [vmem:[%s0 + $0x298] sm:$0xf]
  %v185 = vld [vmem:[%s0 + $0x29c] sm:$0xf]
  %v186 = vld [vmem:[%s0 + $0x2a0] sm:$0xf]
  %v187 = vld [vmem:[%s0 + $0x2a4] sm:$0xf]
  %v188 = vld [vmem:[%s0 + $0x2a8] sm:$0xf]
  %v189 = vld [vmem:[%s0 + $0x2ac] sm:$0xf]
  %v190 = vld [vmem:[%s0 + $0x2b0] sm:$0xf]
  %v191 = vld [vmem:[%s0 + $0x2b4] sm:$0xf]
  %v192 = vld [vmem:[%s0 + $0x2b8] sm:$0xf]
  %v193 = vld [vmem:[%s0 + $0x2bc] sm:$0xf]
  %v194 = vld [vmem:[%s0 + $0x2c0] sm:$0xf]
  %v195 = vld [vmem:[%s0 + $0x2c4] sm:$0xf]
  %v196 = vld [vmem:[%s0 + $0x2c8] sm:$0xf]
  %v197 = vld [vmem:[%s0 + $0x2cc] sm:$0xf]
  %v198 = vld [vmem:[%s0 + $0x2d0] sm:$0xf]
  %v199 = vld [vmem:[%s0 + $0x2d4] sm:$0xf]
  %v200 = vld [vmem:[%s0 + $0x2d8] sm:$0xf]
  %v201 = vld [vmem:[%s0 + $0x2dc] sm:$0xf]
  %v202 = vld [vmem:[%s0 + $0x2e0] sm:$0xf]
  %v203 = vld [vmem:[%s0 + $0x2e4] sm:$0xf]
  %v204 = vld [vmem:[%s0 + $0x2e8] sm:$0xf]
  %v205 = vld [vmem:[%s0 + $0x2ec] sm:$0xf]
  %v206 = vld [vmem:[%s0 + $0x2f0] sm:$0xf]
  %v207 = vld [vmem:[%s0 + $0x2f4] sm:$0xf]
  %v208 = vld [vmem:[%s0 + $0x2f8] sm:$0xf]
  %v209 = vld [vmem:[%s0 + $0x2fc] sm:$0xf]
  %v210 = vld [vmem:[%s0 + $0x300] sm:$0xf]
  %v211 = vld [vmem:[%s0 + $0x304] sm:$0xf]
  %v212 = vld [vmem:[%s0 + $0x308] sm:$0xf]
  %v213 = vld [vmem:[%s0 + $0x30c] sm:$0xf]
  %v214 = vld [vmem:[%s0 + $0x310] sm:$0xf]
  %v215 = vld [vmem:[%s0 + $0x314] sm:$0xf]
  %v216 = vld [vmem:[%s0 + $0x318] sm:$0xf]
  %v217 = vld [vmem:[%s0 + $0x31c] sm:$0xf]
  %v218 = vld [vmem:[%s0 + $0x320] sm:$0xf]
  %v219 = vld [vmem:[%s0 + $0x324] sm:$0xf]
  %v220 = vld [vmem:[%s0 + $0x328] sm:$0xf]
  %v221 = vld [vmem:[%s0 + $0x32c] sm:$0xf]
  %v222 = vld [vmem:[%s0 + $0x330] sm:$0xf]
  %v223 = vld [vmem:[%s0 + $0x334] sm:$0xf]
  %v224 = vld [vmem:[%s0 + $0x338] sm:$0xf]
  %v225 = vld [vmem:[%s0 + $0x33c] sm:$0xf]
  %v226 = vld [vmem:[%s0 + $0x340] sm:$0xf]
  %v227 = vld [vmem:[%s0 + $0x344] sm:$0xf]
  %v228 = vld [vmem:[%s0 + $0x348] sm:$0xf]
  %v229 = vld [vmem:[%s0 + $0x34c] sm:$0xf]
  %v230 = vld [vmem:[%s0 + $0x350] sm:$0xf]
  %v231 = vld [vmem:[%s0 + $0x354] sm:$0xf]
  %v232 = vld [vmem:[%s0 + $0x358] sm:$0xf]
  %v233 = vld [vmem:[%s0 + $0x35c] sm:$0xf]
  %v234 = vld [vmem:[%s0 + $0x360] sm:$0xf]
  %v235 = vld [vmem:[%s0 + $0x364] sm:$0xf]
  %v236 = vld [vmem:[%s0 + $0x368] sm:$0xf]
  %v237 = vld [vmem:[%s0 + $0x36c] sm:$0xf]
  %v238 = vld [vmem:[%s0 + $0x370] sm:$0xf]
  %v239 = vld [vmem:[%s0 + $0x374] sm:$0xf]
  %v240 = vld [vmem:[%s0 + $0x378] sm:$0xf]
  %v241 = vld [vmem:[%s0 + $0x37c] sm:$0xf]
  %v242 = vld [vmem:[%s0 + $0x380] sm:$0xf]
  %v243 = vld [vmem:[%s0 + $0x384] sm:$0xf]
  %v244 = vld [vmem:[%s1] sm:$0xf]
  %v245 = vld [vmem:[%s1 + $0x4] sm:$0x1]
  %v472 = vunpack.c.l.b16 %v18
  %v473 = vunpack.c.l.b16 %v19
  %v474 = vunpack.c.l.b16 %v20
  %v475 = vunpack.c.l.b16 %v21
  %v476 = vunpack.c.l.b16 %v22
  %v477 = vunpack.c.l.b16 %v23
  %v478 = vunpack.c.l.b16 %v24
  %v479 = vunpack.c.l.b16 %v25
  %v480 = vunpack.c.l.b16 %v26
  %v481 = vunpack.c.l.b16 %v27
  %v482 = vunpack.c.l.b16 %v28
  %v483 = vunpack.c.l.b16 %v29
  %v484 = vunpack.c.l.b16 %v30
  %v485 = vunpack.c.l.b16 %v31
  %v486 = vunpack.c.l.b16 %v32
  %v487 = vunpack.c.l.b16 %v33
  %v488 = vunpack.c.l.b16 %v34
  %v489 = vunpack.c.l.b16 %v35
  %v490 = vunpack.c.l.b16 %v36
  %v491 = vunpack.c.l.b16 %v37
  %v492 = vunpack.c.l.b16 %v38
  %v493 = vunpack.c.l.b16 %v39
  %v494 = vunpack.c.l.b16 %v40
  %v495 = vunpack.c.l.b16 %v41
  %v496 = vunpack.c.l.b16 %v42
  %v497 = vunpack.c.l.b16 %v43
  %v498 = vunpack.c.l.b16 %v44
  %v499 = vunpack.c.l.b16 %v45
  %v500 = vunpack.c.l.b16 %v46
  %v501 = vunpack.c.l.b16 %v47
  %v502 = vunpack.c.l.b16 %v48
  %v503 = vunpack.c.l.b16 %v49
  %v504 = vunpack.c.l.b16 %v50
  %v505 = vunpack.c.l.b16 %v51
  %v506 = vunpack.c.l.b16 %v52
  %v507 = vunpack.c.l.b16 %v53
  %v508 = vunpack.c.l.b16 %v54
  %v509 = vunpack.c.l.b16 %v55
  %v510 = vunpack.c.l.b16 %v56
  %v511 = vunpack.c.l.b16 %v57
  %v512 = vunpack.c.l.b16 %v58
  %v513 = vunpack.c.l.b16 %v59
  %v514 = vunpack.c.l.b16 %v60
  %v515 = vunpack.c.l.b16 %v61
  %v516 = vunpack.c.l.b16 %v62
  %v517 = vunpack.c.l.b16 %v63
  %v518 = vunpack.c.l.b16 %v64
  %v519 = vunpack.c.l.b16 %v65
  %v520 = vunpack.c.l.b16 %v66
  %v521 = vunpack.c.l.b16 %v67
  %v522 = vunpack.c.l.b16 %v68
  %v523 = vunpack.c.l.b16 %v69
  %v524 = vunpack.c.l.b16 %v70
  %v525 = vunpack.c.l.b16 %v71
  %v526 = vunpack.c.l.b16 %v72
  %v527 = vunpack.c.l.b16 %v73
  %v528 = vunpack.c.l.b16 %v74
  %v529 = vunpack.c.l.b16 %v75
  %v530 = vunpack.c.l.b16 %v76
  %v531 = vunpack.c.l.b16 %v77
  %v532 = vunpack.c.l.b16 %v78
  %v533 = vunpack.c.l.b16 %v79
  %v534 = vunpack.c.l.b16 %v80
  %v535 = vunpack.c.l.b16 %v81
  %v536 = vunpack.c.l.b16 %v82
  %v537 = vunpack.c.l.b16 %v83
  %v538 = vunpack.c.l.b16 %v84
  %v539 = vunpack.c.l.b16 %v85
  %v540 = vunpack.c.l.b16 %v86
  %v541 = vunpack.c.l.b16 %v87
  %v542 = vunpack.c.l.b16 %v88
  %v543 = vunpack.c.l.b16 %v89
  %v544 = vunpack.c.l.b16 %v90
  %v545 = vunpack.c.l.b16 %v91
  %v546 = vunpack.c.l.b16 %v92
  %v547 = vunpack.c.l.b16 %v93
  %v548 = vunpack.c.l.b16 %v94
  %v549 = vunpack.c.l.b16 %v95
  %v550 = vunpack.c.l.b16 %v96
  %v551 = vunpack.c.l.b16 %v97
  %v552 = vunpack.c.l.b16 %v98
  %v553 = vunpack.c.l.b16 %v99
  %v554 = vunpack.c.l.b16 %v100
  %v555 = vunpack.c.l.b16 %v101
  %v556 = vunpack.c.l.b16 %v102
  %v557 = vunpack.c.l.b16 %v103
  %v558 = vunpack.c.l.b16 %v104
  %v559 = vunpack.c.l.b16 %v105
  %v560 = vunpack.c.l.b16 %v106
  %v561 = vunpack.c.l.b16 %v107
  %v562 = vunpack.c.l.b16 %v108
  %v563 = vunpack.c.l.b16 %v109
  %v564 = vunpack.c.l.b16 %v110
  %v565 = vunpack.c.l.b16 %v111
  %v566 = vunpack.c.l.b16 %v112
  %v567 = vunpack.c.l.b16 %v113
  %v568 = vunpack.c.l.b16 %v114
  %v569 = vunpack.c.l.b16 %v115
  %v570 = vunpack.c.l.b16 %v116
  %v571 = vunpack.c.l.b16 %v117
  %v572 = vunpack.c.l.b16 %v118
  %v573 = vunpack.c.l.b16 %v119
  %v574 = vunpack.c.l.b16 %v120
  %v575 = vunpack.c.l.b16 %v121
  %v576 = vunpack.c.l.b16 %v122
  %v577 = vunpack.c.l.b16 %v123
  %v578 = vunpack.c.l.b16 %v124
  %v579 = vunpack.c.l.b16 %v125
  %v580 = vunpack.c.l.b16 %v126
  %v581 = vunpack.c.l.b16 %v127
  %v582 = vunpack.c.l.b16 %v128
  %v583 = vunpack.c.l.b16 %v129
  %v584 = vunpack.c.l.b16 %v130
  %v585 = vunpack.c.l.b16 %v131
  %v586 = vunpack.c.l.b16 %v132
  %v587 = vunpack.c.l.b16 %v133
  %v588 = vunpack.c.l.b16 %v134
  %v589 = vunpack.c.l.b16 %v135
  %v590 = vunpack.c.l.b16 %v136
  %v591 = vunpack.c.l.b16 %v137
  %v592 = vunpack.c.l.b16 %v138
  %v593 = vunpack.c.l.b16 %v139
  %v594 = vunpack.c.l.b16 %v140
  %v595 = vunpack.c.l.b16 %v141
  %v596 = vunpack.c.l.b16 %v142
  %v597 = vunpack.c.l.b16 %v143
  %v598 = vunpack.c.l.b16 %v144
  %v599 = vunpack.c.l.b16 %v145
  %v600 = vunpack.c.l.b16 %v146
  %v601 = vunpack.c.l.b16 %v147
  %v602 = vunpack.c.l.b16 %v148
  %v603 = vunpack.c.l.b16 %v149
  %v604 = vunpack.c.l.b16 %v150
  %v605 = vunpack.c.l.b16 %v151
  %v606 = vunpack.c.l.b16 %v152
  %v607 = vunpack.c.l.b16 %v153
  %v608 = vunpack.c.l.b16 %v154
  %v609 = vunpack.c.l.b16 %v155
  %v610 = vunpack.c.l.b16 %v156
  %v611 = vunpack.c.l.b16 %v157
  %v612 = vunpack.c.l.b16 %v158
  %v613 = vunpack.c.l.b16 %v159
  %v614 = vunpack.c.l.b16 %v160
  %v615 = vunpack.c.l.b16 %v161
  %v616 = vunpack.c.l.b16 %v162
  %v617 = vunpack.c.l.b16 %v163
  %v618 = vunpack.c.l.b16 %v164
  %v619 = vunpack.c.l.b16 %v165
  %v620 = vunpack.c.l.b16 %v166
  %v621 = vunpack.c.l.b16 %v167
  %v622 = vunpack.c.l.b16 %v168
  %v623 = vunpack.c.l.b16 %v169
  %v624 = vunpack.c.l.b16 %v170
  %v625 = vunpack.c.l.b16 %v171
  %v626 = vunpack.c.l.b16 %v172
  %v627 = vunpack.c.l.b16 %v173
  %v628 = vunpack.c.l.b16 %v174
  %v629 = vunpack.c.l.b16 %v175
  %v630 = vunpack.c.l.b16 %v176
  %v631 = vunpack.c.l.b16 %v177
  %v632 = vunpack.c.l.b16 %v178
  %v633 = vunpack.c.l.b16 %v179
  %v634 = vunpack.c.l.b16 %v180
  %v635 = vunpack.c.l.b16 %v181
  %v636 = vunpack.c.l.b16 %v182
  %v637 = vunpack.c.l.b16 %v183
  %v638 = vunpack.c.l.b16 %v184
  %v639 = vunpack.c.l.b16 %v185
  %v640 = vunpack.c.l.b16 %v186
  %v641 = vunpack.c.l.b16 %v187
  %v642 = vunpack.c.l.b16 %v188
  %v643 = vunpack.c.l.b16 %v189
  %v644 = vunpack.c.l.b16 %v190
  %v645 = vunpack.c.l.b16 %v191
  %v646 = vunpack.c.l.b16 %v192
  %v647 = vunpack.c.l.b16 %v193
  %v648 = vunpack.c.l.b16 %v194
  %v649 = vunpack.c.l.b16 %v195
  %v650 = vunpack.c.l.b16 %v196
  %v651 = vunpack.c.l.b16 %v197
  %v652 = vunpack.c.l.b16 %v198
  %v653 = vunpack.c.l.b16 %v199
  %v654 = vunpack.c.l.b16 %v200
  %v655 = vunpack.c.l.b16 %v201
  %v656 = vunpack.c.l.b16 %v202
  %v657 = vunpack.c.l.b16 %v203
  %v658 = vunpack.c.l.b16 %v204
  %v659 = vunpack.c.l.b16 %v205
  %v660 = vunpack.c.l.b16 %v206
  %v661 = vunpack.c.l.b16 %v207
  %v662 = vunpack.c.l.b16 %v208
  %v663 = vunpack.c.l.b16 %v209
  %v664 = vunpack.c.l.b16 %v210
  %v665 = vunpack.c.l.b16 %v211
  %v666 = vunpack.c.l.b16 %v212
  %v667 = vunpack.c.l.b16 %v213
  %v668 = vunpack.c.l.b16 %v214
  %v669 = vunpack.c.l.b16 %v215
  %v670 = vunpack.c.l.b16 %v216
  %v671 = vunpack.c.l.b16 %v217
  %v672 = vunpack.c.l.b16 %v218
  %v673 = vunpack.c.l.b16 %v219
  %v674 = vunpack.c.l.b16 %v220
  %v675 = vunpack.c.l.b16 %v221
  %v676 = vunpack.c.l.b16 %v222
  %v677 = vunpack.c.l.b16 %v223
  %v678 = vunpack.c.l.b16 %v224
  %v679 = vunpack.c.l.b16 %v225
  %v680 = vunpack.c.l.b16 %v226
  %v681 = vunpack.c.l.b16 %v227
  %v682 = vunpack.c.l.b16 %v228
  %v683 = vunpack.c.l.b16 %v229
  %v684 = vunpack.c.l.b16 %v230
  %v685 = vunpack.c.l.b16 %v231
  %v686 = vunpack.c.l.b16 %v232
  %v687 = vunpack.c.l.b16 %v233
  %v688 = vunpack.c.l.b16 %v234
  %v689 = vunpack.c.l.b16 %v235
  %v690 = vunpack.c.l.b16 %v236
  %v691 = vunpack.c.l.b16 %v237
  %v692 = vunpack.c.l.b16 %v238
  %v693 = vunpack.c.l.b16 %v239
  %v694 = vunpack.c.l.b16 %v240
  %v695 = vunpack.c.l.b16 %v241
  %v696 = vunpack.c.l.b16 %v242
  %v697 = vunpack.c.l.b16 %v243
  %v698 = vpack.c.b16 %v473, %v472
  %v699 = vpack.c.b16 %v475, %v474
  %v700 = vpack.c.b16 %v477, %v476
  %v701 = vpack.c.b16 %v479, %v478
  %v702 = vpack.c.b16 %v481, %v480
  %v703 = vpack.c.b16 %v483, %v482
  %v704 = vpack.c.b16 %v485, %v484
  %v705 = vpack.c.b16 %v487, %v486
  %v706 = vpack.c.b16 %v489, %v488
  %v707 = vpack.c.b16 %v491, %v490
  %v708 = vpack.c.b16 %v493, %v492
  %v709 = vpack.c.b16 %v495, %v494
  %v710 = vpack.c.b16 %v497, %v496
  %v711 = vpack.c.b16 %v499, %v498
  %v712 = vpack.c.b16 %v501, %v500
  %v713 = vpack.c.b16 %v503, %v502
  %v714 = vpack.c.b16 %v505, %v504
  %v715 = vpack.c.b16 %v507, %v506
  %v716 = vpack.c.b16 %v509, %v508
  %v717 = vpack.c.b16 %v511, %v510
  %v718 = vpack.c.b16 %v513, %v512
  %v719 = vpack.c.b16 %v515, %v514
  %v720 = vpack.c.b16 %v517, %v516
  %v721 = vpack.c.b16 %v519, %v518
  %v722 = vpack.c.b16 %v521, %v520
  %v723 = vpack.c.b16 %v523, %v522
  %v724 = vpack.c.b16 %v525, %v524
  %v725 = vpack.c.b16 %v527, %v526
  %v726 = vpack.c.b16 %v529, %v528
  %v727 = vpack.c.b16 %v531, %v530
  %v728 = vpack.c.b16 %v533, %v532
  %v729 = vpack.c.b16 %v535, %v534
  %v730 = vpack.c.b16 %v537, %v536
  %v731 = vpack.c.b16 %v539, %v538
  %v732 = vpack.c.b16 %v541, %v540
  %v733 = vpack.c.b16 %v543, %v542
  %v734 = vpack.c.b16 %v545, %v544
  %v735 = vpack.c.b16 %v547, %v546
  %v736 = vpack.c.b16 %v549, %v548
  %v737 = vpack.c.b16 %v551, %v550
  %v738 = vpack.c.b16 %v553, %v552
  %v739 = vpack.c.b16 %v555, %v554
  %v740 = vpack.c.b16 %v557, %v556
  %v741 = vpack.c.b16 %v559, %v558
  %v742 = vpack.c.b16 %v561, %v560
  %v743 = vpack.c.b16 %v563, %v562
  %v744 = vpack.c.b16 %v565, %v564
  %v745 = vpack.c.b16 %v567, %v566
  %v746 = vpack.c.b16 %v569, %v568
  %v747 = vpack.c.b16 %v571, %v570
  %v748 = vpack.c.b16 %v573, %v572
  %v749 = vpack.c.b16 %v575, %v574
  %v750 = vpack.c.b16 %v577, %v576
  %v751 = vpack.c.b16 %v579, %v578
  %v752 = vpack.c.b16 %v581, %v580
  %v753 = vpack.c.b16 %v583, %v582
  %v754 = vpack.c.b16 %v585, %v584
  %v755 = vpack.c.b16 %v587, %v586
  %v756 = vpack.c.b16 %v589, %v588
  %v757 = vpack.c.b16 %v591, %v590
  %v758 = vpack.c.b16 %v593, %v592
  %v759 = vpack.c.b16 %v595, %v594
  %v760 = vpack.c.b16 %v597, %v596
  %v761 = vpack.c.b16 %v599, %v598
  %v762 = vpack.c.b16 %v601, %v600
  %v763 = vpack.c.b16 %v603, %v602
  %v764 = vpack.c.b16 %v605, %v604
  %v765 = vpack.c.b16 %v607, %v606
  %v766 = vpack.c.b16 %v609, %v608
  %v767 = vpack.c.b16 %v611, %v610
  %v768 = vpack.c.b16 %v613, %v612
  %v769 = vpack.c.b16 %v615, %v614
  %v770 = vpack.c.b16 %v617, %v616
  %v771 = vpack.c.b16 %v619, %v618
  %v772 = vpack.c.b16 %v621, %v620
  %v773 = vpack.c.b16 %v623, %v622
  %v774 = vpack.c.b16 %v625, %v624
  %v775 = vpack.c.b16 %v627, %v626
  %v776 = vpack.c.b16 %v629, %v628
  %v777 = vpack.c.b16 %v631, %v630
  %v778 = vpack.c.b16 %v633, %v632
  %v779 = vpack.c.b16 %v635, %v634
  %v780 = vpack.c.b16 %v637, %v636
  %v781 = vpack.c.b16 %v639, %v638
  %v782 = vpack.c.b16 %v641, %v640
  %v783 = vpack.c.b16 %v643, %v642
  %v784 = vpack.c.b16 %v645, %v644
  %v785 = vpack.c.b16 %v647, %v646
  %v786 = vpack.c.b16 %v649, %v648
  %v787 = vpack.c.b16 %v651, %v650
  %v788 = vpack.c.b16 %v653, %v652
  %v789 = vpack.c.b16 %v655, %v654
  %v790 = vpack.c.b16 %v657, %v656
  %v791 = vpack.c.b16 %v659, %v658
  %v792 = vpack.c.b16 %v661, %v660
  %v793 = vpack.c.b16 %v663, %v662
  %v794 = vpack.c.b16 %v665, %v664
  %v795 = vpack.c.b16 %v667, %v666
  %v796 = vpack.c.b16 %v669, %v668
  %v797 = vpack.c.b16 %v671, %v670
  %v798 = vpack.c.b16 %v673, %v672
  %v799 = vpack.c.b16 %v675, %v674
  %v800 = vpack.c.b16 %v677, %v676
  %v801 = vpack.c.b16 %v679, %v678
  %v802 = vpack.c.b16 %v681, %v680
  %v803 = vpack.c.b16 %v683, %v682
  %v804 = vpack.c.b16 %v685, %v684
  %v805 = vpack.c.b16 %v687, %v686
  %v806 = vpack.c.b16 %v689, %v688
  %v807 = vpack.c.b16 %v691, %v690
  %v808 = vpack.c.b16 %v693, %v692
  %v809 = vpack.c.b16 %v695, %v694
  %v810 = vpack.c.b16 %v697, %v696
  %v813 = vunpack.c.l.b16 %v244
  %v814 = vunpack.c.l.b16 %v245
  %v815 = vpack.c.b16 %v814, %v813
  %vm816 = vcmask 72704
  %v818 = vsel %vm816, %v698, 0
  %v821 = vsel %vm816, %v699, 0
  %v824 = vsel %vm816, %v700, 0
  %v827 = vsel %vm816, %v701, 0
  %v830 = vsel %vm816, %v702, 0
  %v833 = vsel %vm816, %v703, 0
  %v836 = vsel %vm816, %v704, 0
  %v839 = vsel %vm816, %v705, 0
  %v842 = vsel %vm816, %v706, 0
  %v845 = vsel %vm816, %v707, 0
  %v848 = vsel %vm816, %v708, 0
  %v851 = vsel %vm816, %v709, 0
  %v854 = vsel %vm816, %v710, 0
  %v857 = vsel %vm816, %v711, 0
  %v860 = vsel %vm816, %v712, 0
  %v863 = vsel %vm816, %v713, 0
  %v866 = vsel %vm816, %v714, 0
  %v869 = vsel %vm816, %v715, 0
  %v872 = vsel %vm816, %v716, 0
  %v875 = vsel %vm816, %v717, 0
  %v878 = vsel %vm816, %v718, 0
  %v881 = vsel %vm816, %v719, 0
  %v884 = vsel %vm816, %v720, 0
  %v887 = vsel %vm816, %v721, 0
  %v890 = vsel %vm816, %v722, 0
  %v893 = vsel %vm816, %v723, 0
  %v896 = vsel %vm816, %v724, 0
  %v899 = vsel %vm816, %v725, 0
  %v902 = vsel %vm816, %v726, 0
  %v905 = vsel %vm816, %v727, 0
  %v908 = vsel %vm816, %v728, 0
  %v911 = vsel %vm816, %v729, 0
  %v914 = vsel %vm816, %v730, 0
  %v917 = vsel %vm816, %v731, 0
  %v920 = vsel %vm816, %v732, 0
  %v923 = vsel %vm816, %v733, 0
  %v926 = vsel %vm816, %v734, 0
  %v929 = vsel %vm816, %v735, 0
  %v932 = vsel %vm816, %v736, 0
  %v935 = vsel %vm816, %v737, 0
  %v938 = vsel %vm816, %v738, 0
  %v941 = vsel %vm816, %v739, 0
  %v944 = vsel %vm816, %v740, 0
  %v947 = vsel %vm816, %v741, 0
  %v950 = vsel %vm816, %v742, 0
  %v953 = vsel %vm816, %v743, 0
  %v956 = vsel %vm816, %v744, 0
  %v959 = vsel %vm816, %v745, 0
  %v962 = vsel %vm816, %v746, 0
  %v965 = vsel %vm816, %v747, 0
  %v968 = vsel %vm816, %v748, 0
  %v971 = vsel %vm816, %v749, 0
  %v974 = vsel %vm816, %v750, 0
  %v977 = vsel %vm816, %v751, 0
  %v980 = vsel %vm816, %v752, 0
  %v983 = vsel %vm816, %v753, 0
  %v986 = vsel %vm816, %v754, 0
  %v989 = vsel %vm816, %v755, 0
  %v992 = vsel %vm816, %v756, 0
  %v995 = vsel %vm816, %v757, 0
  %v998 = vsel %vm816, %v758, 0
  %v1001 = vsel %vm816, %v759, 0
  %v1004 = vsel %vm816, %v760, 0
  %v1007 = vsel %vm816, %v761, 0
  %v1010 = vsel %vm816, %v762, 0
  %v1013 = vsel %vm816, %v763, 0
  %v1016 = vsel %vm816, %v764, 0
  %v1019 = vsel %vm816, %v765, 0
  %v1022 = vsel %vm816, %v766, 0
  %v1025 = vsel %vm816, %v767, 0
  %v1028 = vsel %vm816, %v768, 0
  %v1031 = vsel %vm816, %v769, 0
  %v1034 = vsel %vm816, %v770, 0
  %v1037 = vsel %vm816, %v771, 0
  %v1040 = vsel %vm816, %v772, 0
  %v1043 = vsel %vm816, %v773, 0
  %v1046 = vsel %vm816, %v774, 0
  %v1049 = vsel %vm816, %v775, 0
  %v1052 = vsel %vm816, %v776, 0
  %v1055 = vsel %vm816, %v777, 0
  %v1058 = vsel %vm816, %v778, 0
  %v1061 = vsel %vm816, %v779, 0
  %v1064 = vsel %vm816, %v780, 0
  %v1067 = vsel %vm816, %v781, 0
  %v1070 = vsel %vm816, %v782, 0
  %v1073 = vsel %vm816, %v783, 0
  %v1076 = vsel %vm816, %v784, 0
  %v1079 = vsel %vm816, %v785, 0
  %v1082 = vsel %vm816, %v786, 0
  %v1085 = vsel %vm816, %v787, 0
  %v1088 = vsel %vm816, %v788, 0
  %v1091 = vsel %vm816, %v789, 0
  %v1094 = vsel %vm816, %v790, 0
  %v1097 = vsel %vm816, %v791, 0
  %v1100 = vsel %vm816, %v792, 0
  %v1103 = vsel %vm816, %v793, 0
  %v1106 = vsel %vm816, %v794, 0
  %v1109 = vsel %vm816, %v795, 0
  %v1112 = vsel %vm816, %v796, 0
  %v1115 = vsel %vm816, %v797, 0
  %v1118 = vsel %vm816, %v798, 0
  %v1121 = vsel %vm816, %v799, 0
  %v1124 = vsel %vm816, %v800, 0
  %v1127 = vsel %vm816, %v801, 0
  %v1130 = vsel %vm816, %v802, 0
  %v1133 = vsel %vm816, %v803, 0
  %v1136 = vsel %vm816, %v804, 0
  %v1139 = vsel %vm816, %v805, 0
  %v1142 = vsel %vm816, %v806, 0
  %v1145 = vsel %vm816, %v807, 0
  %v1148 = vsel %vm816, %v808, 0
  %v1151 = vsel %vm816, %v809, 0
  %v1154 = vsel %vm816, %v810, 0
  %vm1156 = vcmask 1043456
  %vm1157 = vcmask 1044480
  %v1158 = vsel %vm1156, 4294967295, 65535
  %v1159 = vsel %vm1157, %v1158, 0
  %v1161 = vand.u32 %v815, %v1159
  %1163 = vmatprep.subr.bf16.mxu0 0
  %1164 = vmatpush1.bf16.msra.mxu0 %v1161
  %1165 = vmatprep.subr.bf16.mxu0 0
  %1166 = vmatpush1.bf16.msra.mxu0 0
  %1167 = vmatprep.subr.bf16.mxu0 0
  %1168 = vmatpush1.bf16.msra.mxu0 0
  %1169 = vmatprep.subr.bf16.mxu0 0
  %1170 = vmatpush1.bf16.msra.mxu0 0
  %1171 = vmatprep.subr.bf16.mxu0 0
  %1172 = vmatpush1.bf16.msra.mxu0 0
  %1173 = vmatprep.subr.bf16.mxu0 0
  %1174 = vmatpush1.bf16.msra.mxu0 0
  %1175 = vmatprep.subr.bf16.mxu0 0
  %1176 = vmatpush1.bf16.msra.mxu0 0
  %1177 = vmatprep.subr.bf16.mxu0 0
  %1178 = vmatpush1.bf16.msra.mxu0 0
  %1179 = vmatprep.subr.bf16.mxu0 0
  %1180 = vmatpush1.bf16.msra.mxu0 0
  %1181 = vmatprep.subr.bf16.mxu0 0
  %1182 = vmatpush1.bf16.msra.mxu0 0
  %1183 = vmatprep.subr.bf16.mxu0 0
  %1184 = vmatpush1.bf16.msra.mxu0 0
  %1185 = vmatprep.subr.bf16.mxu0 0
  %1186 = vmatpush1.bf16.msra.mxu0 0
  %1187 = vmatprep.subr.bf16.mxu0 0
  %1188 = vmatpush1.bf16.msra.mxu0 0
  %1189 = vmatprep.subr.bf16.mxu0 0
  %1190 = vmatpush1.bf16.msra.mxu0 0
  %1191 = vmatprep.subr.bf16.mxu0 0
  %1192 = vmatpush1.bf16.msra.mxu0 0
  %1193 = vmatprep.subr.bf16.mxu0 0
  %1194 = vmatpush1.bf16.msra.mxu0 0
  %1195 = vmatprep.mubr.bf16.mxu0 0
  %1196 = vmatmul.mubr.bf16.gmra.mrb[0].mxu0 %v818
  %v1197 = vpop.f32.mrb[0].mxu0
  %v1198 = vadd.f32 0.0, %v1197
  %v1199 = vpop.f32.mrb[0].mxu0
  %v1200 = vpop.f32.mrb[0].mxu0
  %v1201 = vadd.f32 0.0, %v1200
  %v1202 = vpop.f32.mrb[0].mxu0
  %1203 = vmatprep.mubr.bf16.mxu0 0
  %1204 = vmatmul.mubr.bf16.gmra.mrb[0].mxu0 %v821
  %v1205 = vpop.f32.mrb[0].mxu0
  %v1206 = vadd.f32 0.0, %v1205
  %v1207 = vpop.f32.mrb[0].mxu0
  %v1208 = vpop.f32.mrb[0].mxu0
  %v1209 = vadd.f32 0.0, %v1208
  %v1210 = vpop.f32.mrb[0].mxu0
  %1211 = vmatprep.mubr.bf16.mxu0 0
  %1212 = vmatmul.mubr.bf16.gmra.mrb[0].mxu0 %v824
  %v1213 = vpop.f32.mrb[0].mxu0
  %v1214 = vadd.f32 0.0, %v1213
  %v1215 = vpop.f32.mrb[0].mxu0
  %v1216 = vpop.f32.mrb[0].mxu0
  %v1217 = vadd.f32 0.0, %v1216
  %v1218 = vpop.f32.mrb[0].mxu0
  %1219 = vmatprep.mubr.bf16.mxu0 0
  %1220 = vmatmul.mubr.bf16.gmra.mrb[0].mxu0 %v827
  %v1221 = vpop.f32.mrb[0].mxu0
  %v1222 = vadd.f32 0.0, %v1221
  %v1223 = vpop.f32.mrb[0].mxu0
  %v1224 = vpop.f32.mrb[0].mxu0
  %v1225 = vadd.f32 0.0, %v1224
  %v1226 = vpop.f32.mrb[0].mxu0
  %1227 = vmatprep.mubr.bf16.mxu0 0
  %1228 = vmatmul.mubr.bf16.gmra.mrb[0].mxu0 %v830
  %v1229 = vpop.f32.mrb[0].mxu0
  %v1230 = vadd.f32 0.0, %v1229
  %v1231 = vpop.f32.mrb[0].mxu0
  %v1232 = vpop.f32.mrb[0].mxu0
  %v1233 = vadd.f32 0.0, %v1232
  %v1234 = vpop.f32.mrb[0].mxu0
  %1235 = vmatprep.mubr.bf16.mxu0 0
  %1236 = vmatmul.mubr.bf16.gmra.mrb[0].mxu0 %v833
  %v1237 = vpop.f32.mrb[0].mxu0
  %v1238 = vadd.f32 0.0, %v1237
  %v1239 = vpop.f32.mrb[0].mxu0
  %v1240 = vpop.f32.mrb[0].mxu0
  %v1241 = vadd.f32 0.0, %v1240
  %v1242 = vpop.f32.mrb[0].mxu0
  %1243 = vmatprep.mubr.bf16.mxu0 0
  %1244 = vmatmul.mubr.bf16.gmra.mrb[0].mxu0 %v836
  %v1245 = vpop.f32.mrb[0].mxu0
  %v1246 = vadd.f32 0.0, %v1245
  %v1247 = vpop.f32.mrb[0].mxu0
  %v1248 = vpop.f32.mrb[0].mxu0
  %v1249 = vadd.f32 0.0, %v1248
  %v1250 = vpop.f32.mrb[0].mxu0
  %1251 = vmatprep.mubr.bf16.mxu0 0
  %1252 = vmatmul.mubr.bf16.gmra.mrb[0].mxu0 %v839
  %v1253 = vpop.f32.mrb[0].mxu0
  %v1254 = vadd.f32 0.0, %v1253
  %v1255 = vpop.f32.mrb[0].mxu0
  %v1256 = vpop.f32.mrb[0].mxu0
  %v1257 = vadd.f32 0.0, %v1256
  %v1258 = vpop.f32.mrb[0].mxu0
  %1259 = vmatprep.mubr.bf16.mxu0 0
  %1260 = vmatmul.mubr.bf16.gmra.mrb[0].mxu0 %v842
  %v1261 = vpop.f32.mrb[0].mxu0
  %v1262 = vadd.f32 0.0, %v1261
  %v1263 = vpop.f32.mrb[0].mxu0
  %v1264 = vpop.f32.mrb[0].mxu0
  %v1265 = vadd.f32 0.0, %v1264
  %v1266 = vpop.f32.mrb[0].mxu0
  %1267 = vmatprep.mubr.bf16.mxu0 0
  %1268 = vmatmul.mubr.bf16.gmra.mrb[0].mxu0 %v845
  %v1269 = vpop.f32.mrb[0].mxu0
  %v1270 = vadd.f32 0.0, %v1269
  %v1271 = vpop.f32.mrb[0].mxu0
  %v1272 = vpop.f32.mrb[0].mxu0
  %v1273 = vadd.f32 0.0, %v1272
  %v1274 = vpop.f32.mrb[0].mxu0
  %1275 = vmatprep.mubr.bf16.mxu0 0
  %1276 = vmatmul.mubr.bf16.gmra.mrb[0].mxu0 %v848
  %v1277 = vpop.f32.mrb[0].mxu0
  %v1278 = vadd.f32 0.0, %v1277
  %v1279 = vpop.f32.mrb[0].mxu0
  %v1280 = vpop.f32.mrb[0].mxu0
  %v1281 = vadd.f32 0.0, %v1280
  %v1282 = vpop.f32.mrb[0].mxu0
  %1283 = vmatprep.mubr.bf16.mxu0 0
  %1284 = vmatmul.mubr.bf16.gmra.mrb[0].mxu0 %v851
  %v1285 = vpop.f32.mrb[0].mxu0
  %v1286 = vadd.f32 0.0, %v1285
  %v1287 = vpop.f32.mrb[0].mxu0
  %v1288 = vpop.f32.mrb[0].mxu0
  %v1289 = vadd.f32 0.0, %v1288
  %v1290 = vpop.f32.mrb[0].mxu0
  %1291 = vmatprep.mubr.bf16.mxu0 0
  %1292 = vmatmul.mubr.bf16.gmra.mrb[0].mxu0 %v854
  %v1293 = vpop.f32.mrb[0].mxu0
  %v1294 = vadd.f32 0.0, %v1293
  %v1295 = vpop.f32.mrb[0].mxu0
  %v1296 = vpop.f32.mrb[0].mxu0
  %v1297 = vadd.f32 0.0, %v1296
  %v1298 = vpop.f32.mrb[0].mxu0
  %1299 = vmatprep.mubr.bf16.mxu0 0
  %1300 = vmatmul.mubr.bf16.gmra.mrb[0].mxu0 %v857
  %v1301 = vpop.f32.mrb[0].mxu0
  %v1302 = vadd.f32 0.0, %v1301
  %v1303 = vpop.f32.mrb[0].mxu0
  %v1304 = vpop.f32.mrb[0].mxu0
  %v1305 = vadd.f32 0.0, %v1304
  %v1306 = vpop.f32.mrb[0].mxu0
  %1307 = vmatprep.mubr.bf16.mxu0 0
  %1308 = vmatmul.mubr.bf16.gmra.mrb[0].mxu0 %v860
  %v1309 = vpop.f32.mrb[0].mxu0
  %v1310 = vadd.f32 0.0, %v1309
  %v1311 = vpop.f32.mrb[0].mxu0
  %v1312 = vpop.f32.mrb[0].mxu0
  %v1313 = vadd.f32 0.0, %v1312
  %v1314 = vpop.f32.mrb[0].mxu0
  %1315 = vmatprep.mubr.bf16.mxu0 0
  %1316 = vmatmul.mubr.bf16.gmra.mrb[0].mxu0 %v863
  %v1317 = vpop.f32.mrb[0].mxu0
  %v1318 = vadd.f32 0.0, %v1317
  %v1319 = vpop.f32.mrb[0].mxu0
  %v1320 = vpop.f32.mrb[0].mxu0
  %v1321 = vadd.f32 0.0, %v1320
  %v1322 = vpop.f32.mrb[0].mxu0
  %1323 = vmatprep.mubr.bf16.mxu0 0
  %1324 = vmatmul.mubr.bf16.gmra.mrb[0].mxu0 %v866
  %v1325 = vpop.f32.mrb[0].mxu0
  %v1326 = vadd.f32 0.0, %v1325
  %v1327 = vpop.f32.mrb[0].mxu0
  %v1328 = vpop.f32.mrb[0].mxu0
  %v1329 = vadd.f32 0.0, %v1328
  %v1330 = vpop.f32.mrb[0].mxu0
  %1331 = vmatprep.mubr.bf16.mxu0 0
  %1332 = vmatmul.mubr.bf16.gmra.mrb[0].mxu0 %v869
  %v1333 = vpop.f32.mrb[0].mxu0
  %v1334 = vadd.f32 0.0, %v1333
  %v1335 = vpop.f32.mrb[0].mxu0
  %v1336 = vpop.f32.mrb[0].mxu0
  %v1337 = vadd.f32 0.0, %v1336
  %v1338 = vpop.f32.mrb[0].mxu0
  %1339 = vmatprep.mubr.bf16.mxu0 0
  %1340 = vmatmul.mubr.bf16.gmra.mrb[0].mxu0 %v872
  %v1341 = vpop.f32.mrb[0].mxu0
  %v1342 = vadd.f32 0.0, %v1341
  %v1343 = vpop.f32.mrb[0].mxu0
  %v1344 = vpop.f32.mrb[0].mxu0
  %v1345 = vadd.f32 0.0, %v1344
  %v1346 = vpop.f32.mrb[0].mxu0
  %1347 = vmatprep.mubr.bf16.mxu0 0
  %1348 = vmatmul.mubr.bf16.gmra.mrb[0].mxu0 %v875
  %v1349 = vpop.f32.mrb[0].mxu0
  %v1350 = vadd.f32 0.0, %v1349
  %v1351 = vpop.f32.mrb[0].mxu0
  %v1352 = vpop.f32.mrb[0].mxu0
  %v1353 = vadd.f32 0.0, %v1352
  %v1354 = vpop.f32.mrb[0].mxu0
  %1355 = vmatprep.mubr.bf16.mxu0 0
  %1356 = vmatmul.mubr.bf16.gmra.mrb[0].mxu0 %v878
  %v1357 = vpop.f32.mrb[0].mxu0
  %v1358 = vadd.f32 0.0, %v1357
  %v1359 = vpop.f32.mrb[0].mxu0
  %v1360 = vpop.f32.mrb[0].mxu0
  %v1361 = vadd.f32 0.0, %v1360
  %v1362 = vpop.f32.mrb[0].mxu0
  %1363 = vmatprep.mubr.bf16.mxu0 0
  %1364 = vmatmul.mubr.bf16.gmra.mrb[0].mxu0 %v881
  %v1365 = vpop.f32.mrb[0].mxu0
  %v1366 = vadd.f32 0.0, %v1365
  %v1367 = vpop.f32.mrb[0].mxu0
  %v1368 = vpop.f32.mrb[0].mxu0
  %v1369 = vadd.f32 0.0, %v1368
  %v1370 = vpop.f32.mrb[0].mxu0
  %1371 = vmatprep.mubr.bf16.mxu0 0
  %1372 = vmatmul.mubr.bf16.gmra.mrb[0].mxu0 %v884
  %v1373 = vpop.f32.mrb[0].mxu0
  %v1374 = vadd.f32 0.0, %v1373
  %v1375 = vpop.f32.mrb[0].mxu0
  %v1376 = vpop.f32.mrb[0].mxu0
  %v1377 = vadd.f32 0.0, %v1376
  %v1378 = vpop.f32.mrb[0].mxu0
  %1379 = vmatprep.mubr.bf16.mxu0 0
  %1380 = vmatmul.mubr.bf16.gmra.mrb[0].mxu0 %v887
  %v1381 = vpop.f32.mrb[0].mxu0
  %v1382 = vadd.f32 0.0, %v1381
  %v1383 = vpop.f32.mrb[0].mxu0
  %v1384 = vpop.f32.mrb[0].mxu0
  %v1385 = vadd.f32 0.0, %v1384
  %v1386 = vpop.f32.mrb[0].mxu0
  %1387 = vmatprep.mubr.bf16.mxu0 0
  %1388 = vmatmul.mubr.bf16.gmra.mrb[0].mxu0 %v890
  %v1389 = vpop.f32.mrb[0].mxu0
  %v1390 = vadd.f32 0.0, %v1389
  %v1391 = vpop.f32.mrb[0].mxu0
  %v1392 = vpop.f32.mrb[0].mxu0
  %v1393 = vadd.f32 0.0, %v1392
  %v1394 = vpop.f32.mrb[0].mxu0
  %1395 = vmatprep.mubr.bf16.mxu0 0
  %1396 = vmatmul.mubr.bf16.gmra.mrb[0].mxu0 %v893
  %v1397 = vpop.f32.mrb[0].mxu0
  %v1398 = vadd.f32 0.0, %v1397
  %v1399 = vpop.f32.mrb[0].mxu0
  %v1400 = vpop.f32.mrb[0].mxu0
  %v1401 = vadd.f32 0.0, %v1400
  %v1402 = vpop.f32.mrb[0].mxu0
  %1403 = vmatprep.mubr.bf16.mxu0 0
  %1404 = vmatmul.mubr.bf16.gmra.mrb[0].mxu0 %v896
  %v1405 = vpop.f32.mrb[0].mxu0
  %v1406 = vadd.f32 0.0, %v1405
  %v1407 = vpop.f32.mrb[0].mxu0
  %v1408 = vpop.f32.mrb[0].mxu0
  %v1409 = vadd.f32 0.0, %v1408
  %v1410 = vpop.f32.mrb[0].mxu0
  %1411 = vmatprep.mubr.bf16.mxu0 0
  %1412 = vmatmul.mubr.bf16.gmra.mrb[0].mxu0 %v899
  %v1413 = vpop.f32.mrb[0].mxu0
  %v1414 = vadd.f32 0.0, %v1413
  %v1415 = vpop.f32.mrb[0].mxu0
  %v1416 = vpop.f32.mrb[0].mxu0
  %v1417 = vadd.f32 0.0, %v1416
  %v1418 = vpop.f32.mrb[0].mxu0
  %1419 = vmatprep.mubr.bf16.mxu0 0
  %1420 = vmatmul.mubr.bf16.gmra.mrb[0].mxu0 %v902
  %v1421 = vpop.f32.mrb[0].mxu0
  %v1422 = vadd.f32 0.0, %v1421
  %v1423 = vpop.f32.mrb[0].mxu0
  %v1424 = vpop.f32.mrb[0].mxu0
  %v1425 = vadd.f32 0.0, %v1424
  %v1426 = vpop.f32.mrb[0].mxu0
  %1427 = vmatprep.mubr.bf16.mxu0 0
  %1428 = vmatmul.mubr.bf16.gmra.mrb[0].mxu0 %v905
  %v1429 = vpop.f32.mrb[0].mxu0
  %v1430 = vadd.f32 0.0, %v1429
  %v1431 = vpop.f32.mrb[0].mxu0
  %v1432 = vpop.f32.mrb[0].mxu0
  %v1433 = vadd.f32 0.0, %v1432
  %v1434 = vpop.f32.mrb[0].mxu0
  %1435 = vmatprep.mubr.bf16.mxu0 0
  %1436 = vmatmul.mubr.bf16.gmra.mrb[0].mxu0 %v908
  %v1437 = vpop.f32.mrb[0].mxu0
  %v1438 = vadd.f32 0.0, %v1437
  %v1439 = vpop.f32.mrb[0].mxu0
  %v1440 = vpop.f32.mrb[0].mxu0
  %v1441 = vadd.f32 0.0, %v1440
  %v1442 = vpop.f32.mrb[0].mxu0
  %1443 = vmatprep.mubr.bf16.mxu0 0
  %1444 = vmatmul.mubr.bf16.gmra.mrb[0].mxu0 %v911
  %v1445 = vpop.f32.mrb[0].mxu0
  %v1446 = vadd.f32 0.0, %v1445
  %v1447 = vpop.f32.mrb[0].mxu0
  %v1448 = vpop.f32.mrb[0].mxu0
  %v1449 = vadd.f32 0.0, %v1448
  %v1450 = vpop.f32.mrb[0].mxu0
  %1451 = vmatprep.mubr.bf16.mxu0 0
  %1452 = vmatmul.mubr.bf16.gmra.mrb[0].mxu0 %v914
  %v1453 = vpop.f32.mrb[0].mxu0
  %v1454 = vadd.f32 0.0, %v1453
  %v1455 = vpop.f32.mrb[0].mxu0
  %v1456 = vpop.f32.mrb[0].mxu0
  %v1457 = vadd.f32 0.0, %v1456
  %v1458 = vpop.f32.mrb[0].mxu0
  %1459 = vmatprep.mubr.bf16.mxu0 0
  %1460 = vmatmul.mubr.bf16.gmra.mrb[0].mxu0 %v917
  %v1461 = vpop.f32.mrb[0].mxu0
  %v1462 = vadd.f32 0.0, %v1461
  %v1463 = vpop.f32.mrb[0].mxu0
  %v1464 = vpop.f32.mrb[0].mxu0
  %v1465 = vadd.f32 0.0, %v1464
  %v1466 = vpop.f32.mrb[0].mxu0
  %1467 = vmatprep.mubr.bf16.mxu0 0
  %1468 = vmatmul.mubr.bf16.gmra.mrb[0].mxu0 %v920
  %v1469 = vpop.f32.mrb[0].mxu0
  %v1470 = vadd.f32 0.0, %v1469
  %v1471 = vpop.f32.mrb[0].mxu0
  %v1472 = vpop.f32.mrb[0].mxu0
  %v1473 = vadd.f32 0.0, %v1472
  %v1474 = vpop.f32.mrb[0].mxu0
  %1475 = vmatprep.mubr.bf16.mxu0 0
  %1476 = vmatmul.mubr.bf16.gmra.mrb[0].mxu0 %v923
  %v1477 = vpop.f32.mrb[0].mxu0
  %v1478 = vadd.f32 0.0, %v1477
  %v1479 = vpop.f32.mrb[0].mxu0
  %v1480 = vpop.f32.mrb[0].mxu0
  %v1481 = vadd.f32 0.0, %v1480
  %v1482 = vpop.f32.mrb[0].mxu0
  %1483 = vmatprep.mubr.bf16.mxu0 0
  %1484 = vmatmul.mubr.bf16.gmra.mrb[0].mxu0 %v926
  %v1485 = vpop.f32.mrb[0].mxu0
  %v1486 = vadd.f32 0.0, %v1485
  %v1487 = vpop.f32.mrb[0].mxu0
  %v1488 = vpop.f32.mrb[0].mxu0
  %v1489 = vadd.f32 0.0, %v1488
  %v1490 = vpop.f32.mrb[0].mxu0
  %1491 = vmatprep.mubr.bf16.mxu0 0
  %1492 = vmatmul.mubr.bf16.gmra.mrb[0].mxu0 %v929
  %v1493 = vpop.f32.mrb[0].mxu0
  %v1494 = vadd.f32 0.0, %v1493
  %v1495 = vpop.f32.mrb[0].mxu0
  %v1496 = vpop.f32.mrb[0].mxu0
  %v1497 = vadd.f32 0.0, %v1496
  %v1498 = vpop.f32.mrb[0].mxu0
  %1499 = vmatprep.mubr.bf16.mxu0 0
  %1500 = vmatmul.mubr.bf16.gmra.mrb[0].mxu0 %v932
  %v1501 = vpop.f32.mrb[0].mxu0
  %v1502 = vadd.f32 0.0, %v1501
  %v1503 = vpop.f32.mrb[0].mxu0
  %v1504 = vpop.f32.mrb[0].mxu0
  %v1505 = vadd.f32 0.0, %v1504
  %v1506 = vpop.f32.mrb[0].mxu0
  %1507 = vmatprep.mubr.bf16.mxu0 0
  %1508 = vmatmul.mubr.bf16.gmra.mrb[0].mxu0 %v935
  %v1509 = vpop.f32.mrb[0].mxu0
  %v1510 = vadd.f32 0.0, %v1509
  %v1511 = vpop.f32.mrb[0].mxu0
  %v1512 = vpop.f32.mrb[0].mxu0
  %v1513 = vadd.f32 0.0, %v1512
  %v1514 = vpop.f32.mrb[0].mxu0
  %1515 = vmatprep.mubr.bf16.mxu0 0
  %1516 = vmatmul.mubr.bf16.gmra.mrb[0].mxu0 %v938
  %v1517 = vpop.f32.mrb[0].mxu0
  %v1518 = vadd.f32 0.0, %v1517
  %v1519 = vpop.f32.mrb[0].mxu0
  %v1520 = vpop.f32.mrb[0].mxu0
  %v1521 = vadd.f32 0.0, %v1520
  %v1522 = vpop.f32.mrb[0].mxu0
  %1523 = vmatprep.mubr.bf16.mxu0 0
  %1524 = vmatmul.mubr.bf16.gmra.mrb[0].mxu0 %v941
  %v1525 = vpop.f32.mrb[0].mxu0
  %v1526 = vadd.f32 0.0, %v1525
  %v1527 = vpop.f32.mrb[0].mxu0
  %v1528 = vpop.f32.mrb[0].mxu0
  %v1529 = vadd.f32 0.0, %v1528
  %v1530 = vpop.f32.mrb[0].mxu0
  %1531 = vmatprep.mubr.bf16.mxu0 0
  %1532 = vmatmul.mubr.bf16.gmra.mrb[0].mxu0 %v944
  %v1533 = vpop.f32.mrb[0].mxu0
  %v1534 = vadd.f32 0.0, %v1533
  %v1535 = vpop.f32.mrb[0].mxu0
  %v1536 = vpop.f32.mrb[0].mxu0
  %v1537 = vadd.f32 0.0, %v1536
  %v1538 = vpop.f32.mrb[0].mxu0
  %1539 = vmatprep.mubr.bf16.mxu0 0
  %1540 = vmatmul.mubr.bf16.gmra.mrb[0].mxu0 %v947
  %v1541 = vpop.f32.mrb[0].mxu0
  %v1542 = vadd.f32 0.0, %v1541
  %v1543 = vpop.f32.mrb[0].mxu0
  %v1544 = vpop.f32.mrb[0].mxu0
  %v1545 = vadd.f32 0.0, %v1544
  %v1546 = vpop.f32.mrb[0].mxu0
  %1547 = vmatprep.mubr.bf16.mxu0 0
  %1548 = vmatmul.mubr.bf16.gmra.mrb[0].mxu0 %v950
  %v1549 = vpop.f32.mrb[0].mxu0
  %v1550 = vadd.f32 0.0, %v1549
  %v1551 = vpop.f32.mrb[0].mxu0
  %v1552 = vpop.f32.mrb[0].mxu0
  %v1553 = vadd.f32 0.0, %v1552
  %v1554 = vpop.f32.mrb[0].mxu0
  %1555 = vmatprep.mubr.bf16.mxu0 0
  %1556 = vmatmul.mubr.bf16.gmra.mrb[0].mxu0 %v953
  %v1557 = vpop.f32.mrb[0].mxu0
  %v1558 = vadd.f32 0.0, %v1557
  %v1559 = vpop.f32.mrb[0].mxu0
  %v1560 = vpop.f32.mrb[0].mxu0
  %v1561 = vadd.f32 0.0, %v1560
  %v1562 = vpop.f32.mrb[0].mxu0
  %1563 = vmatprep.mubr.bf16.mxu0 0
  %1564 = vmatmul.mubr.bf16.gmra.mrb[0].mxu0 %v956
  %v1565 = vpop.f32.mrb[0].mxu0
  %v1566 = vadd.f32 0.0, %v1565
  %v1567 = vpop.f32.mrb[0].mxu0
  %v1568 = vpop.f32.mrb[0].mxu0
  %v1569 = vadd.f32 0.0, %v1568
  %v1570 = vpop.f32.mrb[0].mxu0
  %1571 = vmatprep.mubr.bf16.mxu0 0
  %1572 = vmatmul.mubr.bf16.gmra.mrb[0].mxu0 %v959
  %v1573 = vpop.f32.mrb[0].mxu0
  %v1574 = vadd.f32 0.0, %v1573
  %v1575 = vpop.f32.mrb[0].mxu0
  %v1576 = vpop.f32.mrb[0].mxu0
  %v1577 = vadd.f32 0.0, %v1576
  %v1578 = vpop.f32.mrb[0].mxu0
  %1579 = vmatprep.mubr.bf16.mxu0 0
  %1580 = vmatmul.mubr.bf16.gmra.mrb[0].mxu0 %v962
  %v1581 = vpop.f32.mrb[0].mxu0
  %v1582 = vadd.f32 0.0, %v1581
  %v1583 = vpop.f32.mrb[0].mxu0
  %v1584 = vpop.f32.mrb[0].mxu0
  %v1585 = vadd.f32 0.0, %v1584
  %v1586 = vpop.f32.mrb[0].mxu0
  %1587 = vmatprep.mubr.bf16.mxu0 0
  %1588 = vmatmul.mubr.bf16.gmra.mrb[0].mxu0 %v965
  %v1589 = vpop.f32.mrb[0].mxu0
  %v1590 = vadd.f32 0.0, %v1589
  %v1591 = vpop.f32.mrb[0].mxu0
  %v1592 = vpop.f32.mrb[0].mxu0
  %v1593 = vadd.f32 0.0, %v1592
  %v1594 = vpop.f32.mrb[0].mxu0
  %1595 = vmatprep.mubr.bf16.mxu0 0
  %1596 = vmatmul.mubr.bf16.gmra.mrb[0].mxu0 %v968
  %v1597 = vpop.f32.mrb[0].mxu0
  %v1598 = vadd.f32 0.0, %v1597
  %v1599 = vpop.f32.mrb[0].mxu0
  %v1600 = vpop.f32.mrb[0].mxu0
  %v1601 = vadd.f32 0.0, %v1600
  %v1602 = vpop.f32.mrb[0].mxu0
  %1603 = vmatprep.mubr.bf16.mxu0 0
  %1604 = vmatmul.mubr.bf16.gmra.mrb[0].mxu0 %v971
  %v1605 = vpop.f32.mrb[0].mxu0
  %v1606 = vadd.f32 0.0, %v1605
  %v1607 = vpop.f32.mrb[0].mxu0
  %v1608 = vpop.f32.mrb[0].mxu0
  %v1609 = vadd.f32 0.0, %v1608
  %v1610 = vpop.f32.mrb[0].mxu0
  %1611 = vmatprep.mubr.bf16.mxu0 0
  %1612 = vmatmul.mubr.bf16.gmra.mrb[0].mxu0 %v974
  %v1613 = vpop.f32.mrb[0].mxu0
  %v1614 = vadd.f32 0.0, %v1613
  %v1615 = vpop.f32.mrb[0].mxu0
  %v1616 = vpop.f32.mrb[0].mxu0
  %v1617 = vadd.f32 0.0, %v1616
  %v1618 = vpop.f32.mrb[0].mxu0
  %1619 = vmatprep.mubr.bf16.mxu0 0
  %1620 = vmatmul.mubr.bf16.gmra.mrb[0].mxu0 %v977
  %v1621 = vpop.f32.mrb[0].mxu0
  %v1622 = vadd.f32 0.0, %v1621
  %v1623 = vpop.f32.mrb[0].mxu0
  %v1624 = vpop.f32.mrb[0].mxu0
  %v1625 = vadd.f32 0.0, %v1624
  %v1626 = vpop.f32.mrb[0].mxu0
  %1627 = vmatprep.mubr.bf16.mxu0 0
  %1628 = vmatmul.mubr.bf16.gmra.mrb[0].mxu0 %v980
  %v1629 = vpop.f32.mrb[0].mxu0
  %v1630 = vadd.f32 0.0, %v1629
  %v1631 = vpop.f32.mrb[0].mxu0
  %v1632 = vpop.f32.mrb[0].mxu0
  %v1633 = vadd.f32 0.0, %v1632
  %v1634 = vpop.f32.mrb[0].mxu0
  %1635 = vmatprep.mubr.bf16.mxu0 0
  %1636 = vmatmul.mubr.bf16.gmra.mrb[0].mxu0 %v983
  %v1637 = vpop.f32.mrb[0].mxu0
  %v1638 = vadd.f32 0.0, %v1637
  %v1639 = vpop.f32.mrb[0].mxu0
  %v1640 = vpop.f32.mrb[0].mxu0
  %v1641 = vadd.f32 0.0, %v1640
  %v1642 = vpop.f32.mrb[0].mxu0
  %1643 = vmatprep.mubr.bf16.mxu0 0
  %1644 = vmatmul.mubr.bf16.gmra.mrb[0].mxu0 %v986
  %v1645 = vpop.f32.mrb[0].mxu0
  %v1646 = vadd.f32 0.0, %v1645
  %v1647 = vpop.f32.mrb[0].mxu0
  %v1648 = vpop.f32.mrb[0].mxu0
  %v1649 = vadd.f32 0.0, %v1648
  %v1650 = vpop.f32.mrb[0].mxu0
  %1651 = vmatprep.mubr.bf16.mxu0 0
  %1652 = vmatmul.mubr.bf16.gmra.mrb[0].mxu0 %v989
  %v1653 = vpop.f32.mrb[0].mxu0
  %v1654 = vadd.f32 0.0, %v1653
  %v1655 = vpop.f32.mrb[0].mxu0
  %v1656 = vpop.f32.mrb[0].mxu0
  %v1657 = vadd.f32 0.0, %v1656
  %v1658 = vpop.f32.mrb[0].mxu0
  %1659 = vmatprep.mubr.bf16.mxu0 0
  %1660 = vmatmul.mubr.bf16.gmra.mrb[0].mxu0 %v992
  %v1661 = vpop.f32.mrb[0].mxu0
  %v1662 = vadd.f32 0.0, %v1661
  %v1663 = vpop.f32.mrb[0].mxu0
  %v1664 = vpop.f32.mrb[0].mxu0
  %v1665 = vadd.f32 0.0, %v1664
  %v1666 = vpop.f32.mrb[0].mxu0
  %1667 = vmatprep.mubr.bf16.mxu0 0
  %1668 = vmatmul.mubr.bf16.gmra.mrb[0].mxu0 %v995
  %v1669 = vpop.f32.mrb[0].mxu0
  %v1670 = vadd.f32 0.0, %v1669
  %v1671 = vpop.f32.mrb[0].mxu0
  %v1672 = vpop.f32.mrb[0].mxu0
  %v1673 = vadd.f32 0.0, %v1672
  %v1674 = vpop.f32.mrb[0].mxu0
  %1675 = vmatprep.mubr.bf16.mxu0 0
  %1676 = vmatmul.mubr.bf16.gmra.mrb[0].mxu0 %v998
  %v1677 = vpop.f32.mrb[0].mxu0
  %v1678 = vadd.f32 0.0, %v1677
  %v1679 = vpop.f32.mrb[0].mxu0
  %v1680 = vpop.f32.mrb[0].mxu0
  %v1681 = vadd.f32 0.0, %v1680
  %v1682 = vpop.f32.mrb[0].mxu0
  %1683 = vmatprep.mubr.bf16.mxu0 0
  %1684 = vmatmul.mubr.bf16.gmra.mrb[0].mxu0 %v1001
  %v1685 = vpop.f32.mrb[0].mxu0
  %v1686 = vadd.f32 0.0, %v1685
  %v1687 = vpop.f32.mrb[0].mxu0
  %v1688 = vpop.f32.mrb[0].mxu0
  %v1689 = vadd.f32 0.0, %v1688
  %v1690 = vpop.f32.mrb[0].mxu0
  %1691 = vmatprep.mubr.bf16.mxu0 0
  %1692 = vmatmul.mubr.bf16.gmra.mrb[0].mxu0 %v1004
  %v1693 = vpop.f32.mrb[0].mxu0
  %v1694 = vadd.f32 0.0, %v1693
  %v1695 = vpop.f32.mrb[0].mxu0
  %v1696 = vpop.f32.mrb[0].mxu0
  %v1697 = vadd.f32 0.0, %v1696
  %v1698 = vpop.f32.mrb[0].mxu0
  %1699 = vmatprep.mubr.bf16.mxu0 0
  %1700 = vmatmul.mubr.bf16.gmra.mrb[0].mxu0 %v1007
  %v1701 = vpop.f32.mrb[0].mxu0
  %v1702 = vadd.f32 0.0, %v1701
  %v1703 = vpop.f32.mrb[0].mxu0
  %v1704 = vpop.f32.mrb[0].mxu0
  %v1705 = vadd.f32 0.0, %v1704
  %v1706 = vpop.f32.mrb[0].mxu0
  %1707 = vmatprep.mubr.bf16.mxu0 0
  %1708 = vmatmul.mubr.bf16.gmra.mrb[0].mxu0 %v1010
  %v1709 = vpop.f32.mrb[0].mxu0
  %v1710 = vadd.f32 0.0, %v1709
  %v1711 = vpop.f32.mrb[0].mxu0
  %v1712 = vpop.f32.mrb[0].mxu0
  %v1713 = vadd.f32 0.0, %v1712
  %v1714 = vpop.f32.mrb[0].mxu0
  %1715 = vmatprep.mubr.bf16.mxu0 0
  %1716 = vmatmul.mubr.bf16.gmra.mrb[0].mxu0 %v1013
  %v1717 = vpop.f32.mrb[0].mxu0
  %v1718 = vadd.f32 0.0, %v1717
  %v1719 = vpop.f32.mrb[0].mxu0
  %v1720 = vpop.f32.mrb[0].mxu0
  %v1721 = vadd.f32 0.0, %v1720
  %v1722 = vpop.f32.mrb[0].mxu0
  %1723 = vmatprep.mubr.bf16.mxu0 0
  %1724 = vmatmul.mubr.bf16.gmra.mrb[0].mxu0 %v1016
  %v1725 = vpop.f32.mrb[0].mxu0
  %v1726 = vadd.f32 0.0, %v1725
  %v1727 = vpop.f32.mrb[0].mxu0
  %v1728 = vpop.f32.mrb[0].mxu0
  %v1729 = vadd.f32 0.0, %v1728
  %v1730 = vpop.f32.mrb[0].mxu0
  %1731 = vmatprep.mubr.bf16.mxu0 0
  %1732 = vmatmul.mubr.bf16.gmra.mrb[0].mxu0 %v1019
  %v1733 = vpop.f32.mrb[0].mxu0
  %v1734 = vadd.f32 0.0, %v1733
  %v1735 = vpop.f32.mrb[0].mxu0
  %v1736 = vpop.f32.mrb[0].mxu0
  %v1737 = vadd.f32 0.0, %v1736
  %v1738 = vpop.f32.mrb[0].mxu0
  %1739 = vmatprep.mubr.bf16.mxu0 0
  %1740 = vmatmul.mubr.bf16.gmra.mrb[0].mxu0 %v1022
  %v1741 = vpop.f32.mrb[0].mxu0
  %v1742 = vadd.f32 0.0, %v1741
  %v1743 = vpop.f32.mrb[0].mxu0
  %v1744 = vpop.f32.mrb[0].mxu0
  %v1745 = vadd.f32 0.0, %v1744
  %v1746 = vpop.f32.mrb[0].mxu0
  %1747 = vmatprep.mubr.bf16.mxu0 0
  %1748 = vmatmul.mubr.bf16.gmra.mrb[0].mxu0 %v1025
  %v1749 = vpop.f32.mrb[0].mxu0
  %v1750 = vadd.f32 0.0, %v1749
  %v1751 = vpop.f32.mrb[0].mxu0
  %v1752 = vpop.f32.mrb[0].mxu0
  %v1753 = vadd.f32 0.0, %v1752
  %v1754 = vpop.f32.mrb[0].mxu0
  %1755 = vmatprep.mubr.bf16.mxu0 0
  %1756 = vmatmul.mubr.bf16.gmra.mrb[0].mxu0 %v1028
  %v1757 = vpop.f32.mrb[0].mxu0
  %v1758 = vadd.f32 0.0, %v1757
  %v1759 = vpop.f32.mrb[0].mxu0
  %v1760 = vpop.f32.mrb[0].mxu0
  %v1761 = vadd.f32 0.0, %v1760
  %v1762 = vpop.f32.mrb[0].mxu0
  %1763 = vmatprep.mubr.bf16.mxu0 0
  %1764 = vmatmul.mubr.bf16.gmra.mrb[0].mxu0 %v1031
  %v1765 = vpop.f32.mrb[0].mxu0
  %v1766 = vadd.f32 0.0, %v1765
  %v1767 = vpop.f32.mrb[0].mxu0
  %v1768 = vpop.f32.mrb[0].mxu0
  %v1769 = vadd.f32 0.0, %v1768
  %v1770 = vpop.f32.mrb[0].mxu0
  %1771 = vmatprep.mubr.bf16.mxu0 0
  %1772 = vmatmul.mubr.bf16.gmra.mrb[0].mxu0 %v1034
  %v1773 = vpop.f32.mrb[0].mxu0
  %v1774 = vadd.f32 0.0, %v1773
  %v1775 = vpop.f32.mrb[0].mxu0
  %v1776 = vpop.f32.mrb[0].mxu0
  %v1777 = vadd.f32 0.0, %v1776
  %v1778 = vpop.f32.mrb[0].mxu0
  %1779 = vmatprep.mubr.bf16.mxu0 0
  %1780 = vmatmul.mubr.bf16.gmra.mrb[0].mxu0 %v1037
  %v1781 = vpop.f32.mrb[0].mxu0
  %v1782 = vadd.f32 0.0, %v1781
  %v1783 = vpop.f32.mrb[0].mxu0
  %v1784 = vpop.f32.mrb[0].mxu0
  %v1785 = vadd.f32 0.0, %v1784
  %v1786 = vpop.f32.mrb[0].mxu0
  %1787 = vmatprep.mubr.bf16.mxu0 0
  %1788 = vmatmul.mubr.bf16.gmra.mrb[0].mxu0 %v1040
  %v1789 = vpop.f32.mrb[0].mxu0
  %v1790 = vadd.f32 0.0, %v1789
  %v1791 = vpop.f32.mrb[0].mxu0
  %v1792 = vpop.f32.mrb[0].mxu0
  %v1793 = vadd.f32 0.0, %v1792
  %v1794 = vpop.f32.mrb[0].mxu0
  %1795 = vmatprep.mubr.bf16.mxu0 0
  %1796 = vmatmul.mubr.bf16.gmra.mrb[0].mxu0 %v1043
  %v1797 = vpop.f32.mrb[0].mxu0
  %v1798 = vadd.f32 0.0, %v1797
  %v1799 = vpop.f32.mrb[0].mxu0
  %v1800 = vpop.f32.mrb[0].mxu0
  %v1801 = vadd.f32 0.0, %v1800
  %v1802 = vpop.f32.mrb[0].mxu0
  %1803 = vmatprep.mubr.bf16.mxu0 0
  %1804 = vmatmul.mubr.bf16.gmra.mrb[0].mxu0 %v1046
  %v1805 = vpop.f32.mrb[0].mxu0
  %v1806 = vadd.f32 0.0, %v1805
  %v1807 = vpop.f32.mrb[0].mxu0
  %v1808 = vpop.f32.mrb[0].mxu0
  %v1809 = vadd.f32 0.0, %v1808
  %v1810 = vpop.f32.mrb[0].mxu0
  %1811 = vmatprep.mubr.bf16.mxu0 0
  %1812 = vmatmul.mubr.bf16.gmra.mrb[0].mxu0 %v1049
  %v1813 = vpop.f32.mrb[0].mxu0
  %v1814 = vadd.f32 0.0, %v1813
  %v1815 = vpop.f32.mrb[0].mxu0
  %v1816 = vpop.f32.mrb[0].mxu0
  %v1817 = vadd.f32 0.0, %v1816
  %v1818 = vpop.f32.mrb[0].mxu0
  %1819 = vmatprep.mubr.bf16.mxu0 0
  %1820 = vmatmul.mubr.bf16.gmra.mrb[0].mxu0 %v1052
  %v1821 = vpop.f32.mrb[0].mxu0
  %v1822 = vadd.f32 0.0, %v1821
  %v1823 = vpop.f32.mrb[0].mxu0
  %v1824 = vpop.f32.mrb[0].mxu0
  %v1825 = vadd.f32 0.0, %v1824
  %v1826 = vpop.f32.mrb[0].mxu0
  %1827 = vmatprep.mubr.bf16.mxu0 0
  %1828 = vmatmul.mubr.bf16.gmra.mrb[0].mxu0 %v1055
  %v1829 = vpop.f32.mrb[0].mxu0
  %v1830 = vadd.f32 0.0, %v1829
  %v1831 = vpop.f32.mrb[0].mxu0
  %v1832 = vpop.f32.mrb[0].mxu0
  %v1833 = vadd.f32 0.0, %v1832
  %v1834 = vpop.f32.mrb[0].mxu0
  %1835 = vmatprep.mubr.bf16.mxu0 0
  %1836 = vmatmul.mubr.bf16.gmra.mrb[0].mxu0 %v1058
  %v1837 = vpop.f32.mrb[0].mxu0
  %v1838 = vadd.f32 0.0, %v1837
  %v1839 = vpop.f32.mrb[0].mxu0
  %v1840 = vpop.f32.mrb[0].mxu0
  %v1841 = vadd.f32 0.0, %v1840
  %v1842 = vpop.f32.mrb[0].mxu0
  %1843 = vmatprep.mubr.bf16.mxu0 0
  %1844 = vmatmul.mubr.bf16.gmra.mrb[0].mxu0 %v1061
  %v1845 = vpop.f32.mrb[0].mxu0
  %v1846 = vadd.f32 0.0, %v1845
  %v1847 = vpop.f32.mrb[0].mxu0
  %v1848 = vpop.f32.mrb[0].mxu0
  %v1849 = vadd.f32 0.0, %v1848
  %v1850 = vpop.f32.mrb[0].mxu0
  %1851 = vmatprep.mubr.bf16.mxu0 0
  %1852 = vmatmul.mubr.bf16.gmra.mrb[0].mxu0 %v1064
  %v1853 = vpop.f32.mrb[0].mxu0
  %v1854 = vadd.f32 0.0, %v1853
  %v1855 = vpop.f32.mrb[0].mxu0
  %v1856 = vpop.f32.mrb[0].mxu0
  %v1857 = vadd.f32 0.0, %v1856
  %v1858 = vpop.f32.mrb[0].mxu0
  %1859 = vmatprep.mubr.bf16.mxu0 0
  %1860 = vmatmul.mubr.bf16.gmra.mrb[0].mxu0 %v1067
  %v1861 = vpop.f32.mrb[0].mxu0
  %v1862 = vadd.f32 0.0, %v1861
  %v1863 = vpop.f32.mrb[0].mxu0
  %v1864 = vpop.f32.mrb[0].mxu0
  %v1865 = vadd.f32 0.0, %v1864
  %v1866 = vpop.f32.mrb[0].mxu0
  %1867 = vmatprep.mubr.bf16.mxu0 0
  %1868 = vmatmul.mubr.bf16.gmra.mrb[0].mxu0 %v1070
  %v1869 = vpop.f32.mrb[0].mxu0
  %v1870 = vadd.f32 0.0, %v1869
  %v1871 = vpop.f32.mrb[0].mxu0
  %v1872 = vpop.f32.mrb[0].mxu0
  %v1873 = vadd.f32 0.0, %v1872
  %v1874 = vpop.f32.mrb[0].mxu0
  %1875 = vmatprep.mubr.bf16.mxu0 0
  %1876 = vmatmul.mubr.bf16.gmra.mrb[0].mxu0 %v1073
  %v1877 = vpop.f32.mrb[0].mxu0
  %v1878 = vadd.f32 0.0, %v1877
  %v1879 = vpop.f32.mrb[0].mxu0
  %v1880 = vpop.f32.mrb[0].mxu0
  %v1881 = vadd.f32 0.0, %v1880
  %v1882 = vpop.f32.mrb[0].mxu0
  %1883 = vmatprep.mubr.bf16.mxu0 0
  %1884 = vmatmul.mubr.bf16.gmra.mrb[0].mxu0 %v1076
  %v1885 = vpop.f32.mrb[0].mxu0
  %v1886 = vadd.f32 0.0, %v1885
  %v1887 = vpop.f32.mrb[0].mxu0
  %v1888 = vpop.f32.mrb[0].mxu0
  %v1889 = vadd.f32 0.0, %v1888
  %v1890 = vpop.f32.mrb[0].mxu0
  %1891 = vmatprep.mubr.bf16.mxu0 0
  %1892 = vmatmul.mubr.bf16.gmra.mrb[0].mxu0 %v1079
  %v1893 = vpop.f32.mrb[0].mxu0
  %v1894 = vadd.f32 0.0, %v1893
  %v1895 = vpop.f32.mrb[0].mxu0
  %v1896 = vpop.f32.mrb[0].mxu0
  %v1897 = vadd.f32 0.0, %v1896
  %v1898 = vpop.f32.mrb[0].mxu0
  %1899 = vmatprep.mubr.bf16.mxu0 0
  %1900 = vmatmul.mubr.bf16.gmra.mrb[0].mxu0 %v1082
  %v1901 = vpop.f32.mrb[0].mxu0
  %v1902 = vadd.f32 0.0, %v1901
  %v1903 = vpop.f32.mrb[0].mxu0
  %v1904 = vpop.f32.mrb[0].mxu0
  %v1905 = vadd.f32 0.0, %v1904
  %v1906 = vpop.f32.mrb[0].mxu0
  %1907 = vmatprep.mubr.bf16.mxu0 0
  %1908 = vmatmul.mubr.bf16.gmra.mrb[0].mxu0 %v1085
  %v1909 = vpop.f32.mrb[0].mxu0
  %v1910 = vadd.f32 0.0, %v1909
  %v1911 = vpop.f32.mrb[0].mxu0
  %v1912 = vpop.f32.mrb[0].mxu0
  %v1913 = vadd.f32 0.0, %v1912
  %v1914 = vpop.f32.mrb[0].mxu0
  %1915 = vmatprep.mubr.bf16.mxu0 0
  %1916 = vmatmul.mubr.bf16.gmra.mrb[0].mxu0 %v1088
  %v1917 = vpop.f32.mrb[0].mxu0
  %v1918 = vadd.f32 0.0, %v1917
  %v1919 = vpop.f32.mrb[0].mxu0
  %v1920 = vpop.f32.mrb[0].mxu0
  %v1921 = vadd.f32 0.0, %v1920
  %v1922 = vpop.f32.mrb[0].mxu0
  %1923 = vmatprep.mubr.bf16.mxu0 0
  %1924 = vmatmul.mubr.bf16.gmra.mrb[0].mxu0 %v1091
  %v1925 = vpop.f32.mrb[0].mxu0
  %v1926 = vadd.f32 0.0, %v1925
  %v1927 = vpop.f32.mrb[0].mxu0
  %v1928 = vpop.f32.mrb[0].mxu0
  %v1929 = vadd.f32 0.0, %v1928
  %v1930 = vpop.f32.mrb[0].mxu0
  %1931 = vmatprep.mubr.bf16.mxu0 0
  %1932 = vmatmul.mubr.bf16.gmra.mrb[0].mxu0 %v1094
  %v1933 = vpop.f32.mrb[0].mxu0
  %v1934 = vadd.f32 0.0, %v1933
  %v1935 = vpop.f32.mrb[0].mxu0
  %v1936 = vpop.f32.mrb[0].mxu0
  %v1937 = vadd.f32 0.0, %v1936
  %v1938 = vpop.f32.mrb[0].mxu0
  %1939 = vmatprep.mubr.bf16.mxu0 0
  %1940 = vmatmul.mubr.bf16.gmra.mrb[0].mxu0 %v1097
  %v1941 = vpop.f32.mrb[0].mxu0
  %v1942 = vadd.f32 0.0, %v1941
  %v1943 = vpop.f32.mrb[0].mxu0
  %v1944 = vpop.f32.mrb[0].mxu0
  %v1945 = vadd.f32 0.0, %v1944
  %v1946 = vpop.f32.mrb[0].mxu0
  %1947 = vmatprep.mubr.bf16.mxu0 0
  %1948 = vmatmul.mubr.bf16.gmra.mrb[0].mxu0 %v1100
  %v1949 = vpop.f32.mrb[0].mxu0
  %v1950 = vadd.f32 0.0, %v1949
  %v1951 = vpop.f32.mrb[0].mxu0
  %v1952 = vpop.f32.mrb[0].mxu0
  %v1953 = vadd.f32 0.0, %v1952
  %v1954 = vpop.f32.mrb[0].mxu0
  %1955 = vmatprep.mubr.bf16.mxu0 0
  %1956 = vmatmul.mubr.bf16.gmra.mrb[0].mxu0 %v1103
  %v1957 = vpop.f32.mrb[0].mxu0
  %v1958 = vadd.f32 0.0, %v1957
  %v1959 = vpop.f32.mrb[0].mxu0
  %v1960 = vpop.f32.mrb[0].mxu0
  %v1961 = vadd.f32 0.0, %v1960
  %v1962 = vpop.f32.mrb[0].mxu0
  %1963 = vmatprep.mubr.bf16.mxu0 0
  %1964 = vmatmul.mubr.bf16.gmra.mrb[0].mxu0 %v1106
  %v1965 = vpop.f32.mrb[0].mxu0
  %v1966 = vadd.f32 0.0, %v1965
  %v1967 = vpop.f32.mrb[0].mxu0
  %v1968 = vpop.f32.mrb[0].mxu0
  %v1969 = vadd.f32 0.0, %v1968
  %v1970 = vpop.f32.mrb[0].mxu0
  %1971 = vmatprep.mubr.bf16.mxu0 0
  %1972 = vmatmul.mubr.bf16.gmra.mrb[0].mxu0 %v1109
  %v1973 = vpop.f32.mrb[0].mxu0
  %v1974 = vadd.f32 0.0, %v1973
  %v1975 = vpop.f32.mrb[0].mxu0
  %v1976 = vpop.f32.mrb[0].mxu0
  %v1977 = vadd.f32 0.0, %v1976
  %v1978 = vpop.f32.mrb[0].mxu0
  %1979 = vmatprep.mubr.bf16.mxu0 0
  %1980 = vmatmul.mubr.bf16.gmra.mrb[0].mxu0 %v1112
  %v1981 = vpop.f32.mrb[0].mxu0
  %v1982 = vadd.f32 0.0, %v1981
  %v1983 = vpop.f32.mrb[0].mxu0
  %v1984 = vpop.f32.mrb[0].mxu0
  %v1985 = vadd.f32 0.0, %v1984
  %v1986 = vpop.f32.mrb[0].mxu0
  %1987 = vmatprep.mubr.bf16.mxu0 0
  %1988 = vmatmul.mubr.bf16.gmra.mrb[0].mxu0 %v1115
  %v1989 = vpop.f32.mrb[0].mxu0
  %v1990 = vadd.f32 0.0, %v1989
  %v1991 = vpop.f32.mrb[0].mxu0
  %v1992 = vpop.f32.mrb[0].mxu0
  %v1993 = vadd.f32 0.0, %v1992
  %v1994 = vpop.f32.mrb[0].mxu0
  %1995 = vmatprep.mubr.bf16.mxu0 0
  %1996 = vmatmul.mubr.bf16.gmra.mrb[0].mxu0 %v1118
  %v1997 = vpop.f32.mrb[0].mxu0
  %v1998 = vadd.f32 0.0, %v1997
  %v1999 = vpop.f32.mrb[0].mxu0
  %v2000 = vpop.f32.mrb[0].mxu0
  %v2001 = vadd.f32 0.0, %v2000
  %v2002 = vpop.f32.mrb[0].mxu0
  %2003 = vmatprep.mubr.bf16.mxu0 0
  %2004 = vmatmul.mubr.bf16.gmra.mrb[0].mxu0 %v1121
  %v2005 = vpop.f32.mrb[0].mxu0
  %v2006 = vadd.f32 0.0, %v2005
  %v2007 = vpop.f32.mrb[0].mxu0
  %v2008 = vpop.f32.mrb[0].mxu0
  %v2009 = vadd.f32 0.0, %v2008
  %v2010 = vpop.f32.mrb[0].mxu0
  %2011 = vmatprep.mubr.bf16.mxu0 0
  %2012 = vmatmul.mubr.bf16.gmra.mrb[0].mxu0 %v1124
  %v2013 = vpop.f32.mrb[0].mxu0
  %v2014 = vadd.f32 0.0, %v2013
  %v2015 = vpop.f32.mrb[0].mxu0
  %v2016 = vpop.f32.mrb[0].mxu0
  %v2017 = vadd.f32 0.0, %v2016
  %v2018 = vpop.f32.mrb[0].mxu0
  %2019 = vmatprep.mubr.bf16.mxu0 0
  %2020 = vmatmul.mubr.bf16.gmra.mrb[0].mxu0 %v1127
  %v2021 = vpop.f32.mrb[0].mxu0
  %v2022 = vadd.f32 0.0, %v2021
  %v2023 = vpop.f32.mrb[0].mxu0
  %v2024 = vpop.f32.mrb[0].mxu0
  %v2025 = vadd.f32 0.0, %v2024
  %v2026 = vpop.f32.mrb[0].mxu0
  %2027 = vmatprep.mubr.bf16.mxu0 0
  %2028 = vmatmul.mubr.bf16.gmra.mrb[0].mxu0 %v1130
  %v2029 = vpop.f32.mrb[0].mxu0
  %v2030 = vadd.f32 0.0, %v2029
  %v2031 = vpop.f32.mrb[0].mxu0
  %v2032 = vpop.f32.mrb[0].mxu0
  %v2033 = vadd.f32 0.0, %v2032
  %v2034 = vpop.f32.mrb[0].mxu0
  %2035 = vmatprep.mubr.bf16.mxu0 0
  %2036 = vmatmul.mubr.bf16.gmra.mrb[0].mxu0 %v1133
  %v2037 = vpop.f32.mrb[0].mxu0
  %v2038 = vadd.f32 0.0, %v2037
  %v2039 = vpop.f32.mrb[0].mxu0
  %v2040 = vpop.f32.mrb[0].mxu0
  %v2041 = vadd.f32 0.0, %v2040
  %v2042 = vpop.f32.mrb[0].mxu0
  %2043 = vmatprep.mubr.bf16.mxu0 0
  %2044 = vmatmul.mubr.bf16.gmra.mrb[0].mxu0 %v1136
  %v2045 = vpop.f32.mrb[0].mxu0
  %v2046 = vadd.f32 0.0, %v2045
  %v2047 = vpop.f32.mrb[0].mxu0
  %v2048 = vpop.f32.mrb[0].mxu0
  %v2049 = vadd.f32 0.0, %v2048
  %v2050 = vpop.f32.mrb[0].mxu0
  %2051 = vmatprep.mubr.bf16.mxu0 0
  %2052 = vmatmul.mubr.bf16.gmra.mrb[0].mxu0 %v1139
  %v2053 = vpop.f32.mrb[0].mxu0
  %v2054 = vadd.f32 0.0, %v2053
  %v2055 = vpop.f32.mrb[0].mxu0
  %v2056 = vpop.f32.mrb[0].mxu0
  %v2057 = vadd.f32 0.0, %v2056
  %v2058 = vpop.f32.mrb[0].mxu0
  %2059 = vmatprep.mubr.bf16.mxu0 0
  %2060 = vmatmul.mubr.bf16.gmra.mrb[0].mxu0 %v1142
  %v2061 = vpop.f32.mrb[0].mxu0
  %v2062 = vadd.f32 0.0, %v2061
  %v2063 = vpop.f32.mrb[0].mxu0
  %v2064 = vpop.f32.mrb[0].mxu0
  %v2065 = vadd.f32 0.0, %v2064
  %v2066 = vpop.f32.mrb[0].mxu0
  %2067 = vmatprep.mubr.bf16.mxu0 0
  %2068 = vmatmul.mubr.bf16.gmra.mrb[0].mxu0 %v1145
  %v2069 = vpop.f32.mrb[0].mxu0
  %v2070 = vadd.f32 0.0, %v2069
  %v2071 = vpop.f32.mrb[0].mxu0
  %v2072 = vpop.f32.mrb[0].mxu0
  %v2073 = vadd.f32 0.0, %v2072
  %v2074 = vpop.f32.mrb[0].mxu0
  %2075 = vmatprep.mubr.bf16.mxu0 0
  %2076 = vmatmul.mubr.bf16.gmra.mrb[0].mxu0 %v1148
  %v2077 = vpop.f32.mrb[0].mxu0
  %v2078 = vadd.f32 0.0, %v2077
  %v2079 = vpop.f32.mrb[0].mxu0
  %v2080 = vpop.f32.mrb[0].mxu0
  %v2081 = vadd.f32 0.0, %v2080
  %v2082 = vpop.f32.mrb[0].mxu0
  %2083 = vmatprep.mubr.bf16.mxu0 0
  %2084 = vmatmul.mubr.bf16.gmra.mrb[0].mxu0 %v1151
  %v2085 = vpop.f32.mrb[0].mxu0
  %v2086 = vadd.f32 0.0, %v2085
  %v2087 = vpop.f32.mrb[0].mxu0
  %v2088 = vpop.f32.mrb[0].mxu0
  %v2089 = vadd.f32 0.0, %v2088
  %v2090 = vpop.f32.mrb[0].mxu0
  %2091 = vmatprep.mubr.bf16.mxu0 0
  %2092 = vmatmul.mubr.bf16.gmra.mrb[0].mxu0 %v1154
  %v2093 = vpop.f32.mrb[0].mxu0
  %v2094 = vadd.f32 0.0, %v2093
  %v2095 = vpop.f32.mrb[0].mxu0
  %v2096 = vpop.f32.mrb[0].mxu0
  %v2097 = vadd.f32 0.0, %v2096
  %v2098 = vpop.f32.mrb[0].mxu0
  %2099 = vdwg.mxu0
  %v2100 = vld [vmem:[%s2] sm:$0x1]
  %v2102 = vlaneseq
  %v2103 = vshrl.u32 %v2102, 7
  %v2104 = vsub.s32 0, %v2103
  %v2105 = vrot.slane %v2100, %v2104
  %v2107 = vmul.f32 %v1198, %v2105
  %v2108 = vmul.f32 %v1201, %v2105
  %v2109 = vmul.f32 %v1206, %v2105
  %v2110 = vmul.f32 %v1209, %v2105
  %v2111 = vmul.f32 %v1214, %v2105
  %v2112 = vmul.f32 %v1217, %v2105
  %v2113 = vmul.f32 %v1222, %v2105
  %v2114 = vmul.f32 %v1225, %v2105
  %v2115 = vmul.f32 %v1230, %v2105
  %v2116 = vmul.f32 %v1233, %v2105
  %v2117 = vmul.f32 %v1238, %v2105
  %v2118 = vmul.f32 %v1241, %v2105
  %v2119 = vmul.f32 %v1246, %v2105
  %v2120 = vmul.f32 %v1249, %v2105
  %v2121 = vmul.f32 %v1254, %v2105
  %v2122 = vmul.f32 %v1257, %v2105
  %v2123 = vmul.f32 %v1262, %v2105
  %v2124 = vmul.f32 %v1265, %v2105
  %v2125 = vmul.f32 %v1270, %v2105
  %v2126 = vmul.f32 %v1273, %v2105
  %v2127 = vmul.f32 %v1278, %v2105
  %v2128 = vmul.f32 %v1281, %v2105
  %v2129 = vmul.f32 %v1286, %v2105
  %v2130 = vmul.f32 %v1289, %v2105
  %v2131 = vmul.f32 %v1294, %v2105
  %v2132 = vmul.f32 %v1297, %v2105
  %v2133 = vmul.f32 %v1302, %v2105
  %v2134 = vmul.f32 %v1305, %v2105
  %v2135 = vmul.f32 %v1310, %v2105
  %v2136 = vmul.f32 %v1313, %v2105
  %v2137 = vmul.f32 %v1318, %v2105
  %v2138 = vmul.f32 %v1321, %v2105
  %v2139 = vmul.f32 %v1326, %v2105
  %v2140 = vmul.f32 %v1329, %v2105
  %v2141 = vmul.f32 %v1334, %v2105
  %v2142 = vmul.f32 %v1337, %v2105
  %v2143 = vmul.f32 %v1342, %v2105
  %v2144 = vmul.f32 %v1345, %v2105
  %v2145 = vmul.f32 %v1350, %v2105
  %v2146 = vmul.f32 %v1353, %v2105
  %v2147 = vmul.f32 %v1358, %v2105
  %v2148 = vmul.f32 %v1361, %v2105
  %v2149 = vmul.f32 %v1366, %v2105
  %v2150 = vmul.f32 %v1369, %v2105
  %v2151 = vmul.f32 %v1374, %v2105
  %v2152 = vmul.f32 %v1377, %v2105
  %v2153 = vmul.f32 %v1382, %v2105
  %v2154 = vmul.f32 %v1385, %v2105
  %v2155 = vmul.f32 %v1390, %v2105
  %v2156 = vmul.f32 %v1393, %v2105
  %v2157 = vmul.f32 %v1398, %v2105
  %v2158 = vmul.f32 %v1401, %v2105
  %v2159 = vmul.f32 %v1406, %v2105
  %v2160 = vmul.f32 %v1409, %v2105
  %v2161 = vmul.f32 %v1414, %v2105
  %v2162 = vmul.f32 %v1417, %v2105
  %v2163 = vmul.f32 %v1422, %v2105
  %v2164 = vmul.f32 %v1425, %v2105
  %v2165 = vmul.f32 %v1430, %v2105
  %v2166 = vmul.f32 %v1433, %v2105
  %v2167 = vmul.f32 %v1438, %v2105
  %v2168 = vmul.f32 %v1441, %v2105
  %v2169 = vmul.f32 %v1446, %v2105
  %v2170 = vmul.f32 %v1449, %v2105
  %v2171 = vmul.f32 %v1454, %v2105
  %v2172 = vmul.f32 %v1457, %v2105
  %v2173 = vmul.f32 %v1462, %v2105
  %v2174 = vmul.f32 %v1465, %v2105
  %v2175 = vmul.f32 %v1470, %v2105
  %v2176 = vmul.f32 %v1473, %v2105
  %v2177 = vmul.f32 %v1478, %v2105
  %v2178 = vmul.f32 %v1481, %v2105
  %v2179 = vmul.f32 %v1486, %v2105
  %v2180 = vmul.f32 %v1489, %v2105
  %v2181 = vmul.f32 %v1494, %v2105
  %v2182 = vmul.f32 %v1497, %v2105
  %v2183 = vmul.f32 %v1502, %v2105
  %v2184 = vmul.f32 %v1505, %v2105
  %v2185 = vmul.f32 %v1510, %v2105
  %v2186 = vmul.f32 %v1513, %v2105
  %v2187 = vmul.f32 %v1518, %v2105
  %v2188 = vmul.f32 %v1521, %v2105
  %v2189 = vmul.f32 %v1526, %v2105
  %v2190 = vmul.f32 %v1529, %v2105
  %v2191 = vmul.f32 %v1534, %v2105
  %v2192 = vmul.f32 %v1537, %v2105
  %v2193 = vmul.f32 %v1542, %v2105
  %v2194 = vmul.f32 %v1545, %v2105
  %v2195 = vmul.f32 %v1550, %v2105
  %v2196 = vmul.f32 %v1553, %v2105
  %v2197 = vmul.f32 %v1558, %v2105
  %v2198 = vmul.f32 %v1561, %v2105
  %v2199 = vmul.f32 %v1566, %v2105
  %v2200 = vmul.f32 %v1569, %v2105
  %v2201 = vmul.f32 %v1574, %v2105
  %v2202 = vmul.f32 %v1577, %v2105
  %v2203 = vmul.f32 %v1582, %v2105
  %v2204 = vmul.f32 %v1585, %v2105
  %v2205 = vmul.f32 %v1590, %v2105
  %v2206 = vmul.f32 %v1593, %v2105
  %v2207 = vmul.f32 %v1598, %v2105
  %v2208 = vmul.f32 %v1601, %v2105
  %v2209 = vmul.f32 %v1606, %v2105
  %v2210 = vmul.f32 %v1609, %v2105
  %v2211 = vmul.f32 %v1614, %v2105
  %v2212 = vmul.f32 %v1617, %v2105
  %v2213 = vmul.f32 %v1622, %v2105
  %v2214 = vmul.f32 %v1625, %v2105
  %v2215 = vmul.f32 %v1630, %v2105
  %v2216 = vmul.f32 %v1633, %v2105
  %v2217 = vmul.f32 %v1638, %v2105
  %v2218 = vmul.f32 %v1641, %v2105
  %v2219 = vmul.f32 %v1646, %v2105
  %v2220 = vmul.f32 %v1649, %v2105
  %v2221 = vmul.f32 %v1654, %v2105
  %v2222 = vmul.f32 %v1657, %v2105
  %v2223 = vmul.f32 %v1662, %v2105
  %v2224 = vmul.f32 %v1665, %v2105
  %v2225 = vmul.f32 %v1670, %v2105
  %v2226 = vmul.f32 %v1673, %v2105
  %v2227 = vmul.f32 %v1678, %v2105
  %v2228 = vmul.f32 %v1681, %v2105
  %v2229 = vmul.f32 %v1686, %v2105
  %v2230 = vmul.f32 %v1689, %v2105
  %v2231 = vmul.f32 %v1694, %v2105
  %v2232 = vmul.f32 %v1697, %v2105
  %v2233 = vmul.f32 %v1702, %v2105
  %v2234 = vmul.f32 %v1705, %v2105
  %v2235 = vmul.f32 %v1710, %v2105
  %v2236 = vmul.f32 %v1713, %v2105
  %v2237 = vmul.f32 %v1718, %v2105
  %v2238 = vmul.f32 %v1721, %v2105
  %v2239 = vmul.f32 %v1726, %v2105
  %v2240 = vmul.f32 %v1729, %v2105
  %v2241 = vmul.f32 %v1734, %v2105
  %v2242 = vmul.f32 %v1737, %v2105
  %v2243 = vmul.f32 %v1742, %v2105
  %v2244 = vmul.f32 %v1745, %v2105
  %v2245 = vmul.f32 %v1750, %v2105
  %v2246 = vmul.f32 %v1753, %v2105
  %v2247 = vmul.f32 %v1758, %v2105
  %v2248 = vmul.f32 %v1761, %v2105
  %v2249 = vmul.f32 %v1766, %v2105
  %v2250 = vmul.f32 %v1769, %v2105
  %v2251 = vmul.f32 %v1774, %v2105
  %v2252 = vmul.f32 %v1777, %v2105
  %v2253 = vmul.f32 %v1782, %v2105
  %v2254 = vmul.f32 %v1785, %v2105
  %v2255 = vmul.f32 %v1790, %v2105
  %v2256 = vmul.f32 %v1793, %v2105
  %v2257 = vmul.f32 %v1798, %v2105
  %v2258 = vmul.f32 %v1801, %v2105
  %v2259 = vmul.f32 %v1806, %v2105
  %v2260 = vmul.f32 %v1809, %v2105
  %v2261 = vmul.f32 %v1814, %v2105
  %v2262 = vmul.f32 %v1817, %v2105
  %v2263 = vmul.f32 %v1822, %v2105
  %v2264 = vmul.f32 %v1825, %v2105
  %v2265 = vmul.f32 %v1830, %v2105
  %v2266 = vmul.f32 %v1833, %v2105
  %v2267 = vmul.f32 %v1838, %v2105
  %v2268 = vmul.f32 %v1841, %v2105
  %v2269 = vmul.f32 %v1846, %v2105
  %v2270 = vmul.f32 %v1849, %v2105
  %v2271 = vmul.f32 %v1854, %v2105
  %v2272 = vmul.f32 %v1857, %v2105
  %v2273 = vmul.f32 %v1862, %v2105
  %v2274 = vmul.f32 %v1865, %v2105
  %v2275 = vmul.f32 %v1870, %v2105
  %v2276 = vmul.f32 %v1873, %v2105
  %v2277 = vmul.f32 %v1878, %v2105
  %v2278 = vmul.f32 %v1881, %v2105
  %v2279 = vmul.f32 %v1886, %v2105
  %v2280 = vmul.f32 %v1889, %v2105
  %v2281 = vmul.f32 %v1894, %v2105
  %v2282 = vmul.f32 %v1897, %v2105
  %v2283 = vmul.f32 %v1902, %v2105
  %v2284 = vmul.f32 %v1905, %v2105
  %v2285 = vmul.f32 %v1910, %v2105
  %v2286 = vmul.f32 %v1913, %v2105
  %v2287 = vmul.f32 %v1918, %v2105
  %v2288 = vmul.f32 %v1921, %v2105
  %v2289 = vmul.f32 %v1926, %v2105
  %v2290 = vmul.f32 %v1929, %v2105
  %v2291 = vmul.f32 %v1934, %v2105
  %v2292 = vmul.f32 %v1937, %v2105
  %v2293 = vmul.f32 %v1942, %v2105
  %v2294 = vmul.f32 %v1945, %v2105
  %v2295 = vmul.f32 %v1950, %v2105
  %v2296 = vmul.f32 %v1953, %v2105
  %v2297 = vmul.f32 %v1958, %v2105
  %v2298 = vmul.f32 %v1961, %v2105
  %v2299 = vmul.f32 %v1966, %v2105
  %v2300 = vmul.f32 %v1969, %v2105
  %v2301 = vmul.f32 %v1974, %v2105
  %v2302 = vmul.f32 %v1977, %v2105
  %v2303 = vmul.f32 %v1982, %v2105
  %v2304 = vmul.f32 %v1985, %v2105
  %v2305 = vmul.f32 %v1990, %v2105
  %v2306 = vmul.f32 %v1993, %v2105
  %v2307 = vmul.f32 %v1998, %v2105
  %v2308 = vmul.f32 %v2001, %v2105
  %v2309 = vmul.f32 %v2006, %v2105
  %v2310 = vmul.f32 %v2009, %v2105
  %v2311 = vmul.f32 %v2014, %v2105
  %v2312 = vmul.f32 %v2017, %v2105
  %v2313 = vmul.f32 %v2022, %v2105
  %v2314 = vmul.f32 %v2025, %v2105
  %v2315 = vmul.f32 %v2030, %v2105
  %v2316 = vmul.f32 %v2033, %v2105
  %v2317 = vmul.f32 %v2038, %v2105
  %v2318 = vmul.f32 %v2041, %v2105
  %v2319 = vmul.f32 %v2046, %v2105
  %v2320 = vmul.f32 %v2049, %v2105
  %v2321 = vmul.f32 %v2054, %v2105
  %v2322 = vmul.f32 %v2057, %v2105
  %v2323 = vmul.f32 %v2062, %v2105
  %v2324 = vmul.f32 %v2065, %v2105
  %v2325 = vmul.f32 %v2070, %v2105
  %v2326 = vmul.f32 %v2073, %v2105
  %v2327 = vmul.f32 %v2078, %v2105
  %v2328 = vmul.f32 %v2081, %v2105
  %v2329 = vmul.f32 %v2086, %v2105
  %v2330 = vmul.f32 %v2089, %v2105
  %v2331 = vmul.f32 %v2094, %v2105
  %v2332 = vmul.f32 %v2097, %v2105
  %v2333 = vld [vmem:[%s3] sm:$0x1]
  %v2335 = vlaneseq
  %v2336 = vshrl.u32 %v2335, 7
  %v2337 = vsub.s32 0, %v2336
  %v2338 = vrot.slane %v2333, %v2337
  %v2340 = vadd.f32 %v2107, %v2338
  %v2341 = vadd.f32 %v2108, %v2338
  %v2342 = vadd.f32 %v2109, %v2338
  %v2343 = vadd.f32 %v2110, %v2338
  %v2344 = vadd.f32 %v2111, %v2338
  %v2345 = vadd.f32 %v2112, %v2338
  %v2346 = vadd.f32 %v2113, %v2338
  %v2347 = vadd.f32 %v2114, %v2338
  %v2348 = vadd.f32 %v2115, %v2338
  %v2349 = vadd.f32 %v2116, %v2338
  %v2350 = vadd.f32 %v2117, %v2338
  %v2351 = vadd.f32 %v2118, %v2338
  %v2352 = vadd.f32 %v2119, %v2338
  %v2353 = vadd.f32 %v2120, %v2338
  %v2354 = vadd.f32 %v2121, %v2338
  %v2355 = vadd.f32 %v2122, %v2338
  %v2356 = vadd.f32 %v2123, %v2338
  %v2357 = vadd.f32 %v2124, %v2338
  %v2358 = vadd.f32 %v2125, %v2338
  %v2359 = vadd.f32 %v2126, %v2338
  %v2360 = vadd.f32 %v2127, %v2338
  %v2361 = vadd.f32 %v2128, %v2338
  %v2362 = vadd.f32 %v2129, %v2338
  %v2363 = vadd.f32 %v2130, %v2338
  %v2364 = vadd.f32 %v2131, %v2338
  %v2365 = vadd.f32 %v2132, %v2338
  %v2366 = vadd.f32 %v2133, %v2338
  %v2367 = vadd.f32 %v2134, %v2338
  %v2368 = vadd.f32 %v2135, %v2338
  %v2369 = vadd.f32 %v2136, %v2338
  %v2370 = vadd.f32 %v2137, %v2338
  %v2371 = vadd.f32 %v2138, %v2338
  %v2372 = vadd.f32 %v2139, %v2338
  %v2373 = vadd.f32 %v2140, %v2338
  %v2374 = vadd.f32 %v2141, %v2338
  %v2375 = vadd.f32 %v2142, %v2338
  %v2376 = vadd.f32 %v2143, %v2338
  %v2377 = vadd.f32 %v2144, %v2338
  %v2378 = vadd.f32 %v2145, %v2338
  %v2379 = vadd.f32 %v2146, %v2338
  %v2380 = vadd.f32 %v2147, %v2338
  %v2381 = vadd.f32 %v2148, %v2338
  %v2382 = vadd.f32 %v2149, %v2338
  %v2383 = vadd.f32 %v2150, %v2338
  %v2384 = vadd.f32 %v2151, %v2338
  %v2385 = vadd.f32 %v2152, %v2338
  %v2386 = vadd.f32 %v2153, %v2338
  %v2387 = vadd.f32 %v2154, %v2338
  %v2388 = vadd.f32 %v2155, %v2338
  %v2389 = vadd.f32 %v2156, %v2338
  %v2390 = vadd.f32 %v2157, %v2338
  %v2391 = vadd.f32 %v2158, %v2338
  %v2392 = vadd.f32 %v2159, %v2338
  %v2393 = vadd.f32 %v2160, %v2338
  %v2394 = vadd.f32 %v2161, %v2338
  %v2395 = vadd.f32 %v2162, %v2338
  %v2396 = vadd.f32 %v2163, %v2338
  %v2397 = vadd.f32 %v2164, %v2338
  %v2398 = vadd.f32 %v2165, %v2338
  %v2399 = vadd.f32 %v2166, %v2338
  %v2400 = vadd.f32 %v2167, %v2338
  %v2401 = vadd.f32 %v2168, %v2338
  %v2402 = vadd.f32 %v2169, %v2338
  %v2403 = vadd.f32 %v2170, %v2338
  %v2404 = vadd.f32 %v2171, %v2338
  %v2405 = vadd.f32 %v2172, %v2338
  %v2406 = vadd.f32 %v2173, %v2338
  %v2407 = vadd.f32 %v2174, %v2338
  %v2408 = vadd.f32 %v2175, %v2338
  %v2409 = vadd.f32 %v2176, %v2338
  %v2410 = vadd.f32 %v2177, %v2338
  %v2411 = vadd.f32 %v2178, %v2338
  %v2412 = vadd.f32 %v2179, %v2338
  %v2413 = vadd.f32 %v2180, %v2338
  %v2414 = vadd.f32 %v2181, %v2338
  %v2415 = vadd.f32 %v2182, %v2338
  %v2416 = vadd.f32 %v2183, %v2338
  %v2417 = vadd.f32 %v2184, %v2338
  %v2418 = vadd.f32 %v2185, %v2338
  %v2419 = vadd.f32 %v2186, %v2338
  %v2420 = vadd.f32 %v2187, %v2338
  %v2421 = vadd.f32 %v2188, %v2338
  %v2422 = vadd.f32 %v2189, %v2338
  %v2423 = vadd.f32 %v2190, %v2338
  %v2424 = vadd.f32 %v2191, %v2338
  %v2425 = vadd.f32 %v2192, %v2338
  %v2426 = vadd.f32 %v2193, %v2338
  %v2427 = vadd.f32 %v2194, %v2338
  %v2428 = vadd.f32 %v2195, %v2338
  %v2429 = vadd.f32 %v2196, %v2338
  %v2430 = vadd.f32 %v2197, %v2338
  %v2431 = vadd.f32 %v2198, %v2338
  %v2432 = vadd.f32 %v2199, %v2338
  %v2433 = vadd.f32 %v2200, %v2338
  %v2434 = vadd.f32 %v2201, %v2338
  %v2435 = vadd.f32 %v2202, %v2338
  %v2436 = vadd.f32 %v2203, %v2338
  %v2437 = vadd.f32 %v2204, %v2338
  %v2438 = vadd.f32 %v2205, %v2338
  %v2439 = vadd.f32 %v2206, %v2338
  %v2440 = vadd.f32 %v2207, %v2338
  %v2441 = vadd.f32 %v2208, %v2338
  %v2442 = vadd.f32 %v2209, %v2338
  %v2443 = vadd.f32 %v2210, %v2338
  %v2444 = vadd.f32 %v2211, %v2338
  %v2445 = vadd.f32 %v2212, %v2338
  %v2446 = vadd.f32 %v2213, %v2338
  %v2447 = vadd.f32 %v2214, %v2338
  %v2448 = vadd.f32 %v2215, %v2338
  %v2449 = vadd.f32 %v2216, %v2338
  %v2450 = vadd.f32 %v2217, %v2338
  %v2451 = vadd.f32 %v2218, %v2338
  %v2452 = vadd.f32 %v2219, %v2338
  %v2453 = vadd.f32 %v2220, %v2338
  %v2454 = vadd.f32 %v2221, %v2338
  %v2455 = vadd.f32 %v2222, %v2338
  %v2456 = vadd.f32 %v2223, %v2338
  %v2457 = vadd.f32 %v2224, %v2338
  %v2458 = vadd.f32 %v2225, %v2338
  %v2459 = vadd.f32 %v2226, %v2338
  %v2460 = vadd.f32 %v2227, %v2338
  %v2461 = vadd.f32 %v2228, %v2338
  %v2462 = vadd.f32 %v2229, %v2338
  %v2463 = vadd.f32 %v2230, %v2338
  %v2464 = vadd.f32 %v2231, %v2338
  %v2465 = vadd.f32 %v2232, %v2338
  %v2466 = vadd.f32 %v2233, %v2338
  %v2467 = vadd.f32 %v2234, %v2338
  %v2468 = vadd.f32 %v2235, %v2338
  %v2469 = vadd.f32 %v2236, %v2338
  %v2470 = vadd.f32 %v2237, %v2338
  %v2471 = vadd.f32 %v2238, %v2338
  %v2472 = vadd.f32 %v2239, %v2338
  %v2473 = vadd.f32 %v2240, %v2338
  %v2474 = vadd.f32 %v2241, %v2338
  %v2475 = vadd.f32 %v2242, %v2338
  %v2476 = vadd.f32 %v2243, %v2338
  %v2477 = vadd.f32 %v2244, %v2338
  %v2478 = vadd.f32 %v2245, %v2338
  %v2479 = vadd.f32 %v2246, %v2338
  %v2480 = vadd.f32 %v2247, %v2338
  %v2481 = vadd.f32 %v2248, %v2338
  %v2482 = vadd.f32 %v2249, %v2338
  %v2483 = vadd.f32 %v2250, %v2338
  %v2484 = vadd.f32 %v2251, %v2338
  %v2485 = vadd.f32 %v2252, %v2338
  %v2486 = vadd.f32 %v2253, %v2338
  %v2487 = vadd.f32 %v2254, %v2338
  %v2488 = vadd.f32 %v2255, %v2338
  %v2489 = vadd.f32 %v2256, %v2338
  %v2490 = vadd.f32 %v2257, %v2338
  %v2491 = vadd.f32 %v2258, %v2338
  %v2492 = vadd.f32 %v2259, %v2338
  %v2493 = vadd.f32 %v2260, %v2338
  %v2494 = vadd.f32 %v2261, %v2338
  %v2495 = vadd.f32 %v2262, %v2338
  %v2496 = vadd.f32 %v2263, %v2338
  %v2497 = vadd.f32 %v2264, %v2338
  %v2498 = vadd.f32 %v2265, %v2338
  %v2499 = vadd.f32 %v2266, %v2338
  %v2500 = vadd.f32 %v2267, %v2338
  %v2501 = vadd.f32 %v2268, %v2338
  %v2502 = vadd.f32 %v2269, %v2338
  %v2503 = vadd.f32 %v2270, %v2338
  %v2504 = vadd.f32 %v2271, %v2338
  %v2505 = vadd.f32 %v2272, %v2338
  %v2506 = vadd.f32 %v2273, %v2338
  %v2507 = vadd.f32 %v2274, %v2338
  %v2508 = vadd.f32 %v2275, %v2338
  %v2509 = vadd.f32 %v2276, %v2338
  %v2510 = vadd.f32 %v2277, %v2338
  %v2511 = vadd.f32 %v2278, %v2338
  %v2512 = vadd.f32 %v2279, %v2338
  %v2513 = vadd.f32 %v2280, %v2338
  %v2514 = vadd.f32 %v2281, %v2338
  %v2515 = vadd.f32 %v2282, %v2338
  %v2516 = vadd.f32 %v2283, %v2338
  %v2517 = vadd.f32 %v2284, %v2338
  %v2518 = vadd.f32 %v2285, %v2338
  %v2519 = vadd.f32 %v2286, %v2338
  %v2520 = vadd.f32 %v2287, %v2338
  %v2521 = vadd.f32 %v2288, %v2338
  %v2522 = vadd.f32 %v2289, %v2338
  %v2523 = vadd.f32 %v2290, %v2338
  %v2524 = vadd.f32 %v2291, %v2338
  %v2525 = vadd.f32 %v2292, %v2338
  %v2526 = vadd.f32 %v2293, %v2338
  %v2527 = vadd.f32 %v2294, %v2338
  %v2528 = vadd.f32 %v2295, %v2338
  %v2529 = vadd.f32 %v2296, %v2338
  %v2530 = vadd.f32 %v2297, %v2338
  %v2531 = vadd.f32 %v2298, %v2338
  %v2532 = vadd.f32 %v2299, %v2338
  %v2533 = vadd.f32 %v2300, %v2338
  %v2534 = vadd.f32 %v2301, %v2338
  %v2535 = vadd.f32 %v2302, %v2338
  %v2536 = vadd.f32 %v2303, %v2338
  %v2537 = vadd.f32 %v2304, %v2338
  %v2538 = vadd.f32 %v2305, %v2338
  %v2539 = vadd.f32 %v2306, %v2338
  %v2540 = vadd.f32 %v2307, %v2338
  %v2541 = vadd.f32 %v2308, %v2338
  %v2542 = vadd.f32 %v2309, %v2338
  %v2543 = vadd.f32 %v2310, %v2338
  %v2544 = vadd.f32 %v2311, %v2338
  %v2545 = vadd.f32 %v2312, %v2338
  %v2546 = vadd.f32 %v2313, %v2338
  %v2547 = vadd.f32 %v2314, %v2338
  %v2548 = vadd.f32 %v2315, %v2338
  %v2549 = vadd.f32 %v2316, %v2338
  %v2550 = vadd.f32 %v2317, %v2338
  %v2551 = vadd.f32 %v2318, %v2338
  %v2552 = vadd.f32 %v2319, %v2338
  %v2553 = vadd.f32 %v2320, %v2338
  %v2554 = vadd.f32 %v2321, %v2338
  %v2555 = vadd.f32 %v2322, %v2338
  %v2556 = vadd.f32 %v2323, %v2338
  %v2557 = vadd.f32 %v2324, %v2338
  %v2558 = vadd.f32 %v2325, %v2338
  %v2559 = vadd.f32 %v2326, %v2338
  %v2560 = vadd.f32 %v2327, %v2338
  %v2561 = vadd.f32 %v2328, %v2338
  %v2562 = vadd.f32 %v2329, %v2338
  %v2563 = vadd.f32 %v2330, %v2338
  %v2564 = vadd.f32 %v2331, %v2338
  %v2565 = vadd.f32 %v2332, %v2338
  %v2566 = vmax.f32 %v2340, 0.0
  %v2567 = vmax.f32 %v2341, 0.0
  %v2568 = vmax.f32 %v2342, 0.0
  %v2569 = vmax.f32 %v2343, 0.0
  %v2570 = vmax.f32 %v2344, 0.0
  %v2571 = vmax.f32 %v2345, 0.0
  %v2572 = vmax.f32 %v2346, 0.0
  %v2573 = vmax.f32 %v2347, 0.0
  %v2574 = vmax.f32 %v2348, 0.0
  %v2575 = vmax.f32 %v2349, 0.0
  %v2576 = vmax.f32 %v2350, 0.0
  %v2577 = vmax.f32 %v2351, 0.0
  %v2578 = vmax.f32 %v2352, 0.0
  %v2579 = vmax.f32 %v2353, 0.0
  %v2580 = vmax.f32 %v2354, 0.0
  %v2581 = vmax.f32 %v2355, 0.0
  %v2582 = vmax.f32 %v2356, 0.0
  %v2583 = vmax.f32 %v2357, 0.0
  %v2584 = vmax.f32 %v2358, 0.0
  %v2585 = vmax.f32 %v2359, 0.0
  %v2586 = vmax.f32 %v2360, 0.0
  %v2587 = vmax.f32 %v2361, 0.0
  %v2588 = vmax.f32 %v2362, 0.0
  %v2589 = vmax.f32 %v2363, 0.0
  %v2590 = vmax.f32 %v2364, 0.0
  %v2591 = vmax.f32 %v2365, 0.0
  %v2592 = vmax.f32 %v2366, 0.0
  %v2593 = vmax.f32 %v2367, 0.0
  %v2594 = vmax.f32 %v2368, 0.0
  %v2595 = vmax.f32 %v2369, 0.0
  %v2596 = vmax.f32 %v2370, 0.0
  %v2597 = vmax.f32 %v2371, 0.0
  %v2598 = vmax.f32 %v2372, 0.0
  %v2599 = vmax.f32 %v2373, 0.0
  %v2600 = vmax.f32 %v2374, 0.0
  %v2601 = vmax.f32 %v2375, 0.0
  %v2602 = vmax.f32 %v2376, 0.0
  %v2603 = vmax.f32 %v2377, 0.0
  %v2604 = vmax.f32 %v2378, 0.0
  %v2605 = vmax.f32 %v2379, 0.0
  %v2606 = vmax.f32 %v2380, 0.0
  %v2607 = vmax.f32 %v2381, 0.0
  %v2608 = vmax.f32 %v2382, 0.0
  %v2609 = vmax.f32 %v2383, 0.0
  %v2610 = vmax.f32 %v2384, 0.0
  %v2611 = vmax.f32 %v2385, 0.0
  %v2612 = vmax.f32 %v2386, 0.0
  %v2613 = vmax.f32 %v2387, 0.0
  %v2614 = vmax.f32 %v2388, 0.0
  %v2615 = vmax.f32 %v2389, 0.0
  %v2616 = vmax.f32 %v2390, 0.0
  %v2617 = vmax.f32 %v2391, 0.0
  %v2618 = vmax.f32 %v2392, 0.0
  %v2619 = vmax.f32 %v2393, 0.0
  %v2620 = vmax.f32 %v2394, 0.0
  %v2621 = vmax.f32 %v2395, 0.0
  %v2622 = vmax.f32 %v2396, 0.0
  %v2623 = vmax.f32 %v2397, 0.0
  %v2624 = vmax.f32 %v2398, 0.0
  %v2625 = vmax.f32 %v2399, 0.0
  %v2626 = vmax.f32 %v2400, 0.0
  %v2627 = vmax.f32 %v2401, 0.0
  %v2628 = vmax.f32 %v2402, 0.0
  %v2629 = vmax.f32 %v2403, 0.0
  %v2630 = vmax.f32 %v2404, 0.0
  %v2631 = vmax.f32 %v2405, 0.0
  %v2632 = vmax.f32 %v2406, 0.0
  %v2633 = vmax.f32 %v2407, 0.0
  %v2634 = vmax.f32 %v2408, 0.0
  %v2635 = vmax.f32 %v2409, 0.0
  %v2636 = vmax.f32 %v2410, 0.0
  %v2637 = vmax.f32 %v2411, 0.0
  %v2638 = vmax.f32 %v2412, 0.0
  %v2639 = vmax.f32 %v2413, 0.0
  %v2640 = vmax.f32 %v2414, 0.0
  %v2641 = vmax.f32 %v2415, 0.0
  %v2642 = vmax.f32 %v2416, 0.0
  %v2643 = vmax.f32 %v2417, 0.0
  %v2644 = vmax.f32 %v2418, 0.0
  %v2645 = vmax.f32 %v2419, 0.0
  %v2646 = vmax.f32 %v2420, 0.0
  %v2647 = vmax.f32 %v2421, 0.0
  %v2648 = vmax.f32 %v2422, 0.0
  %v2649 = vmax.f32 %v2423, 0.0
  %v2650 = vmax.f32 %v2424, 0.0
  %v2651 = vmax.f32 %v2425, 0.0
  %v2652 = vmax.f32 %v2426, 0.0
  %v2653 = vmax.f32 %v2427, 0.0
  %v2654 = vmax.f32 %v2428, 0.0
  %v2655 = vmax.f32 %v2429, 0.0
  %v2656 = vmax.f32 %v2430, 0.0
  %v2657 = vmax.f32 %v2431, 0.0
  %v2658 = vmax.f32 %v2432, 0.0
  %v2659 = vmax.f32 %v2433, 0.0
  %v2660 = vmax.f32 %v2434, 0.0
  %v2661 = vmax.f32 %v2435, 0.0
  %v2662 = vmax.f32 %v2436, 0.0
  %v2663 = vmax.f32 %v2437, 0.0
  %v2664 = vmax.f32 %v2438, 0.0
  %v2665 = vmax.f32 %v2439, 0.0
  %v2666 = vmax.f32 %v2440, 0.0
  %v2667 = vmax.f32 %v2441, 0.0
  %v2668 = vmax.f32 %v2442, 0.0
  %v2669 = vmax.f32 %v2443, 0.0
  %v2670 = vmax.f32 %v2444, 0.0
  %v2671 = vmax.f32 %v2445, 0.0
  %v2672 = vmax.f32 %v2446, 0.0
  %v2673 = vmax.f32 %v2447, 0.0
  %v2674 = vmax.f32 %v2448, 0.0
  %v2675 = vmax.f32 %v2449, 0.0
  %v2676 = vmax.f32 %v2450, 0.0
  %v2677 = vmax.f32 %v2451, 0.0
  %v2678 = vmax.f32 %v2452, 0.0
  %v2679 = vmax.f32 %v2453, 0.0
  %v2680 = vmax.f32 %v2454, 0.0
  %v2681 = vmax.f32 %v2455, 0.0
  %v2682 = vmax.f32 %v2456, 0.0
  %v2683 = vmax.f32 %v2457, 0.0
  %v2684 = vmax.f32 %v2458, 0.0
  %v2685 = vmax.f32 %v2459, 0.0
  %v2686 = vmax.f32 %v2460, 0.0
  %v2687 = vmax.f32 %v2461, 0.0
  %v2688 = vmax.f32 %v2462, 0.0
  %v2689 = vmax.f32 %v2463, 0.0
  %v2690 = vmax.f32 %v2464, 0.0
  %v2691 = vmax.f32 %v2465, 0.0
  %v2692 = vmax.f32 %v2466, 0.0
  %v2693 = vmax.f32 %v2467, 0.0
  %v2694 = vmax.f32 %v2468, 0.0
  %v2695 = vmax.f32 %v2469, 0.0
  %v2696 = vmax.f32 %v2470, 0.0
  %v2697 = vmax.f32 %v2471, 0.0
  %v2698 = vmax.f32 %v2472, 0.0
  %v2699 = vmax.f32 %v2473, 0.0
  %v2700 = vmax.f32 %v2474, 0.0
  %v2701 = vmax.f32 %v2475, 0.0
  %v2702 = vmax.f32 %v2476, 0.0
  %v2703 = vmax.f32 %v2477, 0.0
  %v2704 = vmax.f32 %v2478, 0.0
  %v2705 = vmax.f32 %v2479, 0.0
  %v2706 = vmax.f32 %v2480, 0.0
  %v2707 = vmax.f32 %v2481, 0.0
  %v2708 = vmax.f32 %v2482, 0.0
  %v2709 = vmax.f32 %v2483, 0.0
  %v2710 = vmax.f32 %v2484, 0.0
  %v2711 = vmax.f32 %v2485, 0.0
  %v2712 = vmax.f32 %v2486, 0.0
  %v2713 = vmax.f32 %v2487, 0.0
  %v2714 = vmax.f32 %v2488, 0.0
  %v2715 = vmax.f32 %v2489, 0.0
  %v2716 = vmax.f32 %v2490, 0.0
  %v2717 = vmax.f32 %v2491, 0.0
  %v2718 = vmax.f32 %v2492, 0.0
  %v2719 = vmax.f32 %v2493, 0.0
  %v2720 = vmax.f32 %v2494, 0.0
  %v2721 = vmax.f32 %v2495, 0.0
  %v2722 = vmax.f32 %v2496, 0.0
  %v2723 = vmax.f32 %v2497, 0.0
  %v2724 = vmax.f32 %v2498, 0.0
  %v2725 = vmax.f32 %v2499, 0.0
  %v2726 = vmax.f32 %v2500, 0.0
  %v2727 = vmax.f32 %v2501, 0.0
  %v2728 = vmax.f32 %v2502, 0.0
  %v2729 = vmax.f32 %v2503, 0.0
  %v2730 = vmax.f32 %v2504, 0.0
  %v2731 = vmax.f32 %v2505, 0.0
  %v2732 = vmax.f32 %v2506, 0.0
  %v2733 = vmax.f32 %v2507, 0.0
  %v2734 = vmax.f32 %v2508, 0.0
  %v2735 = vmax.f32 %v2509, 0.0
  %v2736 = vmax.f32 %v2510, 0.0
  %v2737 = vmax.f32 %v2511, 0.0
  %v2738 = vmax.f32 %v2512, 0.0
  %v2739 = vmax.f32 %v2513, 0.0
  %v2740 = vmax.f32 %v2514, 0.0
  %v2741 = vmax.f32 %v2515, 0.0
  %v2742 = vmax.f32 %v2516, 0.0
  %v2743 = vmax.f32 %v2517, 0.0
  %v2744 = vmax.f32 %v2518, 0.0
  %v2745 = vmax.f32 %v2519, 0.0
  %v2746 = vmax.f32 %v2520, 0.0
  %v2747 = vmax.f32 %v2521, 0.0
  %v2748 = vmax.f32 %v2522, 0.0
  %v2749 = vmax.f32 %v2523, 0.0
  %v2750 = vmax.f32 %v2524, 0.0
  %v2751 = vmax.f32 %v2525, 0.0
  %v2752 = vmax.f32 %v2526, 0.0
  %v2753 = vmax.f32 %v2527, 0.0
  %v2754 = vmax.f32 %v2528, 0.0
  %v2755 = vmax.f32 %v2529, 0.0
  %v2756 = vmax.f32 %v2530, 0.0
  %v2757 = vmax.f32 %v2531, 0.0
  %v2758 = vmax.f32 %v2532, 0.0
  %v2759 = vmax.f32 %v2533, 0.0
  %v2760 = vmax.f32 %v2534, 0.0
  %v2761 = vmax.f32 %v2535, 0.0
  %v2762 = vmax.f32 %v2536, 0.0
  %v2763 = vmax.f32 %v2537, 0.0
  %v2764 = vmax.f32 %v2538, 0.0
  %v2765 = vmax.f32 %v2539, 0.0
  %v2766 = vmax.f32 %v2540, 0.0
  %v2767 = vmax.f32 %v2541, 0.0
  %v2768 = vmax.f32 %v2542, 0.0
  %v2769 = vmax.f32 %v2543, 0.0
  %v2770 = vmax.f32 %v2544, 0.0
  %v2771 = vmax.f32 %v2545, 0.0
  %v2772 = vmax.f32 %v2546, 0.0
  %v2773 = vmax.f32 %v2547, 0.0
  %v2774 = vmax.f32 %v2548, 0.0
  %v2775 = vmax.f32 %v2549, 0.0
  %v2776 = vmax.f32 %v2550, 0.0
  %v2777 = vmax.f32 %v2551, 0.0
  %v2778 = vmax.f32 %v2552, 0.0
  %v2779 = vmax.f32 %v2553, 0.0
  %v2780 = vmax.f32 %v2554, 0.0
  %v2781 = vmax.f32 %v2555, 0.0
  %v2782 = vmax.f32 %v2556, 0.0
  %v2783 = vmax.f32 %v2557, 0.0
  %v2784 = vmax.f32 %v2558, 0.0
  %v2785 = vmax.f32 %v2559, 0.0
  %v2786 = vmax.f32 %v2560, 0.0
  %v2787 = vmax.f32 %v2561, 0.0
  %v2788 = vmax.f32 %v2562, 0.0
  %v2789 = vmax.f32 %v2563, 0.0
  %v2790 = vmax.f32 %v2564, 0.0
  %v2791 = vmax.f32 %v2565, 0.0
  %v2792 = vpack.c.bf16 %v2567, %v2566
  %v2793 = vpack.c.bf16 %v2569, %v2568
  %v2794 = vpack.c.bf16 %v2571, %v2570
  %v2795 = vpack.c.bf16 %v2573, %v2572
  %v2796 = vpack.c.bf16 %v2575, %v2574
  %v2797 = vpack.c.bf16 %v2577, %v2576
  %v2798 = vpack.c.bf16 %v2579, %v2578
  %v2799 = vpack.c.bf16 %v2581, %v2580
  %v2800 = vpack.c.bf16 %v2583, %v2582
  %v2801 = vpack.c.bf16 %v2585, %v2584
  %v2802 = vpack.c.bf16 %v2587, %v2586
  %v2803 = vpack.c.bf16 %v2589, %v2588
  %v2804 = vpack.c.bf16 %v2591, %v2590
  %v2805 = vpack.c.bf16 %v2593, %v2592
  %v2806 = vpack.c.bf16 %v2595, %v2594
  %v2807 = vpack.c.bf16 %v2597, %v2596
  %v2808 = vpack.c.bf16 %v2599, %v2598
  %v2809 = vpack.c.bf16 %v2601, %v2600
  %v2810 = vpack.c.bf16 %v2603, %v2602
  %v2811 = vpack.c.bf16 %v2605, %v2604
  %v2812 = vpack.c.bf16 %v2607, %v2606
  %v2813 = vpack.c.bf16 %v2609, %v2608
  %v2814 = vpack.c.bf16 %v2611, %v2610
  %v2815 = vpack.c.bf16 %v2613, %v2612
  %v2816 = vpack.c.bf16 %v2615, %v2614
  %v2817 = vpack.c.bf16 %v2617, %v2616
  %v2818 = vpack.c.bf16 %v2619, %v2618
  %v2819 = vpack.c.bf16 %v2621, %v2620
  %v2820 = vpack.c.bf16 %v2623, %v2622
  %v2821 = vpack.c.bf16 %v2625, %v2624
  %v2822 = vpack.c.bf16 %v2627, %v2626
  %v2823 = vpack.c.bf16 %v2629, %v2628
  %v2824 = vpack.c.bf16 %v2631, %v2630
  %v2825 = vpack.c.bf16 %v2633, %v2632
  %v2826 = vpack.c.bf16 %v2635, %v2634
  %v2827 = vpack.c.bf16 %v2637, %v2636
  %v2828 = vpack.c.bf16 %v2639, %v2638
  %v2829 = vpack.c.bf16 %v2641, %v2640
  %v2830 = vpack.c.bf16 %v2643, %v2642
  %v2831 = vpack.c.bf16 %v2645, %v2644
  %v2832 = vpack.c.bf16 %v2647, %v2646
  %v2833 = vpack.c.bf16 %v2649, %v2648
  %v2834 = vpack.c.bf16 %v2651, %v2650
  %v2835 = vpack.c.bf16 %v2653, %v2652
  %v2836 = vpack.c.bf16 %v2655, %v2654
  %v2837 = vpack.c.bf16 %v2657, %v2656
  %v2838 = vpack.c.bf16 %v2659, %v2658
  %v2839 = vpack.c.bf16 %v2661, %v2660
  %v2840 = vpack.c.bf16 %v2663, %v2662
  %v2841 = vpack.c.bf16 %v2665, %v2664
  %v2842 = vpack.c.bf16 %v2667, %v2666
  %v2843 = vpack.c.bf16 %v2669, %v2668
  %v2844 = vpack.c.bf16 %v2671, %v2670
  %v2845 = vpack.c.bf16 %v2673, %v2672
  %v2846 = vpack.c.bf16 %v2675, %v2674
  %v2847 = vpack.c.bf16 %v2677, %v2676
  %v2848 = vpack.c.bf16 %v2679, %v2678
  %v2849 = vpack.c.bf16 %v2681, %v2680
  %v2850 = vpack.c.bf16 %v2683, %v2682
  %v2851 = vpack.c.bf16 %v2685, %v2684
  %v2852 = vpack.c.bf16 %v2687, %v2686
  %v2853 = vpack.c.bf16 %v2689, %v2688
  %v2854 = vpack.c.bf16 %v2691, %v2690
  %v2855 = vpack.c.bf16 %v2693, %v2692
  %v2856 = vpack.c.bf16 %v2695, %v2694
  %v2857 = vpack.c.bf16 %v2697, %v2696
  %v2858 = vpack.c.bf16 %v2699, %v2698
  %v2859 = vpack.c.bf16 %v2701, %v2700
  %v2860 = vpack.c.bf16 %v2703, %v2702
  %v2861 = vpack.c.bf16 %v2705, %v2704
  %v2862 = vpack.c.bf16 %v2707, %v2706
  %v2863 = vpack.c.bf16 %v2709, %v2708
  %v2864 = vpack.c.bf16 %v2711, %v2710
  %v2865 = vpack.c.bf16 %v2713, %v2712
  %v2866 = vpack.c.bf16 %v2715, %v2714
  %v2867 = vpack.c.bf16 %v2717, %v2716
  %v2868 = vpack.c.bf16 %v2719, %v2718
  %v2869 = vpack.c.bf16 %v2721, %v2720
  %v2870 = vpack.c.bf16 %v2723, %v2722
  %v2871 = vpack.c.bf16 %v2725, %v2724
  %v2872 = vpack.c.bf16 %v2727, %v2726
  %v2873 = vpack.c.bf16 %v2729, %v2728
  %v2874 = vpack.c.bf16 %v2731, %v2730
  %v2875 = vpack.c.bf16 %v2733, %v2732
  %v2876 = vpack.c.bf16 %v2735, %v2734
  %v2877 = vpack.c.bf16 %v2737, %v2736
  %v2878 = vpack.c.bf16 %v2739, %v2738
  %v2879 = vpack.c.bf16 %v2741, %v2740
  %v2880 = vpack.c.bf16 %v2743, %v2742
  %v2881 = vpack.c.bf16 %v2745, %v2744
  %v2882 = vpack.c.bf16 %v2747, %v2746
  %v2883 = vpack.c.bf16 %v2749, %v2748
  %v2884 = vpack.c.bf16 %v2751, %v2750
  %v2885 = vpack.c.bf16 %v2753, %v2752
  %v2886 = vpack.c.bf16 %v2755, %v2754
  %v2887 = vpack.c.bf16 %v2757, %v2756
  %v2888 = vpack.c.bf16 %v2759, %v2758
  %v2889 = vpack.c.bf16 %v2761, %v2760
  %v2890 = vpack.c.bf16 %v2763, %v2762
  %v2891 = vpack.c.bf16 %v2765, %v2764
  %v2892 = vpack.c.bf16 %v2767, %v2766
  %v2893 = vpack.c.bf16 %v2769, %v2768
  %v2894 = vpack.c.bf16 %v2771, %v2770
  %v2895 = vpack.c.bf16 %v2773, %v2772
  %v2896 = vpack.c.bf16 %v2775, %v2774
  %v2897 = vpack.c.bf16 %v2777, %v2776
  %v2898 = vpack.c.bf16 %v2779, %v2778
  %v2899 = vpack.c.bf16 %v2781, %v2780
  %v2900 = vpack.c.bf16 %v2783, %v2782
  %v2901 = vpack.c.bf16 %v2785, %v2784
  %v2902 = vpack.c.bf16 %v2787, %v2786
  %v2903 = vpack.c.bf16 %v2789, %v2788
  %v2904 = vpack.c.bf16 %v2791, %v2790
  %v3018 = vunpack.c.l.b16 %v2792
  %v3019 = vunpack.c.h.b16 %v2792
  %v3020 = vunpack.c.l.b16 %v2793
  %v3021 = vunpack.c.h.b16 %v2793
  %v3022 = vunpack.c.l.b16 %v2794
  %v3023 = vunpack.c.h.b16 %v2794
  %v3024 = vunpack.c.l.b16 %v2795
  %v3025 = vunpack.c.h.b16 %v2795
  %v3026 = vunpack.c.l.b16 %v2796
  %v3027 = vunpack.c.h.b16 %v2796
  %v3028 = vunpack.c.l.b16 %v2797
  %v3029 = vunpack.c.h.b16 %v2797
  %v3030 = vunpack.c.l.b16 %v2798
  %v3031 = vunpack.c.h.b16 %v2798
  %v3032 = vunpack.c.l.b16 %v2799
  %v3033 = vunpack.c.h.b16 %v2799
  %v3034 = vunpack.c.l.b16 %v2800
  %v3035 = vunpack.c.h.b16 %v2800
  %v3036 = vunpack.c.l.b16 %v2801
  %v3037 = vunpack.c.h.b16 %v2801
  %v3038 = vunpack.c.l.b16 %v2802
  %v3039 = vunpack.c.h.b16 %v2802
  %v3040 = vunpack.c.l.b16 %v2803
  %v3041 = vunpack.c.h.b16 %v2803
  %v3042 = vunpack.c.l.b16 %v2804
  %v3043 = vunpack.c.h.b16 %v2804
  %v3044 = vunpack.c.l.b16 %v2805
  %v3045 = vunpack.c.h.b16 %v2805
  %v3046 = vunpack.c.l.b16 %v2806
  %v3047 = vunpack.c.h.b16 %v2806
  %v3048 = vunpack.c.l.b16 %v2807
  %v3049 = vunpack.c.h.b16 %v2807
  %v3050 = vunpack.c.l.b16 %v2808
  %v3051 = vunpack.c.h.b16 %v2808
  %v3052 = vunpack.c.l.b16 %v2809
  %v3053 = vunpack.c.h.b16 %v2809
  %v3054 = vunpack.c.l.b16 %v2810
  %v3055 = vunpack.c.h.b16 %v2810
  %v3056 = vunpack.c.l.b16 %v2811
  %v3057 = vunpack.c.h.b16 %v2811
  %v3058 = vunpack.c.l.b16 %v2812
  %v3059 = vunpack.c.h.b16 %v2812
  %v3060 = vunpack.c.l.b16 %v2813
  %v3061 = vunpack.c.h.b16 %v2813
  %v3062 = vunpack.c.l.b16 %v2814
  %v3063 = vunpack.c.h.b16 %v2814
  %v3064 = vunpack.c.l.b16 %v2815
  %v3065 = vunpack.c.h.b16 %v2815
  %v3066 = vunpack.c.l.b16 %v2816
  %v3067 = vunpack.c.h.b16 %v2816
  %v3068 = vunpack.c.l.b16 %v2817
  %v3069 = vunpack.c.h.b16 %v2817
  %v3070 = vunpack.c.l.b16 %v2818
  %v3071 = vunpack.c.h.b16 %v2818
  %v3072 = vunpack.c.l.b16 %v2819
  %v3073 = vunpack.c.h.b16 %v2819
  %v3074 = vunpack.c.l.b16 %v2820
  %v3075 = vunpack.c.h.b16 %v2820
  %v3076 = vunpack.c.l.b16 %v2821
  %v3077 = vunpack.c.h.b16 %v2821
  %v3078 = vunpack.c.l.b16 %v2822
  %v3079 = vunpack.c.h.b16 %v2822
  %v3080 = vunpack.c.l.b16 %v2823
  %v3081 = vunpack.c.h.b16 %v2823
  %v3082 = vunpack.c.l.b16 %v2824
  %v3083 = vunpack.c.h.b16 %v2824
  %v3084 = vunpack.c.l.b16 %v2825
  %v3085 = vunpack.c.h.b16 %v2825
  %v3086 = vunpack.c.l.b16 %v2826
  %v3087 = vunpack.c.h.b16 %v2826
  %v3088 = vunpack.c.l.b16 %v2827
  %v3089 = vunpack.c.h.b16 %v2827
  %v3090 = vunpack.c.l.b16 %v2828
  %v3091 = vunpack.c.h.b16 %v2828
  %v3092 = vunpack.c.l.b16 %v2829
  %v3093 = vunpack.c.h.b16 %v2829
  %v3094 = vunpack.c.l.b16 %v2830
  %v3095 = vunpack.c.h.b16 %v2830
  %v3096 = vunpack.c.l.b16 %v2831
  %v3097 = vunpack.c.h.b16 %v2831
  %v3098 = vunpack.c.l.b16 %v2832
  %v3099 = vunpack.c.h.b16 %v2832
  %v3100 = vunpack.c.l.b16 %v2833
  %v3101 = vunpack.c.h.b16 %v2833
  %v3102 = vunpack.c.l.b16 %v2834
  %v3103 = vunpack.c.h.b16 %v2834
  %v3104 = vunpack.c.l.b16 %v2835
  %v3105 = vunpack.c.h.b16 %v2835
  %v3106 = vunpack.c.l.b16 %v2836
  %v3107 = vunpack.c.h.b16 %v2836
  %v3108 = vunpack.c.l.b16 %v2837
  %v3109 = vunpack.c.h.b16 %v2837
  %v3110 = vunpack.c.l.b16 %v2838
  %v3111 = vunpack.c.h.b16 %v2838
  %v3112 = vunpack.c.l.b16 %v2839
  %v3113 = vunpack.c.h.b16 %v2839
  %v3114 = vunpack.c.l.b16 %v2840
  %v3115 = vunpack.c.h.b16 %v2840
  %v3116 = vunpack.c.l.b16 %v2841
  %v3117 = vunpack.c.h.b16 %v2841
  %v3118 = vunpack.c.l.b16 %v2842
  %v3119 = vunpack.c.h.b16 %v2842
  %v3120 = vunpack.c.l.b16 %v2843
  %v3121 = vunpack.c.h.b16 %v2843
  %v3122 = vunpack.c.l.b16 %v2844
  %v3123 = vunpack.c.h.b16 %v2844
  %v3124 = vunpack.c.l.b16 %v2845
  %v3125 = vunpack.c.h.b16 %v2845
  %v3126 = vunpack.c.l.b16 %v2846
  %v3127 = vunpack.c.h.b16 %v2846
  %v3128 = vunpack.c.l.b16 %v2847
  %v3129 = vunpack.c.h.b16 %v2847
  %v3130 = vunpack.c.l.b16 %v2848
  %v3131 = vunpack.c.h.b16 %v2848
  %v3132 = vunpack.c.l.b16 %v2849
  %v3133 = vunpack.c.h.b16 %v2849
  %v3134 = vunpack.c.l.b16 %v2850
  %v3135 = vunpack.c.h.b16 %v2850
  %v3136 = vunpack.c.l.b16 %v2851
  %v3137 = vunpack.c.h.b16 %v2851
  %v3138 = vunpack.c.l.b16 %v2852
  %v3139 = vunpack.c.h.b16 %v2852
  %v3140 = vunpack.c.l.b16 %v2853
  %v3141 = vunpack.c.h.b16 %v2853
  %v3142 = vunpack.c.l.b16 %v2854
  %v3143 = vunpack.c.h.b16 %v2854
  %v3144 = vunpack.c.l.b16 %v2855
  %v3145 = vunpack.c.h.b16 %v2855
  %v3146 = vunpack.c.l.b16 %v2856
  %v3147 = vunpack.c.h.b16 %v2856
  %v3148 = vunpack.c.l.b16 %v2857
  %v3149 = vunpack.c.h.b16 %v2857
  %v3150 = vunpack.c.l.b16 %v2858
  %v3151 = vunpack.c.h.b16 %v2858
  %v3152 = vunpack.c.l.b16 %v2859
  %v3153 = vunpack.c.h.b16 %v2859
  %v3154 = vunpack.c.l.b16 %v2860
  %v3155 = vunpack.c.h.b16 %v2860
  %v3156 = vunpack.c.l.b16 %v2861
  %v3157 = vunpack.c.h.b16 %v2861
  %v3158 = vunpack.c.l.b16 %v2862
  %v3159 = vunpack.c.h.b16 %v2862
  %v3160 = vunpack.c.l.b16 %v2863
  %v3161 = vunpack.c.h.b16 %v2863
  %v3162 = vunpack.c.l.b16 %v2864
  %v3163 = vunpack.c.h.b16 %v2864
  %v3164 = vunpack.c.l.b16 %v2865
  %v3165 = vunpack.c.h.b16 %v2865
  %v3166 = vunpack.c.l.b16 %v2866
  %v3167 = vunpack.c.h.b16 %v2866
  %v3168 = vunpack.c.l.b16 %v2867
  %v3169 = vunpack.c.h.b16 %v2867
  %v3170 = vunpack.c.l.b16 %v2868
  %v3171 = vunpack.c.h.b16 %v2868
  %v3172 = vunpack.c.l.b16 %v2869
  %v3173 = vunpack.c.h.b16 %v2869
  %v3174 = vunpack.c.l.b16 %v2870
  %v3175 = vunpack.c.h.b16 %v2870
  %v3176 = vunpack.c.l.b16 %v2871
  %v3177 = vunpack.c.h.b16 %v2871
  %v3178 = vunpack.c.l.b16 %v2872
  %v3179 = vunpack.c.h.b16 %v2872
  %v3180 = vunpack.c.l.b16 %v2873
  %v3181 = vunpack.c.h.b16 %v2873
  %v3182 = vunpack.c.l.b16 %v2874
  %v3183 = vunpack.c.h.b16 %v2874
  %v3184 = vunpack.c.l.b16 %v2875
  %v3185 = vunpack.c.h.b16 %v2875
  %v3186 = vunpack.c.l.b16 %v2876
  %v3187 = vunpack.c.h.b16 %v2876
  %v3188 = vunpack.c.l.b16 %v2877
  %v3189 = vunpack.c.h.b16 %v2877
  %v3190 = vunpack.c.l.b16 %v2878
  %v3191 = vunpack.c.h.b16 %v2878
  %v3192 = vunpack.c.l.b16 %v2879
  %v3193 = vunpack.c.h.b16 %v2879
  %v3194 = vunpack.c.l.b16 %v2880
  %v3195 = vunpack.c.h.b16 %v2880
  %v3196 = vunpack.c.l.b16 %v2881
  %v3197 = vunpack.c.h.b16 %v2881
  %v3198 = vunpack.c.l.b16 %v2882
  %v3199 = vunpack.c.h.b16 %v2882
  %v3200 = vunpack.c.l.b16 %v2883
  %v3201 = vunpack.c.h.b16 %v2883
  %v3202 = vunpack.c.l.b16 %v2884
  %v3203 = vunpack.c.h.b16 %v2884
  %v3204 = vunpack.c.l.b16 %v2885
  %v3205 = vunpack.c.h.b16 %v2885
  %v3206 = vunpack.c.l.b16 %v2886
  %v3207 = vunpack.c.h.b16 %v2886
  %v3208 = vunpack.c.l.b16 %v2887
  %v3209 = vunpack.c.h.b16 %v2887
  %v3210 = vunpack.c.l.b16 %v2888
  %v3211 = vunpack.c.h.b16 %v2888
  %v3212 = vunpack.c.l.b16 %v2889
  %v3213 = vunpack.c.h.b16 %v2889
  %v3214 = vunpack.c.l.b16 %v2890
  %v3215 = vunpack.c.h.b16 %v2890
  %v3216 = vunpack.c.l.b16 %v2891
  %v3217 = vunpack.c.h.b16 %v2891
  %v3218 = vunpack.c.l.b16 %v2892
  %v3219 = vunpack.c.h.b16 %v2892
  %v3220 = vunpack.c.l.b16 %v2893
  %v3221 = vunpack.c.h.b16 %v2893
  %v3222 = vunpack.c.l.b16 %v2894
  %v3223 = vunpack.c.h.b16 %v2894
  %v3224 = vunpack.c.l.b16 %v2895
  %v3225 = vunpack.c.h.b16 %v2895
  %v3226 = vunpack.c.l.b16 %v2896
  %v3227 = vunpack.c.h.b16 %v2896
  %v3228 = vunpack.c.l.b16 %v2897
  %v3229 = vunpack.c.h.b16 %v2897
  %v3230 = vunpack.c.l.b16 %v2898
  %v3231 = vunpack.c.h.b16 %v2898
  %v3232 = vunpack.c.l.b16 %v2899
  %v3233 = vunpack.c.h.b16 %v2899
  %v3234 = vunpack.c.l.b16 %v2900
  %v3235 = vunpack.c.h.b16 %v2900
  %v3236 = vunpack.c.l.b16 %v2901
  %v3237 = vunpack.c.h.b16 %v2901
  %v3238 = vunpack.c.l.b16 %v2902
  %v3239 = vunpack.c.h.b16 %v2902
  %v3240 = vunpack.c.l.b16 %v2903
  %v3241 = vunpack.c.h.b16 %v2903
  %v3242 = vunpack.c.l.b16 %v2904
  %v3243 = vunpack.c.h.b16 %v2904
  %v3244 = vpack.c.b16 %v3018, %v3018
  %v3245 = vpack.c.b16 %v3019, %v3019
  %v3246 = vpack.c.b16 %v3020, %v3020
  %v3247 = vpack.c.b16 %v3021, %v3021
  %v3248 = vpack.c.b16 %v3022, %v3022
  %v3249 = vpack.c.b16 %v3023, %v3023
  %v3250 = vpack.c.b16 %v3024, %v3024
  %v3251 = vpack.c.b16 %v3025, %v3025
  %v3252 = vpack.c.b16 %v3026, %v3026
  %v3253 = vpack.c.b16 %v3027, %v3027
  %v3254 = vpack.c.b16 %v3028, %v3028
  %v3255 = vpack.c.b16 %v3029, %v3029
  %v3256 = vpack.c.b16 %v3030, %v3030
  %v3257 = vpack.c.b16 %v3031, %v3031
  %v3258 = vpack.c.b16 %v3032, %v3032
  %v3259 = vpack.c.b16 %v3033, %v3033
  %v3260 = vpack.c.b16 %v3034, %v3034
  %v3261 = vpack.c.b16 %v3035, %v3035
  %v3262 = vpack.c.b16 %v3036, %v3036
  %v3263 = vpack.c.b16 %v3037, %v3037
  %v3264 = vpack.c.b16 %v3038, %v3038
  %v3265 = vpack.c.b16 %v3039, %v3039
  %v3266 = vpack.c.b16 %v3040, %v3040
  %v3267 = vpack.c.b16 %v3041, %v3041
  %v3268 = vpack.c.b16 %v3042, %v3042
  %v3269 = vpack.c.b16 %v3043, %v3043
  %v3270 = vpack.c.b16 %v3044, %v3044
  %v3271 = vpack.c.b16 %v3045, %v3045
  %v3272 = vpack.c.b16 %v3046, %v3046
  %v3273 = vpack.c.b16 %v3047, %v3047
  %v3274 = vpack.c.b16 %v3048, %v3048
  %v3275 = vpack.c.b16 %v3049, %v3049
  %v3276 = vpack.c.b16 %v3050, %v3050
  %v3277 = vpack.c.b16 %v3051, %v3051
  %v3278 = vpack.c.b16 %v3052, %v3052
  %v3279 = vpack.c.b16 %v3053, %v3053
  %v3280 = vpack.c.b16 %v3054, %v3054
  %v3281 = vpack.c.b16 %v3055, %v3055
  %v3282 = vpack.c.b16 %v3056, %v3056
  %v3283 = vpack.c.b16 %v3057, %v3057
  %v3284 = vpack.c.b16 %v3058, %v3058
  %v3285 = vpack.c.b16 %v3059, %v3059
  %v3286 = vpack.c.b16 %v3060, %v3060
  %v3287 = vpack.c.b16 %v3061, %v3061
  %v3288 = vpack.c.b16 %v3062, %v3062
  %v3289 = vpack.c.b16 %v3063, %v3063
  %v3290 = vpack.c.b16 %v3064, %v3064
  %v3291 = vpack.c.b16 %v3065, %v3065
  %v3292 = vpack.c.b16 %v3066, %v3066
  %v3293 = vpack.c.b16 %v3067, %v3067
  %v3294 = vpack.c.b16 %v3068, %v3068
  %v3295 = vpack.c.b16 %v3069, %v3069
  %v3296 = vpack.c.b16 %v3070, %v3070
  %v3297 = vpack.c.b16 %v3071, %v3071
  %v3298 = vpack.c.b16 %v3072, %v3072
  %v3299 = vpack.c.b16 %v3073, %v3073
  %v3300 = vpack.c.b16 %v3074, %v3074
  %v3301 = vpack.c.b16 %v3075, %v3075
  %v3302 = vpack.c.b16 %v3076, %v3076
  %v3303 = vpack.c.b16 %v3077, %v3077
  %v3304 = vpack.c.b16 %v3078, %v3078
  %v3305 = vpack.c.b16 %v3079, %v3079
  %v3306 = vpack.c.b16 %v3080, %v3080
  %v3307 = vpack.c.b16 %v3081, %v3081
  %v3308 = vpack.c.b16 %v3082, %v3082
  %v3309 = vpack.c.b16 %v3083, %v3083
  %v3310 = vpack.c.b16 %v3084, %v3084
  %v3311 = vpack.c.b16 %v3085, %v3085
  %v3312 = vpack.c.b16 %v3086, %v3086
  %v3313 = vpack.c.b16 %v3087, %v3087
  %v3314 = vpack.c.b16 %v3088, %v3088
  %v3315 = vpack.c.b16 %v3089, %v3089
  %v3316 = vpack.c.b16 %v3090, %v3090
  %v3317 = vpack.c.b16 %v3091, %v3091
  %v3318 = vpack.c.b16 %v3092, %v3092
  %v3319 = vpack.c.b16 %v3093, %v3093
  %v3320 = vpack.c.b16 %v3094, %v3094
  %v3321 = vpack.c.b16 %v3095, %v3095
  %v3322 = vpack.c.b16 %v3096, %v3096
  %v3323 = vpack.c.b16 %v3097, %v3097
  %v3324 = vpack.c.b16 %v3098, %v3098
  %v3325 = vpack.c.b16 %v3099, %v3099
  %v3326 = vpack.c.b16 %v3100, %v3100
  %v3327 = vpack.c.b16 %v3101, %v3101
  %v3328 = vpack.c.b16 %v3102, %v3102
  %v3329 = vpack.c.b16 %v3103, %v3103
  %v3330 = vpack.c.b16 %v3104, %v3104
  %v3331 = vpack.c.b16 %v3105, %v3105
  %v3332 = vpack.c.b16 %v3106, %v3106
  %v3333 = vpack.c.b16 %v3107, %v3107
  %v3334 = vpack.c.b16 %v3108, %v3108
  %v3335 = vpack.c.b16 %v3109, %v3109
  %v3336 = vpack.c.b16 %v3110, %v3110
  %v3337 = vpack.c.b16 %v3111, %v3111
  %v3338 = vpack.c.b16 %v3112, %v3112
  %v3339 = vpack.c.b16 %v3113, %v3113
  %v3340 = vpack.c.b16 %v3114, %v3114
  %v3341 = vpack.c.b16 %v3115, %v3115
  %v3342 = vpack.c.b16 %v3116, %v3116
  %v3343 = vpack.c.b16 %v3117, %v3117
  %v3344 = vpack.c.b16 %v3118, %v3118
  %v3345 = vpack.c.b16 %v3119, %v3119
  %v3346 = vpack.c.b16 %v3120, %v3120
  %v3347 = vpack.c.b16 %v3121, %v3121
  %v3348 = vpack.c.b16 %v3122, %v3122
  %v3349 = vpack.c.b16 %v3123, %v3123
  %v3350 = vpack.c.b16 %v3124, %v3124
  %v3351 = vpack.c.b16 %v3125, %v3125
  %v3352 = vpack.c.b16 %v3126, %v3126
  %v3353 = vpack.c.b16 %v3127, %v3127
  %v3354 = vpack.c.b16 %v3128, %v3128
  %v3355 = vpack.c.b16 %v3129, %v3129
  %v3356 = vpack.c.b16 %v3130, %v3130
  %v3357 = vpack.c.b16 %v3131, %v3131
  %v3358 = vpack.c.b16 %v3132, %v3132
  %v3359 = vpack.c.b16 %v3133, %v3133
  %v3360 = vpack.c.b16 %v3134, %v3134
  %v3361 = vpack.c.b16 %v3135, %v3135
  %v3362 = vpack.c.b16 %v3136, %v3136
  %v3363 = vpack.c.b16 %v3137, %v3137
  %v3364 = vpack.c.b16 %v3138, %v3138
  %v3365 = vpack.c.b16 %v3139, %v3139
  %v3366 = vpack.c.b16 %v3140, %v3140
  %v3367 = vpack.c.b16 %v3141, %v3141
  %v3368 = vpack.c.b16 %v3142, %v3142
  %v3369 = vpack.c.b16 %v3143, %v3143
  %v3370 = vpack.c.b16 %v3144, %v3144
  %v3371 = vpack.c.b16 %v3145, %v3145
  %v3372 = vpack.c.b16 %v3146, %v3146
  %v3373 = vpack.c.b16 %v3147, %v3147
  %v3374 = vpack.c.b16 %v3148, %v3148
  %v3375 = vpack.c.b16 %v3149, %v3149
  %v3376 = vpack.c.b16 %v3150, %v3150
  %v3377 = vpack.c.b16 %v3151, %v3151
  %v3378 = vpack.c.b16 %v3152, %v3152
  %v3379 = vpack.c.b16 %v3153, %v3153
  %v3380 = vpack.c.b16 %v3154, %v3154
  %v3381 = vpack.c.b16 %v3155, %v3155
  %v3382 = vpack.c.b16 %v3156, %v3156
  %v3383 = vpack.c.b16 %v3157, %v3157
  %v3384 = vpack.c.b16 %v3158, %v3158
  %v3385 = vpack.c.b16 %v3159, %v3159
  %v3386 = vpack.c.b16 %v3160, %v3160
  %v3387 = vpack.c.b16 %v3161, %v3161
  %v3388 = vpack.c.b16 %v3162, %v3162
  %v3389 = vpack.c.b16 %v3163, %v3163
  %v3390 = vpack.c.b16 %v3164, %v3164
  %v3391 = vpack.c.b16 %v3165, %v3165
  %v3392 = vpack.c.b16 %v3166, %v3166
  %v3393 = vpack.c.b16 %v3167, %v3167
  %v3394 = vpack.c.b16 %v3168, %v3168
  %v3395 = vpack.c.b16 %v3169, %v3169
  %v3396 = vpack.c.b16 %v3170, %v3170
  %v3397 = vpack.c.b16 %v3171, %v3171
  %v3398 = vpack.c.b16 %v3172, %v3172
  %v3399 = vpack.c.b16 %v3173, %v3173
  %v3400 = vpack.c.b16 %v3174, %v3174
  %v3401 = vpack.c.b16 %v3175, %v3175
  %v3402 = vpack.c.b16 %v3176, %v3176
  %v3403 = vpack.c.b16 %v3177, %v3177
  %v3404 = vpack.c.b16 %v3178, %v3178
  %v3405 = vpack.c.b16 %v3179, %v3179
  %v3406 = vpack.c.b16 %v3180, %v3180
  %v3407 = vpack.c.b16 %v3181, %v3181
  %v3408 = vpack.c.b16 %v3182, %v3182
  %v3409 = vpack.c.b16 %v3183, %v3183
  %v3410 = vpack.c.b16 %v3184, %v3184
  %v3411 = vpack.c.b16 %v3185, %v3185
  %v3412 = vpack.c.b16 %v3186, %v3186
  %v3413 = vpack.c.b16 %v3187, %v3187
  %v3414 = vpack.c.b16 %v3188, %v3188
  %v3415 = vpack.c.b16 %v3189, %v3189
  %v3416 = vpack.c.b16 %v3190, %v3190
  %v3417 = vpack.c.b16 %v3191, %v3191
  %v3418 = vpack.c.b16 %v3192, %v3192
  %v3419 = vpack.c.b16 %v3193, %v3193
  %v3420 = vpack.c.b16 %v3194, %v3194
  %v3421 = vpack.c.b16 %v3195, %v3195
  %v3422 = vpack.c.b16 %v3196, %v3196
  %v3423 = vpack.c.b16 %v3197, %v3197
  %v3424 = vpack.c.b16 %v3198, %v3198
  %v3425 = vpack.c.b16 %v3199, %v3199
  %v3426 = vpack.c.b16 %v3200, %v3200
  %v3427 = vpack.c.b16 %v3201, %v3201
  %v3428 = vpack.c.b16 %v3202, %v3202
  %v3429 = vpack.c.b16 %v3203, %v3203
  %v3430 = vpack.c.b16 %v3204, %v3204
  %v3431 = vpack.c.b16 %v3205, %v3205
  %v3432 = vpack.c.b16 %v3206, %v3206
  %v3433 = vpack.c.b16 %v3207, %v3207
  %v3434 = vpack.c.b16 %v3208, %v3208
  %v3435 = vpack.c.b16 %v3209, %v3209
  %v3436 = vpack.c.b16 %v3210, %v3210
  %v3437 = vpack.c.b16 %v3211, %v3211
  %v3438 = vpack.c.b16 %v3212, %v3212
  %v3439 = vpack.c.b16 %v3213, %v3213
  %v3440 = vpack.c.b16 %v3214, %v3214
  %v3441 = vpack.c.b16 %v3215, %v3215
  %v3442 = vpack.c.b16 %v3216, %v3216
  %v3443 = vpack.c.b16 %v3217, %v3217
  %v3444 = vpack.c.b16 %v3218, %v3218
  %v3445 = vpack.c.b16 %v3219, %v3219
  %v3446 = vpack.c.b16 %v3220, %v3220
  %v3447 = vpack.c.b16 %v3221, %v3221
  %v3448 = vpack.c.b16 %v3222, %v3222
  %v3449 = vpack.c.b16 %v3223, %v3223
  %v3450 = vpack.c.b16 %v3224, %v3224
  %v3451 = vpack.c.b16 %v3225, %v3225
  %v3452 = vpack.c.b16 %v3226, %v3226
  %v3453 = vpack.c.b16 %v3227, %v3227
  %v3454 = vpack.c.b16 %v3228, %v3228
  %v3455 = vpack.c.b16 %v3229, %v3229
  %v3456 = vpack.c.b16 %v3230, %v3230
  %v3457 = vpack.c.b16 %v3231, %v3231
  %v3458 = vpack.c.b16 %v3232, %v3232
  %v3459 = vpack.c.b16 %v3233, %v3233
  %v3460 = vpack.c.b16 %v3234, %v3234
  %v3461 = vpack.c.b16 %v3235, %v3235
  %v3462 = vpack.c.b16 %v3236, %v3236
  %v3463 = vpack.c.b16 %v3237, %v3237
  %v3464 = vpack.c.b16 %v3238, %v3238
  %v3465 = vpack.c.b16 %v3239, %v3239
  %v3466 = vpack.c.b16 %v3240, %v3240
  %v3467 = vpack.c.b16 %v3241, %v3241
  %v3468 = vpack.c.b16 %v3242, %v3242
  %v3469 = vpack.c.b16 %v3243, %v3243
  %vm3696 = vcmask 125952
  %3697 = vst.msk [vmem:[%s4] sm:$0xf] %vm3696, %v3244
  %3698 = vst.msk [vmem:[%s4 + $0x4] sm:$0xf] %vm3696, %v3245
  %3699 = vst.msk [vmem:[%s4 + $0x8] sm:$0xf] %vm3696, %v3246
  %3700 = vst.msk [vmem:[%s4 + $0xc] sm:$0xf] %vm3696, %v3247
  %3701 = vst.msk [vmem:[%s4 + $0x10] sm:$0xf] %vm3696, %v3248
  %3702 = vst.msk [vmem:[%s4 + $0x14] sm:$0xf] %vm3696, %v3249
  %3703 = vst.msk [vmem:[%s4 + $0x18] sm:$0xf] %vm3696, %v3250
  %3704 = vst.msk [vmem:[%s4 + $0x1c] sm:$0xf] %vm3696, %v3251
  %3705 = vst.msk [vmem:[%s4 + $0x20] sm:$0xf] %vm3696, %v3252
  %3706 = vst.msk [vmem:[%s4 + $0x24] sm:$0xf] %vm3696, %v3253
  %3707 = vst.msk [vmem:[%s4 + $0x28] sm:$0xf] %vm3696, %v3254
  %3708 = vst.msk [vmem:[%s4 + $0x2c] sm:$0xf] %vm3696, %v3255
  %3709 = vst.msk [vmem:[%s4 + $0x30] sm:$0xf] %vm3696, %v3256
  %3710 = vst.msk [vmem:[%s4 + $0x34] sm:$0xf] %vm3696, %v3257
  %3711 = vst.msk [vmem:[%s4 + $0x38] sm:$0xf] %vm3696, %v3258
  %3712 = vst.msk [vmem:[%s4 + $0x3c] sm:$0xf] %vm3696, %v3259
  %3713 = vst.msk [vmem:[%s4 + $0x40] sm:$0xf] %vm3696, %v3260
  %3714 = vst.msk [vmem:[%s4 + $0x44] sm:$0xf] %vm3696, %v3261
  %3715 = vst.msk [vmem:[%s4 + $0x48] sm:$0xf] %vm3696, %v3262
  %3716 = vst.msk [vmem:[%s4 + $0x4c] sm:$0xf] %vm3696, %v3263
  %3717 = vst.msk [vmem:[%s4 + $0x50] sm:$0xf] %vm3696, %v3264
  %3718 = vst.msk [vmem:[%s4 + $0x54] sm:$0xf] %vm3696, %v3265
  %3719 = vst.msk [vmem:[%s4 + $0x58] sm:$0xf] %vm3696, %v3266
  %3720 = vst.msk [vmem:[%s4 + $0x5c] sm:$0xf] %vm3696, %v3267
  %3721 = vst.msk [vmem:[%s4 + $0x60] sm:$0xf] %vm3696, %v3268
  %3722 = vst.msk [vmem:[%s4 + $0x64] sm:$0xf] %vm3696, %v3269
  %3723 = vst.msk [vmem:[%s4 + $0x68] sm:$0xf] %vm3696, %v3270
  %3724 = vst.msk [vmem:[%s4 + $0x6c] sm:$0xf] %vm3696, %v3271
  %3725 = vst.msk [vmem:[%s4 + $0x70] sm:$0xf] %vm3696, %v3272
  %3726 = vst.msk [vmem:[%s4 + $0x74] sm:$0xf] %vm3696, %v3273
  %3727 = vst.msk [vmem:[%s4 + $0x78] sm:$0xf] %vm3696, %v3274
  %3728 = vst.msk [vmem:[%s4 + $0x7c] sm:$0xf] %vm3696, %v3275
  %3729 = vst.msk [vmem:[%s4 + $0x80] sm:$0xf] %vm3696, %v3276
  %3730 = vst.msk [vmem:[%s4 + $0x84] sm:$0xf] %vm3696, %v3277
  %3731 = vst.msk [vmem:[%s4 + $0x88] sm:$0xf] %vm3696, %v3278
  %3732 = vst.msk [vmem:[%s4 + $0x8c] sm:$0xf] %vm3696, %v3279
  %3733 = vst.msk [vmem:[%s4 + $0x90] sm:$0xf] %vm3696, %v3280
  %3734 = vst.msk [vmem:[%s4 + $0x94] sm:$0xf] %vm3696, %v3281
  %3735 = vst.msk [vmem:[%s4 + $0x98] sm:$0xf] %vm3696, %v3282
  %3736 = vst.msk [vmem:[%s4 + $0x9c] sm:$0xf] %vm3696, %v3283
  %3737 = vst.msk [vmem:[%s4 + $0xa0] sm:$0xf] %vm3696, %v3284
  %3738 = vst.msk [vmem:[%s4 + $0xa4] sm:$0xf] %vm3696, %v3285
  %3739 = vst.msk [vmem:[%s4 + $0xa8] sm:$0xf] %vm3696, %v3286
  %3740 = vst.msk [vmem:[%s4 + $0xac] sm:$0xf] %vm3696, %v3287
  %3741 = vst.msk [vmem:[%s4 + $0xb0] sm:$0xf] %vm3696, %v3288
  %3742 = vst.msk [vmem:[%s4 + $0xb4] sm:$0xf] %vm3696, %v3289
  %3743 = vst.msk [vmem:[%s4 + $0xb8] sm:$0xf] %vm3696, %v3290
  %3744 = vst.msk [vmem:[%s4 + $0xbc] sm:$0xf] %vm3696, %v3291
  %3745 = vst.msk [vmem:[%s4 + $0xc0] sm:$0xf] %vm3696, %v3292
  %3746 = vst.msk [vmem:[%s4 + $0xc4] sm:$0xf] %vm3696, %v3293
  %3747 = vst.msk [vmem:[%s4 + $0xc8] sm:$0xf] %vm3696, %v3294
  %3748 = vst.msk [vmem:[%s4 + $0xcc] sm:$0xf] %vm3696, %v3295
  %3749 = vst.msk [vmem:[%s4 + $0xd0] sm:$0xf] %vm3696, %v3296
  %3750 = vst.msk [vmem:[%s4 + $0xd4] sm:$0xf] %vm3696, %v3297
  %3751 = vst.msk [vmem:[%s4 + $0xd8] sm:$0xf] %vm3696, %v3298
  %3752 = vst.msk [vmem:[%s4 + $0xdc] sm:$0xf] %vm3696, %v3299
  %3753 = vst.msk [vmem:[%s4 + $0xe0] sm:$0xf] %vm3696, %v3300
  %3754 = vst.msk [vmem:[%s4 + $0xe4] sm:$0xf] %vm3696, %v3301
  %3755 = vst.msk [vmem:[%s4 + $0xe8] sm:$0xf] %vm3696, %v3302
  %3756 = vst.msk [vmem:[%s4 + $0xec] sm:$0xf] %vm3696, %v3303
  %3757 = vst.msk [vmem:[%s4 + $0xf0] sm:$0xf] %vm3696, %v3304
  %3758 = vst.msk [vmem:[%s4 + $0xf4] sm:$0xf] %vm3696, %v3305
  %3759 = vst.msk [vmem:[%s4 + $0xf8] sm:$0xf] %vm3696, %v3306
  %3760 = vst.msk [vmem:[%s4 + $0xfc] sm:$0xf] %vm3696, %v3307
  %3761 = vst.msk [vmem:[%s4 + $0x100] sm:$0xf] %vm3696, %v3308
  %3762 = vst.msk [vmem:[%s4 + $0x104] sm:$0xf] %vm3696, %v3309
  %3763 = vst.msk [vmem:[%s4 + $0x108] sm:$0xf] %vm3696, %v3310
  %3764 = vst.msk [vmem:[%s4 + $0x10c] sm:$0xf] %vm3696, %v3311
  %3765 = vst.msk [vmem:[%s4 + $0x110] sm:$0xf] %vm3696, %v3312
  %3766 = vst.msk [vmem:[%s4 + $0x114] sm:$0xf] %vm3696, %v3313
  %3767 = vst.msk [vmem:[%s4 + $0x118] sm:$0xf] %vm3696, %v3314
  %3768 = vst.msk [vmem:[%s4 + $0x11c] sm:$0xf] %vm3696, %v3315
  %3769 = vst.msk [vmem:[%s4 + $0x120] sm:$0xf] %vm3696, %v3316
  %3770 = vst.msk [vmem:[%s4 + $0x124] sm:$0xf] %vm3696, %v3317
  %3771 = vst.msk [vmem:[%s4 + $0x128] sm:$0xf] %vm3696, %v3318
  %3772 = vst.msk [vmem:[%s4 + $0x12c] sm:$0xf] %vm3696, %v3319
  %3773 = vst.msk [vmem:[%s4 + $0x130] sm:$0xf] %vm3696, %v3320
  %3774 = vst.msk [vmem:[%s4 + $0x134] sm:$0xf] %vm3696, %v3321
  %3775 = vst.msk [vmem:[%s4 + $0x138] sm:$0xf] %vm3696, %v3322
  %3776 = vst.msk [vmem:[%s4 + $0x13c] sm:$0xf] %vm3696, %v3323
  %3777 = vst.msk [vmem:[%s4 + $0x140] sm:$0xf] %vm3696, %v3324
  %3778 = vst.msk [vmem:[%s4 + $0x144] sm:$0xf] %vm3696, %v3325
  %3779 = vst.msk [vmem:[%s4 + $0x148] sm:$0xf] %vm3696, %v3326
  %3780 = vst.msk [vmem:[%s4 + $0x14c] sm:$0xf] %vm3696, %v3327
  %3781 = vst.msk [vmem:[%s4 + $0x150] sm:$0xf] %vm3696, %v3328
  %3782 = vst.msk [vmem:[%s4 + $0x154] sm:$0xf] %vm3696, %v3329
  %3783 = vst.msk [vmem:[%s4 + $0x158] sm:$0xf] %vm3696, %v3330
  %3784 = vst.msk [vmem:[%s4 + $0x15c] sm:$0xf] %vm3696, %v3331
  %3785 = vst.msk [vmem:[%s4 + $0x160] sm:$0xf] %vm3696, %v3332
  %3786 = vst.msk [vmem:[%s4 + $0x164] sm:$0xf] %vm3696, %v3333
  %3787 = vst.msk [vmem:[%s4 + $0x168] sm:$0xf] %vm3696, %v3334
  %3788 = vst.msk [vmem:[%s4 + $0x16c] sm:$0xf] %vm3696, %v3335
  %3789 = vst.msk [vmem:[%s4 + $0x170] sm:$0xf] %vm3696, %v3336
  %3790 = vst.msk [vmem:[%s4 + $0x174] sm:$0xf] %vm3696, %v3337
  %3791 = vst.msk [vmem:[%s4 + $0x178] sm:$0xf] %vm3696, %v3338
  %3792 = vst.msk [vmem:[%s4 + $0x17c] sm:$0xf] %vm3696, %v3339
  %3793 = vst.msk [vmem:[%s4 + $0x180] sm:$0xf] %vm3696, %v3340
  %3794 = vst.msk [vmem:[%s4 + $0x184] sm:$0xf] %vm3696, %v3341
  %3795 = vst.msk [vmem:[%s4 + $0x188] sm:$0xf] %vm3696, %v3342
  %3796 = vst.msk [vmem:[%s4 + $0x18c] sm:$0xf] %vm3696, %v3343
  %3797 = vst.msk [vmem:[%s4 + $0x190] sm:$0xf] %vm3696, %v3344
  %3798 = vst.msk [vmem:[%s4 + $0x194] sm:$0xf] %vm3696, %v3345
  %3799 = vst.msk [vmem:[%s4 + $0x198] sm:$0xf] %vm3696, %v3346
  %3800 = vst.msk [vmem:[%s4 + $0x19c] sm:$0xf] %vm3696, %v3347
  %3801 = vst.msk [vmem:[%s4 + $0x1a0] sm:$0xf] %vm3696, %v3348
  %3802 = vst.msk [vmem:[%s4 + $0x1a4] sm:$0xf] %vm3696, %v3349
  %3803 = vst.msk [vmem:[%s4 + $0x1a8] sm:$0xf] %vm3696, %v3350
  %3804 = vst.msk [vmem:[%s4 + $0x1ac] sm:$0xf] %vm3696, %v3351
  %3805 = vst.msk [vmem:[%s4 + $0x1b0] sm:$0xf] %vm3696, %v3352
  %3806 = vst.msk [vmem:[%s4 + $0x1b4] sm:$0xf] %vm3696, %v3353
  %3807 = vst.msk [vmem:[%s4 + $0x1b8] sm:$0xf] %vm3696, %v3354
  %3808 = vst.msk [vmem:[%s4 + $0x1bc] sm:$0xf] %vm3696, %v3355
  %3809 = vst.msk [vmem:[%s4 + $0x1c0] sm:$0xf] %vm3696, %v3356
  %3810 = vst.msk [vmem:[%s4 + $0x1c4] sm:$0xf] %vm3696, %v3357
  %3811 = vst.msk [vmem:[%s4 + $0x1c8] sm:$0xf] %vm3696, %v3358
  %3812 = vst.msk [vmem:[%s4 + $0x1cc] sm:$0xf] %vm3696, %v3359
  %3813 = vst.msk [vmem:[%s4 + $0x1d0] sm:$0xf] %vm3696, %v3360
  %3814 = vst.msk [vmem:[%s4 + $0x1d4] sm:$0xf] %vm3696, %v3361
  %3815 = vst.msk [vmem:[%s4 + $0x1d8] sm:$0xf] %vm3696, %v3362
  %3816 = vst.msk [vmem:[%s4 + $0x1dc] sm:$0xf] %vm3696, %v3363
  %3817 = vst.msk [vmem:[%s4 + $0x1e0] sm:$0xf] %vm3696, %v3364
  %3818 = vst.msk [vmem:[%s4 + $0x1e4] sm:$0xf] %vm3696, %v3365
  %3819 = vst.msk [vmem:[%s4 + $0x1e8] sm:$0xf] %vm3696, %v3366
  %3820 = vst.msk [vmem:[%s4 + $0x1ec] sm:$0xf] %vm3696, %v3367
  %3821 = vst.msk [vmem:[%s4 + $0x1f0] sm:$0xf] %vm3696, %v3368
  %3822 = vst.msk [vmem:[%s4 + $0x1f4] sm:$0xf] %vm3696, %v3369
  %3823 = vst.msk [vmem:[%s4 + $0x1f8] sm:$0xf] %vm3696, %v3370
  %3824 = vst.msk [vmem:[%s4 + $0x1fc] sm:$0xf] %vm3696, %v3371
  %3825 = vst.msk [vmem:[%s4 + $0x200] sm:$0xf] %vm3696, %v3372
  %3826 = vst.msk [vmem:[%s4 + $0x204] sm:$0xf] %vm3696, %v3373
  %3827 = vst.msk [vmem:[%s4 + $0x208] sm:$0xf] %vm3696, %v3374
  %3828 = vst.msk [vmem:[%s4 + $0x20c] sm:$0xf] %vm3696, %v3375
  %3829 = vst.msk [vmem:[%s4 + $0x210] sm:$0xf] %vm3696, %v3376
  %3830 = vst.msk [vmem:[%s4 + $0x214] sm:$0xf] %vm3696, %v3377
  %3831 = vst.msk [vmem:[%s4 + $0x218] sm:$0xf] %vm3696, %v3378
  %3832 = vst.msk [vmem:[%s4 + $0x21c] sm:$0xf] %vm3696, %v3379
  %3833 = vst.msk [vmem:[%s4 + $0x220] sm:$0xf] %vm3696, %v3380
  %3834 = vst.msk [vmem:[%s4 + $0x224] sm:$0xf] %vm3696, %v3381
  %3835 = vst.msk [vmem:[%s4 + $0x228] sm:$0xf] %vm3696, %v3382
  %3836 = vst.msk [vmem:[%s4 + $0x22c] sm:$0xf] %vm3696, %v3383
  %3837 = vst.msk [vmem:[%s4 + $0x230] sm:$0xf] %vm3696, %v3384
  %3838 = vst.msk [vmem:[%s4 + $0x234] sm:$0xf] %vm3696, %v3385
  %3839 = vst.msk [vmem:[%s4 + $0x238] sm:$0xf] %vm3696, %v3386
  %3840 = vst.msk [vmem:[%s4 + $0x23c] sm:$0xf] %vm3696, %v3387
  %3841 = vst.msk [vmem:[%s4 + $0x240] sm:$0xf] %vm3696, %v3388
  %3842 = vst.msk [vmem:[%s4 + $0x244] sm:$0xf] %vm3696, %v3389
  %3843 = vst.msk [vmem:[%s4 + $0x248] sm:$0xf] %vm3696, %v3390
  %3844 = vst.msk [vmem:[%s4 + $0x24c] sm:$0xf] %vm3696, %v3391
  %3845 = vst.msk [vmem:[%s4 + $0x250] sm:$0xf] %vm3696, %v3392
  %3846 = vst.msk [vmem:[%s4 + $0x254] sm:$0xf] %vm3696, %v3393
  %3847 = vst.msk [vmem:[%s4 + $0x258] sm:$0xf] %vm3696, %v3394
  %3848 = vst.msk [vmem:[%s4 + $0x25c] sm:$0xf] %vm3696, %v3395
  %3849 = vst.msk [vmem:[%s4 + $0x260] sm:$0xf] %vm3696, %v3396
  %3850 = vst.msk [vmem:[%s4 + $0x264] sm:$0xf] %vm3696, %v3397
  %3851 = vst.msk [vmem:[%s4 + $0x268] sm:$0xf] %vm3696, %v3398
  %3852 = vst.msk [vmem:[%s4 + $0x26c] sm:$0xf] %vm3696, %v3399
  %3853 = vst.msk [vmem:[%s4 + $0x270] sm:$0xf] %vm3696, %v3400
  %3854 = vst.msk [vmem:[%s4 + $0x274] sm:$0xf] %vm3696, %v3401
  %3855 = vst.msk [vmem:[%s4 + $0x278] sm:$0xf] %vm3696, %v3402
  %3856 = vst.msk [vmem:[%s4 + $0x27c] sm:$0xf] %vm3696, %v3403
  %3857 = vst.msk [vmem:[%s4 + $0x280] sm:$0xf] %vm3696, %v3404
  %3858 = vst.msk [vmem:[%s4 + $0x284] sm:$0xf] %vm3696, %v3405
  %3859 = vst.msk [vmem:[%s4 + $0x288] sm:$0xf] %vm3696, %v3406
  %3860 = vst.msk [vmem:[%s4 + $0x28c] sm:$0xf] %vm3696, %v3407
  %3861 = vst.msk [vmem:[%s4 + $0x290] sm:$0xf] %vm3696, %v3408
  %3862 = vst.msk [vmem:[%s4 + $0x294] sm:$0xf] %vm3696, %v3409
  %3863 = vst.msk [vmem:[%s4 + $0x298] sm:$0xf] %vm3696, %v3410
  %3864 = vst.msk [vmem:[%s4 + $0x29c] sm:$0xf] %vm3696, %v3411
  %3865 = vst.msk [vmem:[%s4 + $0x2a0] sm:$0xf] %vm3696, %v3412
  %3866 = vst.msk [vmem:[%s4 + $0x2a4] sm:$0xf] %vm3696, %v3413
  %3867 = vst.msk [vmem:[%s4 + $0x2a8] sm:$0xf] %vm3696, %v3414
  %3868 = vst.msk [vmem:[%s4 + $0x2ac] sm:$0xf] %vm3696, %v3415
  %3869 = vst.msk [vmem:[%s4 + $0x2b0] sm:$0xf] %vm3696, %v3416
  %3870 = vst.msk [vmem:[%s4 + $0x2b4] sm:$0xf] %vm3696, %v3417
  %3871 = vst.msk [vmem:[%s4 + $0x2b8] sm:$0xf] %vm3696, %v3418
  %3872 = vst.msk [vmem:[%s4 + $0x2bc] sm:$0xf] %vm3696, %v3419
  %3873 = vst.msk [vmem:[%s4 + $0x2c0] sm:$0xf] %vm3696, %v3420
  %3874 = vst.msk [vmem:[%s4 + $0x2c4] sm:$0xf] %vm3696, %v3421
  %3875 = vst.msk [vmem:[%s4 + $0x2c8] sm:$0xf] %vm3696, %v3422
  %3876 = vst.msk [vmem:[%s4 + $0x2cc] sm:$0xf] %vm3696, %v3423
  %3877 = vst.msk [vmem:[%s4 + $0x2d0] sm:$0xf] %vm3696, %v3424
  %3878 = vst.msk [vmem:[%s4 + $0x2d4] sm:$0xf] %vm3696, %v3425
  %3879 = vst.msk [vmem:[%s4 + $0x2d8] sm:$0xf] %vm3696, %v3426
  %3880 = vst.msk [vmem:[%s4 + $0x2dc] sm:$0xf] %vm3696, %v3427
  %3881 = vst.msk [vmem:[%s4 + $0x2e0] sm:$0xf] %vm3696, %v3428
  %3882 = vst.msk [vmem:[%s4 + $0x2e4] sm:$0xf] %vm3696, %v3429
  %3883 = vst.msk [vmem:[%s4 + $0x2e8] sm:$0xf] %vm3696, %v3430
  %3884 = vst.msk [vmem:[%s4 + $0x2ec] sm:$0xf] %vm3696, %v3431
  %3885 = vst.msk [vmem:[%s4 + $0x2f0] sm:$0xf] %vm3696, %v3432
  %3886 = vst.msk [vmem:[%s4 + $0x2f4] sm:$0xf] %vm3696, %v3433
  %3887 = vst.msk [vmem:[%s4 + $0x2f8] sm:$0xf] %vm3696, %v3434
  %3888 = vst.msk [vmem:[%s4 + $0x2fc] sm:$0xf] %vm3696, %v3435
  %3889 = vst.msk [vmem:[%s4 + $0x300] sm:$0xf] %vm3696, %v3436
  %3890 = vst.msk [vmem:[%s4 + $0x304] sm:$0xf] %vm3696, %v3437
  %3891 = vst.msk [vmem:[%s4 + $0x308] sm:$0xf] %vm3696, %v3438
  %3892 = vst.msk [vmem:[%s4 + $0x30c] sm:$0xf] %vm3696, %v3439
  %3893 = vst.msk [vmem:[%s4 + $0x310] sm:$0xf] %vm3696, %v3440
  %3894 = vst.msk [vmem:[%s4 + $0x314] sm:$0xf] %vm3696, %v3441
  %3895 = vst.msk [vmem:[%s4 + $0x318] sm:$0xf] %vm3696, %v3442
  %3896 = vst.msk [vmem:[%s4 + $0x31c] sm:$0xf] %vm3696, %v3443
  %3897 = vst.msk [vmem:[%s4 + $0x320] sm:$0xf] %vm3696, %v3444
  %3898 = vst.msk [vmem:[%s4 + $0x324] sm:$0xf] %vm3696, %v3445
  %3899 = vst.msk [vmem:[%s4 + $0x328] sm:$0xf] %vm3696, %v3446
  %3900 = vst.msk [vmem:[%s4 + $0x32c] sm:$0xf] %vm3696, %v3447
  %3901 = vst.msk [vmem:[%s4 + $0x330] sm:$0xf] %vm3696, %v3448
  %3902 = vst.msk [vmem:[%s4 + $0x334] sm:$0xf] %vm3696, %v3449
  %3903 = vst.msk [vmem:[%s4 + $0x338] sm:$0xf] %vm3696, %v3450
  %3904 = vst.msk [vmem:[%s4 + $0x33c] sm:$0xf] %vm3696, %v3451
  %3905 = vst.msk [vmem:[%s4 + $0x340] sm:$0xf] %vm3696, %v3452
  %3906 = vst.msk [vmem:[%s4 + $0x344] sm:$0xf] %vm3696, %v3453
  %3907 = vst.msk [vmem:[%s4 + $0x348] sm:$0xf] %vm3696, %v3454
  %3908 = vst.msk [vmem:[%s4 + $0x34c] sm:$0xf] %vm3696, %v3455
  %3909 = vst.msk [vmem:[%s4 + $0x350] sm:$0xf] %vm3696, %v3456
  %3910 = vst.msk [vmem:[%s4 + $0x354] sm:$0xf] %vm3696, %v3457
  %3911 = vst.msk [vmem:[%s4 + $0x358] sm:$0xf] %vm3696, %v3458
  %3912 = vst.msk [vmem:[%s4 + $0x35c] sm:$0xf] %vm3696, %v3459
  %3913 = vst.msk [vmem:[%s4 + $0x360] sm:$0xf] %vm3696, %v3460
  %3914 = vst.msk [vmem:[%s4 + $0x364] sm:$0xf] %vm3696, %v3461
  %3915 = vst.msk [vmem:[%s4 + $0x368] sm:$0xf] %vm3696, %v3462
  %3916 = vst.msk [vmem:[%s4 + $0x36c] sm:$0xf] %vm3696, %v3463
  %3917 = vst.msk [vmem:[%s4 + $0x370] sm:$0xf] %vm3696, %v3464
  %3918 = vst.msk [vmem:[%s4 + $0x374] sm:$0xf] %vm3696, %v3465
  %3919 = vst.msk [vmem:[%s4 + $0x378] sm:$0xf] %vm3696, %v3466
  %3920 = vst.msk [vmem:[%s4 + $0x37c] sm:$0xf] %vm3696, %v3467
  %3921 = vst.msk [vmem:[%s4 + $0x380] sm:$0xf] %vm3696, %v3468
  %3922 = vst.msk [vmem:[%s4 + $0x384] sm:$0xf] %vm3696, %v3469
  // Predicated region
  $region18: #{_lambda_.6} parent=0 // pred_check
    _
  $region19: #{_lambda_.6} parent=0 // pred_check_branch
    %3924 = sbr.rel (0) target = $region21
  $region20: #{_lambda_.6} parent=0 // pred_region
    _
  $region21: #{_lambda_.6} parent=0 // pred_fallthru
    _
  // Predicated region
  $region22: #{_lambda_.6} parent=0 // pred_check
    _
  $region23: #{_lambda_.6} parent=0 // pred_check_branch
    %3926 = sbr.rel (0) target = $region25
  $region24: #{_lambda_.6} parent=0 // pred_region
    _
  $region25: #{_lambda_.6} parent=0 // pred_fallthru
    _

// kernel: _lambda_.7
$region0: #{_lambda_.7}
  #allocation0 [shape = 'u32[]', space=smem, size = 0x4, offset = 0x4, fixed_abs, tag = 'smem constant byte address 0x4 - core index']
  #allocation1 [shape = 'u32[144,128]{1,0:T(1,128)}', space=vmem, size = 0x12000, scoped, tag = 'internal scratch']
  %s0 = inlined_call_operand.vmem [shape: bf16[4,400,144], index: 0, kind: input, shape index: {}]
  %s1 = inlined_call_operand.vmem [shape: bf16[144,16], index: 1, kind: input, shape index: {}]
  %s2 = inlined_call_operand.vmem [shape: f32[1,16], index: 2, kind: input, shape index: {}]
  %s3 = inlined_call_operand.vmem [shape: f32[1,16], index: 3, kind: input, shape index: {}]
  %s4 = inlined_call_operand.vmem [shape: bf16[400,16], index: 4, kind: output, shape index: {}]
  %s5 = sld [smem:[#allocation0]]
  $region26: #{_lambda_.7} parent=0
    _
  %s7 = ssub.s32 1, %s5
  %s8 = scalar_select 0, %s7, %s5
  // Predicated region
  $region2: #{_lambda_.7} parent=0 // pred_check
    _
  $region3: #{_lambda_.7} parent=0 // pred_check_branch
    %10 = sbr.rel (0) target = $region5
  $region4: #{_lambda_.7} parent=0 // pred_region
    _
  $region5: #{_lambda_.7} parent=0 // pred_fallthru
    _
  // Predicated region
  $region6: #{_lambda_.7} parent=0 // pred_check
    _
  $region7: #{_lambda_.7} parent=0 // pred_check_branch
    %12 = sbr.rel (0) target = $region9
  $region8: #{_lambda_.7} parent=0 // pred_region
    _
  $region9: #{_lambda_.7} parent=0 // pred_fallthru
    _
  // Predicated region
  $region10: #{_lambda_.7} parent=0 // pred_check
    _
  $region11: #{_lambda_.7} parent=0 // pred_check_branch
    %14 = sbr.rel (0) target = $region13
  $region12: #{_lambda_.7} parent=0 // pred_region
    _
  $region13: #{_lambda_.7} parent=0 // pred_fallthru
    _
  // Predicated region
  $region14: #{_lambda_.7} parent=0 // pred_check
    _
  $region15: #{_lambda_.7} parent=0 // pred_check_branch
    %16 = sbr.rel (0) target = $region17
  $region16: #{_lambda_.7} parent=0 // pred_region
    _
  $region17: #{_lambda_.7} parent=0 // pred_fallthru
    _
  %v18 = vld [vmem:[%s1] sm:$0xf]
  %v19 = vld [vmem:[%s1 + $0x4] sm:$0xf]
  %v20 = vld [vmem:[%s1 + $0x8] sm:$0xf]
  %v21 = vld [vmem:[%s1 + $0xc] sm:$0xf]
  %v22 = vld [vmem:[%s1 + $0x10] sm:$0xf]
  %v23 = vld [vmem:[%s1 + $0x14] sm:$0xf]
  %v24 = vld [vmem:[%s1 + $0x18] sm:$0xf]
  %v25 = vld [vmem:[%s1 + $0x1c] sm:$0xf]
  %v26 = vld [vmem:[%s1 + $0x20] sm:$0xf]
  %v27 = vld [vmem:[%s1 + $0x24] sm:$0xf]
  %v28 = vld [vmem:[%s1 + $0x28] sm:$0xf]
  %v29 = vld [vmem:[%s1 + $0x2c] sm:$0xf]
  %v30 = vld [vmem:[%s1 + $0x30] sm:$0xf]
  %v31 = vld [vmem:[%s1 + $0x34] sm:$0xf]
  %v32 = vld [vmem:[%s1 + $0x38] sm:$0xf]
  %v33 = vld [vmem:[%s1 + $0x3c] sm:$0xf]
  %v34 = vld [vmem:[%s1 + $0x40] sm:$0xf]
  %v35 = vld [vmem:[%s1 + $0x44] sm:$0xf]
  %v36 = vld [vmem:[%s2] sm:$0x1]
  %v37 = vld [vmem:[%s3] sm:$0x1]
  %v38 = vld [vmem:[%s0] sm:$0xff]
  %v39 = vld [vmem:[%s0 + $0x8] sm:$0xff]
  %v40 = vld [vmem:[%s0 + $0x10] sm:$0xff]
  %v41 = vld [vmem:[%s0 + $0x18] sm:$0xff]
  %v42 = vld [vmem:[%s0 + $0x20] sm:$0xff]
  %v43 = vld [vmem:[%s0 + $0x28] sm:$0xff]
  %v44 = vld [vmem:[%s0 + $0x30] sm:$0xff]
  %v45 = vld [vmem:[%s0 + $0x38] sm:$0xff]
  %v46 = vld [vmem:[%s0 + $0x40] sm:$0xff]
  %v47 = vld [vmem:[%s0 + $0x48] sm:$0xff]
  %v48 = vld [vmem:[%s0 + $0x50] sm:$0xff]
  %v49 = vld [vmem:[%s0 + $0x58] sm:$0xff]
  %v50 = vld [vmem:[%s0 + $0x60] sm:$0xff]
  %v51 = vld [vmem:[%s0 + $0x68] sm:$0xff]
  %v52 = vld [vmem:[%s0 + $0x70] sm:$0xff]
  %v53 = vld [vmem:[%s0 + $0x78] sm:$0xff]
  %v54 = vld [vmem:[%s0 + $0x80] sm:$0xff]
  %v55 = vld [vmem:[%s0 + $0x88] sm:$0xff]
  %v56 = vld [vmem:[%s0 + $0x90] sm:$0xff]
  %v57 = vld [vmem:[%s0 + $0x98] sm:$0xff]
  %v58 = vld [vmem:[%s0 + $0xa0] sm:$0xff]
  %v59 = vld [vmem:[%s0 + $0xa8] sm:$0xff]
  %v60 = vld [vmem:[%s0 + $0xb0] sm:$0xff]
  %v61 = vld [vmem:[%s0 + $0xb8] sm:$0xff]
  %v62 = vld [vmem:[%s0 + $0xc0] sm:$0xff]
  %v63 = vld [vmem:[%s0 + $0xc8] sm:$0xff]
  %v64 = vld [vmem:[%s0 + $0xd0] sm:$0xff]
  %v65 = vld [vmem:[%s0 + $0xd8] sm:$0xff]
  %v66 = vld [vmem:[%s0 + $0xe0] sm:$0xff]
  %v67 = vld [vmem:[%s0 + $0xe8] sm:$0xff]
  %v68 = vld [vmem:[%s0 + $0xf0] sm:$0xff]
  %v69 = vld [vmem:[%s0 + $0xf8] sm:$0xff]
  %v70 = vld [vmem:[%s0 + $0x100] sm:$0xff]
  %v71 = vld [vmem:[%s0 + $0x108] sm:$0xff]
  %v72 = vld [vmem:[%s0 + $0x110] sm:$0xff]
  %v73 = vld [vmem:[%s0 + $0x118] sm:$0xff]
  %v74 = vld [vmem:[%s0 + $0x120] sm:$0xff]
  %v75 = vld [vmem:[%s0 + $0x128] sm:$0xff]
  %v76 = vld [vmem:[%s0 + $0x130] sm:$0xff]
  %v77 = vld [vmem:[%s0 + $0x138] sm:$0xff]
  %v78 = vld [vmem:[%s0 + $0x140] sm:$0xff]
  %v79 = vld [vmem:[%s0 + $0x148] sm:$0xff]
  %v80 = vld [vmem:[%s0 + $0x150] sm:$0xff]
  %v81 = vld [vmem:[%s0 + $0x158] sm:$0xff]
  %v82 = vld [vmem:[%s0 + $0x160] sm:$0xff]
  %v83 = vld [vmem:[%s0 + $0x168] sm:$0xff]
  %v84 = vld [vmem:[%s0 + $0x170] sm:$0xff]
  %v85 = vld [vmem:[%s0 + $0x178] sm:$0xff]
  %v86 = vld [vmem:[%s0 + $0x180] sm:$0xff]
  %v87 = vld [vmem:[%s0 + $0x188] sm:$0xff]
  %v138 = vunpack.c.l.b16 %v38
  %v139 = vunpack.c.h.b16 %v38
  %v140 = vunpack.c.l.b16 %v39
  %v141 = vunpack.c.h.b16 %v39
  %v142 = vunpack.c.l.b16 %v40
  %v143 = vunpack.c.h.b16 %v40
  %v144 = vunpack.c.l.b16 %v41
  %v145 = vunpack.c.h.b16 %v41
  %v146 = vunpack.c.l.b16 %v42
  %v147 = vunpack.c.h.b16 %v42
  %v148 = vunpack.c.l.b16 %v43
  %v149 = vunpack.c.h.b16 %v43
  %v150 = vunpack.c.l.b16 %v44
  %v151 = vunpack.c.h.b16 %v44
  %v152 = vunpack.c.l.b16 %v45
  %v153 = vunpack.c.h.b16 %v45
  %v154 = vunpack.c.l.b16 %v46
  %v155 = vunpack.c.h.b16 %v46
  %v156 = vunpack.c.l.b16 %v47
  %v157 = vunpack.c.h.b16 %v47
  %v158 = vunpack.c.l.b16 %v48
  %v159 = vunpack.c.h.b16 %v48
  %v160 = vunpack.c.l.b16 %v49
  %v161 = vunpack.c.h.b16 %v49
  %v162 = vunpack.c.l.b16 %v50
  %v163 = vunpack.c.h.b16 %v50
  %v164 = vunpack.c.l.b16 %v51
  %v165 = vunpack.c.h.b16 %v51
  %v166 = vunpack.c.l.b16 %v52
  %v167 = vunpack.c.h.b16 %v52
  %v168 = vunpack.c.l.b16 %v53
  %v169 = vunpack.c.h.b16 %v53
  %v170 = vunpack.c.l.b16 %v54
  %v171 = vunpack.c.h.b16 %v54
  %v172 = vunpack.c.l.b16 %v55
  %v173 = vunpack.c.h.b16 %v55
  %v174 = vunpack.c.l.b16 %v56
  %v175 = vunpack.c.h.b16 %v56
  %v176 = vunpack.c.l.b16 %v57
  %v177 = vunpack.c.h.b16 %v57
  %v178 = vunpack.c.l.b16 %v58
  %v179 = vunpack.c.h.b16 %v58
  %v180 = vunpack.c.l.b16 %v59
  %v181 = vunpack.c.h.b16 %v59
  %v182 = vunpack.c.l.b16 %v60
  %v183 = vunpack.c.h.b16 %v60
  %v184 = vunpack.c.l.b16 %v61
  %v185 = vunpack.c.h.b16 %v61
  %v186 = vunpack.c.l.b16 %v62
  %v187 = vunpack.c.h.b16 %v62
  %v188 = vunpack.c.l.b16 %v63
  %v189 = vunpack.c.h.b16 %v63
  %v190 = vunpack.c.l.b16 %v64
  %v191 = vunpack.c.h.b16 %v64
  %v192 = vunpack.c.l.b16 %v65
  %v193 = vunpack.c.h.b16 %v65
  %v194 = vunpack.c.l.b16 %v66
  %v195 = vunpack.c.h.b16 %v66
  %v196 = vunpack.c.l.b16 %v67
  %v197 = vunpack.c.h.b16 %v67
  %v198 = vunpack.c.l.b16 %v68
  %v199 = vunpack.c.h.b16 %v68
  %v200 = vunpack.c.l.b16 %v69
  %v201 = vunpack.c.h.b16 %v69
  %v202 = vunpack.c.l.b16 %v70
  %v203 = vunpack.c.h.b16 %v70
  %v204 = vunpack.c.l.b16 %v71
  %v205 = vunpack.c.h.b16 %v71
  %v206 = vunpack.c.l.b16 %v72
  %v207 = vunpack.c.h.b16 %v72
  %v208 = vunpack.c.l.b16 %v73
  %v209 = vunpack.c.h.b16 %v73
  %v210 = vunpack.c.l.b16 %v74
  %v211 = vunpack.c.h.b16 %v74
  %v212 = vunpack.c.l.b16 %v75
  %v213 = vunpack.c.h.b16 %v75
  %v214 = vunpack.c.l.b16 %v76
  %v215 = vunpack.c.h.b16 %v76
  %v216 = vunpack.c.l.b16 %v77
  %v217 = vunpack.c.h.b16 %v77
  %v218 = vunpack.c.l.b16 %v78
  %v219 = vunpack.c.h.b16 %v78
  %v220 = vunpack.c.l.b16 %v79
  %v221 = vunpack.c.h.b16 %v79
  %v222 = vunpack.c.l.b16 %v80
  %v223 = vunpack.c.h.b16 %v80
  %v224 = vunpack.c.l.b16 %v81
  %v225 = vunpack.c.h.b16 %v81
  %v226 = vunpack.c.l.b16 %v82
  %v227 = vunpack.c.h.b16 %v82
  %v228 = vunpack.c.l.b16 %v83
  %v229 = vunpack.c.h.b16 %v83
  %v230 = vunpack.c.l.b16 %v84
  %v231 = vunpack.c.h.b16 %v84
  %v232 = vunpack.c.l.b16 %v85
  %v233 = vunpack.c.h.b16 %v85
  %v234 = vunpack.c.l.b16 %v86
  %v235 = vunpack.c.h.b16 %v86
  %v236 = vunpack.c.l.b16 %v87
  %v237 = vunpack.c.h.b16 %v87
  %v238 = vpack.c.b16 %v140, %v138
  %v239 = vpack.c.b16 %v141, %v139
  %v240 = vpack.c.b16 %v144, %v142
  %v241 = vpack.c.b16 %v145, %v143
  %v242 = vpack.c.b16 %v148, %v146
  %v243 = vpack.c.b16 %v149, %v147
  %v244 = vpack.c.b16 %v152, %v150
  %v245 = vpack.c.b16 %v153, %v151
  %v246 = vpack.c.b16 %v156, %v154
  %v247 = vpack.c.b16 %v157, %v155
  %v248 = vpack.c.b16 %v160, %v158
  %v249 = vpack.c.b16 %v161, %v159
  %v250 = vpack.c.b16 %v164, %v162
  %v251 = vpack.c.b16 %v165, %v163
  %v252 = vpack.c.b16 %v168, %v166
  %v253 = vpack.c.b16 %v169, %v167
  %v254 = vpack.c.b16 %v172, %v170
  %v255 = vpack.c.b16 %v173, %v171
  %v256 = vpack.c.b16 %v176, %v174
  %v257 = vpack.c.b16 %v177, %v175
  %v258 = vpack.c.b16 %v180, %v178
  %v259 = vpack.c.b16 %v181, %v179
  %v260 = vpack.c.b16 %v184, %v182
  %v261 = vpack.c.b16 %v185, %v183
  %v262 = vpack.c.b16 %v188, %v186
  %v263 = vpack.c.b16 %v189, %v187
  %v264 = vpack.c.b16 %v192, %v190
  %v265 = vpack.c.b16 %v193, %v191
  %v266 = vpack.c.b16 %v196, %v194
  %v267 = vpack.c.b16 %v197, %v195
  %v268 = vpack.c.b16 %v200, %v198
  %v269 = vpack.c.b16 %v201, %v199
  %v270 = vpack.c.b16 %v204, %v202
  %v271 = vpack.c.b16 %v205, %v203
  %v272 = vpack.c.b16 %v208, %v206
  %v273 = vpack.c.b16 %v209, %v207
  %v274 = vpack.c.b16 %v212, %v210
  %v275 = vpack.c.b16 %v213, %v211
  %v276 = vpack.c.b16 %v216, %v214
  %v277 = vpack.c.b16 %v217, %v215
  %v278 = vpack.c.b16 %v220, %v218
  %v279 = vpack.c.b16 %v221, %v219
  %v280 = vpack.c.b16 %v224, %v222
  %v281 = vpack.c.b16 %v225, %v223
  %v282 = vpack.c.b16 %v228, %v226
  %v283 = vpack.c.b16 %v229, %v227
  %v284 = vpack.c.b16 %v232, %v230
  %v285 = vpack.c.b16 %v233, %v231
  %v286 = vpack.c.b16 %v236, %v234
  %v287 = vpack.c.b16 %v237, %v235
  %v331 = vunpack.c.l.b16 %v18
  %v332 = vunpack.c.l.b16 %v19
  %v333 = vunpack.c.l.b16 %v20
  %v334 = vunpack.c.l.b16 %v21
  %v335 = vunpack.c.l.b16 %v22
  %v336 = vunpack.c.l.b16 %v23
  %v337 = vunpack.c.l.b16 %v24
  %v338 = vunpack.c.l.b16 %v25
  %v339 = vunpack.c.l.b16 %v26
  %v340 = vunpack.c.l.b16 %v27
  %v341 = vunpack.c.l.b16 %v28
  %v342 = vunpack.c.l.b16 %v29
  %v343 = vunpack.c.l.b16 %v30
  %v344 = vunpack.c.l.b16 %v31
  %v345 = vunpack.c.l.b16 %v32
  %v346 = vunpack.c.l.b16 %v33
  %v347 = vunpack.c.l.b16 %v34
  %v348 = vunpack.c.l.b16 %v35
  %v349 = vpack.c.b16 %v332, %v331
  %v350 = vpack.c.b16 %v334, %v333
  %v351 = vpack.c.b16 %v336, %v335
  %v352 = vpack.c.b16 %v338, %v337
  %v353 = vpack.c.b16 %v340, %v339
  %v354 = vpack.c.b16 %v342, %v341
  %v355 = vpack.c.b16 %v344, %v343
  %v356 = vpack.c.b16 %v346, %v345
  %v357 = vpack.c.b16 %v348, %v347
  %vm367 = vcmask 130048
  %v369 = vsel %vm367, %v239, 0
  %v372 = vsel %vm367, %v241, 0
  %v375 = vsel %vm367, %v243, 0
  %v378 = vsel %vm367, %v245, 0
  %v381 = vsel %vm367, %v247, 0
  %v384 = vsel %vm367, %v249, 0
  %v387 = vsel %vm367, %v251, 0
  %v390 = vsel %vm367, %v253, 0
  %v393 = vsel %vm367, %v255, 0
  %v396 = vsel %vm367, %v257, 0
  %v399 = vsel %vm367, %v259, 0
  %v402 = vsel %vm367, %v261, 0
  %v405 = vsel %vm367, %v263, 0
  %v408 = vsel %vm367, %v265, 0
  %v411 = vsel %vm367, %v267, 0
  %v414 = vsel %vm367, %v269, 0
  %v417 = vsel %vm367, %v271, 0
  %v420 = vsel %vm367, %v273, 0
  %v423 = vsel %vm367, %v275, 0
  %v426 = vsel %vm367, %v277, 0
  %v429 = vsel %vm367, %v279, 0
  %v432 = vsel %vm367, %v281, 0
  %v435 = vsel %vm367, %v283, 0
  %v438 = vsel %vm367, %v285, 0
  %v441 = vsel %vm367, %v287, 0
  %443 = vmatprep.subr.bf16.mxu0 0
  %444 = vmatpush1.bf16.msra.mxu0 %v349
  %445 = vmatprep.subr.bf16.mxu0 0
  %446 = vmatpush1.bf16.msra.mxu0 %v350
  %447 = vmatprep.subr.bf16.mxu0 0
  %448 = vmatpush1.bf16.msra.mxu0 %v351
  %449 = vmatprep.subr.bf16.mxu0 0
  %450 = vmatpush1.bf16.msra.mxu0 %v352
  %451 = vmatprep.subr.bf16.mxu0 0
  %452 = vmatpush1.bf16.msra.mxu0 %v353
  %453 = vmatprep.subr.bf16.mxu0 0
  %454 = vmatpush1.bf16.msra.mxu0 %v354
  %455 = vmatprep.subr.bf16.mxu0 0
  %456 = vmatpush1.bf16.msra.mxu0 %v355
  %457 = vmatprep.subr.bf16.mxu0 0
  %458 = vmatpush1.bf16.msra.mxu0 %v356
  %459 = vmatprep.subr.bf16.mxu0 0
  %460 = vmatpush1.bf16.msra.mxu0 %v357
  %461 = vmatprep.subr.bf16.mxu0 0
  %462 = vmatpush1.bf16.msra.mxu0 0
  %463 = vmatprep.subr.bf16.mxu0 0
  %464 = vmatpush1.bf16.msra.mxu0 0
  %465 = vmatprep.subr.bf16.mxu0 0
  %466 = vmatpush1.bf16.msra.mxu0 0
  %467 = vmatprep.subr.bf16.mxu0 0
  %468 = vmatpush1.bf16.msra.mxu0 0
  %469 = vmatprep.subr.bf16.mxu0 0
  %470 = vmatpush1.bf16.msra.mxu0 0
  %471 = vmatprep.subr.bf16.mxu0 0
  %472 = vmatpush1.bf16.msra.mxu0 0
  %473 = vmatprep.subr.bf16.mxu0 0
  %474 = vmatpush1.bf16.msra.mxu0 0
  %475 = vmatprep.mubr.bf16.mxu0 %v369
  %476 = vmatmul.mubr.bf16.gmra.mrb[0].mxu0 %v238
  %v477 = vpop.f32.mrb[0].mxu0
  %v478 = vadd.f32 0.0, %v477
  %v479 = vpop.f32.mrb[0].mxu0
  %v480 = vpop.f32.mrb[0].mxu0
  %v481 = vadd.f32 0.0, %v480
  %v482 = vpop.f32.mrb[0].mxu0
  %483 = vmatprep.mubr.bf16.mxu0 %v372
  %484 = vmatmul.mubr.bf16.gmra.mrb[0].mxu0 %v240
  %v485 = vpop.f32.mrb[0].mxu0
  %v486 = vadd.f32 0.0, %v485
  %v487 = vpop.f32.mrb[0].mxu0
  %v488 = vpop.f32.mrb[0].mxu0
  %v489 = vadd.f32 0.0, %v488
  %v490 = vpop.f32.mrb[0].mxu0
  %491 = vmatprep.mubr.bf16.mxu0 %v375
  %492 = vmatmul.mubr.bf16.gmra.mrb[0].mxu0 %v242
  %v493 = vpop.f32.mrb[0].mxu0
  %v494 = vadd.f32 0.0, %v493
  %v495 = vpop.f32.mrb[0].mxu0
  %v496 = vpop.f32.mrb[0].mxu0
  %v497 = vadd.f32 0.0, %v496
  %v498 = vpop.f32.mrb[0].mxu0
  %499 = vmatprep.mubr.bf16.mxu0 %v378
  %500 = vmatmul.mubr.bf16.gmra.mrb[0].mxu0 %v244
  %v501 = vpop.f32.mrb[0].mxu0
  %v502 = vadd.f32 0.0, %v501
  %v503 = vpop.f32.mrb[0].mxu0
  %v504 = vpop.f32.mrb[0].mxu0
  %v505 = vadd.f32 0.0, %v504
  %v506 = vpop.f32.mrb[0].mxu0
  %507 = vmatprep.mubr.bf16.mxu0 %v381
  %508 = vmatmul.mubr.bf16.gmra.mrb[0].mxu0 %v246
  %v509 = vpop.f32.mrb[0].mxu0
  %v510 = vadd.f32 0.0, %v509
  %v511 = vpop.f32.mrb[0].mxu0
  %v512 = vpop.f32.mrb[0].mxu0
  %v513 = vadd.f32 0.0, %v512
  %v514 = vpop.f32.mrb[0].mxu0
  %515 = vmatprep.mubr.bf16.mxu0 %v384
  %516 = vmatmul.mubr.bf16.gmra.mrb[0].mxu0 %v248
  %v517 = vpop.f32.mrb[0].mxu0
  %v518 = vadd.f32 0.0, %v517
  %v519 = vpop.f32.mrb[0].mxu0
  %v520 = vpop.f32.mrb[0].mxu0
  %v521 = vadd.f32 0.0, %v520
  %v522 = vpop.f32.mrb[0].mxu0
  %523 = vmatprep.mubr.bf16.mxu0 %v387
  %524 = vmatmul.mubr.bf16.gmra.mrb[0].mxu0 %v250
  %v525 = vpop.f32.mrb[0].mxu0
  %v526 = vadd.f32 0.0, %v525
  %v527 = vpop.f32.mrb[0].mxu0
  %v528 = vpop.f32.mrb[0].mxu0
  %v529 = vadd.f32 0.0, %v528
  %v530 = vpop.f32.mrb[0].mxu0
  %531 = vmatprep.mubr.bf16.mxu0 %v390
  %532 = vmatmul.mubr.bf16.gmra.mrb[0].mxu0 %v252
  %v533 = vpop.f32.mrb[0].mxu0
  %v534 = vadd.f32 0.0, %v533
  %v535 = vpop.f32.mrb[0].mxu0
  %v536 = vpop.f32.mrb[0].mxu0
  %v537 = vadd.f32 0.0, %v536
  %v538 = vpop.f32.mrb[0].mxu0
  %539 = vmatprep.mubr.bf16.mxu0 %v393
  %540 = vmatmul.mubr.bf16.gmra.mrb[0].mxu0 %v254
  %v541 = vpop.f32.mrb[0].mxu0
  %v542 = vadd.f32 0.0, %v541
  %v543 = vpop.f32.mrb[0].mxu0
  %v544 = vpop.f32.mrb[0].mxu0
  %v545 = vadd.f32 0.0, %v544
  %v546 = vpop.f32.mrb[0].mxu0
  %547 = vmatprep.mubr.bf16.mxu0 %v396
  %548 = vmatmul.mubr.bf16.gmra.mrb[0].mxu0 %v256
  %v549 = vpop.f32.mrb[0].mxu0
  %v550 = vadd.f32 0.0, %v549
  %v551 = vpop.f32.mrb[0].mxu0
  %v552 = vpop.f32.mrb[0].mxu0
  %v553 = vadd.f32 0.0, %v552
  %v554 = vpop.f32.mrb[0].mxu0
  %555 = vmatprep.mubr.bf16.mxu0 %v399
  %556 = vmatmul.mubr.bf16.gmra.mrb[0].mxu0 %v258
  %v557 = vpop.f32.mrb[0].mxu0
  %v558 = vadd.f32 0.0, %v557
  %v559 = vpop.f32.mrb[0].mxu0
  %v560 = vpop.f32.mrb[0].mxu0
  %v561 = vadd.f32 0.0, %v560
  %v562 = vpop.f32.mrb[0].mxu0
  %563 = vmatprep.mubr.bf16.mxu0 %v402
  %564 = vmatmul.mubr.bf16.gmra.mrb[0].mxu0 %v260
  %v565 = vpop.f32.mrb[0].mxu0
  %v566 = vadd.f32 0.0, %v565
  %v567 = vpop.f32.mrb[0].mxu0
  %v568 = vpop.f32.mrb[0].mxu0
  %v569 = vadd.f32 0.0, %v568
  %v570 = vpop.f32.mrb[0].mxu0
  %571 = vmatprep.mubr.bf16.mxu0 %v405
  %572 = vmatmul.mubr.bf16.gmra.mrb[0].mxu0 %v262
  %v573 = vpop.f32.mrb[0].mxu0
  %v574 = vadd.f32 0.0, %v573
  %v575 = vpop.f32.mrb[0].mxu0
  %v576 = vpop.f32.mrb[0].mxu0
  %v577 = vadd.f32 0.0, %v576
  %v578 = vpop.f32.mrb[0].mxu0
  %579 = vmatprep.mubr.bf16.mxu0 %v408
  %580 = vmatmul.mubr.bf16.gmra.mrb[0].mxu0 %v264
  %v581 = vpop.f32.mrb[0].mxu0
  %v582 = vadd.f32 0.0, %v581
  %v583 = vpop.f32.mrb[0].mxu0
  %v584 = vpop.f32.mrb[0].mxu0
  %v585 = vadd.f32 0.0, %v584
  %v586 = vpop.f32.mrb[0].mxu0
  %587 = vmatprep.mubr.bf16.mxu0 %v411
  %588 = vmatmul.mubr.bf16.gmra.mrb[0].mxu0 %v266
  %v589 = vpop.f32.mrb[0].mxu0
  %v590 = vadd.f32 0.0, %v589
  %v591 = vpop.f32.mrb[0].mxu0
  %v592 = vpop.f32.mrb[0].mxu0
  %v593 = vadd.f32 0.0, %v592
  %v594 = vpop.f32.mrb[0].mxu0
  %595 = vmatprep.mubr.bf16.mxu0 %v414
  %596 = vmatmul.mubr.bf16.gmra.mrb[0].mxu0 %v268
  %v597 = vpop.f32.mrb[0].mxu0
  %v598 = vadd.f32 0.0, %v597
  %v599 = vpop.f32.mrb[0].mxu0
  %v600 = vpop.f32.mrb[0].mxu0
  %v601 = vadd.f32 0.0, %v600
  %v602 = vpop.f32.mrb[0].mxu0
  %603 = vmatprep.mubr.bf16.mxu0 %v417
  %604 = vmatmul.mubr.bf16.gmra.mrb[0].mxu0 %v270
  %v605 = vpop.f32.mrb[0].mxu0
  %v606 = vadd.f32 0.0, %v605
  %v607 = vpop.f32.mrb[0].mxu0
  %v608 = vpop.f32.mrb[0].mxu0
  %v609 = vadd.f32 0.0, %v608
  %v610 = vpop.f32.mrb[0].mxu0
  %611 = vmatprep.mubr.bf16.mxu0 %v420
  %612 = vmatmul.mubr.bf16.gmra.mrb[0].mxu0 %v272
  %v613 = vpop.f32.mrb[0].mxu0
  %v614 = vadd.f32 0.0, %v613
  %v615 = vpop.f32.mrb[0].mxu0
  %v616 = vpop.f32.mrb[0].mxu0
  %v617 = vadd.f32 0.0, %v616
  %v618 = vpop.f32.mrb[0].mxu0
  %619 = vmatprep.mubr.bf16.mxu0 %v423
  %620 = vmatmul.mubr.bf16.gmra.mrb[0].mxu0 %v274
  %v621 = vpop.f32.mrb[0].mxu0
  %v622 = vadd.f32 0.0, %v621
  %v623 = vpop.f32.mrb[0].mxu0
  %v624 = vpop.f32.mrb[0].mxu0
  %v625 = vadd.f32 0.0, %v624
  %v626 = vpop.f32.mrb[0].mxu0
  %627 = vmatprep.mubr.bf16.mxu0 %v426
  %628 = vmatmul.mubr.bf16.gmra.mrb[0].mxu0 %v276
  %v629 = vpop.f32.mrb[0].mxu0
  %v630 = vadd.f32 0.0, %v629
  %v631 = vpop.f32.mrb[0].mxu0
  %v632 = vpop.f32.mrb[0].mxu0
  %v633 = vadd.f32 0.0, %v632
  %v634 = vpop.f32.mrb[0].mxu0
  %635 = vmatprep.mubr.bf16.mxu0 %v429
  %636 = vmatmul.mubr.bf16.gmra.mrb[0].mxu0 %v278
  %v637 = vpop.f32.mrb[0].mxu0
  %v638 = vadd.f32 0.0, %v637
  %v639 = vpop.f32.mrb[0].mxu0
  %v640 = vpop.f32.mrb[0].mxu0
  %v641 = vadd.f32 0.0, %v640
  %v642 = vpop.f32.mrb[0].mxu0
  %643 = vmatprep.mubr.bf16.mxu0 %v432
  %644 = vmatmul.mubr.bf16.gmra.mrb[0].mxu0 %v280
  %v645 = vpop.f32.mrb[0].mxu0
  %v646 = vadd.f32 0.0, %v645
  %v647 = vpop.f32.mrb[0].mxu0
  %v648 = vpop.f32.mrb[0].mxu0
  %v649 = vadd.f32 0.0, %v648
  %v650 = vpop.f32.mrb[0].mxu0
  %651 = vmatprep.mubr.bf16.mxu0 %v435
  %652 = vmatmul.mubr.bf16.gmra.mrb[0].mxu0 %v282
  %v653 = vpop.f32.mrb[0].mxu0
  %v654 = vadd.f32 0.0, %v653
  %v655 = vpop.f32.mrb[0].mxu0
  %v656 = vpop.f32.mrb[0].mxu0
  %v657 = vadd.f32 0.0, %v656
  %v658 = vpop.f32.mrb[0].mxu0
  %659 = vmatprep.mubr.bf16.mxu0 %v438
  %660 = vmatmul.mubr.bf16.gmra.mrb[0].mxu0 %v284
  %v661 = vpop.f32.mrb[0].mxu0
  %v662 = vadd.f32 0.0, %v661
  %v663 = vpop.f32.mrb[0].mxu0
  %v664 = vpop.f32.mrb[0].mxu0
  %v665 = vadd.f32 0.0, %v664
  %v666 = vpop.f32.mrb[0].mxu0
  %667 = vmatprep.mubr.bf16.mxu0 %v441
  %668 = vmatmul.mubr.bf16.gmra.mrb[0].mxu0 %v286
  %v669 = vpop.f32.mrb[0].mxu0
  %v670 = vadd.f32 0.0, %v669
  %v671 = vpop.f32.mrb[0].mxu0
  %v672 = vpop.f32.mrb[0].mxu0
  %v673 = vadd.f32 0.0, %v672
  %v674 = vpop.f32.mrb[0].mxu0
  %675 = vdwg.mxu0
  %v677 = vlaneseq
  %v678 = vshrl.u32 %v677, 7
  %v679 = vsub.s32 0, %v678
  %v680 = vrot.slane %v36, %v679
  %v682 = vmul.f32 %v478, %v680
  %v683 = vmul.f32 %v481, %v680
  %v684 = vmul.f32 %v486, %v680
  %v685 = vmul.f32 %v489, %v680
  %v686 = vmul.f32 %v494, %v680
  %v687 = vmul.f32 %v497, %v680
  %v688 = vmul.f32 %v502, %v680
  %v689 = vmul.f32 %v505, %v680
  %v690 = vmul.f32 %v510, %v680
  %v691 = vmul.f32 %v513, %v680
  %v692 = vmul.f32 %v518, %v680
  %v693 = vmul.f32 %v521, %v680
  %v694 = vmul.f32 %v526, %v680
  %v695 = vmul.f32 %v529, %v680
  %v696 = vmul.f32 %v534, %v680
  %v697 = vmul.f32 %v537, %v680
  %v698 = vmul.f32 %v542, %v680
  %v699 = vmul.f32 %v545, %v680
  %v700 = vmul.f32 %v550, %v680
  %v701 = vmul.f32 %v553, %v680
  %v702 = vmul.f32 %v558, %v680
  %v703 = vmul.f32 %v561, %v680
  %v704 = vmul.f32 %v566, %v680
  %v705 = vmul.f32 %v569, %v680
  %v706 = vmul.f32 %v574, %v680
  %v707 = vmul.f32 %v577, %v680
  %v708 = vmul.f32 %v582, %v680
  %v709 = vmul.f32 %v585, %v680
  %v710 = vmul.f32 %v590, %v680
  %v711 = vmul.f32 %v593, %v680
  %v712 = vmul.f32 %v598, %v680
  %v713 = vmul.f32 %v601, %v680
  %v714 = vmul.f32 %v606, %v680
  %v715 = vmul.f32 %v609, %v680
  %v716 = vmul.f32 %v614, %v680
  %v717 = vmul.f32 %v617, %v680
  %v718 = vmul.f32 %v622, %v680
  %v719 = vmul.f32 %v625, %v680
  %v720 = vmul.f32 %v630, %v680
  %v721 = vmul.f32 %v633, %v680
  %v722 = vmul.f32 %v638, %v680
  %v723 = vmul.f32 %v641, %v680
  %v724 = vmul.f32 %v646, %v680
  %v725 = vmul.f32 %v649, %v680
  %v726 = vmul.f32 %v654, %v680
  %v727 = vmul.f32 %v657, %v680
  %v728 = vmul.f32 %v662, %v680
  %v729 = vmul.f32 %v665, %v680
  %v730 = vmul.f32 %v670, %v680
  %v731 = vmul.f32 %v673, %v680
  %v733 = vlaneseq
  %v734 = vshrl.u32 %v733, 7
  %v735 = vsub.s32 0, %v734
  %v736 = vrot.slane %v37, %v735
  %v738 = vadd.f32 %v682, %v736
  %v739 = vadd.f32 %v683, %v736
  %v740 = vadd.f32 %v684, %v736
  %v741 = vadd.f32 %v685, %v736
  %v742 = vadd.f32 %v686, %v736
  %v743 = vadd.f32 %v687, %v736
  %v744 = vadd.f32 %v688, %v736
  %v745 = vadd.f32 %v689, %v736
  %v746 = vadd.f32 %v690, %v736
  %v747 = vadd.f32 %v691, %v736
  %v748 = vadd.f32 %v692, %v736
  %v749 = vadd.f32 %v693, %v736
  %v750 = vadd.f32 %v694, %v736
  %v751 = vadd.f32 %v695, %v736
  %v752 = vadd.f32 %v696, %v736
  %v753 = vadd.f32 %v697, %v736
  %v754 = vadd.f32 %v698, %v736
  %v755 = vadd.f32 %v699, %v736
  %v756 = vadd.f32 %v700, %v736
  %v757 = vadd.f32 %v701, %v736
  %v758 = vadd.f32 %v702, %v736
  %v759 = vadd.f32 %v703, %v736
  %v760 = vadd.f32 %v704, %v736
  %v761 = vadd.f32 %v705, %v736
  %v762 = vadd.f32 %v706, %v736
  %v763 = vadd.f32 %v707, %v736
  %v764 = vadd.f32 %v708, %v736
  %v765 = vadd.f32 %v709, %v736
  %v766 = vadd.f32 %v710, %v736
  %v767 = vadd.f32 %v711, %v736
  %v768 = vadd.f32 %v712, %v736
  %v769 = vadd.f32 %v713, %v736
  %v770 = vadd.f32 %v714, %v736
  %v771 = vadd.f32 %v715, %v736
  %v772 = vadd.f32 %v716, %v736
  %v773 = vadd.f32 %v717, %v736
  %v774 = vadd.f32 %v718, %v736
  %v775 = vadd.f32 %v719, %v736
  %v776 = vadd.f32 %v720, %v736
  %v777 = vadd.f32 %v721, %v736
  %v778 = vadd.f32 %v722, %v736
  %v779 = vadd.f32 %v723, %v736
  %v780 = vadd.f32 %v724, %v736
  %v781 = vadd.f32 %v725, %v736
  %v782 = vadd.f32 %v726, %v736
  %v783 = vadd.f32 %v727, %v736
  %v784 = vadd.f32 %v728, %v736
  %v785 = vadd.f32 %v729, %v736
  %v786 = vadd.f32 %v730, %v736
  %v787 = vadd.f32 %v731, %v736
  %v788 = vmax.f32 %v738, 0.0
  %v789 = vmax.f32 %v739, 0.0
  %v790 = vmax.f32 %v740, 0.0
  %v791 = vmax.f32 %v741, 0.0
  %v792 = vmax.f32 %v742, 0.0
  %v793 = vmax.f32 %v743, 0.0
  %v794 = vmax.f32 %v744, 0.0
  %v795 = vmax.f32 %v745, 0.0
  %v796 = vmax.f32 %v746, 0.0
  %v797 = vmax.f32 %v747, 0.0
  %v798 = vmax.f32 %v748, 0.0
  %v799 = vmax.f32 %v749, 0.0
  %v800 = vmax.f32 %v750, 0.0
  %v801 = vmax.f32 %v751, 0.0
  %v802 = vmax.f32 %v752, 0.0
  %v803 = vmax.f32 %v753, 0.0
  %v804 = vmax.f32 %v754, 0.0
  %v805 = vmax.f32 %v755, 0.0
  %v806 = vmax.f32 %v756, 0.0
  %v807 = vmax.f32 %v757, 0.0
  %v808 = vmax.f32 %v758, 0.0
  %v809 = vmax.f32 %v759, 0.0
  %v810 = vmax.f32 %v760, 0.0
  %v811 = vmax.f32 %v761, 0.0
  %v812 = vmax.f32 %v762, 0.0
  %v813 = vmax.f32 %v763, 0.0
  %v814 = vmax.f32 %v764, 0.0
  %v815 = vmax.f32 %v765, 0.0
  %v816 = vmax.f32 %v766, 0.0
  %v817 = vmax.f32 %v767, 0.0
  %v818 = vmax.f32 %v768, 0.0
  %v819 = vmax.f32 %v769, 0.0
  %v820 = vmax.f32 %v770, 0.0
  %v821 = vmax.f32 %v771, 0.0
  %v822 = vmax.f32 %v772, 0.0
  %v823 = vmax.f32 %v773, 0.0
  %v824 = vmax.f32 %v774, 0.0
  %v825 = vmax.f32 %v775, 0.0
  %v826 = vmax.f32 %v776, 0.0
  %v827 = vmax.f32 %v777, 0.0
  %v828 = vmax.f32 %v778, 0.0
  %v829 = vmax.f32 %v779, 0.0
  %v830 = vmax.f32 %v780, 0.0
  %v831 = vmax.f32 %v781, 0.0
  %v832 = vmax.f32 %v782, 0.0
  %v833 = vmax.f32 %v783, 0.0
  %v834 = vmax.f32 %v784, 0.0
  %v835 = vmax.f32 %v785, 0.0
  %v836 = vmax.f32 %v786, 0.0
  %v837 = vmax.f32 %v787, 0.0
  %s838 = scalar_lea.vmem %s0, 400
  %v839 = vld [vmem:[%s838] sm:$0xff]
  %v840 = vld [vmem:[%s838 + $0x8] sm:$0xff]
  %v841 = vld [vmem:[%s838 + $0x10] sm:$0xff]
  %v842 = vld [vmem:[%s838 + $0x18] sm:$0xff]
  %v843 = vld [vmem:[%s838 + $0x20] sm:$0xff]
  %v844 = vld [vmem:[%s838 + $0x28] sm:$0xff]
  %v845 = vld [vmem:[%s838 + $0x30] sm:$0xff]
  %v846 = vld [vmem:[%s838 + $0x38] sm:$0xff]
  %v847 = vld [vmem:[%s838 + $0x40] sm:$0xff]
  %v848 = vld [vmem:[%s838 + $0x48] sm:$0xff]
  %v849 = vld [vmem:[%s838 + $0x50] sm:$0xff]
  %v850 = vld [vmem:[%s838 + $0x58] sm:$0xff]
  %v851 = vld [vmem:[%s838 + $0x60] sm:$0xff]
  %v852 = vld [vmem:[%s838 + $0x68] sm:$0xff]
  %v853 = vld [vmem:[%s838 + $0x70] sm:$0xff]
  %v854 = vld [vmem:[%s838 + $0x78] sm:$0xff]
  %v855 = vld [vmem:[%s838 + $0x80] sm:$0xff]
  %v856 = vld [vmem:[%s838 + $0x88] sm:$0xff]
  %v857 = vld [vmem:[%s838 + $0x90] sm:$0xff]
  %v858 = vld [vmem:[%s838 + $0x98] sm:$0xff]
  %v859 = vld [vmem:[%s838 + $0xa0] sm:$0xff]
  %v860 = vld [vmem:[%s838 + $0xa8] sm:$0xff]
  %v861 = vld [vmem:[%s838 + $0xb0] sm:$0xff]
  %v862 = vld [vmem:[%s838 + $0xb8] sm:$0xff]
  %v863 = vld [vmem:[%s838 + $0xc0] sm:$0xff]
  %v864 = vld [vmem:[%s838 + $0xc8] sm:$0xff]
  %v865 = vld [vmem:[%s838 + $0xd0] sm:$0xff]
  %v866 = vld [vmem:[%s838 + $0xd8] sm:$0xff]
  %v867 = vld [vmem:[%s838 + $0xe0] sm:$0xff]
  %v868 = vld [vmem:[%s838 + $0xe8] sm:$0xff]
  %v869 = vld [vmem:[%s838 + $0xf0] sm:$0xff]
  %v870 = vld [vmem:[%s838 + $0xf8] sm:$0xff]
  %v871 = vld [vmem:[%s838 + $0x100] sm:$0xff]
  %v872 = vld [vmem:[%s838 + $0x108] sm:$0xff]
  %v873 = vld [vmem:[%s838 + $0x110] sm:$0xff]
  %v874 = vld [vmem:[%s838 + $0x118] sm:$0xff]
  %v875 = vld [vmem:[%s838 + $0x120] sm:$0xff]
  %v876 = vld [vmem:[%s838 + $0x128] sm:$0xff]
  %v877 = vld [vmem:[%s838 + $0x130] sm:$0xff]
  %v878 = vld [vmem:[%s838 + $0x138] sm:$0xff]
  %v879 = vld [vmem:[%s838 + $0x140] sm:$0xff]
  %v880 = vld [vmem:[%s838 + $0x148] sm:$0xff]
  %v881 = vld [vmem:[%s838 + $0x150] sm:$0xff]
  %v882 = vld [vmem:[%s838 + $0x158] sm:$0xff]
  %v883 = vld [vmem:[%s838 + $0x160] sm:$0xff]
  %v884 = vld [vmem:[%s838 + $0x168] sm:$0xff]
  %v885 = vld [vmem:[%s838 + $0x170] sm:$0xff]
  %v886 = vld [vmem:[%s838 + $0x178] sm:$0xff]
  %v887 = vld [vmem:[%s838 + $0x180] sm:$0xff]
  %v888 = vld [vmem:[%s838 + $0x188] sm:$0xff]
  %v939 = vunpack.c.l.b16 %v839
  %v940 = vunpack.c.h.b16 %v839
  %v941 = vunpack.c.l.b16 %v840
  %v942 = vunpack.c.h.b16 %v840
  %v943 = vunpack.c.l.b16 %v841
  %v944 = vunpack.c.h.b16 %v841
  %v945 = vunpack.c.l.b16 %v842
  %v946 = vunpack.c.h.b16 %v842
  %v947 = vunpack.c.l.b16 %v843
  %v948 = vunpack.c.h.b16 %v843
  %v949 = vunpack.c.l.b16 %v844
  %v950 = vunpack.c.h.b16 %v844
  %v951 = vunpack.c.l.b16 %v845
  %v952 = vunpack.c.h.b16 %v845
  %v953 = vunpack.c.l.b16 %v846
  %v954 = vunpack.c.h.b16 %v846
  %v955 = vunpack.c.l.b16 %v847
  %v956 = vunpack.c.h.b16 %v847
  %v957 = vunpack.c.l.b16 %v848
  %v958 = vunpack.c.h.b16 %v848
  %v959 = vunpack.c.l.b16 %v849
  %v960 = vunpack.c.h.b16 %v849
  %v961 = vunpack.c.l.b16 %v850
  %v962 = vunpack.c.h.b16 %v850
  %v963 = vunpack.c.l.b16 %v851
  %v964 = vunpack.c.h.b16 %v851
  %v965 = vunpack.c.l.b16 %v852
  %v966 = vunpack.c.h.b16 %v852
  %v967 = vunpack.c.l.b16 %v853
  %v968 = vunpack.c.h.b16 %v853
  %v969 = vunpack.c.l.b16 %v854
  %v970 = vunpack.c.h.b16 %v854
  %v971 = vunpack.c.l.b16 %v855
  %v972 = vunpack.c.h.b16 %v855
  %v973 = vunpack.c.l.b16 %v856
  %v974 = vunpack.c.h.b16 %v856
  %v975 = vunpack.c.l.b16 %v857
  %v976 = vunpack.c.h.b16 %v857
  %v977 = vunpack.c.l.b16 %v858
  %v978 = vunpack.c.h.b16 %v858
  %v979 = vunpack.c.l.b16 %v859
  %v980 = vunpack.c.h.b16 %v859
  %v981 = vunpack.c.l.b16 %v860
  %v982 = vunpack.c.h.b16 %v860
  %v983 = vunpack.c.l.b16 %v861
  %v984 = vunpack.c.h.b16 %v861
  %v985 = vunpack.c.l.b16 %v862
  %v986 = vunpack.c.h.b16 %v862
  %v987 = vunpack.c.l.b16 %v863
  %v988 = vunpack.c.h.b16 %v863
  %v989 = vunpack.c.l.b16 %v864
  %v990 = vunpack.c.h.b16 %v864
  %v991 = vunpack.c.l.b16 %v865
  %v992 = vunpack.c.h.b16 %v865
  %v993 = vunpack.c.l.b16 %v866
  %v994 = vunpack.c.h.b16 %v866
  %v995 = vunpack.c.l.b16 %v867
  %v996 = vunpack.c.h.b16 %v867
  %v997 = vunpack.c.l.b16 %v868
  %v998 = vunpack.c.h.b16 %v868
  %v999 = vunpack.c.l.b16 %v869
  %v1000 = vunpack.c.h.b16 %v869
  %v1001 = vunpack.c.l.b16 %v870
  %v1002 = vunpack.c.h.b16 %v870
  %v1003 = vunpack.c.l.b16 %v871
  %v1004 = vunpack.c.h.b16 %v871
  %v1005 = vunpack.c.l.b16 %v872
  %v1006 = vunpack.c.h.b16 %v872
  %v1007 = vunpack.c.l.b16 %v873
  %v1008 = vunpack.c.h.b16 %v873
  %v1009 = vunpack.c.l.b16 %v874
  %v1010 = vunpack.c.h.b16 %v874
  %v1011 = vunpack.c.l.b16 %v875
  %v1012 = vunpack.c.h.b16 %v875
  %v1013 = vunpack.c.l.b16 %v876
  %v1014 = vunpack.c.h.b16 %v876
  %v1015 = vunpack.c.l.b16 %v877
  %v1016 = vunpack.c.h.b16 %v877
  %v1017 = vunpack.c.l.b16 %v878
  %v1018 = vunpack.c.h.b16 %v878
  %v1019 = vunpack.c.l.b16 %v879
  %v1020 = vunpack.c.h.b16 %v879
  %v1021 = vunpack.c.l.b16 %v880
  %v1022 = vunpack.c.h.b16 %v880
  %v1023 = vunpack.c.l.b16 %v881
  %v1024 = vunpack.c.h.b16 %v881
  %v1025 = vunpack.c.l.b16 %v882
  %v1026 = vunpack.c.h.b16 %v882
  %v1027 = vunpack.c.l.b16 %v883
  %v1028 = vunpack.c.h.b16 %v883
  %v1029 = vunpack.c.l.b16 %v884
  %v1030 = vunpack.c.h.b16 %v884
  %v1031 = vunpack.c.l.b16 %v885
  %v1032 = vunpack.c.h.b16 %v885
  %v1033 = vunpack.c.l.b16 %v886
  %v1034 = vunpack.c.h.b16 %v886
  %v1035 = vunpack.c.l.b16 %v887
  %v1036 = vunpack.c.h.b16 %v887
  %v1037 = vunpack.c.l.b16 %v888
  %v1038 = vunpack.c.h.b16 %v888
  %v1039 = vpack.c.b16 %v941, %v939
  %v1040 = vpack.c.b16 %v942, %v940
  %v1041 = vpack.c.b16 %v945, %v943
  %v1042 = vpack.c.b16 %v946, %v944
  %v1043 = vpack.c.b16 %v949, %v947
  %v1044 = vpack.c.b16 %v950, %v948
  %v1045 = vpack.c.b16 %v953, %v951
  %v1046 = vpack.c.b16 %v954, %v952
  %v1047 = vpack.c.b16 %v957, %v955
  %v1048 = vpack.c.b16 %v958, %v956
  %v1049 = vpack.c.b16 %v961, %v959
  %v1050 = vpack.c.b16 %v962, %v960
  %v1051 = vpack.c.b16 %v965, %v963
  %v1052 = vpack.c.b16 %v966, %v964
  %v1053 = vpack.c.b16 %v969, %v967
  %v1054 = vpack.c.b16 %v970, %v968
  %v1055 = vpack.c.b16 %v973, %v971
  %v1056 = vpack.c.b16 %v974, %v972
  %v1057 = vpack.c.b16 %v977, %v975
  %v1058 = vpack.c.b16 %v978, %v976
  %v1059 = vpack.c.b16 %v981, %v979
  %v1060 = vpack.c.b16 %v982, %v980
  %v1061 = vpack.c.b16 %v985, %v983
  %v1062 = vpack.c.b16 %v986, %v984
  %v1063 = vpack.c.b16 %v989, %v987
  %v1064 = vpack.c.b16 %v990, %v988
  %v1065 = vpack.c.b16 %v993, %v991
  %v1066 = vpack.c.b16 %v994, %v992
  %v1067 = vpack.c.b16 %v997, %v995
  %v1068 = vpack.c.b16 %v998, %v996
  %v1069 = vpack.c.b16 %v1001, %v999
  %v1070 = vpack.c.b16 %v1002, %v1000
  %v1071 = vpack.c.b16 %v1005, %v1003
  %v1072 = vpack.c.b16 %v1006, %v1004
  %v1073 = vpack.c.b16 %v1009, %v1007
  %v1074 = vpack.c.b16 %v1010, %v1008
  %v1075 = vpack.c.b16 %v1013, %v1011
  %v1076 = vpack.c.b16 %v1014, %v1012
  %v1077 = vpack.c.b16 %v1017, %v1015
  %v1078 = vpack.c.b16 %v1018, %v1016
  %v1079 = vpack.c.b16 %v1021, %v1019
  %v1080 = vpack.c.b16 %v1022, %v1020
  %v1081 = vpack.c.b16 %v1025, %v1023
  %v1082 = vpack.c.b16 %v1026, %v1024
  %v1083 = vpack.c.b16 %v1029, %v1027
  %v1084 = vpack.c.b16 %v1030, %v1028
  %v1085 = vpack.c.b16 %v1033, %v1031
  %v1086 = vpack.c.b16 %v1034, %v1032
  %v1087 = vpack.c.b16 %v1037, %v1035
  %v1088 = vpack.c.b16 %v1038, %v1036
  %v1115 = vsel %vm367, %v1040, 0
  %v1118 = vsel %vm367, %v1042, 0
  %v1121 = vsel %vm367, %v1044, 0
  %v1124 = vsel %vm367, %v1046, 0
  %v1127 = vsel %vm367, %v1048, 0
  %v1130 = vsel %vm367, %v1050, 0
  %v1133 = vsel %vm367, %v1052, 0
  %v1136 = vsel %vm367, %v1054, 0
  %v1139 = vsel %vm367, %v1056, 0
  %v1142 = vsel %vm367, %v1058, 0
  %v1145 = vsel %vm367, %v1060, 0
  %v1148 = vsel %vm367, %v1062, 0
  %v1151 = vsel %vm367, %v1064, 0
  %v1154 = vsel %vm367, %v1066, 0
  %v1157 = vsel %vm367, %v1068, 0
  %v1160 = vsel %vm367, %v1070, 0
  %v1163 = vsel %vm367, %v1072, 0
  %v1166 = vsel %vm367, %v1074, 0
  %v1169 = vsel %vm367, %v1076, 0
  %v1172 = vsel %vm367, %v1078, 0
  %v1175 = vsel %vm367, %v1080, 0
  %v1178 = vsel %vm367, %v1082, 0
  %v1181 = vsel %vm367, %v1084, 0
  %v1184 = vsel %vm367, %v1086, 0
  %v1187 = vsel %vm367, %v1088, 0
  %1189 = vmatprep.subr.bf16.mxu0 0
  %1190 = vmatpush1.bf16.msra.mxu0 %v349
  %1191 = vmatprep.subr.bf16.mxu0 0
  %1192 = vmatpush1.bf16.msra.mxu0 %v350
  %1193 = vmatprep.subr.bf16.mxu0 0
  %1194 = vmatpush1.bf16.msra.mxu0 %v351
  %1195 = vmatprep.subr.bf16.mxu0 0
  %1196 = vmatpush1.bf16.msra.mxu0 %v352
  %1197 = vmatprep.subr.bf16.mxu0 0
  %1198 = vmatpush1.bf16.msra.mxu0 %v353
  %1199 = vmatprep.subr.bf16.mxu0 0
  %1200 = vmatpush1.bf16.msra.mxu0 %v354
  %1201 = vmatprep.subr.bf16.mxu0 0
  %1202 = vmatpush1.bf16.msra.mxu0 %v355
  %1203 = vmatprep.subr.bf16.mxu0 0
  %1204 = vmatpush1.bf16.msra.mxu0 %v356
  %1205 = vmatprep.subr.bf16.mxu0 0
  %1206 = vmatpush1.bf16.msra.mxu0 %v357
  %1207 = vmatprep.subr.bf16.mxu0 0
  %1208 = vmatpush1.bf16.msra.mxu0 0
  %1209 = vmatprep.subr.bf16.mxu0 0
  %1210 = vmatpush1.bf16.msra.mxu0 0
  %1211 = vmatprep.subr.bf16.mxu0 0
  %1212 = vmatpush1.bf16.msra.mxu0 0
  %1213 = vmatprep.subr.bf16.mxu0 0
  %1214 = vmatpush1.bf16.msra.mxu0 0
  %1215 = vmatprep.subr.bf16.mxu0 0
  %1216 = vmatpush1.bf16.msra.mxu0 0
  %1217 = vmatprep.subr.bf16.mxu0 0
  %1218 = vmatpush1.bf16.msra.mxu0 0
  %1219 = vmatprep.subr.bf16.mxu0 0
  %1220 = vmatpush1.bf16.msra.mxu0 0
  %1221 = vmatprep.mubr.bf16.mxu0 %v1115
  %1222 = vmatmul.mubr.bf16.gmra.mrb[0].mxu0 %v1039
  %v1223 = vpop.f32.mrb[0].mxu0
  %v1224 = vadd.f32 0.0, %v1223
  %v1225 = vpop.f32.mrb[0].mxu0
  %v1226 = vpop.f32.mrb[0].mxu0
  %v1227 = vadd.f32 0.0, %v1226
  %v1228 = vpop.f32.mrb[0].mxu0
  %1229 = vmatprep.mubr.bf16.mxu0 %v1118
  %1230 = vmatmul.mubr.bf16.gmra.mrb[0].mxu0 %v1041
  %v1231 = vpop.f32.mrb[0].mxu0
  %v1232 = vadd.f32 0.0, %v1231
  %v1233 = vpop.f32.mrb[0].mxu0
  %v1234 = vpop.f32.mrb[0].mxu0
  %v1235 = vadd.f32 0.0, %v1234
  %v1236 = vpop.f32.mrb[0].mxu0
  %1237 = vmatprep.mubr.bf16.mxu0 %v1121
  %1238 = vmatmul.mubr.bf16.gmra.mrb[0].mxu0 %v1043
  %v1239 = vpop.f32.mrb[0].mxu0
  %v1240 = vadd.f32 0.0, %v1239
  %v1241 = vpop.f32.mrb[0].mxu0
  %v1242 = vpop.f32.mrb[0].mxu0
  %v1243 = vadd.f32 0.0, %v1242
  %v1244 = vpop.f32.mrb[0].mxu0
  %1245 = vmatprep.mubr.bf16.mxu0 %v1124
  %1246 = vmatmul.mubr.bf16.gmra.mrb[0].mxu0 %v1045
  %v1247 = vpop.f32.mrb[0].mxu0
  %v1248 = vadd.f32 0.0, %v1247
  %v1249 = vpop.f32.mrb[0].mxu0
  %v1250 = vpop.f32.mrb[0].mxu0
  %v1251 = vadd.f32 0.0, %v1250
  %v1252 = vpop.f32.mrb[0].mxu0
  %1253 = vmatprep.mubr.bf16.mxu0 %v1127
  %1254 = vmatmul.mubr.bf16.gmra.mrb[0].mxu0 %v1047
  %v1255 = vpop.f32.mrb[0].mxu0
  %v1256 = vadd.f32 0.0, %v1255
  %v1257 = vpop.f32.mrb[0].mxu0
  %v1258 = vpop.f32.mrb[0].mxu0
  %v1259 = vadd.f32 0.0, %v1258
  %v1260 = vpop.f32.mrb[0].mxu0
  %1261 = vmatprep.mubr.bf16.mxu0 %v1130
  %1262 = vmatmul.mubr.bf16.gmra.mrb[0].mxu0 %v1049
  %v1263 = vpop.f32.mrb[0].mxu0
  %v1264 = vadd.f32 0.0, %v1263
  %v1265 = vpop.f32.mrb[0].mxu0
  %v1266 = vpop.f32.mrb[0].mxu0
  %v1267 = vadd.f32 0.0, %v1266
  %v1268 = vpop.f32.mrb[0].mxu0
  %1269 = vmatprep.mubr.bf16.mxu0 %v1133
  %1270 = vmatmul.mubr.bf16.gmra.mrb[0].mxu0 %v1051
  %v1271 = vpop.f32.mrb[0].mxu0
  %v1272 = vadd.f32 0.0, %v1271
  %v1273 = vpop.f32.mrb[0].mxu0
  %v1274 = vpop.f32.mrb[0].mxu0
  %v1275 = vadd.f32 0.0, %v1274
  %v1276 = vpop.f32.mrb[0].mxu0
  %1277 = vmatprep.mubr.bf16.mxu0 %v1136
  %1278 = vmatmul.mubr.bf16.gmra.mrb[0].mxu0 %v1053
  %v1279 = vpop.f32.mrb[0].mxu0
  %v1280 = vadd.f32 0.0, %v1279
  %v1281 = vpop.f32.mrb[0].mxu0
  %v1282 = vpop.f32.mrb[0].mxu0
  %v1283 = vadd.f32 0.0, %v1282
  %v1284 = vpop.f32.mrb[0].mxu0
  %1285 = vmatprep.mubr.bf16.mxu0 %v1139
  %1286 = vmatmul.mubr.bf16.gmra.mrb[0].mxu0 %v1055
  %v1287 = vpop.f32.mrb[0].mxu0
  %v1288 = vadd.f32 0.0, %v1287
  %v1289 = vpop.f32.mrb[0].mxu0
  %v1290 = vpop.f32.mrb[0].mxu0
  %v1291 = vadd.f32 0.0, %v1290
  %v1292 = vpop.f32.mrb[0].mxu0
  %1293 = vmatprep.mubr.bf16.mxu0 %v1142
  %1294 = vmatmul.mubr.bf16.gmra.mrb[0].mxu0 %v1057
  %v1295 = vpop.f32.mrb[0].mxu0
  %v1296 = vadd.f32 0.0, %v1295
  %v1297 = vpop.f32.mrb[0].mxu0
  %v1298 = vpop.f32.mrb[0].mxu0
  %v1299 = vadd.f32 0.0, %v1298
  %v1300 = vpop.f32.mrb[0].mxu0
  %1301 = vmatprep.mubr.bf16.mxu0 %v1145
  %1302 = vmatmul.mubr.bf16.gmra.mrb[0].mxu0 %v1059
  %v1303 = vpop.f32.mrb[0].mxu0
  %v1304 = vadd.f32 0.0, %v1303
  %v1305 = vpop.f32.mrb[0].mxu0
  %v1306 = vpop.f32.mrb[0].mxu0
  %v1307 = vadd.f32 0.0, %v1306
  %v1308 = vpop.f32.mrb[0].mxu0
  %1309 = vmatprep.mubr.bf16.mxu0 %v1148
  %1310 = vmatmul.mubr.bf16.gmra.mrb[0].mxu0 %v1061
  %v1311 = vpop.f32.mrb[0].mxu0
  %v1312 = vadd.f32 0.0, %v1311
  %v1313 = vpop.f32.mrb[0].mxu0
  %v1314 = vpop.f32.mrb[0].mxu0
  %v1315 = vadd.f32 0.0, %v1314
  %v1316 = vpop.f32.mrb[0].mxu0
  %1317 = vmatprep.mubr.bf16.mxu0 %v1151
  %1318 = vmatmul.mubr.bf16.gmra.mrb[0].mxu0 %v1063
  %v1319 = vpop.f32.mrb[0].mxu0
  %v1320 = vadd.f32 0.0, %v1319
  %v1321 = vpop.f32.mrb[0].mxu0
  %v1322 = vpop.f32.mrb[0].mxu0
  %v1323 = vadd.f32 0.0, %v1322
  %v1324 = vpop.f32.mrb[0].mxu0
  %1325 = vmatprep.mubr.bf16.mxu0 %v1154
  %1326 = vmatmul.mubr.bf16.gmra.mrb[0].mxu0 %v1065
  %v1327 = vpop.f32.mrb[0].mxu0
  %v1328 = vadd.f32 0.0, %v1327
  %v1329 = vpop.f32.mrb[0].mxu0
  %v1330 = vpop.f32.mrb[0].mxu0
  %v1331 = vadd.f32 0.0, %v1330
  %v1332 = vpop.f32.mrb[0].mxu0
  %1333 = vmatprep.mubr.bf16.mxu0 %v1157
  %1334 = vmatmul.mubr.bf16.gmra.mrb[0].mxu0 %v1067
  %v1335 = vpop.f32.mrb[0].mxu0
  %v1336 = vadd.f32 0.0, %v1335
  %v1337 = vpop.f32.mrb[0].mxu0
  %v1338 = vpop.f32.mrb[0].mxu0
  %v1339 = vadd.f32 0.0, %v1338
  %v1340 = vpop.f32.mrb[0].mxu0
  %1341 = vmatprep.mubr.bf16.mxu0 %v1160
  %1342 = vmatmul.mubr.bf16.gmra.mrb[0].mxu0 %v1069
  %v1343 = vpop.f32.mrb[0].mxu0
  %v1344 = vadd.f32 0.0, %v1343
  %v1345 = vpop.f32.mrb[0].mxu0
  %v1346 = vpop.f32.mrb[0].mxu0
  %v1347 = vadd.f32 0.0, %v1346
  %v1348 = vpop.f32.mrb[0].mxu0
  %1349 = vmatprep.mubr.bf16.mxu0 %v1163
  %1350 = vmatmul.mubr.bf16.gmra.mrb[0].mxu0 %v1071
  %v1351 = vpop.f32.mrb[0].mxu0
  %v1352 = vadd.f32 0.0, %v1351
  %v1353 = vpop.f32.mrb[0].mxu0
  %v1354 = vpop.f32.mrb[0].mxu0
  %v1355 = vadd.f32 0.0, %v1354
  %v1356 = vpop.f32.mrb[0].mxu0
  %1357 = vmatprep.mubr.bf16.mxu0 %v1166
  %1358 = vmatmul.mubr.bf16.gmra.mrb[0].mxu0 %v1073
  %v1359 = vpop.f32.mrb[0].mxu0
  %v1360 = vadd.f32 0.0, %v1359
  %v1361 = vpop.f32.mrb[0].mxu0
  %v1362 = vpop.f32.mrb[0].mxu0
  %v1363 = vadd.f32 0.0, %v1362
  %v1364 = vpop.f32.mrb[0].mxu0
  %1365 = vmatprep.mubr.bf16.mxu0 %v1169
  %1366 = vmatmul.mubr.bf16.gmra.mrb[0].mxu0 %v1075
  %v1367 = vpop.f32.mrb[0].mxu0
  %v1368 = vadd.f32 0.0, %v1367
  %v1369 = vpop.f32.mrb[0].mxu0
  %v1370 = vpop.f32.mrb[0].mxu0
  %v1371 = vadd.f32 0.0, %v1370
  %v1372 = vpop.f32.mrb[0].mxu0
  %1373 = vmatprep.mubr.bf16.mxu0 %v1172
  %1374 = vmatmul.mubr.bf16.gmra.mrb[0].mxu0 %v1077
  %v1375 = vpop.f32.mrb[0].mxu0
  %v1376 = vadd.f32 0.0, %v1375
  %v1377 = vpop.f32.mrb[0].mxu0
  %v1378 = vpop.f32.mrb[0].mxu0
  %v1379 = vadd.f32 0.0, %v1378
  %v1380 = vpop.f32.mrb[0].mxu0
  %1381 = vmatprep.mubr.bf16.mxu0 %v1175
  %1382 = vmatmul.mubr.bf16.gmra.mrb[0].mxu0 %v1079
  %v1383 = vpop.f32.mrb[0].mxu0
  %v1384 = vadd.f32 0.0, %v1383
  %v1385 = vpop.f32.mrb[0].mxu0
  %v1386 = vpop.f32.mrb[0].mxu0
  %v1387 = vadd.f32 0.0, %v1386
  %v1388 = vpop.f32.mrb[0].mxu0
  %1389 = vmatprep.mubr.bf16.mxu0 %v1178
  %1390 = vmatmul.mubr.bf16.gmra.mrb[0].mxu0 %v1081
  %v1391 = vpop.f32.mrb[0].mxu0
  %v1392 = vadd.f32 0.0, %v1391
  %v1393 = vpop.f32.mrb[0].mxu0
  %v1394 = vpop.f32.mrb[0].mxu0
  %v1395 = vadd.f32 0.0, %v1394
  %v1396 = vpop.f32.mrb[0].mxu0
  %1397 = vmatprep.mubr.bf16.mxu0 %v1181
  %1398 = vmatmul.mubr.bf16.gmra.mrb[0].mxu0 %v1083
  %v1399 = vpop.f32.mrb[0].mxu0
  %v1400 = vadd.f32 0.0, %v1399
  %v1401 = vpop.f32.mrb[0].mxu0
  %v1402 = vpop.f32.mrb[0].mxu0
  %v1403 = vadd.f32 0.0, %v1402
  %v1404 = vpop.f32.mrb[0].mxu0
  %1405 = vmatprep.mubr.bf16.mxu0 %v1184
  %1406 = vmatmul.mubr.bf16.gmra.mrb[0].mxu0 %v1085
  %v1407 = vpop.f32.mrb[0].mxu0
  %v1408 = vadd.f32 0.0, %v1407
  %v1409 = vpop.f32.mrb[0].mxu0
  %v1410 = vpop.f32.mrb[0].mxu0
  %v1411 = vadd.f32 0.0, %v1410
  %v1412 = vpop.f32.mrb[0].mxu0
  %1413 = vmatprep.mubr.bf16.mxu0 %v1187
  %1414 = vmatmul.mubr.bf16.gmra.mrb[0].mxu0 %v1087
  %v1415 = vpop.f32.mrb[0].mxu0
  %v1416 = vadd.f32 0.0, %v1415
  %v1417 = vpop.f32.mrb[0].mxu0
  %v1418 = vpop.f32.mrb[0].mxu0
  %v1419 = vadd.f32 0.0, %v1418
  %v1420 = vpop.f32.mrb[0].mxu0
  %1421 = vdwg.mxu0
  %v1422 = vmul.f32 %v1224, %v680
  %v1423 = vmul.f32 %v1227, %v680
  %v1424 = vmul.f32 %v1232, %v680
  %v1425 = vmul.f32 %v1235, %v680
  %v1426 = vmul.f32 %v1240, %v680
  %v1427 = vmul.f32 %v1243, %v680
  %v1428 = vmul.f32 %v1248, %v680
  %v1429 = vmul.f32 %v1251, %v680
  %v1430 = vmul.f32 %v1256, %v680
  %v1431 = vmul.f32 %v1259, %v680
  %v1432 = vmul.f32 %v1264, %v680
  %v1433 = vmul.f32 %v1267, %v680
  %v1434 = vmul.f32 %v1272, %v680
  %v1435 = vmul.f32 %v1275, %v680
  %v1436 = vmul.f32 %v1280, %v680
  %v1437 = vmul.f32 %v1283, %v680
  %v1438 = vmul.f32 %v1288, %v680
  %v1439 = vmul.f32 %v1291, %v680
  %v1440 = vmul.f32 %v1296, %v680
  %v1441 = vmul.f32 %v1299, %v680
  %v1442 = vmul.f32 %v1304, %v680
  %v1443 = vmul.f32 %v1307, %v680
  %v1444 = vmul.f32 %v1312, %v680
  %v1445 = vmul.f32 %v1315, %v680
  %v1446 = vmul.f32 %v1320, %v680
  %v1447 = vmul.f32 %v1323, %v680
  %v1448 = vmul.f32 %v1328, %v680
  %v1449 = vmul.f32 %v1331, %v680
  %v1450 = vmul.f32 %v1336, %v680
  %v1451 = vmul.f32 %v1339, %v680
  %v1452 = vmul.f32 %v1344, %v680
  %v1453 = vmul.f32 %v1347, %v680
  %v1454 = vmul.f32 %v1352, %v680
  %v1455 = vmul.f32 %v1355, %v680
  %v1456 = vmul.f32 %v1360, %v680
  %v1457 = vmul.f32 %v1363, %v680
  %v1458 = vmul.f32 %v1368, %v680
  %v1459 = vmul.f32 %v1371, %v680
  %v1460 = vmul.f32 %v1376, %v680
  %v1461 = vmul.f32 %v1379, %v680
  %v1462 = vmul.f32 %v1384, %v680
  %v1463 = vmul.f32 %v1387, %v680
  %v1464 = vmul.f32 %v1392, %v680
  %v1465 = vmul.f32 %v1395, %v680
  %v1466 = vmul.f32 %v1400, %v680
  %v1467 = vmul.f32 %v1403, %v680
  %v1468 = vmul.f32 %v1408, %v680
  %v1469 = vmul.f32 %v1411, %v680
  %v1470 = vmul.f32 %v1416, %v680
  %v1471 = vmul.f32 %v1419, %v680
  %v1472 = vadd.f32 %v1422, %v736
  %v1473 = vadd.f32 %v1423, %v736
  %v1474 = vadd.f32 %v1424, %v736
  %v1475 = vadd.f32 %v1425, %v736
  %v1476 = vadd.f32 %v1426, %v736
  %v1477 = vadd.f32 %v1427, %v736
  %v1478 = vadd.f32 %v1428, %v736
  %v1479 = vadd.f32 %v1429, %v736
  %v1480 = vadd.f32 %v1430, %v736
  %v1481 = vadd.f32 %v1431, %v736
  %v1482 = vadd.f32 %v1432, %v736
  %v1483 = vadd.f32 %v1433, %v736
  %v1484 = vadd.f32 %v1434, %v736
  %v1485 = vadd.f32 %v1435, %v736
  %v1486 = vadd.f32 %v1436, %v736
  %v1487 = vadd.f32 %v1437, %v736
  %v1488 = vadd.f32 %v1438, %v736
  %v1489 = vadd.f32 %v1439, %v736
  %v1490 = vadd.f32 %v1440, %v736
  %v1491 = vadd.f32 %v1441, %v736
  %v1492 = vadd.f32 %v1442, %v736
  %v1493 = vadd.f32 %v1443, %v736
  %v1494 = vadd.f32 %v1444, %v736
  %v1495 = vadd.f32 %v1445, %v736
  %v1496 = vadd.f32 %v1446, %v736
  %v1497 = vadd.f32 %v1447, %v736
  %v1498 = vadd.f32 %v1448, %v736
  %v1499 = vadd.f32 %v1449, %v736
  %v1500 = vadd.f32 %v1450, %v736
  %v1501 = vadd.f32 %v1451, %v736
  %v1502 = vadd.f32 %v1452, %v736
  %v1503 = vadd.f32 %v1453, %v736
  %v1504 = vadd.f32 %v1454, %v736
  %v1505 = vadd.f32 %v1455, %v736
  %v1506 = vadd.f32 %v1456, %v736
  %v1507 = vadd.f32 %v1457, %v736
  %v1508 = vadd.f32 %v1458, %v736
  %v1509 = vadd.f32 %v1459, %v736
  %v1510 = vadd.f32 %v1460, %v736
  %v1511 = vadd.f32 %v1461, %v736
  %v1512 = vadd.f32 %v1462, %v736
  %v1513 = vadd.f32 %v1463, %v736
  %v1514 = vadd.f32 %v1464, %v736
  %v1515 = vadd.f32 %v1465, %v736
  %v1516 = vadd.f32 %v1466, %v736
  %v1517 = vadd.f32 %v1467, %v736
  %v1518 = vadd.f32 %v1468, %v736
  %v1519 = vadd.f32 %v1469, %v736
  %v1520 = vadd.f32 %v1470, %v736
  %v1521 = vadd.f32 %v1471, %v736
  %v1522 = vmax.f32 %v1472, 0.0
  %v1523 = vmax.f32 %v1473, 0.0
  %v1524 = vmax.f32 %v1474, 0.0
  %v1525 = vmax.f32 %v1475, 0.0
  %v1526 = vmax.f32 %v1476, 0.0
  %v1527 = vmax.f32 %v1477, 0.0
  %v1528 = vmax.f32 %v1478, 0.0
  %v1529 = vmax.f32 %v1479, 0.0
  %v1530 = vmax.f32 %v1480, 0.0
  %v1531 = vmax.f32 %v1481, 0.0
  %v1532 = vmax.f32 %v1482, 0.0
  %v1533 = vmax.f32 %v1483, 0.0
  %v1534 = vmax.f32 %v1484, 0.0
  %v1535 = vmax.f32 %v1485, 0.0
  %v1536 = vmax.f32 %v1486, 0.0
  %v1537 = vmax.f32 %v1487, 0.0
  %v1538 = vmax.f32 %v1488, 0.0
  %v1539 = vmax.f32 %v1489, 0.0
  %v1540 = vmax.f32 %v1490, 0.0
  %v1541 = vmax.f32 %v1491, 0.0
  %v1542 = vmax.f32 %v1492, 0.0
  %v1543 = vmax.f32 %v1493, 0.0
  %v1544 = vmax.f32 %v1494, 0.0
  %v1545 = vmax.f32 %v1495, 0.0
  %v1546 = vmax.f32 %v1496, 0.0
  %v1547 = vmax.f32 %v1497, 0.0
  %v1548 = vmax.f32 %v1498, 0.0
  %v1549 = vmax.f32 %v1499, 0.0
  %v1550 = vmax.f32 %v1500, 0.0
  %v1551 = vmax.f32 %v1501, 0.0
  %v1552 = vmax.f32 %v1502, 0.0
  %v1553 = vmax.f32 %v1503, 0.0
  %v1554 = vmax.f32 %v1504, 0.0
  %v1555 = vmax.f32 %v1505, 0.0
  %v1556 = vmax.f32 %v1506, 0.0
  %v1557 = vmax.f32 %v1507, 0.0
  %v1558 = vmax.f32 %v1508, 0.0
  %v1559 = vmax.f32 %v1509, 0.0
  %v1560 = vmax.f32 %v1510, 0.0
  %v1561 = vmax.f32 %v1511, 0.0
  %v1562 = vmax.f32 %v1512, 0.0
  %v1563 = vmax.f32 %v1513, 0.0
  %v1564 = vmax.f32 %v1514, 0.0
  %v1565 = vmax.f32 %v1515, 0.0
  %v1566 = vmax.f32 %v1516, 0.0
  %v1567 = vmax.f32 %v1517, 0.0
  %v1568 = vmax.f32 %v1518, 0.0
  %v1569 = vmax.f32 %v1519, 0.0
  %v1570 = vmax.f32 %v1520, 0.0
  %v1571 = vmax.f32 %v1521, 0.0
  %v1572 = vmax.f32 %v788, %v1522
  %v1573 = vmax.f32 %v789, %v1523
  %v1574 = vmax.f32 %v790, %v1524
  %v1575 = vmax.f32 %v791, %v1525
  %v1576 = vmax.f32 %v792, %v1526
  %v1577 = vmax.f32 %v793, %v1527
  %v1578 = vmax.f32 %v794, %v1528
  %v1579 = vmax.f32 %v795, %v1529
  %v1580 = vmax.f32 %v796, %v1530
  %v1581 = vmax.f32 %v797, %v1531
  %v1582 = vmax.f32 %v798, %v1532
  %v1583 = vmax.f32 %v799, %v1533
  %v1584 = vmax.f32 %v800, %v1534
  %v1585 = vmax.f32 %v801, %v1535
  %v1586 = vmax.f32 %v802, %v1536
  %v1587 = vmax.f32 %v803, %v1537
  %v1588 = vmax.f32 %v804, %v1538
  %v1589 = vmax.f32 %v805, %v1539
  %v1590 = vmax.f32 %v806, %v1540
  %v1591 = vmax.f32 %v807, %v1541
  %v1592 = vmax.f32 %v808, %v1542
  %v1593 = vmax.f32 %v809, %v1543
  %v1594 = vmax.f32 %v810, %v1544
  %v1595 = vmax.f32 %v811, %v1545
  %v1596 = vmax.f32 %v812, %v1546
  %v1597 = vmax.f32 %v813, %v1547
  %v1598 = vmax.f32 %v814, %v1548
  %v1599 = vmax.f32 %v815, %v1549
  %v1600 = vmax.f32 %v816, %v1550
  %v1601 = vmax.f32 %v817, %v1551
  %v1602 = vmax.f32 %v818, %v1552
  %v1603 = vmax.f32 %v819, %v1553
  %v1604 = vmax.f32 %v820, %v1554
  %v1605 = vmax.f32 %v821, %v1555
  %v1606 = vmax.f32 %v822, %v1556
  %v1607 = vmax.f32 %v823, %v1557
  %v1608 = vmax.f32 %v824, %v1558
  %v1609 = vmax.f32 %v825, %v1559
  %v1610 = vmax.f32 %v826, %v1560
  %v1611 = vmax.f32 %v827, %v1561
  %v1612 = vmax.f32 %v828, %v1562
  %v1613 = vmax.f32 %v829, %v1563
  %v1614 = vmax.f32 %v830, %v1564
  %v1615 = vmax.f32 %v831, %v1565
  %v1616 = vmax.f32 %v832, %v1566
  %v1617 = vmax.f32 %v833, %v1567
  %v1618 = vmax.f32 %v834, %v1568
  %v1619 = vmax.f32 %v835, %v1569
  %v1620 = vmax.f32 %v836, %v1570
  %v1621 = vmax.f32 %v837, %v1571
  %s1622 = scalar_lea.vmem %s0, 800
  %v1623 = vld [vmem:[%s1622] sm:$0xff]
  %v1624 = vld [vmem:[%s1622 + $0x8] sm:$0xff]
  %v1625 = vld [vmem:[%s1622 + $0x10] sm:$0xff]
  %v1626 = vld [vmem:[%s1622 + $0x18] sm:$0xff]
  %v1627 = vld [vmem:[%s1622 + $0x20] sm:$0xff]
  %v1628 = vld [vmem:[%s1622 + $0x28] sm:$0xff]
  %v1629 = vld [vmem:[%s1622 + $0x30] sm:$0xff]
  %v1630 = vld [vmem:[%s1622 + $0x38] sm:$0xff]
  %v1631 = vld [vmem:[%s1622 + $0x40] sm:$0xff]
  %v1632 = vld [vmem:[%s1622 + $0x48] sm:$0xff]
  %v1633 = vld [vmem:[%s1622 + $0x50] sm:$0xff]
  %v1634 = vld [vmem:[%s1622 + $0x58] sm:$0xff]
  %v1635 = vld [vmem:[%s1622 + $0x60] sm:$0xff]
  %v1636 = vld [vmem:[%s1622 + $0x68] sm:$0xff]
  %v1637 = vld [vmem:[%s1622 + $0x70] sm:$0xff]
  %v1638 = vld [vmem:[%s1622 + $0x78] sm:$0xff]
  %v1639 = vld [vmem:[%s1622 + $0x80] sm:$0xff]
  %v1640 = vld [vmem:[%s1622 + $0x88] sm:$0xff]
  %v1641 = vld [vmem:[%s1622 + $0x90] sm:$0xff]
  %v1642 = vld [vmem:[%s1622 + $0x98] sm:$0xff]
  %v1643 = vld [vmem:[%s1622 + $0xa0] sm:$0xff]
  %v1644 = vld [vmem:[%s1622 + $0xa8] sm:$0xff]
  %v1645 = vld [vmem:[%s1622 + $0xb0] sm:$0xff]
  %v1646 = vld [vmem:[%s1622 + $0xb8] sm:$0xff]
  %v1647 = vld [vmem:[%s1622 + $0xc0] sm:$0xff]
  %v1648 = vld [vmem:[%s1622 + $0xc8] sm:$0xff]
  %v1649 = vld [vmem:[%s1622 + $0xd0] sm:$0xff]
  %v1650 = vld [vmem:[%s1622 + $0xd8] sm:$0xff]
  %v1651 = vld [vmem:[%s1622 + $0xe0] sm:$0xff]
  %v1652 = vld [vmem:[%s1622 + $0xe8] sm:$0xff]
  %v1653 = vld [vmem:[%s1622 + $0xf0] sm:$0xff]
  %v1654 = vld [vmem:[%s1622 + $0xf8] sm:$0xff]
  %v1655 = vld [vmem:[%s1622 + $0x100] sm:$0xff]
  %v1656 = vld [vmem:[%s1622 + $0x108] sm:$0xff]
  %v1657 = vld [vmem:[%s1622 + $0x110] sm:$0xff]
  %v1658 = vld [vmem:[%s1622 + $0x118] sm:$0xff]
  %v1659 = vld [vmem:[%s1622 + $0x120] sm:$0xff]
  %v1660 = vld [vmem:[%s1622 + $0x128] sm:$0xff]
  %v1661 = vld [vmem:[%s1622 + $0x130] sm:$0xff]
  %v1662 = vld [vmem:[%s1622 + $0x138] sm:$0xff]
  %v1663 = vld [vmem:[%s1622 + $0x140] sm:$0xff]
  %v1664 = vld [vmem:[%s1622 + $0x148] sm:$0xff]
  %v1665 = vld [vmem:[%s1622 + $0x150] sm:$0xff]
  %v1666 = vld [vmem:[%s1622 + $0x158] sm:$0xff]
  %v1667 = vld [vmem:[%s1622 + $0x160] sm:$0xff]
  %v1668 = vld [vmem:[%s1622 + $0x168] sm:$0xff]
  %v1669 = vld [vmem:[%s1622 + $0x170] sm:$0xff]
  %v1670 = vld [vmem:[%s1622 + $0x178] sm:$0xff]
  %v1671 = vld [vmem:[%s1622 + $0x180] sm:$0xff]
  %v1672 = vld [vmem:[%s1622 + $0x188] sm:$0xff]
  %v1723 = vunpack.c.l.b16 %v1623
  %v1724 = vunpack.c.h.b16 %v1623
  %v1725 = vunpack.c.l.b16 %v1624
  %v1726 = vunpack.c.h.b16 %v1624
  %v1727 = vunpack.c.l.b16 %v1625
  %v1728 = vunpack.c.h.b16 %v1625
  %v1729 = vunpack.c.l.b16 %v1626
  %v1730 = vunpack.c.h.b16 %v1626
  %v1731 = vunpack.c.l.b16 %v1627
  %v1732 = vunpack.c.h.b16 %v1627
  %v1733 = vunpack.c.l.b16 %v1628
  %v1734 = vunpack.c.h.b16 %v1628
  %v1735 = vunpack.c.l.b16 %v1629
  %v1736 = vunpack.c.h.b16 %v1629
  %v1737 = vunpack.c.l.b16 %v1630
  %v1738 = vunpack.c.h.b16 %v1630
  %v1739 = vunpack.c.l.b16 %v1631
  %v1740 = vunpack.c.h.b16 %v1631
  %v1741 = vunpack.c.l.b16 %v1632
  %v1742 = vunpack.c.h.b16 %v1632
  %v1743 = vunpack.c.l.b16 %v1633
  %v1744 = vunpack.c.h.b16 %v1633
  %v1745 = vunpack.c.l.b16 %v1634
  %v1746 = vunpack.c.h.b16 %v1634
  %v1747 = vunpack.c.l.b16 %v1635
  %v1748 = vunpack.c.h.b16 %v1635
  %v1749 = vunpack.c.l.b16 %v1636
  %v1750 = vunpack.c.h.b16 %v1636
  %v1751 = vunpack.c.l.b16 %v1637
  %v1752 = vunpack.c.h.b16 %v1637
  %v1753 = vunpack.c.l.b16 %v1638
  %v1754 = vunpack.c.h.b16 %v1638
  %v1755 = vunpack.c.l.b16 %v1639
  %v1756 = vunpack.c.h.b16 %v1639
  %v1757 = vunpack.c.l.b16 %v1640
  %v1758 = vunpack.c.h.b16 %v1640
  %v1759 = vunpack.c.l.b16 %v1641
  %v1760 = vunpack.c.h.b16 %v1641
  %v1761 = vunpack.c.l.b16 %v1642
  %v1762 = vunpack.c.h.b16 %v1642
  %v1763 = vunpack.c.l.b16 %v1643
  %v1764 = vunpack.c.h.b16 %v1643
  %v1765 = vunpack.c.l.b16 %v1644
  %v1766 = vunpack.c.h.b16 %v1644
  %v1767 = vunpack.c.l.b16 %v1645
  %v1768 = vunpack.c.h.b16 %v1645
  %v1769 = vunpack.c.l.b16 %v1646
  %v1770 = vunpack.c.h.b16 %v1646
  %v1771 = vunpack.c.l.b16 %v1647
  %v1772 = vunpack.c.h.b16 %v1647
  %v1773 = vunpack.c.l.b16 %v1648
  %v1774 = vunpack.c.h.b16 %v1648
  %v1775 = vunpack.c.l.b16 %v1649
  %v1776 = vunpack.c.h.b16 %v1649
  %v1777 = vunpack.c.l.b16 %v1650
  %v1778 = vunpack.c.h.b16 %v1650
  %v1779 = vunpack.c.l.b16 %v1651
  %v1780 = vunpack.c.h.b16 %v1651
  %v1781 = vunpack.c.l.b16 %v1652
  %v1782 = vunpack.c.h.b16 %v1652
  %v1783 = vunpack.c.l.b16 %v1653
  %v1784 = vunpack.c.h.b16 %v1653
  %v1785 = vunpack.c.l.b16 %v1654
  %v1786 = vunpack.c.h.b16 %v1654
  %v1787 = vunpack.c.l.b16 %v1655
  %v1788 = vunpack.c.h.b16 %v1655
  %v1789 = vunpack.c.l.b16 %v1656
  %v1790 = vunpack.c.h.b16 %v1656
  %v1791 = vunpack.c.l.b16 %v1657
  %v1792 = vunpack.c.h.b16 %v1657
  %v1793 = vunpack.c.l.b16 %v1658
  %v1794 = vunpack.c.h.b16 %v1658
  %v1795 = vunpack.c.l.b16 %v1659
  %v1796 = vunpack.c.h.b16 %v1659
  %v1797 = vunpack.c.l.b16 %v1660
  %v1798 = vunpack.c.h.b16 %v1660
  %v1799 = vunpack.c.l.b16 %v1661
  %v1800 = vunpack.c.h.b16 %v1661
  %v1801 = vunpack.c.l.b16 %v1662
  %v1802 = vunpack.c.h.b16 %v1662
  %v1803 = vunpack.c.l.b16 %v1663
  %v1804 = vunpack.c.h.b16 %v1663
  %v1805 = vunpack.c.l.b16 %v1664
  %v1806 = vunpack.c.h.b16 %v1664
  %v1807 = vunpack.c.l.b16 %v1665
  %v1808 = vunpack.c.h.b16 %v1665
  %v1809 = vunpack.c.l.b16 %v1666
  %v1810 = vunpack.c.h.b16 %v1666
  %v1811 = vunpack.c.l.b16 %v1667
  %v1812 = vunpack.c.h.b16 %v1667
  %v1813 = vunpack.c.l.b16 %v1668
  %v1814 = vunpack.c.h.b16 %v1668
  %v1815 = vunpack.c.l.b16 %v1669
  %v1816 = vunpack.c.h.b16 %v1669
  %v1817 = vunpack.c.l.b16 %v1670
  %v1818 = vunpack.c.h.b16 %v1670
  %v1819 = vunpack.c.l.b16 %v1671
  %v1820 = vunpack.c.h.b16 %v1671
  %v1821 = vunpack.c.l.b16 %v1672
  %v1822 = vunpack.c.h.b16 %v1672
  %v1823 = vpack.c.b16 %v1725, %v1723
  %v1824 = vpack.c.b16 %v1726, %v1724
  %v1825 = vpack.c.b16 %v1729, %v1727
  %v1826 = vpack.c.b16 %v1730, %v1728
  %v1827 = vpack.c.b16 %v1733, %v1731
  %v1828 = vpack.c.b16 %v1734, %v1732
  %v1829 = vpack.c.b16 %v1737, %v1735
  %v1830 = vpack.c.b16 %v1738, %v1736
  %v1831 = vpack.c.b16 %v1741, %v1739
  %v1832 = vpack.c.b16 %v1742, %v1740
  %v1833 = vpack.c.b16 %v1745, %v1743
  %v1834 = vpack.c.b16 %v1746, %v1744
  %v1835 = vpack.c.b16 %v1749, %v1747
  %v1836 = vpack.c.b16 %v1750, %v1748
  %v1837 = vpack.c.b16 %v1753, %v1751
  %v1838 = vpack.c.b16 %v1754, %v1752
  %v1839 = vpack.c.b16 %v1757, %v1755
  %v1840 = vpack.c.b16 %v1758, %v1756
  %v1841 = vpack.c.b16 %v1761, %v1759
  %v1842 = vpack.c.b16 %v1762, %v1760
  %v1843 = vpack.c.b16 %v1765, %v1763
  %v1844 = vpack.c.b16 %v1766, %v1764
  %v1845 = vpack.c.b16 %v1769, %v1767
  %v1846 = vpack.c.b16 %v1770, %v1768
  %v1847 = vpack.c.b16 %v1773, %v1771
  %v1848 = vpack.c.b16 %v1774, %v1772
  %v1849 = vpack.c.b16 %v1777, %v1775
  %v1850 = vpack.c.b16 %v1778, %v1776
  %v1851 = vpack.c.b16 %v1781, %v1779
  %v1852 = vpack.c.b16 %v1782, %v1780
  %v1853 = vpack.c.b16 %v1785, %v1783
  %v1854 = vpack.c.b16 %v1786, %v1784
  %v1855 = vpack.c.b16 %v1789, %v1787
  %v1856 = vpack.c.b16 %v1790, %v1788
  %v1857 = vpack.c.b16 %v1793, %v1791
  %v1858 = vpack.c.b16 %v1794, %v1792
  %v1859 = vpack.c.b16 %v1797, %v1795
  %v1860 = vpack.c.b16 %v1798, %v1796
  %v1861 = vpack.c.b16 %v1801, %v1799
  %v1862 = vpack.c.b16 %v1802, %v1800
  %v1863 = vpack.c.b16 %v1805, %v1803
  %v1864 = vpack.c.b16 %v1806, %v1804
  %v1865 = vpack.c.b16 %v1809, %v1807
  %v1866 = vpack.c.b16 %v1810, %v1808
  %v1867 = vpack.c.b16 %v1813, %v1811
  %v1868 = vpack.c.b16 %v1814, %v1812
  %v1869 = vpack.c.b16 %v1817, %v1815
  %v1870 = vpack.c.b16 %v1818, %v1816
  %v1871 = vpack.c.b16 %v1821, %v1819
  %v1872 = vpack.c.b16 %v1822, %v1820
  %v1899 = vsel %vm367, %v1824, 0
  %v1902 = vsel %vm367, %v1826, 0
  %v1905 = vsel %vm367, %v1828, 0
  %v1908 = vsel %vm367, %v1830, 0
  %v1911 = vsel %vm367, %v1832, 0
  %v1914 = vsel %vm367, %v1834, 0
  %v1917 = vsel %vm367, %v1836, 0
  %v1920 = vsel %vm367, %v1838, 0
  %v1923 = vsel %vm367, %v1840, 0
  %v1926 = vsel %vm367, %v1842, 0
  %v1929 = vsel %vm367, %v1844, 0
  %v1932 = vsel %vm367, %v1846, 0
  %v1935 = vsel %vm367, %v1848, 0
  %v1938 = vsel %vm367, %v1850, 0
  %v1941 = vsel %vm367, %v1852, 0
  %v1944 = vsel %vm367, %v1854, 0
  %v1947 = vsel %vm367, %v1856, 0
  %v1950 = vsel %vm367, %v1858, 0
  %v1953 = vsel %vm367, %v1860, 0
  %v1956 = vsel %vm367, %v1862, 0
  %v1959 = vsel %vm367, %v1864, 0
  %v1962 = vsel %vm367, %v1866, 0
  %v1965 = vsel %vm367, %v1868, 0
  %v1968 = vsel %vm367, %v1870, 0
  %v1971 = vsel %vm367, %v1872, 0
  %1973 = vmatprep.subr.bf16.mxu0 0
  %1974 = vmatpush1.bf16.msra.mxu0 %v349
  %1975 = vmatprep.subr.bf16.mxu0 0
  %1976 = vmatpush1.bf16.msra.mxu0 %v350
  %1977 = vmatprep.subr.bf16.mxu0 0
  %1978 = vmatpush1.bf16.msra.mxu0 %v351
  %1979 = vmatprep.subr.bf16.mxu0 0
  %1980 = vmatpush1.bf16.msra.mxu0 %v352
  %1981 = vmatprep.subr.bf16.mxu0 0
  %1982 = vmatpush1.bf16.msra.mxu0 %v353
  %1983 = vmatprep.subr.bf16.mxu0 0
  %1984 = vmatpush1.bf16.msra.mxu0 %v354
  %1985 = vmatprep.subr.bf16.mxu0 0
  %1986 = vmatpush1.bf16.msra.mxu0 %v355
  %1987 = vmatprep.subr.bf16.mxu0 0
  %1988 = vmatpush1.bf16.msra.mxu0 %v356
  %1989 = vmatprep.subr.bf16.mxu0 0
  %1990 = vmatpush1.bf16.msra.mxu0 %v357
  %1991 = vmatprep.subr.bf16.mxu0 0
  %1992 = vmatpush1.bf16.msra.mxu0 0
  %1993 = vmatprep.subr.bf16.mxu0 0
  %1994 = vmatpush1.bf16.msra.mxu0 0
  %1995 = vmatprep.subr.bf16.mxu0 0
  %1996 = vmatpush1.bf16.msra.mxu0 0
  %1997 = vmatprep.subr.bf16.mxu0 0
  %1998 = vmatpush1.bf16.msra.mxu0 0
  %1999 = vmatprep.subr.bf16.mxu0 0
  %2000 = vmatpush1.bf16.msra.mxu0 0
  %2001 = vmatprep.subr.bf16.mxu0 0
  %2002 = vmatpush1.bf16.msra.mxu0 0
  %2003 = vmatprep.subr.bf16.mxu0 0
  %2004 = vmatpush1.bf16.msra.mxu0 0
  %2005 = vmatprep.mubr.bf16.mxu0 %v1899
  %2006 = vmatmul.mubr.bf16.gmra.mrb[0].mxu0 %v1823
  %v2007 = vpop.f32.mrb[0].mxu0
  %v2008 = vadd.f32 0.0, %v2007
  %v2009 = vpop.f32.mrb[0].mxu0
  %v2010 = vpop.f32.mrb[0].mxu0
  %v2011 = vadd.f32 0.0, %v2010
  %v2012 = vpop.f32.mrb[0].mxu0
  %2013 = vmatprep.mubr.bf16.mxu0 %v1902
  %2014 = vmatmul.mubr.bf16.gmra.mrb[0].mxu0 %v1825
  %v2015 = vpop.f32.mrb[0].mxu0
  %v2016 = vadd.f32 0.0, %v2015
  %v2017 = vpop.f32.mrb[0].mxu0
  %v2018 = vpop.f32.mrb[0].mxu0
  %v2019 = vadd.f32 0.0, %v2018
  %v2020 = vpop.f32.mrb[0].mxu0
  %2021 = vmatprep.mubr.bf16.mxu0 %v1905
  %2022 = vmatmul.mubr.bf16.gmra.mrb[0].mxu0 %v1827
  %v2023 = vpop.f32.mrb[0].mxu0
  %v2024 = vadd.f32 0.0, %v2023
  %v2025 = vpop.f32.mrb[0].mxu0
  %v2026 = vpop.f32.mrb[0].mxu0
  %v2027 = vadd.f32 0.0, %v2026
  %v2028 = vpop.f32.mrb[0].mxu0
  %2029 = vmatprep.mubr.bf16.mxu0 %v1908
  %2030 = vmatmul.mubr.bf16.gmra.mrb[0].mxu0 %v1829
  %v2031 = vpop.f32.mrb[0].mxu0
  %v2032 = vadd.f32 0.0, %v2031
  %v2033 = vpop.f32.mrb[0].mxu0
  %v2034 = vpop.f32.mrb[0].mxu0
  %v2035 = vadd.f32 0.0, %v2034
  %v2036 = vpop.f32.mrb[0].mxu0
  %2037 = vmatprep.mubr.bf16.mxu0 %v1911
  %2038 = vmatmul.mubr.bf16.gmra.mrb[0].mxu0 %v1831
  %v2039 = vpop.f32.mrb[0].mxu0
  %v2040 = vadd.f32 0.0, %v2039
  %v2041 = vpop.f32.mrb[0].mxu0
  %v2042 = vpop.f32.mrb[0].mxu0
  %v2043 = vadd.f32 0.0, %v2042
  %v2044 = vpop.f32.mrb[0].mxu0
  %2045 = vmatprep.mubr.bf16.mxu0 %v1914
  %2046 = vmatmul.mubr.bf16.gmra.mrb[0].mxu0 %v1833
  %v2047 = vpop.f32.mrb[0].mxu0
  %v2048 = vadd.f32 0.0, %v2047
  %v2049 = vpop.f32.mrb[0].mxu0
  %v2050 = vpop.f32.mrb[0].mxu0
  %v2051 = vadd.f32 0.0, %v2050
  %v2052 = vpop.f32.mrb[0].mxu0
  %2053 = vmatprep.mubr.bf16.mxu0 %v1917
  %2054 = vmatmul.mubr.bf16.gmra.mrb[0].mxu0 %v1835
  %v2055 = vpop.f32.mrb[0].mxu0
  %v2056 = vadd.f32 0.0, %v2055
  %v2057 = vpop.f32.mrb[0].mxu0
  %v2058 = vpop.f32.mrb[0].mxu0
  %v2059 = vadd.f32 0.0, %v2058
  %v2060 = vpop.f32.mrb[0].mxu0
  %2061 = vmatprep.mubr.bf16.mxu0 %v1920
  %2062 = vmatmul.mubr.bf16.gmra.mrb[0].mxu0 %v1837
  %v2063 = vpop.f32.mrb[0].mxu0
  %v2064 = vadd.f32 0.0, %v2063
  %v2065 = vpop.f32.mrb[0].mxu0
  %v2066 = vpop.f32.mrb[0].mxu0
  %v2067 = vadd.f32 0.0, %v2066
  %v2068 = vpop.f32.mrb[0].mxu0
  %2069 = vmatprep.mubr.bf16.mxu0 %v1923
  %2070 = vmatmul.mubr.bf16.gmra.mrb[0].mxu0 %v1839
  %v2071 = vpop.f32.mrb[0].mxu0
  %v2072 = vadd.f32 0.0, %v2071
  %v2073 = vpop.f32.mrb[0].mxu0
  %v2074 = vpop.f32.mrb[0].mxu0
  %v2075 = vadd.f32 0.0, %v2074
  %v2076 = vpop.f32.mrb[0].mxu0
  %2077 = vmatprep.mubr.bf16.mxu0 %v1926
  %2078 = vmatmul.mubr.bf16.gmra.mrb[0].mxu0 %v1841
  %v2079 = vpop.f32.mrb[0].mxu0
  %v2080 = vadd.f32 0.0, %v2079
  %v2081 = vpop.f32.mrb[0].mxu0
  %v2082 = vpop.f32.mrb[0].mxu0
  %v2083 = vadd.f32 0.0, %v2082
  %v2084 = vpop.f32.mrb[0].mxu0
  %2085 = vmatprep.mubr.bf16.mxu0 %v1929
  %2086 = vmatmul.mubr.bf16.gmra.mrb[0].mxu0 %v1843
  %v2087 = vpop.f32.mrb[0].mxu0
  %v2088 = vadd.f32 0.0, %v2087
  %v2089 = vpop.f32.mrb[0].mxu0
  %v2090 = vpop.f32.mrb[0].mxu0
  %v2091 = vadd.f32 0.0, %v2090
  %v2092 = vpop.f32.mrb[0].mxu0
  %2093 = vmatprep.mubr.bf16.mxu0 %v1932
  %2094 = vmatmul.mubr.bf16.gmra.mrb[0].mxu0 %v1845
  %v2095 = vpop.f32.mrb[0].mxu0
  %v2096 = vadd.f32 0.0, %v2095
  %v2097 = vpop.f32.mrb[0].mxu0
  %v2098 = vpop.f32.mrb[0].mxu0
  %v2099 = vadd.f32 0.0, %v2098
  %v2100 = vpop.f32.mrb[0].mxu0
  %2101 = vmatprep.mubr.bf16.mxu0 %v1935
  %2102 = vmatmul.mubr.bf16.gmra.mrb[0].mxu0 %v1847
  %v2103 = vpop.f32.mrb[0].mxu0
  %v2104 = vadd.f32 0.0, %v2103
  %v2105 = vpop.f32.mrb[0].mxu0
  %v2106 = vpop.f32.mrb[0].mxu0
  %v2107 = vadd.f32 0.0, %v2106
  %v2108 = vpop.f32.mrb[0].mxu0
  %2109 = vmatprep.mubr.bf16.mxu0 %v1938
  %2110 = vmatmul.mubr.bf16.gmra.mrb[0].mxu0 %v1849
  %v2111 = vpop.f32.mrb[0].mxu0
  %v2112 = vadd.f32 0.0, %v2111
  %v2113 = vpop.f32.mrb[0].mxu0
  %v2114 = vpop.f32.mrb[0].mxu0
  %v2115 = vadd.f32 0.0, %v2114
  %v2116 = vpop.f32.mrb[0].mxu0
  %2117 = vmatprep.mubr.bf16.mxu0 %v1941
  %2118 = vmatmul.mubr.bf16.gmra.mrb[0].mxu0 %v1851
  %v2119 = vpop.f32.mrb[0].mxu0
  %v2120 = vadd.f32 0.0, %v2119
  %v2121 = vpop.f32.mrb[0].mxu0
  %v2122 = vpop.f32.mrb[0].mxu0
  %v2123 = vadd.f32 0.0, %v2122
  %v2124 = vpop.f32.mrb[0].mxu0
  %2125 = vmatprep.mubr.bf16.mxu0 %v1944
  %2126 = vmatmul.mubr.bf16.gmra.mrb[0].mxu0 %v1853
  %v2127 = vpop.f32.mrb[0].mxu0
  %v2128 = vadd.f32 0.0, %v2127
  %v2129 = vpop.f32.mrb[0].mxu0
  %v2130 = vpop.f32.mrb[0].mxu0
  %v2131 = vadd.f32 0.0, %v2130
  %v2132 = vpop.f32.mrb[0].mxu0
  %2133 = vmatprep.mubr.bf16.mxu0 %v1947
  %2134 = vmatmul.mubr.bf16.gmra.mrb[0].mxu0 %v1855
  %v2135 = vpop.f32.mrb[0].mxu0
  %v2136 = vadd.f32 0.0, %v2135
  %v2137 = vpop.f32.mrb[0].mxu0
  %v2138 = vpop.f32.mrb[0].mxu0
  %v2139 = vadd.f32 0.0, %v2138
  %v2140 = vpop.f32.mrb[0].mxu0
  %2141 = vmatprep.mubr.bf16.mxu0 %v1950
  %2142 = vmatmul.mubr.bf16.gmra.mrb[0].mxu0 %v1857
  %v2143 = vpop.f32.mrb[0].mxu0
  %v2144 = vadd.f32 0.0, %v2143
  %v2145 = vpop.f32.mrb[0].mxu0
  %v2146 = vpop.f32.mrb[0].mxu0
  %v2147 = vadd.f32 0.0, %v2146
  %v2148 = vpop.f32.mrb[0].mxu0
  %2149 = vmatprep.mubr.bf16.mxu0 %v1953
  %2150 = vmatmul.mubr.bf16.gmra.mrb[0].mxu0 %v1859
  %v2151 = vpop.f32.mrb[0].mxu0
  %v2152 = vadd.f32 0.0, %v2151
  %v2153 = vpop.f32.mrb[0].mxu0
  %v2154 = vpop.f32.mrb[0].mxu0
  %v2155 = vadd.f32 0.0, %v2154
  %v2156 = vpop.f32.mrb[0].mxu0
  %2157 = vmatprep.mubr.bf16.mxu0 %v1956
  %2158 = vmatmul.mubr.bf16.gmra.mrb[0].mxu0 %v1861
  %v2159 = vpop.f32.mrb[0].mxu0
  %v2160 = vadd.f32 0.0, %v2159
  %v2161 = vpop.f32.mrb[0].mxu0
  %v2162 = vpop.f32.mrb[0].mxu0
  %v2163 = vadd.f32 0.0, %v2162
  %v2164 = vpop.f32.mrb[0].mxu0
  %2165 = vmatprep.mubr.bf16.mxu0 %v1959
  %2166 = vmatmul.mubr.bf16.gmra.mrb[0].mxu0 %v1863
  %v2167 = vpop.f32.mrb[0].mxu0
  %v2168 = vadd.f32 0.0, %v2167
  %v2169 = vpop.f32.mrb[0].mxu0
  %v2170 = vpop.f32.mrb[0].mxu0
  %v2171 = vadd.f32 0.0, %v2170
  %v2172 = vpop.f32.mrb[0].mxu0
  %2173 = vmatprep.mubr.bf16.mxu0 %v1962
  %2174 = vmatmul.mubr.bf16.gmra.mrb[0].mxu0 %v1865
  %v2175 = vpop.f32.mrb[0].mxu0
  %v2176 = vadd.f32 0.0, %v2175
  %v2177 = vpop.f32.mrb[0].mxu0
  %v2178 = vpop.f32.mrb[0].mxu0
  %v2179 = vadd.f32 0.0, %v2178
  %v2180 = vpop.f32.mrb[0].mxu0
  %2181 = vmatprep.mubr.bf16.mxu0 %v1965
  %2182 = vmatmul.mubr.bf16.gmra.mrb[0].mxu0 %v1867
  %v2183 = vpop.f32.mrb[0].mxu0
  %v2184 = vadd.f32 0.0, %v2183
  %v2185 = vpop.f32.mrb[0].mxu0
  %v2186 = vpop.f32.mrb[0].mxu0
  %v2187 = vadd.f32 0.0, %v2186
  %v2188 = vpop.f32.mrb[0].mxu0
  %2189 = vmatprep.mubr.bf16.mxu0 %v1968
  %2190 = vmatmul.mubr.bf16.gmra.mrb[0].mxu0 %v1869
  %v2191 = vpop.f32.mrb[0].mxu0
  %v2192 = vadd.f32 0.0, %v2191
  %v2193 = vpop.f32.mrb[0].mxu0
  %v2194 = vpop.f32.mrb[0].mxu0
  %v2195 = vadd.f32 0.0, %v2194
  %v2196 = vpop.f32.mrb[0].mxu0
  %2197 = vmatprep.mubr.bf16.mxu0 %v1971
  %2198 = vmatmul.mubr.bf16.gmra.mrb[0].mxu0 %v1871
  %v2199 = vpop.f32.mrb[0].mxu0
  %v2200 = vadd.f32 0.0, %v2199
  %v2201 = vpop.f32.mrb[0].mxu0
  %v2202 = vpop.f32.mrb[0].mxu0
  %v2203 = vadd.f32 0.0, %v2202
  %v2204 = vpop.f32.mrb[0].mxu0
  %2205 = vdwg.mxu0
  %v2206 = vmul.f32 %v2008, %v680
  %v2207 = vmul.f32 %v2011, %v680
  %v2208 = vmul.f32 %v2016, %v680
  %v2209 = vmul.f32 %v2019, %v680
  %v2210 = vmul.f32 %v2024, %v680
  %v2211 = vmul.f32 %v2027, %v680
  %v2212 = vmul.f32 %v2032, %v680
  %v2213 = vmul.f32 %v2035, %v680
  %v2214 = vmul.f32 %v2040, %v680
  %v2215 = vmul.f32 %v2043, %v680
  %v2216 = vmul.f32 %v2048, %v680
  %v2217 = vmul.f32 %v2051, %v680
  %v2218 = vmul.f32 %v2056, %v680
  %v2219 = vmul.f32 %v2059, %v680
  %v2220 = vmul.f32 %v2064, %v680
  %v2221 = vmul.f32 %v2067, %v680
  %v2222 = vmul.f32 %v2072, %v680
  %v2223 = vmul.f32 %v2075, %v680
  %v2224 = vmul.f32 %v2080, %v680
  %v2225 = vmul.f32 %v2083, %v680
  %v2226 = vmul.f32 %v2088, %v680
  %v2227 = vmul.f32 %v2091, %v680
  %v2228 = vmul.f32 %v2096, %v680
  %v2229 = vmul.f32 %v2099, %v680
  %v2230 = vmul.f32 %v2104, %v680
  %v2231 = vmul.f32 %v2107, %v680
  %v2232 = vmul.f32 %v2112, %v680
  %v2233 = vmul.f32 %v2115, %v680
  %v2234 = vmul.f32 %v2120, %v680
  %v2235 = vmul.f32 %v2123, %v680
  %v2236 = vmul.f32 %v2128, %v680
  %v2237 = vmul.f32 %v2131, %v680
  %v2238 = vmul.f32 %v2136, %v680
  %v2239 = vmul.f32 %v2139, %v680
  %v2240 = vmul.f32 %v2144, %v680
  %v2241 = vmul.f32 %v2147, %v680
  %v2242 = vmul.f32 %v2152, %v680
  %v2243 = vmul.f32 %v2155, %v680
  %v2244 = vmul.f32 %v2160, %v680
  %v2245 = vmul.f32 %v2163, %v680
  %v2246 = vmul.f32 %v2168, %v680
  %v2247 = vmul.f32 %v2171, %v680
  %v2248 = vmul.f32 %v2176, %v680
  %v2249 = vmul.f32 %v2179, %v680
  %v2250 = vmul.f32 %v2184, %v680
  %v2251 = vmul.f32 %v2187, %v680
  %v2252 = vmul.f32 %v2192, %v680
  %v2253 = vmul.f32 %v2195, %v680
  %v2254 = vmul.f32 %v2200, %v680
  %v2255 = vmul.f32 %v2203, %v680
  %v2256 = vadd.f32 %v2206, %v736
  %v2257 = vadd.f32 %v2207, %v736
  %v2258 = vadd.f32 %v2208, %v736
  %v2259 = vadd.f32 %v2209, %v736
  %v2260 = vadd.f32 %v2210, %v736
  %v2261 = vadd.f32 %v2211, %v736
  %v2262 = vadd.f32 %v2212, %v736
  %v2263 = vadd.f32 %v2213, %v736
  %v2264 = vadd.f32 %v2214, %v736
  %v2265 = vadd.f32 %v2215, %v736
  %v2266 = vadd.f32 %v2216, %v736
  %v2267 = vadd.f32 %v2217, %v736
  %v2268 = vadd.f32 %v2218, %v736
  %v2269 = vadd.f32 %v2219, %v736
  %v2270 = vadd.f32 %v2220, %v736
  %v2271 = vadd.f32 %v2221, %v736
  %v2272 = vadd.f32 %v2222, %v736
  %v2273 = vadd.f32 %v2223, %v736
  %v2274 = vadd.f32 %v2224, %v736
  %v2275 = vadd.f32 %v2225, %v736
  %v2276 = vadd.f32 %v2226, %v736
  %v2277 = vadd.f32 %v2227, %v736
  %v2278 = vadd.f32 %v2228, %v736
  %v2279 = vadd.f32 %v2229, %v736
  %v2280 = vadd.f32 %v2230, %v736
  %v2281 = vadd.f32 %v2231, %v736
  %v2282 = vadd.f32 %v2232, %v736
  %v2283 = vadd.f32 %v2233, %v736
  %v2284 = vadd.f32 %v2234, %v736
  %v2285 = vadd.f32 %v2235, %v736
  %v2286 = vadd.f32 %v2236, %v736
  %v2287 = vadd.f32 %v2237, %v736
  %v2288 = vadd.f32 %v2238, %v736
  %v2289 = vadd.f32 %v2239, %v736
  %v2290 = vadd.f32 %v2240, %v736
  %v2291 = vadd.f32 %v2241, %v736
  %v2292 = vadd.f32 %v2242, %v736
  %v2293 = vadd.f32 %v2243, %v736
  %v2294 = vadd.f32 %v2244, %v736
  %v2295 = vadd.f32 %v2245, %v736
  %v2296 = vadd.f32 %v2246, %v736
  %v2297 = vadd.f32 %v2247, %v736
  %v2298 = vadd.f32 %v2248, %v736
  %v2299 = vadd.f32 %v2249, %v736
  %v2300 = vadd.f32 %v2250, %v736
  %v2301 = vadd.f32 %v2251, %v736
  %v2302 = vadd.f32 %v2252, %v736
  %v2303 = vadd.f32 %v2253, %v736
  %v2304 = vadd.f32 %v2254, %v736
  %v2305 = vadd.f32 %v2255, %v736
  %v2306 = vmax.f32 %v2256, 0.0
  %v2307 = vmax.f32 %v2257, 0.0
  %v2308 = vmax.f32 %v2258, 0.0
  %v2309 = vmax.f32 %v2259, 0.0
  %v2310 = vmax.f32 %v2260, 0.0
  %v2311 = vmax.f32 %v2261, 0.0
  %v2312 = vmax.f32 %v2262, 0.0
  %v2313 = vmax.f32 %v2263, 0.0
  %v2314 = vmax.f32 %v2264, 0.0
  %v2315 = vmax.f32 %v2265, 0.0
  %v2316 = vmax.f32 %v2266, 0.0
  %v2317 = vmax.f32 %v2267, 0.0
  %v2318 = vmax.f32 %v2268, 0.0
  %v2319 = vmax.f32 %v2269, 0.0
  %v2320 = vmax.f32 %v2270, 0.0
  %v2321 = vmax.f32 %v2271, 0.0
  %v2322 = vmax.f32 %v2272, 0.0
  %v2323 = vmax.f32 %v2273, 0.0
  %v2324 = vmax.f32 %v2274, 0.0
  %v2325 = vmax.f32 %v2275, 0.0
  %v2326 = vmax.f32 %v2276, 0.0
  %v2327 = vmax.f32 %v2277, 0.0
  %v2328 = vmax.f32 %v2278, 0.0
  %v2329 = vmax.f32 %v2279, 0.0
  %v2330 = vmax.f32 %v2280, 0.0
  %v2331 = vmax.f32 %v2281, 0.0
  %v2332 = vmax.f32 %v2282, 0.0
  %v2333 = vmax.f32 %v2283, 0.0
  %v2334 = vmax.f32 %v2284, 0.0
  %v2335 = vmax.f32 %v2285, 0.0
  %v2336 = vmax.f32 %v2286, 0.0
  %v2337 = vmax.f32 %v2287, 0.0
  %v2338 = vmax.f32 %v2288, 0.0
  %v2339 = vmax.f32 %v2289, 0.0
  %v2340 = vmax.f32 %v2290, 0.0
  %v2341 = vmax.f32 %v2291, 0.0
  %v2342 = vmax.f32 %v2292, 0.0
  %v2343 = vmax.f32 %v2293, 0.0
  %v2344 = vmax.f32 %v2294, 0.0
  %v2345 = vmax.f32 %v2295, 0.0
  %v2346 = vmax.f32 %v2296, 0.0
  %v2347 = vmax.f32 %v2297, 0.0
  %v2348 = vmax.f32 %v2298, 0.0
  %v2349 = vmax.f32 %v2299, 0.0
  %v2350 = vmax.f32 %v2300, 0.0
  %v2351 = vmax.f32 %v2301, 0.0
  %v2352 = vmax.f32 %v2302, 0.0
  %v2353 = vmax.f32 %v2303, 0.0
  %v2354 = vmax.f32 %v2304, 0.0
  %v2355 = vmax.f32 %v2305, 0.0
  %v2356 = vmax.f32 %v1572, %v2306
  %v2357 = vmax.f32 %v1573, %v2307
  %v2358 = vmax.f32 %v1574, %v2308
  %v2359 = vmax.f32 %v1575, %v2309
  %v2360 = vmax.f32 %v1576, %v2310
  %v2361 = vmax.f32 %v1577, %v2311
  %v2362 = vmax.f32 %v1578, %v2312
  %v2363 = vmax.f32 %v1579, %v2313
  %v2364 = vmax.f32 %v1580, %v2314
  %v2365 = vmax.f32 %v1581, %v2315
  %v2366 = vmax.f32 %v1582, %v2316
  %v2367 = vmax.f32 %v1583, %v2317
  %v2368 = vmax.f32 %v1584, %v2318
  %v2369 = vmax.f32 %v1585, %v2319
  %v2370 = vmax.f32 %v1586, %v2320
  %v2371 = vmax.f32 %v1587, %v2321
  %v2372 = vmax.f32 %v1588, %v2322
  %v2373 = vmax.f32 %v1589, %v2323
  %v2374 = vmax.f32 %v1590, %v2324
  %v2375 = vmax.f32 %v1591, %v2325
  %v2376 = vmax.f32 %v1592, %v2326
  %v2377 = vmax.f32 %v1593, %v2327
  %v2378 = vmax.f32 %v1594, %v2328
  %v2379 = vmax.f32 %v1595, %v2329
  %v2380 = vmax.f32 %v1596, %v2330
  %v2381 = vmax.f32 %v1597, %v2331
  %v2382 = vmax.f32 %v1598, %v2332
  %v2383 = vmax.f32 %v1599, %v2333
  %v2384 = vmax.f32 %v1600, %v2334
  %v2385 = vmax.f32 %v1601, %v2335
  %v2386 = vmax.f32 %v1602, %v2336
  %v2387 = vmax.f32 %v1603, %v2337
  %v2388 = vmax.f32 %v1604, %v2338
  %v2389 = vmax.f32 %v1605, %v2339
  %v2390 = vmax.f32 %v1606, %v2340
  %v2391 = vmax.f32 %v1607, %v2341
  %v2392 = vmax.f32 %v1608, %v2342
  %v2393 = vmax.f32 %v1609, %v2343
  %v2394 = vmax.f32 %v1610, %v2344
  %v2395 = vmax.f32 %v1611, %v2345
  %v2396 = vmax.f32 %v1612, %v2346
  %v2397 = vmax.f32 %v1613, %v2347
  %v2398 = vmax.f32 %v1614, %v2348
  %v2399 = vmax.f32 %v1615, %v2349
  %v2400 = vmax.f32 %v1616, %v2350
  %v2401 = vmax.f32 %v1617, %v2351
  %v2402 = vmax.f32 %v1618, %v2352
  %v2403 = vmax.f32 %v1619, %v2353
  %v2404 = vmax.f32 %v1620, %v2354
  %v2405 = vmax.f32 %v1621, %v2355
  %s2406 = scalar_lea.vmem %s0, 1200
  %v2407 = vld [vmem:[%s2406] sm:$0xff]
  %v2408 = vld [vmem:[%s2406 + $0x8] sm:$0xff]
  %v2409 = vld [vmem:[%s2406 + $0x10] sm:$0xff]
  %v2410 = vld [vmem:[%s2406 + $0x18] sm:$0xff]
  %v2411 = vld [vmem:[%s2406 + $0x20] sm:$0xff]
  %v2412 = vld [vmem:[%s2406 + $0x28] sm:$0xff]
  %v2413 = vld [vmem:[%s2406 + $0x30] sm:$0xff]
  %v2414 = vld [vmem:[%s2406 + $0x38] sm:$0xff]
  %v2415 = vld [vmem:[%s2406 + $0x40] sm:$0xff]
  %v2416 = vld [vmem:[%s2406 + $0x48] sm:$0xff]
  %v2417 = vld [vmem:[%s2406 + $0x50] sm:$0xff]
  %v2418 = vld [vmem:[%s2406 + $0x58] sm:$0xff]
  %v2419 = vld [vmem:[%s2406 + $0x60] sm:$0xff]
  %v2420 = vld [vmem:[%s2406 + $0x68] sm:$0xff]
  %v2421 = vld [vmem:[%s2406 + $0x70] sm:$0xff]
  %v2422 = vld [vmem:[%s2406 + $0x78] sm:$0xff]
  %v2423 = vld [vmem:[%s2406 + $0x80] sm:$0xff]
  %v2424 = vld [vmem:[%s2406 + $0x88] sm:$0xff]
  %v2425 = vld [vmem:[%s2406 + $0x90] sm:$0xff]
  %v2426 = vld [vmem:[%s2406 + $0x98] sm:$0xff]
  %v2427 = vld [vmem:[%s2406 + $0xa0] sm:$0xff]
  %v2428 = vld [vmem:[%s2406 + $0xa8] sm:$0xff]
  %v2429 = vld [vmem:[%s2406 + $0xb0] sm:$0xff]
  %v2430 = vld [vmem:[%s2406 + $0xb8] sm:$0xff]
  %v2431 = vld [vmem:[%s2406 + $0xc0] sm:$0xff]
  %v2432 = vld [vmem:[%s2406 + $0xc8] sm:$0xff]
  %v2433 = vld [vmem:[%s2406 + $0xd0] sm:$0xff]
  %v2434 = vld [vmem:[%s2406 + $0xd8] sm:$0xff]
  %v2435 = vld [vmem:[%s2406 + $0xe0] sm:$0xff]
  %v2436 = vld [vmem:[%s2406 + $0xe8] sm:$0xff]
  %v2437 = vld [vmem:[%s2406 + $0xf0] sm:$0xff]
  %v2438 = vld [vmem:[%s2406 + $0xf8] sm:$0xff]
  %v2439 = vld [vmem:[%s2406 + $0x100] sm:$0xff]
  %v2440 = vld [vmem:[%s2406 + $0x108] sm:$0xff]
  %v2441 = vld [vmem:[%s2406 + $0x110] sm:$0xff]
  %v2442 = vld [vmem:[%s2406 + $0x118] sm:$0xff]
  %v2443 = vld [vmem:[%s2406 + $0x120] sm:$0xff]
  %v2444 = vld [vmem:[%s2406 + $0x128] sm:$0xff]
  %v2445 = vld [vmem:[%s2406 + $0x130] sm:$0xff]
  %v2446 = vld [vmem:[%s2406 + $0x138] sm:$0xff]
  %v2447 = vld [vmem:[%s2406 + $0x140] sm:$0xff]
  %v2448 = vld [vmem:[%s2406 + $0x148] sm:$0xff]
  %v2449 = vld [vmem:[%s2406 + $0x150] sm:$0xff]
  %v2450 = vld [vmem:[%s2406 + $0x158] sm:$0xff]
  %v2451 = vld [vmem:[%s2406 + $0x160] sm:$0xff]
  %v2452 = vld [vmem:[%s2406 + $0x168] sm:$0xff]
  %v2453 = vld [vmem:[%s2406 + $0x170] sm:$0xff]
  %v2454 = vld [vmem:[%s2406 + $0x178] sm:$0xff]
  %v2455 = vld [vmem:[%s2406 + $0x180] sm:$0xff]
  %v2456 = vld [vmem:[%s2406 + $0x188] sm:$0xff]
  %v2507 = vunpack.c.l.b16 %v2407
  %v2508 = vunpack.c.h.b16 %v2407
  %v2509 = vunpack.c.l.b16 %v2408
  %v2510 = vunpack.c.h.b16 %v2408
  %v2511 = vunpack.c.l.b16 %v2409
  %v2512 = vunpack.c.h.b16 %v2409
  %v2513 = vunpack.c.l.b16 %v2410
  %v2514 = vunpack.c.h.b16 %v2410
  %v2515 = vunpack.c.l.b16 %v2411
  %v2516 = vunpack.c.h.b16 %v2411
  %v2517 = vunpack.c.l.b16 %v2412
  %v2518 = vunpack.c.h.b16 %v2412
  %v2519 = vunpack.c.l.b16 %v2413
  %v2520 = vunpack.c.h.b16 %v2413
  %v2521 = vunpack.c.l.b16 %v2414
  %v2522 = vunpack.c.h.b16 %v2414
  %v2523 = vunpack.c.l.b16 %v2415
  %v2524 = vunpack.c.h.b16 %v2415
  %v2525 = vunpack.c.l.b16 %v2416
  %v2526 = vunpack.c.h.b16 %v2416
  %v2527 = vunpack.c.l.b16 %v2417
  %v2528 = vunpack.c.h.b16 %v2417
  %v2529 = vunpack.c.l.b16 %v2418
  %v2530 = vunpack.c.h.b16 %v2418
  %v2531 = vunpack.c.l.b16 %v2419
  %v2532 = vunpack.c.h.b16 %v2419
  %v2533 = vunpack.c.l.b16 %v2420
  %v2534 = vunpack.c.h.b16 %v2420
  %v2535 = vunpack.c.l.b16 %v2421
  %v2536 = vunpack.c.h.b16 %v2421
  %v2537 = vunpack.c.l.b16 %v2422
  %v2538 = vunpack.c.h.b16 %v2422
  %v2539 = vunpack.c.l.b16 %v2423
  %v2540 = vunpack.c.h.b16 %v2423
  %v2541 = vunpack.c.l.b16 %v2424
  %v2542 = vunpack.c.h.b16 %v2424
  %v2543 = vunpack.c.l.b16 %v2425
  %v2544 = vunpack.c.h.b16 %v2425
  %v2545 = vunpack.c.l.b16 %v2426
  %v2546 = vunpack.c.h.b16 %v2426
  %v2547 = vunpack.c.l.b16 %v2427
  %v2548 = vunpack.c.h.b16 %v2427
  %v2549 = vunpack.c.l.b16 %v2428
  %v2550 = vunpack.c.h.b16 %v2428
  %v2551 = vunpack.c.l.b16 %v2429
  %v2552 = vunpack.c.h.b16 %v2429
  %v2553 = vunpack.c.l.b16 %v2430
  %v2554 = vunpack.c.h.b16 %v2430
  %v2555 = vunpack.c.l.b16 %v2431
  %v2556 = vunpack.c.h.b16 %v2431
  %v2557 = vunpack.c.l.b16 %v2432
  %v2558 = vunpack.c.h.b16 %v2432
  %v2559 = vunpack.c.l.b16 %v2433
  %v2560 = vunpack.c.h.b16 %v2433
  %v2561 = vunpack.c.l.b16 %v2434
  %v2562 = vunpack.c.h.b16 %v2434
  %v2563 = vunpack.c.l.b16 %v2435
  %v2564 = vunpack.c.h.b16 %v2435
  %v2565 = vunpack.c.l.b16 %v2436
  %v2566 = vunpack.c.h.b16 %v2436
  %v2567 = vunpack.c.l.b16 %v2437
  %v2568 = vunpack.c.h.b16 %v2437
  %v2569 = vunpack.c.l.b16 %v2438
  %v2570 = vunpack.c.h.b16 %v2438
  %v2571 = vunpack.c.l.b16 %v2439
  %v2572 = vunpack.c.h.b16 %v2439
  %v2573 = vunpack.c.l.b16 %v2440
  %v2574 = vunpack.c.h.b16 %v2440
  %v2575 = vunpack.c.l.b16 %v2441
  %v2576 = vunpack.c.h.b16 %v2441
  %v2577 = vunpack.c.l.b16 %v2442
  %v2578 = vunpack.c.h.b16 %v2442
  %v2579 = vunpack.c.l.b16 %v2443
  %v2580 = vunpack.c.h.b16 %v2443
  %v2581 = vunpack.c.l.b16 %v2444
  %v2582 = vunpack.c.h.b16 %v2444
  %v2583 = vunpack.c.l.b16 %v2445
  %v2584 = vunpack.c.h.b16 %v2445
  %v2585 = vunpack.c.l.b16 %v2446
  %v2586 = vunpack.c.h.b16 %v2446
  %v2587 = vunpack.c.l.b16 %v2447
  %v2588 = vunpack.c.h.b16 %v2447
  %v2589 = vunpack.c.l.b16 %v2448
  %v2590 = vunpack.c.h.b16 %v2448
  %v2591 = vunpack.c.l.b16 %v2449
  %v2592 = vunpack.c.h.b16 %v2449
  %v2593 = vunpack.c.l.b16 %v2450
  %v2594 = vunpack.c.h.b16 %v2450
  %v2595 = vunpack.c.l.b16 %v2451
  %v2596 = vunpack.c.h.b16 %v2451
  %v2597 = vunpack.c.l.b16 %v2452
  %v2598 = vunpack.c.h.b16 %v2452
  %v2599 = vunpack.c.l.b16 %v2453
  %v2600 = vunpack.c.h.b16 %v2453
  %v2601 = vunpack.c.l.b16 %v2454
  %v2602 = vunpack.c.h.b16 %v2454
  %v2603 = vunpack.c.l.b16 %v2455
  %v2604 = vunpack.c.h.b16 %v2455
  %v2605 = vunpack.c.l.b16 %v2456
  %v2606 = vunpack.c.h.b16 %v2456
  %v2607 = vpack.c.b16 %v2509, %v2507
  %v2608 = vpack.c.b16 %v2510, %v2508
  %v2609 = vpack.c.b16 %v2513, %v2511
  %v2610 = vpack.c.b16 %v2514, %v2512
  %v2611 = vpack.c.b16 %v2517, %v2515
  %v2612 = vpack.c.b16 %v2518, %v2516
  %v2613 = vpack.c.b16 %v2521, %v2519
  %v2614 = vpack.c.b16 %v2522, %v2520
  %v2615 = vpack.c.b16 %v2525, %v2523
  %v2616 = vpack.c.b16 %v2526, %v2524
  %v2617 = vpack.c.b16 %v2529, %v2527
  %v2618 = vpack.c.b16 %v2530, %v2528
  %v2619 = vpack.c.b16 %v2533, %v2531
  %v2620 = vpack.c.b16 %v2534, %v2532
  %v2621 = vpack.c.b16 %v2537, %v2535
  %v2622 = vpack.c.b16 %v2538, %v2536
  %v2623 = vpack.c.b16 %v2541, %v2539
  %v2624 = vpack.c.b16 %v2542, %v2540
  %v2625 = vpack.c.b16 %v2545, %v2543
  %v2626 = vpack.c.b16 %v2546, %v2544
  %v2627 = vpack.c.b16 %v2549, %v2547
  %v2628 = vpack.c.b16 %v2550, %v2548
  %v2629 = vpack.c.b16 %v2553, %v2551
  %v2630 = vpack.c.b16 %v2554, %v2552
  %v2631 = vpack.c.b16 %v2557, %v2555
  %v2632 = vpack.c.b16 %v2558, %v2556
  %v2633 = vpack.c.b16 %v2561, %v2559
  %v2634 = vpack.c.b16 %v2562, %v2560
  %v2635 = vpack.c.b16 %v2565, %v2563
  %v2636 = vpack.c.b16 %v2566, %v2564
  %v2637 = vpack.c.b16 %v2569, %v2567
  %v2638 = vpack.c.b16 %v2570, %v2568
  %v2639 = vpack.c.b16 %v2573, %v2571
  %v2640 = vpack.c.b16 %v2574, %v2572
  %v2641 = vpack.c.b16 %v2577, %v2575
  %v2642 = vpack.c.b16 %v2578, %v2576
  %v2643 = vpack.c.b16 %v2581, %v2579
  %v2644 = vpack.c.b16 %v2582, %v2580
  %v2645 = vpack.c.b16 %v2585, %v2583
  %v2646 = vpack.c.b16 %v2586, %v2584
  %v2647 = vpack.c.b16 %v2589, %v2587
  %v2648 = vpack.c.b16 %v2590, %v2588
  %v2649 = vpack.c.b16 %v2593, %v2591
  %v2650 = vpack.c.b16 %v2594, %v2592
  %v2651 = vpack.c.b16 %v2597, %v2595
  %v2652 = vpack.c.b16 %v2598, %v2596
  %v2653 = vpack.c.b16 %v2601, %v2599
  %v2654 = vpack.c.b16 %v2602, %v2600
  %v2655 = vpack.c.b16 %v2605, %v2603
  %v2656 = vpack.c.b16 %v2606, %v2604
  %v2683 = vsel %vm367, %v2608, 0
  %v2686 = vsel %vm367, %v2610, 0
  %v2689 = vsel %vm367, %v2612, 0
  %v2692 = vsel %vm367, %v2614, 0
  %v2695 = vsel %vm367, %v2616, 0
  %v2698 = vsel %vm367, %v2618, 0
  %v2701 = vsel %vm367, %v2620, 0
  %v2704 = vsel %vm367, %v2622, 0
  %v2707 = vsel %vm367, %v2624, 0
  %v2710 = vsel %vm367, %v2626, 0
  %v2713 = vsel %vm367, %v2628, 0
  %v2716 = vsel %vm367, %v2630, 0
  %v2719 = vsel %vm367, %v2632, 0
  %v2722 = vsel %vm367, %v2634, 0
  %v2725 = vsel %vm367, %v2636, 0
  %v2728 = vsel %vm367, %v2638, 0
  %v2731 = vsel %vm367, %v2640, 0
  %v2734 = vsel %vm367, %v2642, 0
  %v2737 = vsel %vm367, %v2644, 0
  %v2740 = vsel %vm367, %v2646, 0
  %v2743 = vsel %vm367, %v2648, 0
  %v2746 = vsel %vm367, %v2650, 0
  %v2749 = vsel %vm367, %v2652, 0
  %v2752 = vsel %vm367, %v2654, 0
  %v2755 = vsel %vm367, %v2656, 0
  %2757 = vmatprep.subr.bf16.mxu0 0
  %2758 = vmatpush1.bf16.msra.mxu0 %v349
  %2759 = vmatprep.subr.bf16.mxu0 0
  %2760 = vmatpush1.bf16.msra.mxu0 %v350
  %2761 = vmatprep.subr.bf16.mxu0 0
  %2762 = vmatpush1.bf16.msra.mxu0 %v351
  %2763 = vmatprep.subr.bf16.mxu0 0
  %2764 = vmatpush1.bf16.msra.mxu0 %v352
  %2765 = vmatprep.subr.bf16.mxu0 0
  %2766 = vmatpush1.bf16.msra.mxu0 %v353
  %2767 = vmatprep.subr.bf16.mxu0 0
  %2768 = vmatpush1.bf16.msra.mxu0 %v354
  %2769 = vmatprep.subr.bf16.mxu0 0
  %2770 = vmatpush1.bf16.msra.mxu0 %v355
  %2771 = vmatprep.subr.bf16.mxu0 0
  %2772 = vmatpush1.bf16.msra.mxu0 %v356
  %2773 = vmatprep.subr.bf16.mxu0 0
  %2774 = vmatpush1.bf16.msra.mxu0 %v357
  %2775 = vmatprep.subr.bf16.mxu0 0
  %2776 = vmatpush1.bf16.msra.mxu0 0
  %2777 = vmatprep.subr.bf16.mxu0 0
  %2778 = vmatpush1.bf16.msra.mxu0 0
  %2779 = vmatprep.subr.bf16.mxu0 0
  %2780 = vmatpush1.bf16.msra.mxu0 0
  %2781 = vmatprep.subr.bf16.mxu0 0
  %2782 = vmatpush1.bf16.msra.mxu0 0
  %2783 = vmatprep.subr.bf16.mxu0 0
  %2784 = vmatpush1.bf16.msra.mxu0 0
  %2785 = vmatprep.subr.bf16.mxu0 0
  %2786 = vmatpush1.bf16.msra.mxu0 0
  %2787 = vmatprep.subr.bf16.mxu0 0
  %2788 = vmatpush1.bf16.msra.mxu0 0
  %2789 = vmatprep.mubr.bf16.mxu0 %v2683
  %2790 = vmatmul.mubr.bf16.gmra.mrb[0].mxu0 %v2607
  %v2791 = vpop.f32.mrb[0].mxu0
  %v2792 = vadd.f32 0.0, %v2791
  %v2793 = vpop.f32.mrb[0].mxu0
  %v2794 = vpop.f32.mrb[0].mxu0
  %v2795 = vadd.f32 0.0, %v2794
  %v2796 = vpop.f32.mrb[0].mxu0
  %2797 = vmatprep.mubr.bf16.mxu0 %v2686
  %2798 = vmatmul.mubr.bf16.gmra.mrb[0].mxu0 %v2609
  %v2799 = vpop.f32.mrb[0].mxu0
  %v2800 = vadd.f32 0.0, %v2799
  %v2801 = vpop.f32.mrb[0].mxu0
  %v2802 = vpop.f32.mrb[0].mxu0
  %v2803 = vadd.f32 0.0, %v2802
  %v2804 = vpop.f32.mrb[0].mxu0
  %2805 = vmatprep.mubr.bf16.mxu0 %v2689
  %2806 = vmatmul.mubr.bf16.gmra.mrb[0].mxu0 %v2611
  %v2807 = vpop.f32.mrb[0].mxu0
  %v2808 = vadd.f32 0.0, %v2807
  %v2809 = vpop.f32.mrb[0].mxu0
  %v2810 = vpop.f32.mrb[0].mxu0
  %v2811 = vadd.f32 0.0, %v2810
  %v2812 = vpop.f32.mrb[0].mxu0
  %2813 = vmatprep.mubr.bf16.mxu0 %v2692
  %2814 = vmatmul.mubr.bf16.gmra.mrb[0].mxu0 %v2613
  %v2815 = vpop.f32.mrb[0].mxu0
  %v2816 = vadd.f32 0.0, %v2815
  %v2817 = vpop.f32.mrb[0].mxu0
  %v2818 = vpop.f32.mrb[0].mxu0
  %v2819 = vadd.f32 0.0, %v2818
  %v2820 = vpop.f32.mrb[0].mxu0
  %2821 = vmatprep.mubr.bf16.mxu0 %v2695
  %2822 = vmatmul.mubr.bf16.gmra.mrb[0].mxu0 %v2615
  %v2823 = vpop.f32.mrb[0].mxu0
  %v2824 = vadd.f32 0.0, %v2823
  %v2825 = vpop.f32.mrb[0].mxu0
  %v2826 = vpop.f32.mrb[0].mxu0
  %v2827 = vadd.f32 0.0, %v2826
  %v2828 = vpop.f32.mrb[0].mxu0
  %2829 = vmatprep.mubr.bf16.mxu0 %v2698
  %2830 = vmatmul.mubr.bf16.gmra.mrb[0].mxu0 %v2617
  %v2831 = vpop.f32.mrb[0].mxu0
  %v2832 = vadd.f32 0.0, %v2831
  %v2833 = vpop.f32.mrb[0].mxu0
  %v2834 = vpop.f32.mrb[0].mxu0
  %v2835 = vadd.f32 0.0, %v2834
  %v2836 = vpop.f32.mrb[0].mxu0
  %2837 = vmatprep.mubr.bf16.mxu0 %v2701
  %2838 = vmatmul.mubr.bf16.gmra.mrb[0].mxu0 %v2619
  %v2839 = vpop.f32.mrb[0].mxu0
  %v2840 = vadd.f32 0.0, %v2839
  %v2841 = vpop.f32.mrb[0].mxu0
  %v2842 = vpop.f32.mrb[0].mxu0
  %v2843 = vadd.f32 0.0, %v2842
  %v2844 = vpop.f32.mrb[0].mxu0
  %2845 = vmatprep.mubr.bf16.mxu0 %v2704
  %2846 = vmatmul.mubr.bf16.gmra.mrb[0].mxu0 %v2621
  %v2847 = vpop.f32.mrb[0].mxu0
  %v2848 = vadd.f32 0.0, %v2847
  %v2849 = vpop.f32.mrb[0].mxu0
  %v2850 = vpop.f32.mrb[0].mxu0
  %v2851 = vadd.f32 0.0, %v2850
  %v2852 = vpop.f32.mrb[0].mxu0
  %2853 = vmatprep.mubr.bf16.mxu0 %v2707
  %2854 = vmatmul.mubr.bf16.gmra.mrb[0].mxu0 %v2623
  %v2855 = vpop.f32.mrb[0].mxu0
  %v2856 = vadd.f32 0.0, %v2855
  %v2857 = vpop.f32.mrb[0].mxu0
  %v2858 = vpop.f32.mrb[0].mxu0
  %v2859 = vadd.f32 0.0, %v2858
  %v2860 = vpop.f32.mrb[0].mxu0
  %2861 = vmatprep.mubr.bf16.mxu0 %v2710
  %2862 = vmatmul.mubr.bf16.gmra.mrb[0].mxu0 %v2625
  %v2863 = vpop.f32.mrb[0].mxu0
  %v2864 = vadd.f32 0.0, %v2863
  %v2865 = vpop.f32.mrb[0].mxu0
  %v2866 = vpop.f32.mrb[0].mxu0
  %v2867 = vadd.f32 0.0, %v2866
  %v2868 = vpop.f32.mrb[0].mxu0
  %2869 = vmatprep.mubr.bf16.mxu0 %v2713
  %2870 = vmatmul.mubr.bf16.gmra.mrb[0].mxu0 %v2627
  %v2871 = vpop.f32.mrb[0].mxu0
  %v2872 = vadd.f32 0.0, %v2871
  %v2873 = vpop.f32.mrb[0].mxu0
  %v2874 = vpop.f32.mrb[0].mxu0
  %v2875 = vadd.f32 0.0, %v2874
  %v2876 = vpop.f32.mrb[0].mxu0
  %2877 = vmatprep.mubr.bf16.mxu0 %v2716
  %2878 = vmatmul.mubr.bf16.gmra.mrb[0].mxu0 %v2629
  %v2879 = vpop.f32.mrb[0].mxu0
  %v2880 = vadd.f32 0.0, %v2879
  %v2881 = vpop.f32.mrb[0].mxu0
  %v2882 = vpop.f32.mrb[0].mxu0
  %v2883 = vadd.f32 0.0, %v2882
  %v2884 = vpop.f32.mrb[0].mxu0
  %2885 = vmatprep.mubr.bf16.mxu0 %v2719
  %2886 = vmatmul.mubr.bf16.gmra.mrb[0].mxu0 %v2631
  %v2887 = vpop.f32.mrb[0].mxu0
  %v2888 = vadd.f32 0.0, %v2887
  %v2889 = vpop.f32.mrb[0].mxu0
  %v2890 = vpop.f32.mrb[0].mxu0
  %v2891 = vadd.f32 0.0, %v2890
  %v2892 = vpop.f32.mrb[0].mxu0
  %2893 = vmatprep.mubr.bf16.mxu0 %v2722
  %2894 = vmatmul.mubr.bf16.gmra.mrb[0].mxu0 %v2633
  %v2895 = vpop.f32.mrb[0].mxu0
  %v2896 = vadd.f32 0.0, %v2895
  %v2897 = vpop.f32.mrb[0].mxu0
  %v2898 = vpop.f32.mrb[0].mxu0
  %v2899 = vadd.f32 0.0, %v2898
  %v2900 = vpop.f32.mrb[0].mxu0
  %2901 = vmatprep.mubr.bf16.mxu0 %v2725
  %2902 = vmatmul.mubr.bf16.gmra.mrb[0].mxu0 %v2635
  %v2903 = vpop.f32.mrb[0].mxu0
  %v2904 = vadd.f32 0.0, %v2903
  %v2905 = vpop.f32.mrb[0].mxu0
  %v2906 = vpop.f32.mrb[0].mxu0
  %v2907 = vadd.f32 0.0, %v2906
  %v2908 = vpop.f32.mrb[0].mxu0
  %2909 = vmatprep.mubr.bf16.mxu0 %v2728
  %2910 = vmatmul.mubr.bf16.gmra.mrb[0].mxu0 %v2637
  %v2911 = vpop.f32.mrb[0].mxu0
  %v2912 = vadd.f32 0.0, %v2911
  %v2913 = vpop.f32.mrb[0].mxu0
  %v2914 = vpop.f32.mrb[0].mxu0
  %v2915 = vadd.f32 0.0, %v2914
  %v2916 = vpop.f32.mrb[0].mxu0
  %2917 = vmatprep.mubr.bf16.mxu0 %v2731
  %2918 = vmatmul.mubr.bf16.gmra.mrb[0].mxu0 %v2639
  %v2919 = vpop.f32.mrb[0].mxu0
  %v2920 = vadd.f32 0.0, %v2919
  %v2921 = vpop.f32.mrb[0].mxu0
  %v2922 = vpop.f32.mrb[0].mxu0
  %v2923 = vadd.f32 0.0, %v2922
  %v2924 = vpop.f32.mrb[0].mxu0
  %2925 = vmatprep.mubr.bf16.mxu0 %v2734
  %2926 = vmatmul.mubr.bf16.gmra.mrb[0].mxu0 %v2641
  %v2927 = vpop.f32.mrb[0].mxu0
  %v2928 = vadd.f32 0.0, %v2927
  %v2929 = vpop.f32.mrb[0].mxu0
  %v2930 = vpop.f32.mrb[0].mxu0
  %v2931 = vadd.f32 0.0, %v2930
  %v2932 = vpop.f32.mrb[0].mxu0
  %2933 = vmatprep.mubr.bf16.mxu0 %v2737
  %2934 = vmatmul.mubr.bf16.gmra.mrb[0].mxu0 %v2643
  %v2935 = vpop.f32.mrb[0].mxu0
  %v2936 = vadd.f32 0.0, %v2935
  %v2937 = vpop.f32.mrb[0].mxu0
  %v2938 = vpop.f32.mrb[0].mxu0
  %v2939 = vadd.f32 0.0, %v2938
  %v2940 = vpop.f32.mrb[0].mxu0
  %2941 = vmatprep.mubr.bf16.mxu0 %v2740
  %2942 = vmatmul.mubr.bf16.gmra.mrb[0].mxu0 %v2645
  %v2943 = vpop.f32.mrb[0].mxu0
  %v2944 = vadd.f32 0.0, %v2943
  %v2945 = vpop.f32.mrb[0].mxu0
  %v2946 = vpop.f32.mrb[0].mxu0
  %v2947 = vadd.f32 0.0, %v2946
  %v2948 = vpop.f32.mrb[0].mxu0
  %2949 = vmatprep.mubr.bf16.mxu0 %v2743
  %2950 = vmatmul.mubr.bf16.gmra.mrb[0].mxu0 %v2647
  %v2951 = vpop.f32.mrb[0].mxu0
  %v2952 = vadd.f32 0.0, %v2951
  %v2953 = vpop.f32.mrb[0].mxu0
  %v2954 = vpop.f32.mrb[0].mxu0
  %v2955 = vadd.f32 0.0, %v2954
  %v2956 = vpop.f32.mrb[0].mxu0
  %2957 = vmatprep.mubr.bf16.mxu0 %v2746
  %2958 = vmatmul.mubr.bf16.gmra.mrb[0].mxu0 %v2649
  %v2959 = vpop.f32.mrb[0].mxu0
  %v2960 = vadd.f32 0.0, %v2959
  %v2961 = vpop.f32.mrb[0].mxu0
  %v2962 = vpop.f32.mrb[0].mxu0
  %v2963 = vadd.f32 0.0, %v2962
  %v2964 = vpop.f32.mrb[0].mxu0
  %2965 = vmatprep.mubr.bf16.mxu0 %v2749
  %2966 = vmatmul.mubr.bf16.gmra.mrb[0].mxu0 %v2651
  %v2967 = vpop.f32.mrb[0].mxu0
  %v2968 = vadd.f32 0.0, %v2967
  %v2969 = vpop.f32.mrb[0].mxu0
  %v2970 = vpop.f32.mrb[0].mxu0
  %v2971 = vadd.f32 0.0, %v2970
  %v2972 = vpop.f32.mrb[0].mxu0
  %2973 = vmatprep.mubr.bf16.mxu0 %v2752
  %2974 = vmatmul.mubr.bf16.gmra.mrb[0].mxu0 %v2653
  %v2975 = vpop.f32.mrb[0].mxu0
  %v2976 = vadd.f32 0.0, %v2975
  %v2977 = vpop.f32.mrb[0].mxu0
  %v2978 = vpop.f32.mrb[0].mxu0
  %v2979 = vadd.f32 0.0, %v2978
  %v2980 = vpop.f32.mrb[0].mxu0
  %2981 = vmatprep.mubr.bf16.mxu0 %v2755
  %2982 = vmatmul.mubr.bf16.gmra.mrb[0].mxu0 %v2655
  %v2983 = vpop.f32.mrb[0].mxu0
  %v2984 = vadd.f32 0.0, %v2983
  %v2985 = vpop.f32.mrb[0].mxu0
  %v2986 = vpop.f32.mrb[0].mxu0
  %v2987 = vadd.f32 0.0, %v2986
  %v2988 = vpop.f32.mrb[0].mxu0
  %2989 = vdwg.mxu0
  %v2990 = vmul.f32 %v2792, %v680
  %v2991 = vmul.f32 %v2795, %v680
  %v2992 = vmul.f32 %v2800, %v680
  %v2993 = vmul.f32 %v2803, %v680
  %v2994 = vmul.f32 %v2808, %v680
  %v2995 = vmul.f32 %v2811, %v680
  %v2996 = vmul.f32 %v2816, %v680
  %v2997 = vmul.f32 %v2819, %v680
  %v2998 = vmul.f32 %v2824, %v680
  %v2999 = vmul.f32 %v2827, %v680
  %v3000 = vmul.f32 %v2832, %v680
  %v3001 = vmul.f32 %v2835, %v680
  %v3002 = vmul.f32 %v2840, %v680
  %v3003 = vmul.f32 %v2843, %v680
  %v3004 = vmul.f32 %v2848, %v680
  %v3005 = vmul.f32 %v2851, %v680
  %v3006 = vmul.f32 %v2856, %v680
  %v3007 = vmul.f32 %v2859, %v680
  %v3008 = vmul.f32 %v2864, %v680
  %v3009 = vmul.f32 %v2867, %v680
  %v3010 = vmul.f32 %v2872, %v680
  %v3011 = vmul.f32 %v2875, %v680
  %v3012 = vmul.f32 %v2880, %v680
  %v3013 = vmul.f32 %v2883, %v680
  %v3014 = vmul.f32 %v2888, %v680
  %v3015 = vmul.f32 %v2891, %v680
  %v3016 = vmul.f32 %v2896, %v680
  %v3017 = vmul.f32 %v2899, %v680
  %v3018 = vmul.f32 %v2904, %v680
  %v3019 = vmul.f32 %v2907, %v680
  %v3020 = vmul.f32 %v2912, %v680
  %v3021 = vmul.f32 %v2915, %v680
  %v3022 = vmul.f32 %v2920, %v680
  %v3023 = vmul.f32 %v2923, %v680
  %v3024 = vmul.f32 %v2928, %v680
  %v3025 = vmul.f32 %v2931, %v680
  %v3026 = vmul.f32 %v2936, %v680
  %v3027 = vmul.f32 %v2939, %v680
  %v3028 = vmul.f32 %v2944, %v680
  %v3029 = vmul.f32 %v2947, %v680
  %v3030 = vmul.f32 %v2952, %v680
  %v3031 = vmul.f32 %v2955, %v680
  %v3032 = vmul.f32 %v2960, %v680
  %v3033 = vmul.f32 %v2963, %v680
  %v3034 = vmul.f32 %v2968, %v680
  %v3035 = vmul.f32 %v2971, %v680
  %v3036 = vmul.f32 %v2976, %v680
  %v3037 = vmul.f32 %v2979, %v680
  %v3038 = vmul.f32 %v2984, %v680
  %v3039 = vmul.f32 %v2987, %v680
  %v3040 = vadd.f32 %v2990, %v736
  %v3041 = vadd.f32 %v2991, %v736
  %v3042 = vadd.f32 %v2992, %v736
  %v3043 = vadd.f32 %v2993, %v736
  %v3044 = vadd.f32 %v2994, %v736
  %v3045 = vadd.f32 %v2995, %v736
  %v3046 = vadd.f32 %v2996, %v736
  %v3047 = vadd.f32 %v2997, %v736
  %v3048 = vadd.f32 %v2998, %v736
  %v3049 = vadd.f32 %v2999, %v736
  %v3050 = vadd.f32 %v3000, %v736
  %v3051 = vadd.f32 %v3001, %v736
  %v3052 = vadd.f32 %v3002, %v736
  %v3053 = vadd.f32 %v3003, %v736
  %v3054 = vadd.f32 %v3004, %v736
  %v3055 = vadd.f32 %v3005, %v736
  %v3056 = vadd.f32 %v3006, %v736
  %v3057 = vadd.f32 %v3007, %v736
  %v3058 = vadd.f32 %v3008, %v736
  %v3059 = vadd.f32 %v3009, %v736
  %v3060 = vadd.f32 %v3010, %v736
  %v3061 = vadd.f32 %v3011, %v736
  %v3062 = vadd.f32 %v3012, %v736
  %v3063 = vadd.f32 %v3013, %v736
  %v3064 = vadd.f32 %v3014, %v736
  %v3065 = vadd.f32 %v3015, %v736
  %v3066 = vadd.f32 %v3016, %v736
  %v3067 = vadd.f32 %v3017, %v736
  %v3068 = vadd.f32 %v3018, %v736
  %v3069 = vadd.f32 %v3019, %v736
  %v3070 = vadd.f32 %v3020, %v736
  %v3071 = vadd.f32 %v3021, %v736
  %v3072 = vadd.f32 %v3022, %v736
  %v3073 = vadd.f32 %v3023, %v736
  %v3074 = vadd.f32 %v3024, %v736
  %v3075 = vadd.f32 %v3025, %v736
  %v3076 = vadd.f32 %v3026, %v736
  %v3077 = vadd.f32 %v3027, %v736
  %v3078 = vadd.f32 %v3028, %v736
  %v3079 = vadd.f32 %v3029, %v736
  %v3080 = vadd.f32 %v3030, %v736
  %v3081 = vadd.f32 %v3031, %v736
  %v3082 = vadd.f32 %v3032, %v736
  %v3083 = vadd.f32 %v3033, %v736
  %v3084 = vadd.f32 %v3034, %v736
  %v3085 = vadd.f32 %v3035, %v736
  %v3086 = vadd.f32 %v3036, %v736
  %v3087 = vadd.f32 %v3037, %v736
  %v3088 = vadd.f32 %v3038, %v736
  %v3089 = vadd.f32 %v3039, %v736
  %v3090 = vmax.f32 %v3040, 0.0
  %v3091 = vmax.f32 %v3041, 0.0
  %v3092 = vmax.f32 %v3042, 0.0
  %v3093 = vmax.f32 %v3043, 0.0
  %v3094 = vmax.f32 %v3044, 0.0
  %v3095 = vmax.f32 %v3045, 0.0
  %v3096 = vmax.f32 %v3046, 0.0
  %v3097 = vmax.f32 %v3047, 0.0
  %v3098 = vmax.f32 %v3048, 0.0
  %v3099 = vmax.f32 %v3049, 0.0
  %v3100 = vmax.f32 %v3050, 0.0
  %v3101 = vmax.f32 %v3051, 0.0
  %v3102 = vmax.f32 %v3052, 0.0
  %v3103 = vmax.f32 %v3053, 0.0
  %v3104 = vmax.f32 %v3054, 0.0
  %v3105 = vmax.f32 %v3055, 0.0
  %v3106 = vmax.f32 %v3056, 0.0
  %v3107 = vmax.f32 %v3057, 0.0
  %v3108 = vmax.f32 %v3058, 0.0
  %v3109 = vmax.f32 %v3059, 0.0
  %v3110 = vmax.f32 %v3060, 0.0
  %v3111 = vmax.f32 %v3061, 0.0
  %v3112 = vmax.f32 %v3062, 0.0
  %v3113 = vmax.f32 %v3063, 0.0
  %v3114 = vmax.f32 %v3064, 0.0
  %v3115 = vmax.f32 %v3065, 0.0
  %v3116 = vmax.f32 %v3066, 0.0
  %v3117 = vmax.f32 %v3067, 0.0
  %v3118 = vmax.f32 %v3068, 0.0
  %v3119 = vmax.f32 %v3069, 0.0
  %v3120 = vmax.f32 %v3070, 0.0
  %v3121 = vmax.f32 %v3071, 0.0
  %v3122 = vmax.f32 %v3072, 0.0
  %v3123 = vmax.f32 %v3073, 0.0
  %v3124 = vmax.f32 %v3074, 0.0
  %v3125 = vmax.f32 %v3075, 0.0
  %v3126 = vmax.f32 %v3076, 0.0
  %v3127 = vmax.f32 %v3077, 0.0
  %v3128 = vmax.f32 %v3078, 0.0
  %v3129 = vmax.f32 %v3079, 0.0
  %v3130 = vmax.f32 %v3080, 0.0
  %v3131 = vmax.f32 %v3081, 0.0
  %v3132 = vmax.f32 %v3082, 0.0
  %v3133 = vmax.f32 %v3083, 0.0
  %v3134 = vmax.f32 %v3084, 0.0
  %v3135 = vmax.f32 %v3085, 0.0
  %v3136 = vmax.f32 %v3086, 0.0
  %v3137 = vmax.f32 %v3087, 0.0
  %v3138 = vmax.f32 %v3088, 0.0
  %v3139 = vmax.f32 %v3089, 0.0
  %v3140 = vmax.f32 %v2356, %v3090
  %v3141 = vmax.f32 %v2357, %v3091
  %v3142 = vmax.f32 %v2358, %v3092
  %v3143 = vmax.f32 %v2359, %v3093
  %v3144 = vmax.f32 %v2360, %v3094
  %v3145 = vmax.f32 %v2361, %v3095
  %v3146 = vmax.f32 %v2362, %v3096
  %v3147 = vmax.f32 %v2363, %v3097
  %v3148 = vmax.f32 %v2364, %v3098
  %v3149 = vmax.f32 %v2365, %v3099
  %v3150 = vmax.f32 %v2366, %v3100
  %v3151 = vmax.f32 %v2367, %v3101
  %v3152 = vmax.f32 %v2368, %v3102
  %v3153 = vmax.f32 %v2369, %v3103
  %v3154 = vmax.f32 %v2370, %v3104
  %v3155 = vmax.f32 %v2371, %v3105
  %v3156 = vmax.f32 %v2372, %v3106
  %v3157 = vmax.f32 %v2373, %v3107
  %v3158 = vmax.f32 %v2374, %v3108
  %v3159 = vmax.f32 %v2375, %v3109
  %v3160 = vmax.f32 %v2376, %v3110
  %v3161 = vmax.f32 %v2377, %v3111
  %v3162 = vmax.f32 %v2378, %v3112
  %v3163 = vmax.f32 %v2379, %v3113
  %v3164 = vmax.f32 %v2380, %v3114
  %v3165 = vmax.f32 %v2381, %v3115
  %v3166 = vmax.f32 %v2382, %v3116
  %v3167 = vmax.f32 %v2383, %v3117
  %v3168 = vmax.f32 %v2384, %v3118
  %v3169 = vmax.f32 %v2385, %v3119
  %v3170 = vmax.f32 %v2386, %v3120
  %v3171 = vmax.f32 %v2387, %v3121
  %v3172 = vmax.f32 %v2388, %v3122
  %v3173 = vmax.f32 %v2389, %v3123
  %v3174 = vmax.f32 %v2390, %v3124
  %v3175 = vmax.f32 %v2391, %v3125
  %v3176 = vmax.f32 %v2392, %v3126
  %v3177 = vmax.f32 %v2393, %v3127
  %v3178 = vmax.f32 %v2394, %v3128
  %v3179 = vmax.f32 %v2395, %v3129
  %v3180 = vmax.f32 %v2396, %v3130
  %v3181 = vmax.f32 %v2397, %v3131
  %v3182 = vmax.f32 %v2398, %v3132
  %v3183 = vmax.f32 %v2399, %v3133
  %v3184 = vmax.f32 %v2400, %v3134
  %v3185 = vmax.f32 %v2401, %v3135
  %v3186 = vmax.f32 %v2402, %v3136
  %v3187 = vmax.f32 %v2403, %v3137
  %v3188 = vmax.f32 %v2404, %v3138
  %v3189 = vmax.f32 %v2405, %v3139
  %v3190 = vpack.c.bf16 %v3141, %v3140
  %v3191 = vpack.c.bf16 %v3143, %v3142
  %v3192 = vpack.c.bf16 %v3145, %v3144
  %v3193 = vpack.c.bf16 %v3147, %v3146
  %v3194 = vpack.c.bf16 %v3149, %v3148
  %v3195 = vpack.c.bf16 %v3151, %v3150
  %v3196 = vpack.c.bf16 %v3153, %v3152
  %v3197 = vpack.c.bf16 %v3155, %v3154
  %v3198 = vpack.c.bf16 %v3157, %v3156
  %v3199 = vpack.c.bf16 %v3159, %v3158
  %v3200 = vpack.c.bf16 %v3161, %v3160
  %v3201 = vpack.c.bf16 %v3163, %v3162
  %v3202 = vpack.c.bf16 %v3165, %v3164
  %v3203 = vpack.c.bf16 %v3167, %v3166
  %v3204 = vpack.c.bf16 %v3169, %v3168
  %v3205 = vpack.c.bf16 %v3171, %v3170
  %v3206 = vpack.c.bf16 %v3173, %v3172
  %v3207 = vpack.c.bf16 %v3175, %v3174
  %v3208 = vpack.c.bf16 %v3177, %v3176
  %v3209 = vpack.c.bf16 %v3179, %v3178
  %v3210 = vpack.c.bf16 %v3181, %v3180
  %v3211 = vpack.c.bf16 %v3183, %v3182
  %v3212 = vpack.c.bf16 %v3185, %v3184
  %v3213 = vpack.c.bf16 %v3187, %v3186
  %v3214 = vpack.c.bf16 %v3189, %v3188
  %v3240 = vunpack.c.l.b16 %v3190
  %v3241 = vunpack.c.h.b16 %v3190
  %v3242 = vunpack.c.l.b16 %v3191
  %v3243 = vunpack.c.h.b16 %v3191
  %v3244 = vunpack.c.l.b16 %v3192
  %v3245 = vunpack.c.h.b16 %v3192
  %v3246 = vunpack.c.l.b16 %v3193
  %v3247 = vunpack.c.h.b16 %v3193
  %v3248 = vunpack.c.l.b16 %v3194
  %v3249 = vunpack.c.h.b16 %v3194
  %v3250 = vunpack.c.l.b16 %v3195
  %v3251 = vunpack.c.h.b16 %v3195
  %v3252 = vunpack.c.l.b16 %v3196
  %v3253 = vunpack.c.h.b16 %v3196
  %v3254 = vunpack.c.l.b16 %v3197
  %v3255 = vunpack.c.h.b16 %v3197
  %v3256 = vunpack.c.l.b16 %v3198
  %v3257 = vunpack.c.h.b16 %v3198
  %v3258 = vunpack.c.l.b16 %v3199
  %v3259 = vunpack.c.h.b16 %v3199
  %v3260 = vunpack.c.l.b16 %v3200
  %v3261 = vunpack.c.h.b16 %v3200
  %v3262 = vunpack.c.l.b16 %v3201
  %v3263 = vunpack.c.h.b16 %v3201
  %v3264 = vunpack.c.l.b16 %v3202
  %v3265 = vunpack.c.h.b16 %v3202
  %v3266 = vunpack.c.l.b16 %v3203
  %v3267 = vunpack.c.h.b16 %v3203
  %v3268 = vunpack.c.l.b16 %v3204
  %v3269 = vunpack.c.h.b16 %v3204
  %v3270 = vunpack.c.l.b16 %v3205
  %v3271 = vunpack.c.h.b16 %v3205
  %v3272 = vunpack.c.l.b16 %v3206
  %v3273 = vunpack.c.h.b16 %v3206
  %v3274 = vunpack.c.l.b16 %v3207
  %v3275 = vunpack.c.h.b16 %v3207
  %v3276 = vunpack.c.l.b16 %v3208
  %v3277 = vunpack.c.h.b16 %v3208
  %v3278 = vunpack.c.l.b16 %v3209
  %v3279 = vunpack.c.h.b16 %v3209
  %v3280 = vunpack.c.l.b16 %v3210
  %v3281 = vunpack.c.h.b16 %v3210
  %v3282 = vunpack.c.l.b16 %v3211
  %v3283 = vunpack.c.h.b16 %v3211
  %v3284 = vunpack.c.l.b16 %v3212
  %v3285 = vunpack.c.h.b16 %v3212
  %v3286 = vunpack.c.l.b16 %v3213
  %v3287 = vunpack.c.h.b16 %v3213
  %v3288 = vunpack.c.l.b16 %v3214
  %v3289 = vunpack.c.h.b16 %v3214
  %v3290 = vpack.c.b16 %v3240, %v3240
  %v3291 = vpack.c.b16 %v3241, %v3241
  %v3292 = vpack.c.b16 %v3242, %v3242
  %v3293 = vpack.c.b16 %v3243, %v3243
  %v3294 = vpack.c.b16 %v3244, %v3244
  %v3295 = vpack.c.b16 %v3245, %v3245
  %v3296 = vpack.c.b16 %v3246, %v3246
  %v3297 = vpack.c.b16 %v3247, %v3247
  %v3298 = vpack.c.b16 %v3248, %v3248
  %v3299 = vpack.c.b16 %v3249, %v3249
  %v3300 = vpack.c.b16 %v3250, %v3250
  %v3301 = vpack.c.b16 %v3251, %v3251
  %v3302 = vpack.c.b16 %v3252, %v3252
  %v3303 = vpack.c.b16 %v3253, %v3253
  %v3304 = vpack.c.b16 %v3254, %v3254
  %v3305 = vpack.c.b16 %v3255, %v3255
  %v3306 = vpack.c.b16 %v3256, %v3256
  %v3307 = vpack.c.b16 %v3257, %v3257
  %v3308 = vpack.c.b16 %v3258, %v3258
  %v3309 = vpack.c.b16 %v3259, %v3259
  %v3310 = vpack.c.b16 %v3260, %v3260
  %v3311 = vpack.c.b16 %v3261, %v3261
  %v3312 = vpack.c.b16 %v3262, %v3262
  %v3313 = vpack.c.b16 %v3263, %v3263
  %v3314 = vpack.c.b16 %v3264, %v3264
  %v3315 = vpack.c.b16 %v3265, %v3265
  %v3316 = vpack.c.b16 %v3266, %v3266
  %v3317 = vpack.c.b16 %v3267, %v3267
  %v3318 = vpack.c.b16 %v3268, %v3268
  %v3319 = vpack.c.b16 %v3269, %v3269
  %v3320 = vpack.c.b16 %v3270, %v3270
  %v3321 = vpack.c.b16 %v3271, %v3271
  %v3322 = vpack.c.b16 %v3272, %v3272
  %v3323 = vpack.c.b16 %v3273, %v3273
  %v3324 = vpack.c.b16 %v3274, %v3274
  %v3325 = vpack.c.b16 %v3275, %v3275
  %v3326 = vpack.c.b16 %v3276, %v3276
  %v3327 = vpack.c.b16 %v3277, %v3277
  %v3328 = vpack.c.b16 %v3278, %v3278
  %v3329 = vpack.c.b16 %v3279, %v3279
  %v3330 = vpack.c.b16 %v3280, %v3280
  %v3331 = vpack.c.b16 %v3281, %v3281
  %v3332 = vpack.c.b16 %v3282, %v3282
  %v3333 = vpack.c.b16 %v3283, %v3283
  %v3334 = vpack.c.b16 %v3284, %v3284
  %v3335 = vpack.c.b16 %v3285, %v3285
  %v3336 = vpack.c.b16 %v3286, %v3286
  %v3337 = vpack.c.b16 %v3287, %v3287
  %v3338 = vpack.c.b16 %v3288, %v3288
  %v3339 = vpack.c.b16 %v3289, %v3289
  %vm3390 = vcmask 125952
  %3391 = vst.msk [vmem:[%s4] sm:$0xf] %vm3390, %v3290
  %3392 = vst.msk [vmem:[%s4 + $0x4] sm:$0xf] %vm3390, %v3291
  %3393 = vst.msk [vmem:[%s4 + $0x8] sm:$0xf] %vm3390, %v3292
  %3394 = vst.msk [vmem:[%s4 + $0xc] sm:$0xf] %vm3390, %v3293
  %3395 = vst.msk [vmem:[%s4 + $0x10] sm:$0xf] %vm3390, %v3294
  %3396 = vst.msk [vmem:[%s4 + $0x14] sm:$0xf] %vm3390, %v3295
  %3397 = vst.msk [vmem:[%s4 + $0x18] sm:$0xf] %vm3390, %v3296
  %3398 = vst.msk [vmem:[%s4 + $0x1c] sm:$0xf] %vm3390, %v3297
  %3399 = vst.msk [vmem:[%s4 + $0x20] sm:$0xf] %vm3390, %v3298
  %3400 = vst.msk [vmem:[%s4 + $0x24] sm:$0xf] %vm3390, %v3299
  %3401 = vst.msk [vmem:[%s4 + $0x28] sm:$0xf] %vm3390, %v3300
  %3402 = vst.msk [vmem:[%s4 + $0x2c] sm:$0xf] %vm3390, %v3301
  %3403 = vst.msk [vmem:[%s4 + $0x30] sm:$0xf] %vm3390, %v3302
  %3404 = vst.msk [vmem:[%s4 + $0x34] sm:$0xf] %vm3390, %v3303
  %3405 = vst.msk [vmem:[%s4 + $0x38] sm:$0xf] %vm3390, %v3304
  %3406 = vst.msk [vmem:[%s4 + $0x3c] sm:$0xf] %vm3390, %v3305
  %3407 = vst.msk [vmem:[%s4 + $0x40] sm:$0xf] %vm3390, %v3306
  %3408 = vst.msk [vmem:[%s4 + $0x44] sm:$0xf] %vm3390, %v3307
  %3409 = vst.msk [vmem:[%s4 + $0x48] sm:$0xf] %vm3390, %v3308
  %3410 = vst.msk [vmem:[%s4 + $0x4c] sm:$0xf] %vm3390, %v3309
  %3411 = vst.msk [vmem:[%s4 + $0x50] sm:$0xf] %vm3390, %v3310
  %3412 = vst.msk [vmem:[%s4 + $0x54] sm:$0xf] %vm3390, %v3311
  %3413 = vst.msk [vmem:[%s4 + $0x58] sm:$0xf] %vm3390, %v3312
  %3414 = vst.msk [vmem:[%s4 + $0x5c] sm:$0xf] %vm3390, %v3313
  %3415 = vst.msk [vmem:[%s4 + $0x60] sm:$0xf] %vm3390, %v3314
  %3416 = vst.msk [vmem:[%s4 + $0x64] sm:$0xf] %vm3390, %v3315
  %3417 = vst.msk [vmem:[%s4 + $0x68] sm:$0xf] %vm3390, %v3316
  %3418 = vst.msk [vmem:[%s4 + $0x6c] sm:$0xf] %vm3390, %v3317
  %3419 = vst.msk [vmem:[%s4 + $0x70] sm:$0xf] %vm3390, %v3318
  %3420 = vst.msk [vmem:[%s4 + $0x74] sm:$0xf] %vm3390, %v3319
  %3421 = vst.msk [vmem:[%s4 + $0x78] sm:$0xf] %vm3390, %v3320
  %3422 = vst.msk [vmem:[%s4 + $0x7c] sm:$0xf] %vm3390, %v3321
  %3423 = vst.msk [vmem:[%s4 + $0x80] sm:$0xf] %vm3390, %v3322
  %3424 = vst.msk [vmem:[%s4 + $0x84] sm:$0xf] %vm3390, %v3323
  %3425 = vst.msk [vmem:[%s4 + $0x88] sm:$0xf] %vm3390, %v3324
  %3426 = vst.msk [vmem:[%s4 + $0x8c] sm:$0xf] %vm3390, %v3325
  %3427 = vst.msk [vmem:[%s4 + $0x90] sm:$0xf] %vm3390, %v3326
  %3428 = vst.msk [vmem:[%s4 + $0x94] sm:$0xf] %vm3390, %v3327
  %3429 = vst.msk [vmem:[%s4 + $0x98] sm:$0xf] %vm3390, %v3328
  %3430 = vst.msk [vmem:[%s4 + $0x9c] sm:$0xf] %vm3390, %v3329
  %3431 = vst.msk [vmem:[%s4 + $0xa0] sm:$0xf] %vm3390, %v3330
  %3432 = vst.msk [vmem:[%s4 + $0xa4] sm:$0xf] %vm3390, %v3331
  %3433 = vst.msk [vmem:[%s4 + $0xa8] sm:$0xf] %vm3390, %v3332
  %3434 = vst.msk [vmem:[%s4 + $0xac] sm:$0xf] %vm3390, %v3333
  %3435 = vst.msk [vmem:[%s4 + $0xb0] sm:$0xf] %vm3390, %v3334
  %3436 = vst.msk [vmem:[%s4 + $0xb4] sm:$0xf] %vm3390, %v3335
  %3437 = vst.msk [vmem:[%s4 + $0xb8] sm:$0xf] %vm3390, %v3336
  %3438 = vst.msk [vmem:[%s4 + $0xbc] sm:$0xf] %vm3390, %v3337
  %3439 = vst.msk [vmem:[%s4 + $0xc0] sm:$0xf] %vm3390, %v3338
  %3440 = vst.msk [vmem:[%s4 + $0xc4] sm:$0xf] %vm3390, %v3339
  // Predicated region
  $region18: #{_lambda_.7} parent=0 // pred_check
    _
  $region19: #{_lambda_.7} parent=0 // pred_check_branch
    %3442 = sbr.rel (0) target = $region21
  $region20: #{_lambda_.7} parent=0 // pred_region
    _
  $region21: #{_lambda_.7} parent=0 // pred_fallthru
    _
  // Predicated region
  $region22: #{_lambda_.7} parent=0 // pred_check
    _
  $region23: #{_lambda_.7} parent=0 // pred_check_branch
    %3444 = sbr.rel (0) target = $region25
  $region24: #{_lambda_.7} parent=0 // pred_region
    _
  $region25: #{_lambda_.7} parent=0 // pred_fallthru
    _

// kernel: _lambda_.8
$region0: #{_lambda_.8}
  #allocation0 [shape = 'u32[]', space=smem, size = 0x4, offset = 0x4, fixed_abs, tag = 'smem constant byte address 0x4 - core index']
  #allocation1 [shape = 'u32[144,128]{1,0:T(1,128)}', space=vmem, size = 0x12000, scoped, tag = 'internal scratch']
  %s0 = inlined_call_operand.vmem [shape: bf16[288,144], index: 0, kind: input, shape index: {}]
  %s1 = inlined_call_operand.vmem [shape: bf16[144,64], index: 1, kind: input, shape index: {}]
  %s2 = inlined_call_operand.vmem [shape: f32[1,64], index: 2, kind: input, shape index: {}]
  %s3 = inlined_call_operand.vmem [shape: f32[1,64], index: 3, kind: input, shape index: {}]
  %s4 = inlined_call_operand.vmem [shape: bf16[288,64], index: 4, kind: output, shape index: {}]
  %s5 = sld [smem:[#allocation0]]
  $region26: #{_lambda_.8} parent=0
    _
  %s7 = ssub.s32 1, %s5
  %s8 = scalar_select 0, %s7, %s5
  // Predicated region
  $region2: #{_lambda_.8} parent=0 // pred_check
    _
  $region3: #{_lambda_.8} parent=0 // pred_check_branch
    %10 = sbr.rel (0) target = $region5
  $region4: #{_lambda_.8} parent=0 // pred_region
    _
  $region5: #{_lambda_.8} parent=0 // pred_fallthru
    _
  // Predicated region
  $region6: #{_lambda_.8} parent=0 // pred_check
    _
  $region7: #{_lambda_.8} parent=0 // pred_check_branch
    %12 = sbr.rel (0) target = $region9
  $region8: #{_lambda_.8} parent=0 // pred_region
    _
  $region9: #{_lambda_.8} parent=0 // pred_fallthru
    _
  // Predicated region
  $region10: #{_lambda_.8} parent=0 // pred_check
    _
  $region11: #{_lambda_.8} parent=0 // pred_check_branch
    %14 = sbr.rel (0) target = $region13
  $region12: #{_lambda_.8} parent=0 // pred_region
    _
  $region13: #{_lambda_.8} parent=0 // pred_fallthru
    _
  // Predicated region
  $region14: #{_lambda_.8} parent=0 // pred_check
    _
  $region15: #{_lambda_.8} parent=0 // pred_check_branch
    %16 = sbr.rel (0) target = $region17
  $region16: #{_lambda_.8} parent=0 // pred_region
    _
  $region17: #{_lambda_.8} parent=0 // pred_fallthru
    _
  %v18 = vld [vmem:[%s0] sm:$0xff]
  %v19 = vld [vmem:[%s0 + $0x8] sm:$0xff]
  %v20 = vld [vmem:[%s0 + $0x10] sm:$0xff]
  %v21 = vld [vmem:[%s0 + $0x18] sm:$0xff]
  %v22 = vld [vmem:[%s0 + $0x20] sm:$0xff]
  %v23 = vld [vmem:[%s0 + $0x28] sm:$0xff]
  %v24 = vld [vmem:[%s0 + $0x30] sm:$0xff]
  %v25 = vld [vmem:[%s0 + $0x38] sm:$0xff]
  %v26 = vld [vmem:[%s0 + $0x40] sm:$0xff]
  %v27 = vld [vmem:[%s0 + $0x48] sm:$0xff]
  %v28 = vld [vmem:[%s0 + $0x50] sm:$0xff]
  %v29 = vld [vmem:[%s0 + $0x58] sm:$0xff]
  %v30 = vld [vmem:[%s0 + $0x60] sm:$0xff]
  %v31 = vld [vmem:[%s0 + $0x68] sm:$0xff]
  %v32 = vld [vmem:[%s0 + $0x70] sm:$0xff]
  %v33 = vld [vmem:[%s0 + $0x78] sm:$0xff]
  %v34 = vld [vmem:[%s0 + $0x80] sm:$0xff]
  %v35 = vld [vmem:[%s0 + $0x88] sm:$0xff]
  %v36 = vld [vmem:[%s0 + $0x90] sm:$0xff]
  %v37 = vld [vmem:[%s0 + $0x98] sm:$0xff]
  %v38 = vld [vmem:[%s0 + $0xa0] sm:$0xff]
  %v39 = vld [vmem:[%s0 + $0xa8] sm:$0xff]
  %v40 = vld [vmem:[%s0 + $0xb0] sm:$0xff]
  %v41 = vld [vmem:[%s0 + $0xb8] sm:$0xff]
  %v42 = vld [vmem:[%s0 + $0xc0] sm:$0xff]
  %v43 = vld [vmem:[%s0 + $0xc8] sm:$0xff]
  %v44 = vld [vmem:[%s0 + $0xd0] sm:$0xff]
  %v45 = vld [vmem:[%s0 + $0xd8] sm:$0xff]
  %v46 = vld [vmem:[%s0 + $0xe0] sm:$0xff]
  %v47 = vld [vmem:[%s0 + $0xe8] sm:$0xff]
  %v48 = vld [vmem:[%s0 + $0xf0] sm:$0xff]
  %v49 = vld [vmem:[%s0 + $0xf8] sm:$0xff]
  %v50 = vld [vmem:[%s0 + $0x100] sm:$0xff]
  %v51 = vld [vmem:[%s0 + $0x108] sm:$0xff]
  %v52 = vld [vmem:[%s0 + $0x110] sm:$0xff]
  %v53 = vld [vmem:[%s0 + $0x118] sm:$0xff]
  %v54 = vld [vmem:[%s1] sm:$0xf]
  %v55 = vld [vmem:[%s1 + $0x4] sm:$0xf]
  %v56 = vld [vmem:[%s1 + $0x8] sm:$0xf]
  %v57 = vld [vmem:[%s1 + $0xc] sm:$0xf]
  %v58 = vld [vmem:[%s1 + $0x10] sm:$0xf]
  %v59 = vld [vmem:[%s1 + $0x14] sm:$0xf]
  %v60 = vld [vmem:[%s1 + $0x18] sm:$0xf]
  %v61 = vld [vmem:[%s1 + $0x1c] sm:$0xf]
  %v62 = vld [vmem:[%s1 + $0x20] sm:$0xf]
  %v63 = vld [vmem:[%s1 + $0x24] sm:$0xf]
  %v64 = vld [vmem:[%s1 + $0x28] sm:$0xf]
  %v65 = vld [vmem:[%s1 + $0x2c] sm:$0xf]
  %v66 = vld [vmem:[%s1 + $0x30] sm:$0xf]
  %v67 = vld [vmem:[%s1 + $0x34] sm:$0xf]
  %v68 = vld [vmem:[%s1 + $0x38] sm:$0xf]
  %v69 = vld [vmem:[%s1 + $0x3c] sm:$0xf]
  %v70 = vld [vmem:[%s1 + $0x40] sm:$0xf]
  %v71 = vld [vmem:[%s1 + $0x44] sm:$0xf]
  %v108 = vunpack.c.l.b16 %v18
  %v109 = vunpack.c.h.b16 %v18
  %v110 = vunpack.c.l.b16 %v19
  %v111 = vunpack.c.h.b16 %v19
  %v112 = vunpack.c.l.b16 %v20
  %v113 = vunpack.c.h.b16 %v20
  %v114 = vunpack.c.l.b16 %v21
  %v115 = vunpack.c.h.b16 %v21
  %v116 = vunpack.c.l.b16 %v22
  %v117 = vunpack.c.h.b16 %v22
  %v118 = vunpack.c.l.b16 %v23
  %v119 = vunpack.c.h.b16 %v23
  %v120 = vunpack.c.l.b16 %v24
  %v121 = vunpack.c.h.b16 %v24
  %v122 = vunpack.c.l.b16 %v25
  %v123 = vunpack.c.h.b16 %v25
  %v124 = vunpack.c.l.b16 %v26
  %v125 = vunpack.c.h.b16 %v26
  %v126 = vunpack.c.l.b16 %v27
  %v127 = vunpack.c.h.b16 %v27
  %v128 = vunpack.c.l.b16 %v28
  %v129 = vunpack.c.h.b16 %v28
  %v130 = vunpack.c.l.b16 %v29
  %v131 = vunpack.c.h.b16 %v29
  %v132 = vunpack.c.l.b16 %v30
  %v133 = vunpack.c.h.b16 %v30
  %v134 = vunpack.c.l.b16 %v31
  %v135 = vunpack.c.h.b16 %v31
  %v136 = vunpack.c.l.b16 %v32
  %v137 = vunpack.c.h.b16 %v32
  %v138 = vunpack.c.l.b16 %v33
  %v139 = vunpack.c.h.b16 %v33
  %v140 = vunpack.c.l.b16 %v34
  %v141 = vunpack.c.h.b16 %v34
  %v142 = vunpack.c.l.b16 %v35
  %v143 = vunpack.c.h.b16 %v35
  %v144 = vunpack.c.l.b16 %v36
  %v145 = vunpack.c.h.b16 %v36
  %v146 = vunpack.c.l.b16 %v37
  %v147 = vunpack.c.h.b16 %v37
  %v148 = vunpack.c.l.b16 %v38
  %v149 = vunpack.c.h.b16 %v38
  %v150 = vunpack.c.l.b16 %v39
  %v151 = vunpack.c.h.b16 %v39
  %v152 = vunpack.c.l.b16 %v40
  %v153 = vunpack.c.h.b16 %v40
  %v154 = vunpack.c.l.b16 %v41
  %v155 = vunpack.c.h.b16 %v41
  %v156 = vunpack.c.l.b16 %v42
  %v157 = vunpack.c.h.b16 %v42
  %v158 = vunpack.c.l.b16 %v43
  %v159 = vunpack.c.h.b16 %v43
  %v160 = vunpack.c.l.b16 %v44
  %v161 = vunpack.c.h.b16 %v44
  %v162 = vunpack.c.l.b16 %v45
  %v163 = vunpack.c.h.b16 %v45
  %v164 = vunpack.c.l.b16 %v46
  %v165 = vunpack.c.h.b16 %v46
  %v166 = vunpack.c.l.b16 %v47
  %v167 = vunpack.c.h.b16 %v47
  %v168 = vunpack.c.l.b16 %v48
  %v169 = vunpack.c.h.b16 %v48
  %v170 = vunpack.c.l.b16 %v49
  %v171 = vunpack.c.h.b16 %v49
  %v172 = vunpack.c.l.b16 %v50
  %v173 = vunpack.c.h.b16 %v50
  %v174 = vunpack.c.l.b16 %v51
  %v175 = vunpack.c.h.b16 %v51
  %v176 = vunpack.c.l.b16 %v52
  %v177 = vunpack.c.h.b16 %v52
  %v178 = vunpack.c.l.b16 %v53
  %v179 = vunpack.c.h.b16 %v53
  %v180 = vpack.c.b16 %v110, %v108
  %v181 = vpack.c.b16 %v111, %v109
  %v182 = vpack.c.b16 %v114, %v112
  %v183 = vpack.c.b16 %v115, %v113
  %v184 = vpack.c.b16 %v118, %v116
  %v185 = vpack.c.b16 %v119, %v117
  %v186 = vpack.c.b16 %v122, %v120
  %v187 = vpack.c.b16 %v123, %v121
  %v188 = vpack.c.b16 %v126, %v124
  %v189 = vpack.c.b16 %v127, %v125
  %v190 = vpack.c.b16 %v130, %v128
  %v191 = vpack.c.b16 %v131, %v129
  %v192 = vpack.c.b16 %v134, %v132
  %v193 = vpack.c.b16 %v135, %v133
  %v194 = vpack.c.b16 %v138, %v136
  %v195 = vpack.c.b16 %v139, %v137
  %v196 = vpack.c.b16 %v142, %v140
  %v197 = vpack.c.b16 %v143, %v141
  %v198 = vpack.c.b16 %v146, %v144
  %v199 = vpack.c.b16 %v147, %v145
  %v200 = vpack.c.b16 %v150, %v148
  %v201 = vpack.c.b16 %v151, %v149
  %v202 = vpack.c.b16 %v154, %v152
  %v203 = vpack.c.b16 %v155, %v153
  %v204 = vpack.c.b16 %v158, %v156
  %v205 = vpack.c.b16 %v159, %v157
  %v206 = vpack.c.b16 %v162, %v160
  %v207 = vpack.c.b16 %v163, %v161
  %v208 = vpack.c.b16 %v166, %v164
  %v209 = vpack.c.b16 %v167, %v165
  %v210 = vpack.c.b16 %v170, %v168
  %v211 = vpack.c.b16 %v171, %v169
  %v212 = vpack.c.b16 %v174, %v172
  %v213 = vpack.c.b16 %v175, %v173
  %v214 = vpack.c.b16 %v178, %v176
  %v215 = vpack.c.b16 %v179, %v177
  %v252 = vunpack.c.l.b16 %v54
  %v253 = vunpack.c.l.b16 %v55
  %v254 = vunpack.c.l.b16 %v56
  %v255 = vunpack.c.l.b16 %v57
  %v256 = vunpack.c.l.b16 %v58
  %v257 = vunpack.c.l.b16 %v59
  %v258 = vunpack.c.l.b16 %v60
  %v259 = vunpack.c.l.b16 %v61
  %v260 = vunpack.c.l.b16 %v62
  %v261 = vunpack.c.l.b16 %v63
  %v262 = vunpack.c.l.b16 %v64
  %v263 = vunpack.c.l.b16 %v65
  %v264 = vunpack.c.l.b16 %v66
  %v265 = vunpack.c.l.b16 %v67
  %v266 = vunpack.c.l.b16 %v68
  %v267 = vunpack.c.l.b16 %v69
  %v268 = vunpack.c.l.b16 %v70
  %v269 = vunpack.c.l.b16 %v71
  %v270 = vpack.c.b16 %v253, %v252
  %v271 = vpack.c.b16 %v255, %v254
  %v272 = vpack.c.b16 %v257, %v256
  %v273 = vpack.c.b16 %v259, %v258
  %v274 = vpack.c.b16 %v261, %v260
  %v275 = vpack.c.b16 %v263, %v262
  %v276 = vpack.c.b16 %v265, %v264
  %v277 = vpack.c.b16 %v267, %v266
  %v278 = vpack.c.b16 %v269, %v268
  %vm288 = vcmask 130048
  %v290 = vsel %vm288, %v181, 0
  %v293 = vsel %vm288, %v183, 0
  %v296 = vsel %vm288, %v185, 0
  %v299 = vsel %vm288, %v187, 0
  %v302 = vsel %vm288, %v189, 0
  %v305 = vsel %vm288, %v191, 0
  %v308 = vsel %vm288, %v193, 0
  %v311 = vsel %vm288, %v195, 0
  %v314 = vsel %vm288, %v197, 0
  %v317 = vsel %vm288, %v199, 0
  %v320 = vsel %vm288, %v201, 0
  %v323 = vsel %vm288, %v203, 0
  %v326 = vsel %vm288, %v205, 0
  %v329 = vsel %vm288, %v207, 0
  %v332 = vsel %vm288, %v209, 0
  %v335 = vsel %vm288, %v211, 0
  %v338 = vsel %vm288, %v213, 0
  %v341 = vsel %vm288, %v215, 0
  %343 = vmatprep.subr.bf16.mxu0 0
  %344 = vmatpush1.bf16.msra.mxu0 %v270
  %345 = vmatprep.subr.bf16.mxu0 0
  %346 = vmatpush1.bf16.msra.mxu0 %v271
  %347 = vmatprep.subr.bf16.mxu0 0
  %348 = vmatpush1.bf16.msra.mxu0 %v272
  %349 = vmatprep.subr.bf16.mxu0 0
  %350 = vmatpush1.bf16.msra.mxu0 %v273
  %351 = vmatprep.subr.bf16.mxu0 0
  %352 = vmatpush1.bf16.msra.mxu0 %v274
  %353 = vmatprep.subr.bf16.mxu0 0
  %354 = vmatpush1.bf16.msra.mxu0 %v275
  %355 = vmatprep.subr.bf16.mxu0 0
  %356 = vmatpush1.bf16.msra.mxu0 %v276
  %357 = vmatprep.subr.bf16.mxu0 0
  %358 = vmatpush1.bf16.msra.mxu0 %v277
  %359 = vmatprep.subr.bf16.mxu0 0
  %360 = vmatpush1.bf16.msra.mxu0 %v278
  %361 = vmatprep.subr.bf16.mxu0 0
  %362 = vmatpush1.bf16.msra.mxu0 0
  %363 = vmatprep.subr.bf16.mxu0 0
  %364 = vmatpush1.bf16.msra.mxu0 0
  %365 = vmatprep.subr.bf16.mxu0 0
  %366 = vmatpush1.bf16.msra.mxu0 0
  %367 = vmatprep.subr.bf16.mxu0 0
  %368 = vmatpush1.bf16.msra.mxu0 0
  %369 = vmatprep.subr.bf16.mxu0 0
  %370 = vmatpush1.bf16.msra.mxu0 0
  %371 = vmatprep.subr.bf16.mxu0 0
  %372 = vmatpush1.bf16.msra.mxu0 0
  %373 = vmatprep.subr.bf16.mxu0 0
  %374 = vmatpush1.bf16.msra.mxu0 0
  %375 = vmatprep.mubr.bf16.mxu0 %v290
  %376 = vmatmul.mubr.bf16.gmra.mrb[0].mxu0 %v180
  %v377 = vpop.f32.mrb[0].mxu0
  %v378 = vadd.f32 0.0, %v377
  %v379 = vpop.f32.mrb[0].mxu0
  %v380 = vpop.f32.mrb[0].mxu0
  %v381 = vadd.f32 0.0, %v380
  %v382 = vpop.f32.mrb[0].mxu0
  %383 = vmatprep.mubr.bf16.mxu0 %v293
  %384 = vmatmul.mubr.bf16.gmra.mrb[0].mxu0 %v182
  %v385 = vpop.f32.mrb[0].mxu0
  %v386 = vadd.f32 0.0, %v385
  %v387 = vpop.f32.mrb[0].mxu0
  %v388 = vpop.f32.mrb[0].mxu0
  %v389 = vadd.f32 0.0, %v388
  %v390 = vpop.f32.mrb[0].mxu0
  %391 = vmatprep.mubr.bf16.mxu0 %v296
  %392 = vmatmul.mubr.bf16.gmra.mrb[0].mxu0 %v184
  %v393 = vpop.f32.mrb[0].mxu0
  %v394 = vadd.f32 0.0, %v393
  %v395 = vpop.f32.mrb[0].mxu0
  %v396 = vpop.f32.mrb[0].mxu0
  %v397 = vadd.f32 0.0, %v396
  %v398 = vpop.f32.mrb[0].mxu0
  %399 = vmatprep.mubr.bf16.mxu0 %v299
  %400 = vmatmul.mubr.bf16.gmra.mrb[0].mxu0 %v186
  %v401 = vpop.f32.mrb[0].mxu0
  %v402 = vadd.f32 0.0, %v401
  %v403 = vpop.f32.mrb[0].mxu0
  %v404 = vpop.f32.mrb[0].mxu0
  %v405 = vadd.f32 0.0, %v404
  %v406 = vpop.f32.mrb[0].mxu0
  %407 = vmatprep.mubr.bf16.mxu0 %v302
  %408 = vmatmul.mubr.bf16.gmra.mrb[0].mxu0 %v188
  %v409 = vpop.f32.mrb[0].mxu0
  %v410 = vadd.f32 0.0, %v409
  %v411 = vpop.f32.mrb[0].mxu0
  %v412 = vpop.f32.mrb[0].mxu0
  %v413 = vadd.f32 0.0, %v412
  %v414 = vpop.f32.mrb[0].mxu0
  %415 = vmatprep.mubr.bf16.mxu0 %v305
  %416 = vmatmul.mubr.bf16.gmra.mrb[0].mxu0 %v190
  %v417 = vpop.f32.mrb[0].mxu0
  %v418 = vadd.f32 0.0, %v417
  %v419 = vpop.f32.mrb[0].mxu0
  %v420 = vpop.f32.mrb[0].mxu0
  %v421 = vadd.f32 0.0, %v420
  %v422 = vpop.f32.mrb[0].mxu0
  %423 = vmatprep.mubr.bf16.mxu0 %v308
  %424 = vmatmul.mubr.bf16.gmra.mrb[0].mxu0 %v192
  %v425 = vpop.f32.mrb[0].mxu0
  %v426 = vadd.f32 0.0, %v425
  %v427 = vpop.f32.mrb[0].mxu0
  %v428 = vpop.f32.mrb[0].mxu0
  %v429 = vadd.f32 0.0, %v428
  %v430 = vpop.f32.mrb[0].mxu0
  %431 = vmatprep.mubr.bf16.mxu0 %v311
  %432 = vmatmul.mubr.bf16.gmra.mrb[0].mxu0 %v194
  %v433 = vpop.f32.mrb[0].mxu0
  %v434 = vadd.f32 0.0, %v433
  %v435 = vpop.f32.mrb[0].mxu0
  %v436 = vpop.f32.mrb[0].mxu0
  %v437 = vadd.f32 0.0, %v436
  %v438 = vpop.f32.mrb[0].mxu0
  %439 = vmatprep.mubr.bf16.mxu0 %v314
  %440 = vmatmul.mubr.bf16.gmra.mrb[0].mxu0 %v196
  %v441 = vpop.f32.mrb[0].mxu0
  %v442 = vadd.f32 0.0, %v441
  %v443 = vpop.f32.mrb[0].mxu0
  %v444 = vpop.f32.mrb[0].mxu0
  %v445 = vadd.f32 0.0, %v444
  %v446 = vpop.f32.mrb[0].mxu0
  %447 = vmatprep.mubr.bf16.mxu0 %v317
  %448 = vmatmul.mubr.bf16.gmra.mrb[0].mxu0 %v198
  %v449 = vpop.f32.mrb[0].mxu0
  %v450 = vadd.f32 0.0, %v449
  %v451 = vpop.f32.mrb[0].mxu0
  %v452 = vpop.f32.mrb[0].mxu0
  %v453 = vadd.f32 0.0, %v452
  %v454 = vpop.f32.mrb[0].mxu0
  %455 = vmatprep.mubr.bf16.mxu0 %v320
  %456 = vmatmul.mubr.bf16.gmra.mrb[0].mxu0 %v200
  %v457 = vpop.f32.mrb[0].mxu0
  %v458 = vadd.f32 0.0, %v457
  %v459 = vpop.f32.mrb[0].mxu0
  %v460 = vpop.f32.mrb[0].mxu0
  %v461 = vadd.f32 0.0, %v460
  %v462 = vpop.f32.mrb[0].mxu0
  %463 = vmatprep.mubr.bf16.mxu0 %v323
  %464 = vmatmul.mubr.bf16.gmra.mrb[0].mxu0 %v202
  %v465 = vpop.f32.mrb[0].mxu0
  %v466 = vadd.f32 0.0, %v465
  %v467 = vpop.f32.mrb[0].mxu0
  %v468 = vpop.f32.mrb[0].mxu0
  %v469 = vadd.f32 0.0, %v468
  %v470 = vpop.f32.mrb[0].mxu0
  %471 = vmatprep.mubr.bf16.mxu0 %v326
  %472 = vmatmul.mubr.bf16.gmra.mrb[0].mxu0 %v204
  %v473 = vpop.f32.mrb[0].mxu0
  %v474 = vadd.f32 0.0, %v473
  %v475 = vpop.f32.mrb[0].mxu0
  %v476 = vpop.f32.mrb[0].mxu0
  %v477 = vadd.f32 0.0, %v476
  %v478 = vpop.f32.mrb[0].mxu0
  %479 = vmatprep.mubr.bf16.mxu0 %v329
  %480 = vmatmul.mubr.bf16.gmra.mrb[0].mxu0 %v206
  %v481 = vpop.f32.mrb[0].mxu0
  %v482 = vadd.f32 0.0, %v481
  %v483 = vpop.f32.mrb[0].mxu0
  %v484 = vpop.f32.mrb[0].mxu0
  %v485 = vadd.f32 0.0, %v484
  %v486 = vpop.f32.mrb[0].mxu0
  %487 = vmatprep.mubr.bf16.mxu0 %v332
  %488 = vmatmul.mubr.bf16.gmra.mrb[0].mxu0 %v208
  %v489 = vpop.f32.mrb[0].mxu0
  %v490 = vadd.f32 0.0, %v489
  %v491 = vpop.f32.mrb[0].mxu0
  %v492 = vpop.f32.mrb[0].mxu0
  %v493 = vadd.f32 0.0, %v492
  %v494 = vpop.f32.mrb[0].mxu0
  %495 = vmatprep.mubr.bf16.mxu0 %v335
  %496 = vmatmul.mubr.bf16.gmra.mrb[0].mxu0 %v210
  %v497 = vpop.f32.mrb[0].mxu0
  %v498 = vadd.f32 0.0, %v497
  %v499 = vpop.f32.mrb[0].mxu0
  %v500 = vpop.f32.mrb[0].mxu0
  %v501 = vadd.f32 0.0, %v500
  %v502 = vpop.f32.mrb[0].mxu0
  %503 = vmatprep.mubr.bf16.mxu0 %v338
  %504 = vmatmul.mubr.bf16.gmra.mrb[0].mxu0 %v212
  %v505 = vpop.f32.mrb[0].mxu0
  %v506 = vadd.f32 0.0, %v505
  %v507 = vpop.f32.mrb[0].mxu0
  %v508 = vpop.f32.mrb[0].mxu0
  %v509 = vadd.f32 0.0, %v508
  %v510 = vpop.f32.mrb[0].mxu0
  %511 = vmatprep.mubr.bf16.mxu0 %v341
  %512 = vmatmul.mubr.bf16.gmra.mrb[0].mxu0 %v214
  %v513 = vpop.f32.mrb[0].mxu0
  %v514 = vadd.f32 0.0, %v513
  %v515 = vpop.f32.mrb[0].mxu0
  %v516 = vpop.f32.mrb[0].mxu0
  %v517 = vadd.f32 0.0, %v516
  %v518 = vpop.f32.mrb[0].mxu0
  %519 = vdwg.mxu0
  %v520 = vld [vmem:[%s2] sm:$0x1]
  %v522 = vlaneseq
  %v523 = vshrl.u32 %v522, 7
  %v524 = vsub.s32 0, %v523
  %v525 = vrot.slane %v520, %v524
  %v527 = vmul.f32 %v378, %v525
  %v528 = vmul.f32 %v381, %v525
  %v529 = vmul.f32 %v386, %v525
  %v530 = vmul.f32 %v389, %v525
  %v531 = vmul.f32 %v394, %v525
  %v532 = vmul.f32 %v397, %v525
  %v533 = vmul.f32 %v402, %v525
  %v534 = vmul.f32 %v405, %v525
  %v535 = vmul.f32 %v410, %v525
  %v536 = vmul.f32 %v413, %v525
  %v537 = vmul.f32 %v418, %v525
  %v538 = vmul.f32 %v421, %v525
  %v539 = vmul.f32 %v426, %v525
  %v540 = vmul.f32 %v429, %v525
  %v541 = vmul.f32 %v434, %v525
  %v542 = vmul.f32 %v437, %v525
  %v543 = vmul.f32 %v442, %v525
  %v544 = vmul.f32 %v445, %v525
  %v545 = vmul.f32 %v450, %v525
  %v546 = vmul.f32 %v453, %v525
  %v547 = vmul.f32 %v458, %v525
  %v548 = vmul.f32 %v461, %v525
  %v549 = vmul.f32 %v466, %v525
  %v550 = vmul.f32 %v469, %v525
  %v551 = vmul.f32 %v474, %v525
  %v552 = vmul.f32 %v477, %v525
  %v553 = vmul.f32 %v482, %v525
  %v554 = vmul.f32 %v485, %v525
  %v555 = vmul.f32 %v490, %v525
  %v556 = vmul.f32 %v493, %v525
  %v557 = vmul.f32 %v498, %v525
  %v558 = vmul.f32 %v501, %v525
  %v559 = vmul.f32 %v506, %v525
  %v560 = vmul.f32 %v509, %v525
  %v561 = vmul.f32 %v514, %v525
  %v562 = vmul.f32 %v517, %v525
  %v563 = vld [vmem:[%s3] sm:$0x1]
  %v565 = vlaneseq
  %v566 = vshrl.u32 %v565, 7
  %v567 = vsub.s32 0, %v566
  %v568 = vrot.slane %v563, %v567
  %v570 = vadd.f32 %v527, %v568
  %v571 = vadd.f32 %v528, %v568
  %v572 = vadd.f32 %v529, %v568
  %v573 = vadd.f32 %v530, %v568
  %v574 = vadd.f32 %v531, %v568
  %v575 = vadd.f32 %v532, %v568
  %v576 = vadd.f32 %v533, %v568
  %v577 = vadd.f32 %v534, %v568
  %v578 = vadd.f32 %v535, %v568
  %v579 = vadd.f32 %v536, %v568
  %v580 = vadd.f32 %v537, %v568
  %v581 = vadd.f32 %v538, %v568
  %v582 = vadd.f32 %v539, %v568
  %v583 = vadd.f32 %v540, %v568
  %v584 = vadd.f32 %v541, %v568
  %v585 = vadd.f32 %v542, %v568
  %v586 = vadd.f32 %v543, %v568
  %v587 = vadd.f32 %v544, %v568
  %v588 = vadd.f32 %v545, %v568
  %v589 = vadd.f32 %v546, %v568
  %v590 = vadd.f32 %v547, %v568
  %v591 = vadd.f32 %v548, %v568
  %v592 = vadd.f32 %v549, %v568
  %v593 = vadd.f32 %v550, %v568
  %v594 = vadd.f32 %v551, %v568
  %v595 = vadd.f32 %v552, %v568
  %v596 = vadd.f32 %v553, %v568
  %v597 = vadd.f32 %v554, %v568
  %v598 = vadd.f32 %v555, %v568
  %v599 = vadd.f32 %v556, %v568
  %v600 = vadd.f32 %v557, %v568
  %v601 = vadd.f32 %v558, %v568
  %v602 = vadd.f32 %v559, %v568
  %v603 = vadd.f32 %v560, %v568
  %v604 = vadd.f32 %v561, %v568
  %v605 = vadd.f32 %v562, %v568
  %v606 = vmax.f32 %v570, 0.0
  %v607 = vmax.f32 %v571, 0.0
  %v608 = vmax.f32 %v572, 0.0
  %v609 = vmax.f32 %v573, 0.0
  %v610 = vmax.f32 %v574, 0.0
  %v611 = vmax.f32 %v575, 0.0
  %v612 = vmax.f32 %v576, 0.0
  %v613 = vmax.f32 %v577, 0.0
  %v614 = vmax.f32 %v578, 0.0
  %v615 = vmax.f32 %v579, 0.0
  %v616 = vmax.f32 %v580, 0.0
  %v617 = vmax.f32 %v581, 0.0
  %v618 = vmax.f32 %v582, 0.0
  %v619 = vmax.f32 %v583, 0.0
  %v620 = vmax.f32 %v584, 0.0
  %v621 = vmax.f32 %v585, 0.0
  %v622 = vmax.f32 %v586, 0.0
  %v623 = vmax.f32 %v587, 0.0
  %v624 = vmax.f32 %v588, 0.0
  %v625 = vmax.f32 %v589, 0.0
  %v626 = vmax.f32 %v590, 0.0
  %v627 = vmax.f32 %v591, 0.0
  %v628 = vmax.f32 %v592, 0.0
  %v629 = vmax.f32 %v593, 0.0
  %v630 = vmax.f32 %v594, 0.0
  %v631 = vmax.f32 %v595, 0.0
  %v632 = vmax.f32 %v596, 0.0
  %v633 = vmax.f32 %v597, 0.0
  %v634 = vmax.f32 %v598, 0.0
  %v635 = vmax.f32 %v599, 0.0
  %v636 = vmax.f32 %v600, 0.0
  %v637 = vmax.f32 %v601, 0.0
  %v638 = vmax.f32 %v602, 0.0
  %v639 = vmax.f32 %v603, 0.0
  %v640 = vmax.f32 %v604, 0.0
  %v641 = vmax.f32 %v605, 0.0
  %v642 = vpack.c.bf16 %v607, %v606
  %v643 = vpack.c.bf16 %v609, %v608
  %v644 = vpack.c.bf16 %v611, %v610
  %v645 = vpack.c.bf16 %v613, %v612
  %v646 = vpack.c.bf16 %v615, %v614
  %v647 = vpack.c.bf16 %v617, %v616
  %v648 = vpack.c.bf16 %v619, %v618
  %v649 = vpack.c.bf16 %v621, %v620
  %v650 = vpack.c.bf16 %v623, %v622
  %v651 = vpack.c.bf16 %v625, %v624
  %v652 = vpack.c.bf16 %v627, %v626
  %v653 = vpack.c.bf16 %v629, %v628
  %v654 = vpack.c.bf16 %v631, %v630
  %v655 = vpack.c.bf16 %v633, %v632
  %v656 = vpack.c.bf16 %v635, %v634
  %v657 = vpack.c.bf16 %v637, %v636
  %v658 = vpack.c.bf16 %v639, %v638
  %v659 = vpack.c.bf16 %v641, %v640
  %v678 = vunpack.c.l.b16 %v642
  %v679 = vunpack.c.h.b16 %v642
  %v680 = vunpack.c.l.b16 %v643
  %v681 = vunpack.c.h.b16 %v643
  %v682 = vunpack.c.l.b16 %v644
  %v683 = vunpack.c.h.b16 %v644
  %v684 = vunpack.c.l.b16 %v645
  %v685 = vunpack.c.h.b16 %v645
  %v686 = vunpack.c.l.b16 %v646
  %v687 = vunpack.c.h.b16 %v646
  %v688 = vunpack.c.l.b16 %v647
  %v689 = vunpack.c.h.b16 %v647
  %v690 = vunpack.c.l.b16 %v648
  %v691 = vunpack.c.h.b16 %v648
  %v692 = vunpack.c.l.b16 %v649
  %v693 = vunpack.c.h.b16 %v649
  %v694 = vunpack.c.l.b16 %v650
  %v695 = vunpack.c.h.b16 %v650
  %v696 = vunpack.c.l.b16 %v651
  %v697 = vunpack.c.h.b16 %v651
  %v698 = vunpack.c.l.b16 %v652
  %v699 = vunpack.c.h.b16 %v652
  %v700 = vunpack.c.l.b16 %v653
  %v701 = vunpack.c.h.b16 %v653
  %v702 = vunpack.c.l.b16 %v654
  %v703 = vunpack.c.h.b16 %v654
  %v704 = vunpack.c.l.b16 %v655
  %v705 = vunpack.c.h.b16 %v655
  %v706 = vunpack.c.l.b16 %v656
  %v707 = vunpack.c.h.b16 %v656
  %v708 = vunpack.c.l.b16 %v657
  %v709 = vunpack.c.h.b16 %v657
  %v710 = vunpack.c.l.b16 %v658
  %v711 = vunpack.c.h.b16 %v658
  %v712 = vunpack.c.l.b16 %v659
  %v713 = vunpack.c.h.b16 %v659
  %v714 = vpack.c.b16 %v678, %v678
  %v715 = vpack.c.b16 %v679, %v679
  %v716 = vpack.c.b16 %v680, %v680
  %v717 = vpack.c.b16 %v681, %v681
  %v718 = vpack.c.b16 %v682, %v682
  %v719 = vpack.c.b16 %v683, %v683
  %v720 = vpack.c.b16 %v684, %v684
  %v721 = vpack.c.b16 %v685, %v685
  %v722 = vpack.c.b16 %v686, %v686
  %v723 = vpack.c.b16 %v687, %v687
  %v724 = vpack.c.b16 %v688, %v688
  %v725 = vpack.c.b16 %v689, %v689
  %v726 = vpack.c.b16 %v690, %v690
  %v727 = vpack.c.b16 %v691, %v691
  %v728 = vpack.c.b16 %v692, %v692
  %v729 = vpack.c.b16 %v693, %v693
  %v730 = vpack.c.b16 %v694, %v694
  %v731 = vpack.c.b16 %v695, %v695
  %v732 = vpack.c.b16 %v696, %v696
  %v733 = vpack.c.b16 %v697, %v697
  %v734 = vpack.c.b16 %v698, %v698
  %v735 = vpack.c.b16 %v699, %v699
  %v736 = vpack.c.b16 %v700, %v700
  %v737 = vpack.c.b16 %v701, %v701
  %v738 = vpack.c.b16 %v702, %v702
  %v739 = vpack.c.b16 %v703, %v703
  %v740 = vpack.c.b16 %v704, %v704
  %v741 = vpack.c.b16 %v705, %v705
  %v742 = vpack.c.b16 %v706, %v706
  %v743 = vpack.c.b16 %v707, %v707
  %v744 = vpack.c.b16 %v708, %v708
  %v745 = vpack.c.b16 %v709, %v709
  %v746 = vpack.c.b16 %v710, %v710
  %v747 = vpack.c.b16 %v711, %v711
  %v748 = vpack.c.b16 %v712, %v712
  %v749 = vpack.c.b16 %v713, %v713
  %vm786 = vcmask 519168
  %787 = vst.msk [vmem:[%s4] sm:$0xf] %vm786, %v714
  %788 = vst.msk [vmem:[%s4 + $0x4] sm:$0xf] %vm786, %v715
  %789 = vst.msk [vmem:[%s4 + $0x8] sm:$0xf] %vm786, %v716
  %790 = vst.msk [vmem:[%s4 + $0xc] sm:$0xf] %vm786, %v717
  %791 = vst.msk [vmem:[%s4 + $0x10] sm:$0xf] %vm786, %v718
  %792 = vst.msk [vmem:[%s4 + $0x14] sm:$0xf] %vm786, %v719
  %793 = vst.msk [vmem:[%s4 + $0x18] sm:$0xf] %vm786, %v720
  %794 = vst.msk [vmem:[%s4 + $0x1c] sm:$0xf] %vm786, %v721
  %795 = vst.msk [vmem:[%s4 + $0x20] sm:$0xf] %vm786, %v722
  %796 = vst.msk [vmem:[%s4 + $0x24] sm:$0xf] %vm786, %v723
  %797 = vst.msk [vmem:[%s4 + $0x28] sm:$0xf] %vm786, %v724
  %798 = vst.msk [vmem:[%s4 + $0x2c] sm:$0xf] %vm786, %v725
  %799 = vst.msk [vmem:[%s4 + $0x30] sm:$0xf] %vm786, %v726
  %800 = vst.msk [vmem:[%s4 + $0x34] sm:$0xf] %vm786, %v727
  %801 = vst.msk [vmem:[%s4 + $0x38] sm:$0xf] %vm786, %v728
  %802 = vst.msk [vmem:[%s4 + $0x3c] sm:$0xf] %vm786, %v729
  %803 = vst.msk [vmem:[%s4 + $0x40] sm:$0xf] %vm786, %v730
  %804 = vst.msk [vmem:[%s4 + $0x44] sm:$0xf] %vm786, %v731
  %805 = vst.msk [vmem:[%s4 + $0x48] sm:$0xf] %vm786, %v732
  %806 = vst.msk [vmem:[%s4 + $0x4c] sm:$0xf] %vm786, %v733
  %807 = vst.msk [vmem:[%s4 + $0x50] sm:$0xf] %vm786, %v734
  %808 = vst.msk [vmem:[%s4 + $0x54] sm:$0xf] %vm786, %v735
  %809 = vst.msk [vmem:[%s4 + $0x58] sm:$0xf] %vm786, %v736
  %810 = vst.msk [vmem:[%s4 + $0x5c] sm:$0xf] %vm786, %v737
  %811 = vst.msk [vmem:[%s4 + $0x60] sm:$0xf] %vm786, %v738
  %812 = vst.msk [vmem:[%s4 + $0x64] sm:$0xf] %vm786, %v739
  %813 = vst.msk [vmem:[%s4 + $0x68] sm:$0xf] %vm786, %v740
  %814 = vst.msk [vmem:[%s4 + $0x6c] sm:$0xf] %vm786, %v741
  %815 = vst.msk [vmem:[%s4 + $0x70] sm:$0xf] %vm786, %v742
  %816 = vst.msk [vmem:[%s4 + $0x74] sm:$0xf] %vm786, %v743
  %817 = vst.msk [vmem:[%s4 + $0x78] sm:$0xf] %vm786, %v744
  %818 = vst.msk [vmem:[%s4 + $0x7c] sm:$0xf] %vm786, %v745
  %819 = vst.msk [vmem:[%s4 + $0x80] sm:$0xf] %vm786, %v746
  %820 = vst.msk [vmem:[%s4 + $0x84] sm:$0xf] %vm786, %v747
  %821 = vst.msk [vmem:[%s4 + $0x88] sm:$0xf] %vm786, %v748
  %822 = vst.msk [vmem:[%s4 + $0x8c] sm:$0xf] %vm786, %v749
  // Predicated region
  $region18: #{_lambda_.8} parent=0 // pred_check
    _
  $region19: #{_lambda_.8} parent=0 // pred_check_branch
    %824 = sbr.rel (0) target = $region21
  $region20: #{_lambda_.8} parent=0 // pred_region
    _
  $region21: #{_lambda_.8} parent=0 // pred_fallthru
    _
  // Predicated region
  $region22: #{_lambda_.8} parent=0 // pred_check
    _
  $region23: #{_lambda_.8} parent=0 // pred_check_branch
    %826 = sbr.rel (0) target = $region25
  $region24: #{_lambda_.8} parent=0 // pred_region
    _
  $region25: #{_lambda_.8} parent=0 // pred_fallthru
    _

// kernel: _lambda_.9
$region0: #{_lambda_.9}
  #allocation0 [shape = 'u32[]', space=smem, size = 0x4, offset = 0x4, fixed_abs, tag = 'smem constant byte address 0x4 - core index']
  #allocation1 [shape = 'u32[144,128]{1,0:T(1,128)}', space=vmem, size = 0x12000, scoped, tag = 'internal scratch']
  %s0 = inlined_call_operand.vmem [shape: bf16[208,576], index: 0, kind: input, shape index: {}]
  %s1 = inlined_call_operand.vmem [shape: bf16[576,64], index: 1, kind: input, shape index: {}]
  %s2 = inlined_call_operand.vmem [shape: f32[1,64], index: 2, kind: input, shape index: {}]
  %s3 = inlined_call_operand.vmem [shape: f32[1,64], index: 3, kind: input, shape index: {}]
  %s4 = inlined_call_operand.vmem [shape: bf16[208,64], index: 4, kind: output, shape index: {}]
  %s5 = sld [smem:[#allocation0]]
  $region26: #{_lambda_.9} parent=0
    _
  %s7 = ssub.s32 1, %s5
  %s8 = scalar_select 0, %s7, %s5
  // Predicated region
  $region2: #{_lambda_.9} parent=0 // pred_check
    _
  $region3: #{_lambda_.9} parent=0 // pred_check_branch
    %10 = sbr.rel (0) target = $region5
  $region4: #{_lambda_.9} parent=0 // pred_region
    _
  $region5: #{_lambda_.9} parent=0 // pred_fallthru
    _
  // Predicated region
  $region6: #{_lambda_.9} parent=0 // pred_check
    _
  $region7: #{_lambda_.9} parent=0 // pred_check_branch
    %12 = sbr.rel (0) target = $region9
  $region8: #{_lambda_.9} parent=0 // pred_region
    _
  $region9: #{_lambda_.9} parent=0 // pred_fallthru
    _
  // Predicated region
  $region10: #{_lambda_.9} parent=0 // pred_check
    _
  $region11: #{_lambda_.9} parent=0 // pred_check_branch
    %14 = sbr.rel (0) target = $region13
  $region12: #{_lambda_.9} parent=0 // pred_region
    _
  $region13: #{_lambda_.9} parent=0 // pred_fallthru
    _
  // Predicated region
  $region14: #{_lambda_.9} parent=0 // pred_check
    _
  $region15: #{_lambda_.9} parent=0 // pred_check_branch
    %16 = sbr.rel (0) target = $region17
  $region16: #{_lambda_.9} parent=0 // pred_region
    _
  $region17: #{_lambda_.9} parent=0 // pred_fallthru
    _
  %v18 = vld [vmem:[%s0] sm:$0xff]
  %v19 = vld [vmem:[%s0 + $0x8] sm:$0xff]
  %v20 = vld [vmem:[%s0 + $0x10] sm:$0xf]
  %v21 = vld [vmem:[%s0 + $0x14] sm:$0xff]
  %v22 = vld [vmem:[%s0 + $0x1c] sm:$0xff]
  %v23 = vld [vmem:[%s0 + $0x24] sm:$0xf]
  %v24 = vld [vmem:[%s0 + $0x28] sm:$0xff]
  %v25 = vld [vmem:[%s0 + $0x30] sm:$0xff]
  %v26 = vld [vmem:[%s0 + $0x38] sm:$0xf]
  %v27 = vld [vmem:[%s0 + $0x3c] sm:$0xff]
  %v28 = vld [vmem:[%s0 + $0x44] sm:$0xff]
  %v29 = vld [vmem:[%s0 + $0x4c] sm:$0xf]
  %v30 = vld [vmem:[%s0 + $0x50] sm:$0xff]
  %v31 = vld [vmem:[%s0 + $0x58] sm:$0xff]
  %v32 = vld [vmem:[%s0 + $0x60] sm:$0xf]
  %v33 = vld [vmem:[%s0 + $0x64] sm:$0xff]
  %v34 = vld [vmem:[%s0 + $0x6c] sm:$0xff]
  %v35 = vld [vmem:[%s0 + $0x74] sm:$0xf]
  %v36 = vld [vmem:[%s0 + $0x78] sm:$0xff]
  %v37 = vld [vmem:[%s0 + $0x80] sm:$0xff]
  %v38 = vld [vmem:[%s0 + $0x88] sm:$0xf]
  %v39 = vld [vmem:[%s0 + $0x8c] sm:$0xff]
  %v40 = vld [vmem:[%s0 + $0x94] sm:$0xff]
  %v41 = vld [vmem:[%s0 + $0x9c] sm:$0xf]
  %v42 = vld [vmem:[%s0 + $0xa0] sm:$0xff]
  %v43 = vld [vmem:[%s0 + $0xa8] sm:$0xff]
  %v44 = vld [vmem:[%s0 + $0xb0] sm:$0xf]
  %v45 = vld [vmem:[%s0 + $0xb4] sm:$0xff]
  %v46 = vld [vmem:[%s0 + $0xbc] sm:$0xff]
  %v47 = vld [vmem:[%s0 + $0xc4] sm:$0xf]
  %v48 = vld [vmem:[%s0 + $0xc8] sm:$0xff]
  %v49 = vld [vmem:[%s0 + $0xd0] sm:$0xff]
  %v50 = vld [vmem:[%s0 + $0xd8] sm:$0xf]
  %v51 = vld [vmem:[%s0 + $0xdc] sm:$0xff]
  %v52 = vld [vmem:[%s0 + $0xe4] sm:$0xff]
  %v53 = vld [vmem:[%s0 + $0xec] sm:$0xf]
  %v54 = vld [vmem:[%s0 + $0xf0] sm:$0xff]
  %v55 = vld [vmem:[%s0 + $0xf8] sm:$0xff]
  %v56 = vld [vmem:[%s0 + $0x100] sm:$0xf]
  %v57 = vld [vmem:[%s0 + $0x104] sm:$0xff]
  %v58 = vld [vmem:[%s0 + $0x10c] sm:$0xff]
  %v59 = vld [vmem:[%s0 + $0x114] sm:$0xf]
  %v60 = vld [vmem:[%s0 + $0x118] sm:$0xff]
  %v61 = vld [vmem:[%s0 + $0x120] sm:$0xff]
  %v62 = vld [vmem:[%s0 + $0x128] sm:$0xf]
  %v63 = vld [vmem:[%s0 + $0x12c] sm:$0xff]
  %v64 = vld [vmem:[%s0 + $0x134] sm:$0xff]
  %v65 = vld [vmem:[%s0 + $0x13c] sm:$0xf]
  %v66 = vld [vmem:[%s0 + $0x140] sm:$0xff]
  %v67 = vld [vmem:[%s0 + $0x148] sm:$0xff]
  %v68 = vld [vmem:[%s0 + $0x150] sm:$0xf]
  %v69 = vld [vmem:[%s0 + $0x154] sm:$0xff]
  %v70 = vld [vmem:[%s0 + $0x15c] sm:$0xff]
  %v71 = vld [vmem:[%s0 + $0x164] sm:$0xf]
  %v72 = vld [vmem:[%s0 + $0x168] sm:$0xff]
  %v73 = vld [vmem:[%s0 + $0x170] sm:$0xff]
  %v74 = vld [vmem:[%s0 + $0x178] sm:$0xf]
  %v75 = vld [vmem:[%s0 + $0x17c] sm:$0xff]
  %v76 = vld [vmem:[%s0 + $0x184] sm:$0xff]
  %v77 = vld [vmem:[%s0 + $0x18c] sm:$0xf]
  %v78 = vld [vmem:[%s0 + $0x190] sm:$0xff]
  %v79 = vld [vmem:[%s0 + $0x198] sm:$0xff]
  %v80 = vld [vmem:[%s0 + $0x1a0] sm:$0xf]
  %v81 = vld [vmem:[%s0 + $0x1a4] sm:$0xff]
  %v82 = vld [vmem:[%s0 + $0x1ac] sm:$0xff]
  %v83 = vld [vmem:[%s0 + $0x1b4] sm:$0xf]
  %v84 = vld [vmem:[%s0 + $0x1b8] sm:$0xff]
  %v85 = vld [vmem:[%s0 + $0x1c0] sm:$0xff]
  %v86 = vld [vmem:[%s0 + $0x1c8] sm:$0xf]
  %v87 = vld [vmem:[%s0 + $0x1cc] sm:$0xff]
  %v88 = vld [vmem:[%s0 + $0x1d4] sm:$0xff]
  %v89 = vld [vmem:[%s0 + $0x1dc] sm:$0xf]
  %v90 = vld [vmem:[%s0 + $0x1e0] sm:$0xff]
  %v91 = vld [vmem:[%s0 + $0x1e8] sm:$0xff]
  %v92 = vld [vmem:[%s0 + $0x1f0] sm:$0xf]
  %v93 = vld [vmem:[%s0 + $0x1f4] sm:$0xff]
  %v94 = vld [vmem:[%s0 + $0x1fc] sm:$0xff]
  %v95 = vld [vmem:[%s0 + $0x204] sm:$0xf]
  %v96 = vld [vmem:[%s1] sm:$0xf]
  %v97 = vld [vmem:[%s1 + $0x4] sm:$0xf]
  %v98 = vld [vmem:[%s1 + $0x8] sm:$0xf]
  %v99 = vld [vmem:[%s1 + $0xc] sm:$0xf]
  %v100 = vld [vmem:[%s1 + $0x10] sm:$0xf]
  %v101 = vld [vmem:[%s1 + $0x14] sm:$0xf]
  %v102 = vld [vmem:[%s1 + $0x18] sm:$0xf]
  %v103 = vld [vmem:[%s1 + $0x1c] sm:$0xf]
  %v104 = vld [vmem:[%s1 + $0x20] sm:$0xf]
  %v105 = vld [vmem:[%s1 + $0x24] sm:$0xf]
  %v106 = vld [vmem:[%s1 + $0x28] sm:$0xf]
  %v107 = vld [vmem:[%s1 + $0x2c] sm:$0xf]
  %v108 = vld [vmem:[%s1 + $0x30] sm:$0xf]
  %v109 = vld [vmem:[%s1 + $0x34] sm:$0xf]
  %v110 = vld [vmem:[%s1 + $0x38] sm:$0xf]
  %v111 = vld [vmem:[%s1 + $0x3c] sm:$0xf]
  %v112 = vld [vmem:[%s1 + $0x40] sm:$0xf]
  %v113 = vld [vmem:[%s1 + $0x44] sm:$0xf]
  %v114 = vld [vmem:[%s1 + $0x48] sm:$0xf]
  %v115 = vld [vmem:[%s1 + $0x4c] sm:$0xf]
  %v116 = vld [vmem:[%s1 + $0x50] sm:$0xf]
  %v117 = vld [vmem:[%s1 + $0x54] sm:$0xf]
  %v118 = vld [vmem:[%s1 + $0x58] sm:$0xf]
  %v119 = vld [vmem:[%s1 + $0x5c] sm:$0xf]
  %v120 = vld [vmem:[%s1 + $0x60] sm:$0xf]
  %v121 = vld [vmem:[%s1 + $0x64] sm:$0xf]
  %v122 = vld [vmem:[%s1 + $0x68] sm:$0xf]
  %v123 = vld [vmem:[%s1 + $0x6c] sm:$0xf]
  %v124 = vld [vmem:[%s1 + $0x70] sm:$0xf]
  %v125 = vld [vmem:[%s1 + $0x74] sm:$0xf]
  %v126 = vld [vmem:[%s1 + $0x78] sm:$0xf]
  %v127 = vld [vmem:[%s1 + $0x7c] sm:$0xf]
  %v128 = vld [vmem:[%s1 + $0x80] sm:$0xf]
  %v129 = vld [vmem:[%s1 + $0x84] sm:$0xf]
  %v130 = vld [vmem:[%s1 + $0x88] sm:$0xf]
  %v131 = vld [vmem:[%s1 + $0x8c] sm:$0xf]
  %v132 = vld [vmem:[%s1 + $0x90] sm:$0xf]
  %v133 = vld [vmem:[%s1 + $0x94] sm:$0xf]
  %v134 = vld [vmem:[%s1 + $0x98] sm:$0xf]
  %v135 = vld [vmem:[%s1 + $0x9c] sm:$0xf]
  %v136 = vld [vmem:[%s1 + $0xa0] sm:$0xf]
  %v137 = vld [vmem:[%s1 + $0xa4] sm:$0xf]
  %v138 = vld [vmem:[%s1 + $0xa8] sm:$0xf]
  %v139 = vld [vmem:[%s1 + $0xac] sm:$0xf]
  %v140 = vld [vmem:[%s1 + $0xb0] sm:$0xf]
  %v141 = vld [vmem:[%s1 + $0xb4] sm:$0xf]
  %v142 = vld [vmem:[%s1 + $0xb8] sm:$0xf]
  %v143 = vld [vmem:[%s1 + $0xbc] sm:$0xf]
  %v144 = vld [vmem:[%s1 + $0xc0] sm:$0xf]
  %v145 = vld [vmem:[%s1 + $0xc4] sm:$0xf]
  %v146 = vld [vmem:[%s1 + $0xc8] sm:$0xf]
  %v147 = vld [vmem:[%s1 + $0xcc] sm:$0xf]
  %v148 = vld [vmem:[%s1 + $0xd0] sm:$0xf]
  %v149 = vld [vmem:[%s1 + $0xd4] sm:$0xf]
  %v150 = vld [vmem:[%s1 + $0xd8] sm:$0xf]
  %v151 = vld [vmem:[%s1 + $0xdc] sm:$0xf]
  %v152 = vld [vmem:[%s1 + $0xe0] sm:$0xf]
  %v153 = vld [vmem:[%s1 + $0xe4] sm:$0xf]
  %v154 = vld [vmem:[%s1 + $0xe8] sm:$0xf]
  %v155 = vld [vmem:[%s1 + $0xec] sm:$0xf]
  %v156 = vld [vmem:[%s1 + $0xf0] sm:$0xf]
  %v157 = vld [vmem:[%s1 + $0xf4] sm:$0xf]
  %v158 = vld [vmem:[%s1 + $0xf8] sm:$0xf]
  %v159 = vld [vmem:[%s1 + $0xfc] sm:$0xf]
  %v160 = vld [vmem:[%s1 + $0x100] sm:$0xf]
  %v161 = vld [vmem:[%s1 + $0x104] sm:$0xf]
  %v162 = vld [vmem:[%s1 + $0x108] sm:$0xf]
  %v163 = vld [vmem:[%s1 + $0x10c] sm:$0xf]
  %v164 = vld [vmem:[%s1 + $0x110] sm:$0xf]
  %v165 = vld [vmem:[%s1 + $0x114] sm:$0xf]
  %v166 = vld [vmem:[%s1 + $0x118] sm:$0xf]
  %v167 = vld [vmem:[%s1 + $0x11c] sm:$0xf]
  %v246 = vunpack.c.l.b16 %v18
  %v247 = vunpack.c.h.b16 %v18
  %v248 = vunpack.c.l.b16 %v19
  %v249 = vunpack.c.h.b16 %v19
  %v250 = vunpack.c.l.b16 %v20
  %v251 = vunpack.c.l.b16 %v21
  %v252 = vunpack.c.h.b16 %v21
  %v253 = vunpack.c.l.b16 %v22
  %v254 = vunpack.c.h.b16 %v22
  %v255 = vunpack.c.l.b16 %v23
  %v256 = vunpack.c.l.b16 %v24
  %v257 = vunpack.c.h.b16 %v24
  %v258 = vunpack.c.l.b16 %v25
  %v259 = vunpack.c.h.b16 %v25
  %v260 = vunpack.c.l.b16 %v26
  %v261 = vunpack.c.l.b16 %v27
  %v262 = vunpack.c.h.b16 %v27
  %v263 = vunpack.c.l.b16 %v28
  %v264 = vunpack.c.h.b16 %v28
  %v265 = vunpack.c.l.b16 %v29
  %v266 = vunpack.c.l.b16 %v30
  %v267 = vunpack.c.h.b16 %v30
  %v268 = vunpack.c.l.b16 %v31
  %v269 = vunpack.c.h.b16 %v31
  %v270 = vunpack.c.l.b16 %v32
  %v271 = vunpack.c.l.b16 %v33
  %v272 = vunpack.c.h.b16 %v33
  %v273 = vunpack.c.l.b16 %v34
  %v274 = vunpack.c.h.b16 %v34
  %v275 = vunpack.c.l.b16 %v35
  %v276 = vunpack.c.l.b16 %v36
  %v277 = vunpack.c.h.b16 %v36
  %v278 = vunpack.c.l.b16 %v37
  %v279 = vunpack.c.h.b16 %v37
  %v280 = vunpack.c.l.b16 %v38
  %v281 = vunpack.c.l.b16 %v39
  %v282 = vunpack.c.h.b16 %v39
  %v283 = vunpack.c.l.b16 %v40
  %v284 = vunpack.c.h.b16 %v40
  %v285 = vunpack.c.l.b16 %v41
  %v286 = vunpack.c.l.b16 %v42
  %v287 = vunpack.c.h.b16 %v42
  %v288 = vunpack.c.l.b16 %v43
  %v289 = vunpack.c.h.b16 %v43
  %v290 = vunpack.c.l.b16 %v44
  %v291 = vunpack.c.l.b16 %v45
  %v292 = vunpack.c.h.b16 %v45
  %v293 = vunpack.c.l.b16 %v46
  %v294 = vunpack.c.h.b16 %v46
  %v295 = vunpack.c.l.b16 %v47
  %v296 = vunpack.c.l.b16 %v48
  %v297 = vunpack.c.h.b16 %v48
  %v298 = vunpack.c.l.b16 %v49
  %v299 = vunpack.c.h.b16 %v49
  %v300 = vunpack.c.l.b16 %v50
  %v301 = vunpack.c.l.b16 %v51
  %v302 = vunpack.c.h.b16 %v51
  %v303 = vunpack.c.l.b16 %v52
  %v304 = vunpack.c.h.b16 %v52
  %v305 = vunpack.c.l.b16 %v53
  %v306 = vunpack.c.l.b16 %v54
  %v307 = vunpack.c.h.b16 %v54
  %v308 = vunpack.c.l.b16 %v55
  %v309 = vunpack.c.h.b16 %v55
  %v310 = vunpack.c.l.b16 %v56
  %v311 = vunpack.c.l.b16 %v57
  %v312 = vunpack.c.h.b16 %v57
  %v313 = vunpack.c.l.b16 %v58
  %v314 = vunpack.c.h.b16 %v58
  %v315 = vunpack.c.l.b16 %v59
  %v316 = vunpack.c.l.b16 %v60
  %v317 = vunpack.c.h.b16 %v60
  %v318 = vunpack.c.l.b16 %v61
  %v319 = vunpack.c.h.b16 %v61
  %v320 = vunpack.c.l.b16 %v62
  %v321 = vunpack.c.l.b16 %v63
  %v322 = vunpack.c.h.b16 %v63
  %v323 = vunpack.c.l.b16 %v64
  %v324 = vunpack.c.h.b16 %v64
  %v325 = vunpack.c.l.b16 %v65
  %v326 = vunpack.c.l.b16 %v66
  %v327 = vunpack.c.h.b16 %v66
  %v328 = vunpack.c.l.b16 %v67
  %v329 = vunpack.c.h.b16 %v67
  %v330 = vunpack.c.l.b16 %v68
  %v331 = vunpack.c.l.b16 %v69
  %v332 = vunpack.c.h.b16 %v69
  %v333 = vunpack.c.l.b16 %v70
  %v334 = vunpack.c.h.b16 %v70
  %v335 = vunpack.c.l.b16 %v71
  %v336 = vunpack.c.l.b16 %v72
  %v337 = vunpack.c.h.b16 %v72
  %v338 = vunpack.c.l.b16 %v73
  %v339 = vunpack.c.h.b16 %v73
  %v340 = vunpack.c.l.b16 %v74
  %v341 = vunpack.c.l.b16 %v75
  %v342 = vunpack.c.h.b16 %v75
  %v343 = vunpack.c.l.b16 %v76
  %v344 = vunpack.c.h.b16 %v76
  %v345 = vunpack.c.l.b16 %v77
  %v346 = vunpack.c.l.b16 %v78
  %v347 = vunpack.c.h.b16 %v78
  %v348 = vunpack.c.l.b16 %v79
  %v349 = vunpack.c.h.b16 %v79
  %v350 = vunpack.c.l.b16 %v80
  %v351 = vunpack.c.l.b16 %v81
  %v352 = vunpack.c.h.b16 %v81
  %v353 = vunpack.c.l.b16 %v82
  %v354 = vunpack.c.h.b16 %v82
  %v355 = vunpack.c.l.b16 %v83
  %v356 = vunpack.c.l.b16 %v84
  %v357 = vunpack.c.h.b16 %v84
  %v358 = vunpack.c.l.b16 %v85
  %v359 = vunpack.c.h.b16 %v85
  %v360 = vunpack.c.l.b16 %v86
  %v361 = vunpack.c.l.b16 %v87
  %v362 = vunpack.c.h.b16 %v87
  %v363 = vunpack.c.l.b16 %v88
  %v364 = vunpack.c.h.b16 %v88
  %v365 = vunpack.c.l.b16 %v89
  %v366 = vunpack.c.l.b16 %v90
  %v367 = vunpack.c.h.b16 %v90
  %v368 = vunpack.c.l.b16 %v91
  %v369 = vunpack.c.h.b16 %v91
  %v370 = vunpack.c.l.b16 %v92
  %v371 = vunpack.c.l.b16 %v93
  %v372 = vunpack.c.h.b16 %v93
  %v373 = vunpack.c.l.b16 %v94
  %v374 = vunpack.c.h.b16 %v94
  %v375 = vunpack.c.l.b16 %v95
  %v376 = vpack.c.b16 %v251, %v246
  %v377 = vpack.c.b16 %v252, %v247
  %v378 = vpack.c.b16 %v253, %v248
  %v379 = vpack.c.b16 %v254, %v249
  %v380 = vpack.c.b16 %v255, %v250
  %v381 = vpack.c.b16 %v261, %v256
  %v382 = vpack.c.b16 %v262, %v257
  %v383 = vpack.c.b16 %v263, %v258
  %v384 = vpack.c.b16 %v264, %v259
  %v385 = vpack.c.b16 %v265, %v260
  %v386 = vpack.c.b16 %v271, %v266
  %v387 = vpack.c.b16 %v272, %v267
  %v388 = vpack.c.b16 %v273, %v268
  %v389 = vpack.c.b16 %v274, %v269
  %v390 = vpack.c.b16 %v275, %v270
  %v391 = vpack.c.b16 %v281, %v276
  %v392 = vpack.c.b16 %v282, %v277
  %v393 = vpack.c.b16 %v283, %v278
  %v394 = vpack.c.b16 %v284, %v279
  %v395 = vpack.c.b16 %v285, %v280
  %v396 = vpack.c.b16 %v291, %v286
  %v397 = vpack.c.b16 %v292, %v287
  %v398 = vpack.c.b16 %v293, %v288
  %v399 = vpack.c.b16 %v294, %v289
  %v400 = vpack.c.b16 %v295, %v290
  %v401 = vpack.c.b16 %v301, %v296
  %v402 = vpack.c.b16 %v302, %v297
  %v403 = vpack.c.b16 %v303, %v298
  %v404 = vpack.c.b16 %v304, %v299
  %v405 = vpack.c.b16 %v305, %v300
  %v406 = vpack.c.b16 %v311, %v306
  %v407 = vpack.c.b16 %v312, %v307
  %v408 = vpack.c.b16 %v313, %v308
  %v409 = vpack.c.b16 %v314, %v309
  %v410 = vpack.c.b16 %v315, %v310
  %v411 = vpack.c.b16 %v321, %v316
  %v412 = vpack.c.b16 %v322, %v317
  %v413 = vpack.c.b16 %v323, %v318
  %v414 = vpack.c.b16 %v324, %v319
  %v415 = vpack.c.b16 %v325, %v320
  %v416 = vpack.c.b16 %v331, %v326
  %v417 = vpack.c.b16 %v332, %v327
  %v418 = vpack.c.b16 %v333, %v328
  %v419 = vpack.c.b16 %v334, %v329
  %v420 = vpack.c.b16 %v335, %v330
  %v421 = vpack.c.b16 %v341, %v336
  %v422 = vpack.c.b16 %v342, %v337
  %v423 = vpack.c.b16 %v343, %v338
  %v424 = vpack.c.b16 %v344, %v339
  %v425 = vpack.c.b16 %v345, %v340
  %v426 = vpack.c.b16 %v351, %v346
  %v427 = vpack.c.b16 %v352, %v347
  %v428 = vpack.c.b16 %v353, %v348
  %v429 = vpack.c.b16 %v354, %v349
  %v430 = vpack.c.b16 %v355, %v350
  %v431 = vpack.c.b16 %v361, %v356
  %v432 = vpack.c.b16 %v362, %v357
  %v433 = vpack.c.b16 %v363, %v358
  %v434 = vpack.c.b16 %v364, %v359
  %v435 = vpack.c.b16 %v365, %v360
  %v436 = vpack.c.b16 %v371, %v366
  %v437 = vpack.c.b16 %v372, %v367
  %v438 = vpack.c.b16 %v373, %v368
  %v439 = vpack.c.b16 %v374, %v369
  %v440 = vpack.c.b16 %v375, %v370
  %v565 = vunpack.c.l.b16 %v96
  %v566 = vunpack.c.l.b16 %v97
  %v567 = vunpack.c.l.b16 %v98
  %v568 = vunpack.c.l.b16 %v99
  %v569 = vunpack.c.l.b16 %v100
  %v570 = vunpack.c.l.b16 %v101
  %v571 = vunpack.c.l.b16 %v102
  %v572 = vunpack.c.l.b16 %v103
  %v573 = vunpack.c.l.b16 %v104
  %v574 = vunpack.c.l.b16 %v105
  %v575 = vunpack.c.l.b16 %v106
  %v576 = vunpack.c.l.b16 %v107
  %v577 = vunpack.c.l.b16 %v108
  %v578 = vunpack.c.l.b16 %v109
  %v579 = vunpack.c.l.b16 %v110
  %v580 = vunpack.c.l.b16 %v111
  %v581 = vunpack.c.l.b16 %v112
  %v582 = vunpack.c.l.b16 %v113
  %v583 = vunpack.c.l.b16 %v114
  %v584 = vunpack.c.l.b16 %v115
  %v585 = vunpack.c.l.b16 %v116
  %v586 = vunpack.c.l.b16 %v117
  %v587 = vunpack.c.l.b16 %v118
  %v588 = vunpack.c.l.b16 %v119
  %v589 = vunpack.c.l.b16 %v120
  %v590 = vunpack.c.l.b16 %v121
  %v591 = vunpack.c.l.b16 %v122
  %v592 = vunpack.c.l.b16 %v123
  %v593 = vunpack.c.l.b16 %v124
  %v594 = vunpack.c.l.b16 %v125
  %v595 = vunpack.c.l.b16 %v126
  %v596 = vunpack.c.l.b16 %v127
  %v597 = vunpack.c.l.b16 %v128
  %v598 = vunpack.c.l.b16 %v129
  %v599 = vunpack.c.l.b16 %v130
  %v600 = vunpack.c.l.b16 %v131
  %v601 = vunpack.c.l.b16 %v132
  %v602 = vunpack.c.l.b16 %v133
  %v603 = vunpack.c.l.b16 %v134
  %v604 = vunpack.c.l.b16 %v135
  %v605 = vunpack.c.l.b16 %v136
  %v606 = vunpack.c.l.b16 %v137
  %v607 = vunpack.c.l.b16 %v138
  %v608 = vunpack.c.l.b16 %v139
  %v609 = vunpack.c.l.b16 %v140
  %v610 = vunpack.c.l.b16 %v141
  %v611 = vunpack.c.l.b16 %v142
  %v612 = vunpack.c.l.b16 %v143
  %v613 = vunpack.c.l.b16 %v144
  %v614 = vunpack.c.l.b16 %v145
  %v615 = vunpack.c.l.b16 %v146
  %v616 = vunpack.c.l.b16 %v147
  %v617 = vunpack.c.l.b16 %v148
  %v618 = vunpack.c.l.b16 %v149
  %v619 = vunpack.c.l.b16 %v150
  %v620 = vunpack.c.l.b16 %v151
  %v621 = vunpack.c.l.b16 %v152
  %v622 = vunpack.c.l.b16 %v153
  %v623 = vunpack.c.l.b16 %v154
  %v624 = vunpack.c.l.b16 %v155
  %v625 = vunpack.c.l.b16 %v156
  %v626 = vunpack.c.l.b16 %v157
  %v627 = vunpack.c.l.b16 %v158
  %v628 = vunpack.c.l.b16 %v159
  %v629 = vunpack.c.l.b16 %v160
  %v630 = vunpack.c.l.b16 %v161
  %v631 = vunpack.c.l.b16 %v162
  %v632 = vunpack.c.l.b16 %v163
  %v633 = vunpack.c.l.b16 %v164
  %v634 = vunpack.c.l.b16 %v165
  %v635 = vunpack.c.l.b16 %v166
  %v636 = vunpack.c.l.b16 %v167
  %v637 = vpack.c.b16 %v566, %v565
  %v638 = vpack.c.b16 %v568, %v567
  %v639 = vpack.c.b16 %v570, %v569
  %v640 = vpack.c.b16 %v572, %v571
  %v641 = vpack.c.b16 %v574, %v573
  %v642 = vpack.c.b16 %v576, %v575
  %v643 = vpack.c.b16 %v578, %v577
  %v644 = vpack.c.b16 %v580, %v579
  %v645 = vpack.c.b16 %v582, %v581
  %v646 = vpack.c.b16 %v584, %v583
  %v647 = vpack.c.b16 %v586, %v585
  %v648 = vpack.c.b16 %v588, %v587
  %v649 = vpack.c.b16 %v590, %v589
  %v650 = vpack.c.b16 %v592, %v591
  %v651 = vpack.c.b16 %v594, %v593
  %v652 = vpack.c.b16 %v596, %v595
  %v653 = vpack.c.b16 %v598, %v597
  %v654 = vpack.c.b16 %v600, %v599
  %v655 = vpack.c.b16 %v602, %v601
  %v656 = vpack.c.b16 %v604, %v603
  %v657 = vpack.c.b16 %v606, %v605
  %v658 = vpack.c.b16 %v608, %v607
  %v659 = vpack.c.b16 %v610, %v609
  %v660 = vpack.c.b16 %v612, %v611
  %v661 = vpack.c.b16 %v614, %v613
  %v662 = vpack.c.b16 %v616, %v615
  %v663 = vpack.c.b16 %v618, %v617
  %v664 = vpack.c.b16 %v620, %v619
  %v665 = vpack.c.b16 %v622, %v621
  %v666 = vpack.c.b16 %v624, %v623
  %v667 = vpack.c.b16 %v626, %v625
  %v668 = vpack.c.b16 %v628, %v627
  %v669 = vpack.c.b16 %v630, %v629
  %v670 = vpack.c.b16 %v632, %v631
  %v671 = vpack.c.b16 %v634, %v633
  %v672 = vpack.c.b16 %v636, %v635
  %vm709 = vcmask 523264
  %v711 = vsel %vm709, %v380, 0
  %v714 = vsel %vm709, %v385, 0
  %v717 = vsel %vm709, %v390, 0
  %v720 = vsel %vm709, %v395, 0
  %v723 = vsel %vm709, %v400, 0
  %v726 = vsel %vm709, %v405, 0
  %v729 = vsel %vm709, %v410, 0
  %v732 = vsel %vm709, %v415, 0
  %v735 = vsel %vm709, %v420, 0
  %v738 = vsel %vm709, %v425, 0
  %v741 = vsel %vm709, %v430, 0
  %v744 = vsel %vm709, %v435, 0
  %v747 = vsel %vm709, %v440, 0
  %749 = vmatprep.subr.bf16.mxu0 0
  %750 = vmatpush1.bf16.msra.mxu0 %v637
  %751 = vmatprep.subr.bf16.mxu0 0
  %752 = vmatpush1.bf16.msra.mxu0 %v638
  %753 = vmatprep.subr.bf16.mxu0 0
  %754 = vmatpush1.bf16.msra.mxu0 %v639
  %755 = vmatprep.subr.bf16.mxu0 0
  %756 = vmatpush1.bf16.msra.mxu0 %v640
  %757 = vmatprep.subr.bf16.mxu0 0
  %758 = vmatpush1.bf16.msra.mxu0 %v641
  %759 = vmatprep.subr.bf16.mxu0 0
  %760 = vmatpush1.bf16.msra.mxu0 %v642
  %761 = vmatprep.subr.bf16.mxu0 0
  %762 = vmatpush1.bf16.msra.mxu0 %v643
  %763 = vmatprep.subr.bf16.mxu0 0
  %764 = vmatpush1.bf16.msra.mxu0 %v644
  %765 = vmatprep.subr.bf16.mxu0 0
  %766 = vmatpush1.bf16.msra.mxu0 %v645
  %767 = vmatprep.subr.bf16.mxu0 0
  %768 = vmatpush1.bf16.msra.mxu0 %v646
  %769 = vmatprep.subr.bf16.mxu0 0
  %770 = vmatpush1.bf16.msra.mxu0 %v647
  %771 = vmatprep.subr.bf16.mxu0 0
  %772 = vmatpush1.bf16.msra.mxu0 %v648
  %773 = vmatprep.subr.bf16.mxu0 0
  %774 = vmatpush1.bf16.msra.mxu0 %v649
  %775 = vmatprep.subr.bf16.mxu0 0
  %776 = vmatpush1.bf16.msra.mxu0 %v650
  %777 = vmatprep.subr.bf16.mxu0 0
  %778 = vmatpush1.bf16.msra.mxu0 %v651
  %779 = vmatprep.subr.bf16.mxu0 0
  %780 = vmatpush1.bf16.msra.mxu0 %v652
  %781 = vmatprep.mubr.bf16.mxu0 %v377
  %782 = vmatmul.mubr.bf16.gmra.mrb[0].mxu0 %v376
  %v783 = vpop.f32.mrb[0].mxu0
  %v784 = vadd.f32 0.0, %v783
  %v785 = vpop.f32.mrb[0].mxu0
  %v786 = vpop.f32.mrb[0].mxu0
  %v787 = vadd.f32 0.0, %v786
  %v788 = vpop.f32.mrb[0].mxu0
  %789 = vmatprep.mubr.bf16.mxu0 %v382
  %790 = vmatmul.mubr.bf16.gmra.mrb[0].mxu0 %v381
  %v791 = vpop.f32.mrb[0].mxu0
  %v792 = vadd.f32 0.0, %v791
  %v793 = vpop.f32.mrb[0].mxu0
  %v794 = vpop.f32.mrb[0].mxu0
  %v795 = vadd.f32 0.0, %v794
  %v796 = vpop.f32.mrb[0].mxu0
  %797 = vmatprep.mubr.bf16.mxu0 %v387
  %798 = vmatmul.mubr.bf16.gmra.mrb[0].mxu0 %v386
  %v799 = vpop.f32.mrb[0].mxu0
  %v800 = vadd.f32 0.0, %v799
  %v801 = vpop.f32.mrb[0].mxu0
  %v802 = vpop.f32.mrb[0].mxu0
  %v803 = vadd.f32 0.0, %v802
  %v804 = vpop.f32.mrb[0].mxu0
  %805 = vmatprep.mubr.bf16.mxu0 %v392
  %806 = vmatmul.mubr.bf16.gmra.mrb[0].mxu0 %v391
  %v807 = vpop.f32.mrb[0].mxu0
  %v808 = vadd.f32 0.0, %v807
  %v809 = vpop.f32.mrb[0].mxu0
  %v810 = vpop.f32.mrb[0].mxu0
  %v811 = vadd.f32 0.0, %v810
  %v812 = vpop.f32.mrb[0].mxu0
  %813 = vmatprep.mubr.bf16.mxu0 %v397
  %814 = vmatmul.mubr.bf16.gmra.mrb[0].mxu0 %v396
  %v815 = vpop.f32.mrb[0].mxu0
  %v816 = vadd.f32 0.0, %v815
  %v817 = vpop.f32.mrb[0].mxu0
  %v818 = vpop.f32.mrb[0].mxu0
  %v819 = vadd.f32 0.0, %v818
  %v820 = vpop.f32.mrb[0].mxu0
  %821 = vmatprep.mubr.bf16.mxu0 %v402
  %822 = vmatmul.mubr.bf16.gmra.mrb[0].mxu0 %v401
  %v823 = vpop.f32.mrb[0].mxu0
  %v824 = vadd.f32 0.0, %v823
  %v825 = vpop.f32.mrb[0].mxu0
  %v826 = vpop.f32.mrb[0].mxu0
  %v827 = vadd.f32 0.0, %v826
  %v828 = vpop.f32.mrb[0].mxu0
  %829 = vmatprep.mubr.bf16.mxu0 %v407
  %830 = vmatmul.mubr.bf16.gmra.mrb[0].mxu0 %v406
  %v831 = vpop.f32.mrb[0].mxu0
  %v832 = vadd.f32 0.0, %v831
  %v833 = vpop.f32.mrb[0].mxu0
  %v834 = vpop.f32.mrb[0].mxu0
  %v835 = vadd.f32 0.0, %v834
  %v836 = vpop.f32.mrb[0].mxu0
  %837 = vmatprep.mubr.bf16.mxu0 %v412
  %838 = vmatmul.mubr.bf16.gmra.mrb[0].mxu0 %v411
  %v839 = vpop.f32.mrb[0].mxu0
  %v840 = vadd.f32 0.0, %v839
  %v841 = vpop.f32.mrb[0].mxu0
  %v842 = vpop.f32.mrb[0].mxu0
  %v843 = vadd.f32 0.0, %v842
  %v844 = vpop.f32.mrb[0].mxu0
  %845 = vmatprep.mubr.bf16.mxu0 %v417
  %846 = vmatmul.mubr.bf16.gmra.mrb[0].mxu0 %v416
  %v847 = vpop.f32.mrb[0].mxu0
  %v848 = vadd.f32 0.0, %v847
  %v849 = vpop.f32.mrb[0].mxu0
  %v850 = vpop.f32.mrb[0].mxu0
  %v851 = vadd.f32 0.0, %v850
  %v852 = vpop.f32.mrb[0].mxu0
  %853 = vmatprep.mubr.bf16.mxu0 %v422
  %854 = vmatmul.mubr.bf16.gmra.mrb[0].mxu0 %v421
  %v855 = vpop.f32.mrb[0].mxu0
  %v856 = vadd.f32 0.0, %v855
  %v857 = vpop.f32.mrb[0].mxu0
  %v858 = vpop.f32.mrb[0].mxu0
  %v859 = vadd.f32 0.0, %v858
  %v860 = vpop.f32.mrb[0].mxu0
  %861 = vmatprep.mubr.bf16.mxu0 %v427
  %862 = vmatmul.mubr.bf16.gmra.mrb[0].mxu0 %v426
  %v863 = vpop.f32.mrb[0].mxu0
  %v864 = vadd.f32 0.0, %v863
  %v865 = vpop.f32.mrb[0].mxu0
  %v866 = vpop.f32.mrb[0].mxu0
  %v867 = vadd.f32 0.0, %v866
  %v868 = vpop.f32.mrb[0].mxu0
  %869 = vmatprep.mubr.bf16.mxu0 %v432
  %870 = vmatmul.mubr.bf16.gmra.mrb[0].mxu0 %v431
  %v871 = vpop.f32.mrb[0].mxu0
  %v872 = vadd.f32 0.0, %v871
  %v873 = vpop.f32.mrb[0].mxu0
  %v874 = vpop.f32.mrb[0].mxu0
  %v875 = vadd.f32 0.0, %v874
  %v876 = vpop.f32.mrb[0].mxu0
  %877 = vmatprep.mubr.bf16.mxu0 %v437
  %878 = vmatmul.mubr.bf16.gmra.mrb[0].mxu0 %v436
  %v879 = vpop.f32.mrb[0].mxu0
  %v880 = vadd.f32 0.0, %v879
  %v881 = vpop.f32.mrb[0].mxu0
  %v882 = vpop.f32.mrb[0].mxu0
  %v883 = vadd.f32 0.0, %v882
  %v884 = vpop.f32.mrb[0].mxu0
  %885 = vdwg.mxu0
  %886 = vmatprep.subr.bf16.mxu0 0
  %887 = vmatpush1.bf16.msra.mxu0 %v653
  %888 = vmatprep.subr.bf16.mxu0 0
  %889 = vmatpush1.bf16.msra.mxu0 %v654
  %890 = vmatprep.subr.bf16.mxu0 0
  %891 = vmatpush1.bf16.msra.mxu0 %v655
  %892 = vmatprep.subr.bf16.mxu0 0
  %893 = vmatpush1.bf16.msra.mxu0 %v656
  %894 = vmatprep.subr.bf16.mxu0 0
  %895 = vmatpush1.bf16.msra.mxu0 %v657
  %896 = vmatprep.subr.bf16.mxu0 0
  %897 = vmatpush1.bf16.msra.mxu0 %v658
  %898 = vmatprep.subr.bf16.mxu0 0
  %899 = vmatpush1.bf16.msra.mxu0 %v659
  %900 = vmatprep.subr.bf16.mxu0 0
  %901 = vmatpush1.bf16.msra.mxu0 %v660
  %902 = vmatprep.subr.bf16.mxu0 0
  %903 = vmatpush1.bf16.msra.mxu0 %v661
  %904 = vmatprep.subr.bf16.mxu0 0
  %905 = vmatpush1.bf16.msra.mxu0 %v662
  %906 = vmatprep.subr.bf16.mxu0 0
  %907 = vmatpush1.bf16.msra.mxu0 %v663
  %908 = vmatprep.subr.bf16.mxu0 0
  %909 = vmatpush1.bf16.msra.mxu0 %v664
  %910 = vmatprep.subr.bf16.mxu0 0
  %911 = vmatpush1.bf16.msra.mxu0 %v665
  %912 = vmatprep.subr.bf16.mxu0 0
  %913 = vmatpush1.bf16.msra.mxu0 %v666
  %914 = vmatprep.subr.bf16.mxu0 0
  %915 = vmatpush1.bf16.msra.mxu0 %v667
  %916 = vmatprep.subr.bf16.mxu0 0
  %917 = vmatpush1.bf16.msra.mxu0 %v668
  %918 = vmatprep.mubr.bf16.mxu0 %v379
  %919 = vmatmul.mubr.bf16.gmra.mrb[0].mxu0 %v378
  %v920 = vpop.f32.mrb[0].mxu0
  %v921 = vadd.f32 %v784, %v920
  %v922 = vpop.f32.mrb[0].mxu0
  %v923 = vpop.f32.mrb[0].mxu0
  %v924 = vadd.f32 %v787, %v923
  %v925 = vpop.f32.mrb[0].mxu0
  %926 = vmatprep.mubr.bf16.mxu0 %v384
  %927 = vmatmul.mubr.bf16.gmra.mrb[0].mxu0 %v383
  %v928 = vpop.f32.mrb[0].mxu0
  %v929 = vadd.f32 %v792, %v928
  %v930 = vpop.f32.mrb[0].mxu0
  %v931 = vpop.f32.mrb[0].mxu0
  %v932 = vadd.f32 %v795, %v931
  %v933 = vpop.f32.mrb[0].mxu0
  %934 = vmatprep.mubr.bf16.mxu0 %v389
  %935 = vmatmul.mubr.bf16.gmra.mrb[0].mxu0 %v388
  %v936 = vpop.f32.mrb[0].mxu0
  %v937 = vadd.f32 %v800, %v936
  %v938 = vpop.f32.mrb[0].mxu0
  %v939 = vpop.f32.mrb[0].mxu0
  %v940 = vadd.f32 %v803, %v939
  %v941 = vpop.f32.mrb[0].mxu0
  %942 = vmatprep.mubr.bf16.mxu0 %v394
  %943 = vmatmul.mubr.bf16.gmra.mrb[0].mxu0 %v393
  %v944 = vpop.f32.mrb[0].mxu0
  %v945 = vadd.f32 %v808, %v944
  %v946 = vpop.f32.mrb[0].mxu0
  %v947 = vpop.f32.mrb[0].mxu0
  %v948 = vadd.f32 %v811, %v947
  %v949 = vpop.f32.mrb[0].mxu0
  %950 = vmatprep.mubr.bf16.mxu0 %v399
  %951 = vmatmul.mubr.bf16.gmra.mrb[0].mxu0 %v398
  %v952 = vpop.f32.mrb[0].mxu0
  %v953 = vadd.f32 %v816, %v952
  %v954 = vpop.f32.mrb[0].mxu0
  %v955 = vpop.f32.mrb[0].mxu0
  %v956 = vadd.f32 %v819, %v955
  %v957 = vpop.f32.mrb[0].mxu0
  %958 = vmatprep.mubr.bf16.mxu0 %v404
  %959 = vmatmul.mubr.bf16.gmra.mrb[0].mxu0 %v403
  %v960 = vpop.f32.mrb[0].mxu0
  %v961 = vadd.f32 %v824, %v960
  %v962 = vpop.f32.mrb[0].mxu0
  %v963 = vpop.f32.mrb[0].mxu0
  %v964 = vadd.f32 %v827, %v963
  %v965 = vpop.f32.mrb[0].mxu0
  %966 = vmatprep.mubr.bf16.mxu0 %v409
  %967 = vmatmul.mubr.bf16.gmra.mrb[0].mxu0 %v408
  %v968 = vpop.f32.mrb[0].mxu0
  %v969 = vadd.f32 %v832, %v968
  %v970 = vpop.f32.mrb[0].mxu0
  %v971 = vpop.f32.mrb[0].mxu0
  %v972 = vadd.f32 %v835, %v971
  %v973 = vpop.f32.mrb[0].mxu0
  %974 = vmatprep.mubr.bf16.mxu0 %v414
  %975 = vmatmul.mubr.bf16.gmra.mrb[0].mxu0 %v413
  %v976 = vpop.f32.mrb[0].mxu0
  %v977 = vadd.f32 %v840, %v976
  %v978 = vpop.f32.mrb[0].mxu0
  %v979 = vpop.f32.mrb[0].mxu0
  %v980 = vadd.f32 %v843, %v979
  %v981 = vpop.f32.mrb[0].mxu0
  %982 = vmatprep.mubr.bf16.mxu0 %v419
  %983 = vmatmul.mubr.bf16.gmra.mrb[0].mxu0 %v418
  %v984 = vpop.f32.mrb[0].mxu0
  %v985 = vadd.f32 %v848, %v984
  %v986 = vpop.f32.mrb[0].mxu0
  %v987 = vpop.f32.mrb[0].mxu0
  %v988 = vadd.f32 %v851, %v987
  %v989 = vpop.f32.mrb[0].mxu0
  %990 = vmatprep.mubr.bf16.mxu0 %v424
  %991 = vmatmul.mubr.bf16.gmra.mrb[0].mxu0 %v423
  %v992 = vpop.f32.mrb[0].mxu0
  %v993 = vadd.f32 %v856, %v992
  %v994 = vpop.f32.mrb[0].mxu0
  %v995 = vpop.f32.mrb[0].mxu0
  %v996 = vadd.f32 %v859, %v995
  %v997 = vpop.f32.mrb[0].mxu0
  %998 = vmatprep.mubr.bf16.mxu0 %v429
  %999 = vmatmul.mubr.bf16.gmra.mrb[0].mxu0 %v428
  %v1000 = vpop.f32.mrb[0].mxu0
  %v1001 = vadd.f32 %v864, %v1000
  %v1002 = vpop.f32.mrb[0].mxu0
  %v1003 = vpop.f32.mrb[0].mxu0
  %v1004 = vadd.f32 %v867, %v1003
  %v1005 = vpop.f32.mrb[0].mxu0
  %1006 = vmatprep.mubr.bf16.mxu0 %v434
  %1007 = vmatmul.mubr.bf16.gmra.mrb[0].mxu0 %v433
  %v1008 = vpop.f32.mrb[0].mxu0
  %v1009 = vadd.f32 %v872, %v1008
  %v1010 = vpop.f32.mrb[0].mxu0
  %v1011 = vpop.f32.mrb[0].mxu0
  %v1012 = vadd.f32 %v875, %v1011
  %v1013 = vpop.f32.mrb[0].mxu0
  %1014 = vmatprep.mubr.bf16.mxu0 %v439
  %1015 = vmatmul.mubr.bf16.gmra.mrb[0].mxu0 %v438
  %v1016 = vpop.f32.mrb[0].mxu0
  %v1017 = vadd.f32 %v880, %v1016
  %v1018 = vpop.f32.mrb[0].mxu0
  %v1019 = vpop.f32.mrb[0].mxu0
  %v1020 = vadd.f32 %v883, %v1019
  %v1021 = vpop.f32.mrb[0].mxu0
  %1022 = vdwg.mxu0
  %1023 = vmatprep.subr.bf16.mxu0 0
  %1024 = vmatpush1.bf16.msra.mxu0 %v669
  %1025 = vmatprep.subr.bf16.mxu0 0
  %1026 = vmatpush1.bf16.msra.mxu0 %v670
  %1027 = vmatprep.subr.bf16.mxu0 0
  %1028 = vmatpush1.bf16.msra.mxu0 %v671
  %1029 = vmatprep.subr.bf16.mxu0 0
  %1030 = vmatpush1.bf16.msra.mxu0 %v672
  %1031 = vmatprep.subr.bf16.mxu0 0
  %1032 = vmatpush1.bf16.msra.mxu0 0
  %1033 = vmatprep.subr.bf16.mxu0 0
  %1034 = vmatpush1.bf16.msra.mxu0 0
  %1035 = vmatprep.subr.bf16.mxu0 0
  %1036 = vmatpush1.bf16.msra.mxu0 0
  %1037 = vmatprep.subr.bf16.mxu0 0
  %1038 = vmatpush1.bf16.msra.mxu0 0
  %1039 = vmatprep.subr.bf16.mxu0 0
  %1040 = vmatpush1.bf16.msra.mxu0 0
  %1041 = vmatprep.subr.bf16.mxu0 0
  %1042 = vmatpush1.bf16.msra.mxu0 0
  %1043 = vmatprep.subr.bf16.mxu0 0
  %1044 = vmatpush1.bf16.msra.mxu0 0
  %1045 = vmatprep.subr.bf16.mxu0 0
  %1046 = vmatpush1.bf16.msra.mxu0 0
  %1047 = vmatprep.subr.bf16.mxu0 0
  %1048 = vmatpush1.bf16.msra.mxu0 0
  %1049 = vmatprep.subr.bf16.mxu0 0
  %1050 = vmatpush1.bf16.msra.mxu0 0
  %1051 = vmatprep.subr.bf16.mxu0 0
  %1052 = vmatpush1.bf16.msra.mxu0 0
  %1053 = vmatprep.subr.bf16.mxu0 0
  %1054 = vmatpush1.bf16.msra.mxu0 0
  %1055 = vmatprep.mubr.bf16.mxu0 0
  %1056 = vmatmul.mubr.bf16.gmra.mrb[0].mxu0 %v711
  %v1057 = vpop.f32.mrb[0].mxu0
  %v1058 = vadd.f32 %v921, %v1057
  %v1059 = vpop.f32.mrb[0].mxu0
  %v1060 = vpop.f32.mrb[0].mxu0
  %v1061 = vadd.f32 %v924, %v1060
  %v1062 = vpop.f32.mrb[0].mxu0
  %1063 = vmatprep.mubr.bf16.mxu0 0
  %1064 = vmatmul.mubr.bf16.gmra.mrb[0].mxu0 %v714
  %v1065 = vpop.f32.mrb[0].mxu0
  %v1066 = vadd.f32 %v929, %v1065
  %v1067 = vpop.f32.mrb[0].mxu0
  %v1068 = vpop.f32.mrb[0].mxu0
  %v1069 = vadd.f32 %v932, %v1068
  %v1070 = vpop.f32.mrb[0].mxu0
  %1071 = vmatprep.mubr.bf16.mxu0 0
  %1072 = vmatmul.mubr.bf16.gmra.mrb[0].mxu0 %v717
  %v1073 = vpop.f32.mrb[0].mxu0
  %v1074 = vadd.f32 %v937, %v1073
  %v1075 = vpop.f32.mrb[0].mxu0
  %v1076 = vpop.f32.mrb[0].mxu0
  %v1077 = vadd.f32 %v940, %v1076
  %v1078 = vpop.f32.mrb[0].mxu0
  %1079 = vmatprep.mubr.bf16.mxu0 0
  %1080 = vmatmul.mubr.bf16.gmra.mrb[0].mxu0 %v720
  %v1081 = vpop.f32.mrb[0].mxu0
  %v1082 = vadd.f32 %v945, %v1081
  %v1083 = vpop.f32.mrb[0].mxu0
  %v1084 = vpop.f32.mrb[0].mxu0
  %v1085 = vadd.f32 %v948, %v1084
  %v1086 = vpop.f32.mrb[0].mxu0
  %1087 = vmatprep.mubr.bf16.mxu0 0
  %1088 = vmatmul.mubr.bf16.gmra.mrb[0].mxu0 %v723
  %v1089 = vpop.f32.mrb[0].mxu0
  %v1090 = vadd.f32 %v953, %v1089
  %v1091 = vpop.f32.mrb[0].mxu0
  %v1092 = vpop.f32.mrb[0].mxu0
  %v1093 = vadd.f32 %v956, %v1092
  %v1094 = vpop.f32.mrb[0].mxu0
  %1095 = vmatprep.mubr.bf16.mxu0 0
  %1096 = vmatmul.mubr.bf16.gmra.mrb[0].mxu0 %v726
  %v1097 = vpop.f32.mrb[0].mxu0
  %v1098 = vadd.f32 %v961, %v1097
  %v1099 = vpop.f32.mrb[0].mxu0
  %v1100 = vpop.f32.mrb[0].mxu0
  %v1101 = vadd.f32 %v964, %v1100
  %v1102 = vpop.f32.mrb[0].mxu0
  %1103 = vmatprep.mubr.bf16.mxu0 0
  %1104 = vmatmul.mubr.bf16.gmra.mrb[0].mxu0 %v729
  %v1105 = vpop.f32.mrb[0].mxu0
  %v1106 = vadd.f32 %v969, %v1105
  %v1107 = vpop.f32.mrb[0].mxu0
  %v1108 = vpop.f32.mrb[0].mxu0
  %v1109 = vadd.f32 %v972, %v1108
  %v1110 = vpop.f32.mrb[0].mxu0
  %1111 = vmatprep.mubr.bf16.mxu0 0
  %1112 = vmatmul.mubr.bf16.gmra.mrb[0].mxu0 %v732
  %v1113 = vpop.f32.mrb[0].mxu0
  %v1114 = vadd.f32 %v977, %v1113
  %v1115 = vpop.f32.mrb[0].mxu0
  %v1116 = vpop.f32.mrb[0].mxu0
  %v1117 = vadd.f32 %v980, %v1116
  %v1118 = vpop.f32.mrb[0].mxu0
  %1119 = vmatprep.mubr.bf16.mxu0 0
  %1120 = vmatmul.mubr.bf16.gmra.mrb[0].mxu0 %v735
  %v1121 = vpop.f32.mrb[0].mxu0
  %v1122 = vadd.f32 %v985, %v1121
  %v1123 = vpop.f32.mrb[0].mxu0
  %v1124 = vpop.f32.mrb[0].mxu0
  %v1125 = vadd.f32 %v988, %v1124
  %v1126 = vpop.f32.mrb[0].mxu0
  %1127 = vmatprep.mubr.bf16.mxu0 0
  %1128 = vmatmul.mubr.bf16.gmra.mrb[0].mxu0 %v738
  %v1129 = vpop.f32.mrb[0].mxu0
  %v1130 = vadd.f32 %v993, %v1129
  %v1131 = vpop.f32.mrb[0].mxu0
  %v1132 = vpop.f32.mrb[0].mxu0
  %v1133 = vadd.f32 %v996, %v1132
  %v1134 = vpop.f32.mrb[0].mxu0
  %1135 = vmatprep.mubr.bf16.mxu0 0
  %1136 = vmatmul.mubr.bf16.gmra.mrb[0].mxu0 %v741
  %v1137 = vpop.f32.mrb[0].mxu0
  %v1138 = vadd.f32 %v1001, %v1137
  %v1139 = vpop.f32.mrb[0].mxu0
  %v1140 = vpop.f32.mrb[0].mxu0
  %v1141 = vadd.f32 %v1004, %v1140
  %v1142 = vpop.f32.mrb[0].mxu0
  %1143 = vmatprep.mubr.bf16.mxu0 0
  %1144 = vmatmul.mubr.bf16.gmra.mrb[0].mxu0 %v744
  %v1145 = vpop.f32.mrb[0].mxu0
  %v1146 = vadd.f32 %v1009, %v1145
  %v1147 = vpop.f32.mrb[0].mxu0
  %v1148 = vpop.f32.mrb[0].mxu0
  %v1149 = vadd.f32 %v1012, %v1148
  %v1150 = vpop.f32.mrb[0].mxu0
  %1151 = vmatprep.mubr.bf16.mxu0 0
  %1152 = vmatmul.mubr.bf16.gmra.mrb[0].mxu0 %v747
  %v1153 = vpop.f32.mrb[0].mxu0
  %v1154 = vadd.f32 %v1017, %v1153
  %v1155 = vpop.f32.mrb[0].mxu0
  %v1156 = vpop.f32.mrb[0].mxu0
  %v1157 = vadd.f32 %v1020, %v1156
  %v1158 = vpop.f32.mrb[0].mxu0
  %1159 = vdwg.mxu0
  %v1160 = vld [vmem:[%s2] sm:$0x1]
  %v1162 = vlaneseq
  %v1163 = vshrl.u32 %v1162, 7
  %v1164 = vsub.s32 0, %v1163
  %v1165 = vrot.slane %v1160, %v1164
  %v1167 = vmul.f32 %v1058, %v1165
  %v1168 = vmul.f32 %v1061, %v1165
  %v1169 = vmul.f32 %v1066, %v1165
  %v1170 = vmul.f32 %v1069, %v1165
  %v1171 = vmul.f32 %v1074, %v1165
  %v1172 = vmul.f32 %v1077, %v1165
  %v1173 = vmul.f32 %v1082, %v1165
  %v1174 = vmul.f32 %v1085, %v1165
  %v1175 = vmul.f32 %v1090, %v1165
  %v1176 = vmul.f32 %v1093, %v1165
  %v1177 = vmul.f32 %v1098, %v1165
  %v1178 = vmul.f32 %v1101, %v1165
  %v1179 = vmul.f32 %v1106, %v1165
  %v1180 = vmul.f32 %v1109, %v1165
  %v1181 = vmul.f32 %v1114, %v1165
  %v1182 = vmul.f32 %v1117, %v1165
  %v1183 = vmul.f32 %v1122, %v1165
  %v1184 = vmul.f32 %v1125, %v1165
  %v1185 = vmul.f32 %v1130, %v1165
  %v1186 = vmul.f32 %v1133, %v1165
  %v1187 = vmul.f32 %v1138, %v1165
  %v1188 = vmul.f32 %v1141, %v1165
  %v1189 = vmul.f32 %v1146, %v1165
  %v1190 = vmul.f32 %v1149, %v1165
  %v1191 = vmul.f32 %v1154, %v1165
  %v1192 = vmul.f32 %v1157, %v1165
  %v1193 = vld [vmem:[%s3] sm:$0x1]
  %v1195 = vlaneseq
  %v1196 = vshrl.u32 %v1195, 7
  %v1197 = vsub.s32 0, %v1196
  %v1198 = vrot.slane %v1193, %v1197
  %v1200 = vadd.f32 %v1167, %v1198
  %v1201 = vadd.f32 %v1168, %v1198
  %v1202 = vadd.f32 %v1169, %v1198
  %v1203 = vadd.f32 %v1170, %v1198
  %v1204 = vadd.f32 %v1171, %v1198
  %v1205 = vadd.f32 %v1172, %v1198
  %v1206 = vadd.f32 %v1173, %v1198
  %v1207 = vadd.f32 %v1174, %v1198
  %v1208 = vadd.f32 %v1175, %v1198
  %v1209 = vadd.f32 %v1176, %v1198
  %v1210 = vadd.f32 %v1177, %v1198
  %v1211 = vadd.f32 %v1178, %v1198
  %v1212 = vadd.f32 %v1179, %v1198
  %v1213 = vadd.f32 %v1180, %v1198
  %v1214 = vadd.f32 %v1181, %v1198
  %v1215 = vadd.f32 %v1182, %v1198
  %v1216 = vadd.f32 %v1183, %v1198
  %v1217 = vadd.f32 %v1184, %v1198
  %v1218 = vadd.f32 %v1185, %v1198
  %v1219 = vadd.f32 %v1186, %v1198
  %v1220 = vadd.f32 %v1187, %v1198
  %v1221 = vadd.f32 %v1188, %v1198
  %v1222 = vadd.f32 %v1189, %v1198
  %v1223 = vadd.f32 %v1190, %v1198
  %v1224 = vadd.f32 %v1191, %v1198
  %v1225 = vadd.f32 %v1192, %v1198
  %v1226 = vmax.f32 %v1200, 0.0
  %v1227 = vmax.f32 %v1201, 0.0
  %v1228 = vmax.f32 %v1202, 0.0
  %v1229 = vmax.f32 %v1203, 0.0
  %v1230 = vmax.f32 %v1204, 0.0
  %v1231 = vmax.f32 %v1205, 0.0
  %v1232 = vmax.f32 %v1206, 0.0
  %v1233 = vmax.f32 %v1207, 0.0
  %v1234 = vmax.f32 %v1208, 0.0
  %v1235 = vmax.f32 %v1209, 0.0
  %v1236 = vmax.f32 %v1210, 0.0
  %v1237 = vmax.f32 %v1211, 0.0
  %v1238 = vmax.f32 %v1212, 0.0
  %v1239 = vmax.f32 %v1213, 0.0
  %v1240 = vmax.f32 %v1214, 0.0
  %v1241 = vmax.f32 %v1215, 0.0
  %v1242 = vmax.f32 %v1216, 0.0
  %v1243 = vmax.f32 %v1217, 0.0
  %v1244 = vmax.f32 %v1218, 0.0
  %v1245 = vmax.f32 %v1219, 0.0
  %v1246 = vmax.f32 %v1220, 0.0
  %v1247 = vmax.f32 %v1221, 0.0
  %v1248 = vmax.f32 %v1222, 0.0
  %v1249 = vmax.f32 %v1223, 0.0
  %v1250 = vmax.f32 %v1224, 0.0
  %v1251 = vmax.f32 %v1225, 0.0
  %v1252 = vpack.c.bf16 %v1227, %v1226
  %v1253 = vpack.c.bf16 %v1229, %v1228
  %v1254 = vpack.c.bf16 %v1231, %v1230
  %v1255 = vpack.c.bf16 %v1233, %v1232
  %v1256 = vpack.c.bf16 %v1235, %v1234
  %v1257 = vpack.c.bf16 %v1237, %v1236
  %v1258 = vpack.c.bf16 %v1239, %v1238
  %v1259 = vpack.c.bf16 %v1241, %v1240
  %v1260 = vpack.c.bf16 %v1243, %v1242
  %v1261 = vpack.c.bf16 %v1245, %v1244
  %v1262 = vpack.c.bf16 %v1247, %v1246
  %v1263 = vpack.c.bf16 %v1249, %v1248
  %v1264 = vpack.c.bf16 %v1251, %v1250
  %v1278 = vunpack.c.l.b16 %v1252
  %v1279 = vunpack.c.h.b16 %v1252
  %v1280 = vunpack.c.l.b16 %v1253
  %v1281 = vunpack.c.h.b16 %v1253
  %v1282 = vunpack.c.l.b16 %v1254
  %v1283 = vunpack.c.h.b16 %v1254
  %v1284 = vunpack.c.l.b16 %v1255
  %v1285 = vunpack.c.h.b16 %v1255
  %v1286 = vunpack.c.l.b16 %v1256
  %v1287 = vunpack.c.h.b16 %v1256
  %v1288 = vunpack.c.l.b16 %v1257
  %v1289 = vunpack.c.h.b16 %v1257
  %v1290 = vunpack.c.l.b16 %v1258
  %v1291 = vunpack.c.h.b16 %v1258
  %v1292 = vunpack.c.l.b16 %v1259
  %v1293 = vunpack.c.h.b16 %v1259
  %v1294 = vunpack.c.l.b16 %v1260
  %v1295 = vunpack.c.h.b16 %v1260
  %v1296 = vunpack.c.l.b16 %v1261
  %v1297 = vunpack.c.h.b16 %v1261
  %v1298 = vunpack.c.l.b16 %v1262
  %v1299 = vunpack.c.h.b16 %v1262
  %v1300 = vunpack.c.l.b16 %v1263
  %v1301 = vunpack.c.h.b16 %v1263
  %v1302 = vunpack.c.l.b16 %v1264
  %v1303 = vunpack.c.h.b16 %v1264
  %v1304 = vpack.c.b16 %v1278, %v1278
  %v1305 = vpack.c.b16 %v1279, %v1279
  %v1306 = vpack.c.b16 %v1280, %v1280
  %v1307 = vpack.c.b16 %v1281, %v1281
  %v1308 = vpack.c.b16 %v1282, %v1282
  %v1309 = vpack.c.b16 %v1283, %v1283
  %v1310 = vpack.c.b16 %v1284, %v1284
  %v1311 = vpack.c.b16 %v1285, %v1285
  %v1312 = vpack.c.b16 %v1286, %v1286
  %v1313 = vpack.c.b16 %v1287, %v1287
  %v1314 = vpack.c.b16 %v1288, %v1288
  %v1315 = vpack.c.b16 %v1289, %v1289
  %v1316 = vpack.c.b16 %v1290, %v1290
  %v1317 = vpack.c.b16 %v1291, %v1291
  %v1318 = vpack.c.b16 %v1292, %v1292
  %v1319 = vpack.c.b16 %v1293, %v1293
  %v1320 = vpack.c.b16 %v1294, %v1294
  %v1321 = vpack.c.b16 %v1295, %v1295
  %v1322 = vpack.c.b16 %v1296, %v1296
  %v1323 = vpack.c.b16 %v1297, %v1297
  %v1324 = vpack.c.b16 %v1298, %v1298
  %v1325 = vpack.c.b16 %v1299, %v1299
  %v1326 = vpack.c.b16 %v1300, %v1300
  %v1327 = vpack.c.b16 %v1301, %v1301
  %v1328 = vpack.c.b16 %v1302, %v1302
  %v1329 = vpack.c.b16 %v1303, %v1303
  %vm1356 = vcmask 519168
  %1357 = vst.msk [vmem:[%s4] sm:$0xf] %vm1356, %v1304
  %1358 = vst.msk [vmem:[%s4 + $0x4] sm:$0xf] %vm1356, %v1305
  %1359 = vst.msk [vmem:[%s4 + $0x8] sm:$0xf] %vm1356, %v1306
  %1360 = vst.msk [vmem:[%s4 + $0xc] sm:$0xf] %vm1356, %v1307
  %1361 = vst.msk [vmem:[%s4 + $0x10] sm:$0xf] %vm1356, %v1308
  %1362 = vst.msk [vmem:[%s4 + $0x14] sm:$0xf] %vm1356, %v1309
  %1363 = vst.msk [vmem:[%s4 + $0x18] sm:$0xf] %vm1356, %v1310
  %1364 = vst.msk [vmem:[%s4 + $0x1c] sm:$0xf] %vm1356, %v1311
  %1365 = vst.msk [vmem:[%s4 + $0x20] sm:$0xf] %vm1356, %v1312
  %1366 = vst.msk [vmem:[%s4 + $0x24] sm:$0xf] %vm1356, %v1313
  %1367 = vst.msk [vmem:[%s4 + $0x28] sm:$0xf] %vm1356, %v1314
  %1368 = vst.msk [vmem:[%s4 + $0x2c] sm:$0xf] %vm1356, %v1315
  %1369 = vst.msk [vmem:[%s4 + $0x30] sm:$0xf] %vm1356, %v1316
  %1370 = vst.msk [vmem:[%s4 + $0x34] sm:$0xf] %vm1356, %v1317
  %1371 = vst.msk [vmem:[%s4 + $0x38] sm:$0xf] %vm1356, %v1318
  %1372 = vst.msk [vmem:[%s4 + $0x3c] sm:$0xf] %vm1356, %v1319
  %1373 = vst.msk [vmem:[%s4 + $0x40] sm:$0xf] %vm1356, %v1320
  %1374 = vst.msk [vmem:[%s4 + $0x44] sm:$0xf] %vm1356, %v1321
  %1375 = vst.msk [vmem:[%s4 + $0x48] sm:$0xf] %vm1356, %v1322
  %1376 = vst.msk [vmem:[%s4 + $0x4c] sm:$0xf] %vm1356, %v1323
  %1377 = vst.msk [vmem:[%s4 + $0x50] sm:$0xf] %vm1356, %v1324
  %1378 = vst.msk [vmem:[%s4 + $0x54] sm:$0xf] %vm1356, %v1325
  %1379 = vst.msk [vmem:[%s4 + $0x58] sm:$0xf] %vm1356, %v1326
  %1380 = vst.msk [vmem:[%s4 + $0x5c] sm:$0xf] %vm1356, %v1327
  %1381 = vst.msk [vmem:[%s4 + $0x60] sm:$0xf] %vm1356, %v1328
  %1382 = vst.msk [vmem:[%s4 + $0x64] sm:$0xf] %vm1356, %v1329
  // Predicated region
  $region18: #{_lambda_.9} parent=0 // pred_check
    _
  $region19: #{_lambda_.9} parent=0 // pred_check_branch
    %1384 = sbr.rel (0) target = $region21
  $region20: #{_lambda_.9} parent=0 // pred_region
    _
  $region21: #{_lambda_.9} parent=0 // pred_fallthru
    _
  // Predicated region
  $region22: #{_lambda_.9} parent=0 // pred_check
    _
  $region23: #{_lambda_.9} parent=0 // pred_check_branch
    %1386 = sbr.rel (0) target = $region25
  $region24: #{_lambda_.9} parent=0 // pred_region
    _
  $region25: #{_lambda_.9} parent=0 // pred_fallthru
    _

// kernel: _lambda_.10
$region0: #{_lambda_.10}
  #allocation0 [shape = 'u32[]', space=smem, size = 0x4, offset = 0x4, fixed_abs, tag = 'smem constant byte address 0x4 - core index']
  #allocation1 [shape = 'u32[144,128]{1,0:T(1,128)}', space=vmem, size = 0x12000, scoped, tag = 'internal scratch']
  %s0 = inlined_call_operand.vmem [shape: bf16[4,64,576], index: 0, kind: input, shape index: {}]
  %s1 = inlined_call_operand.vmem [shape: bf16[576,64], index: 1, kind: input, shape index: {}]
  %s2 = inlined_call_operand.vmem [shape: f32[1,64], index: 2, kind: input, shape index: {}]
  %s3 = inlined_call_operand.vmem [shape: f32[1,64], index: 3, kind: input, shape index: {}]
  %s4 = inlined_call_operand.vmem [shape: bf16[64,64], index: 4, kind: output, shape index: {}]
  %s5 = sld [smem:[#allocation0]]
  $region26: #{_lambda_.10} parent=0
    _
  %s7 = ssub.s32 1, %s5
  %s8 = scalar_select 0, %s7, %s5
  // Predicated region
  $region2: #{_lambda_.10} parent=0 // pred_check
    _
  $region3: #{_lambda_.10} parent=0 // pred_check_branch
    %10 = sbr.rel (0) target = $region5
  $region4: #{_lambda_.10} parent=0 // pred_region
    _
  $region5: #{_lambda_.10} parent=0 // pred_fallthru
    _
  // Predicated region
  $region6: #{_lambda_.10} parent=0 // pred_check
    _
  $region7: #{_lambda_.10} parent=0 // pred_check_branch
    %12 = sbr.rel (0) target = $region9
  $region8: #{_lambda_.10} parent=0 // pred_region
    _
  $region9: #{_lambda_.10} parent=0 // pred_fallthru
    _
  // Predicated region
  $region10: #{_lambda_.10} parent=0 // pred_check
    _
  $region11: #{_lambda_.10} parent=0 // pred_check_branch
    %14 = sbr.rel (0) target = $region13
  $region12: #{_lambda_.10} parent=0 // pred_region
    _
  $region13: #{_lambda_.10} parent=0 // pred_fallthru
    _
  // Predicated region
  $region14: #{_lambda_.10} parent=0 // pred_check
    _
  $region15: #{_lambda_.10} parent=0 // pred_check_branch
    %16 = sbr.rel (0) target = $region17
  $region16: #{_lambda_.10} parent=0 // pred_region
    _
  $region17: #{_lambda_.10} parent=0 // pred_fallthru
    _
  %v18 = vld [vmem:[%s1] sm:$0xf]
  %v19 = vld [vmem:[%s1 + $0x4] sm:$0xf]
  %v20 = vld [vmem:[%s1 + $0x8] sm:$0xf]
  %v21 = vld [vmem:[%s1 + $0xc] sm:$0xf]
  %v22 = vld [vmem:[%s1 + $0x10] sm:$0xf]
  %v23 = vld [vmem:[%s1 + $0x14] sm:$0xf]
  %v24 = vld [vmem:[%s1 + $0x18] sm:$0xf]
  %v25 = vld [vmem:[%s1 + $0x1c] sm:$0xf]
  %v26 = vld [vmem:[%s1 + $0x20] sm:$0xf]
  %v27 = vld [vmem:[%s1 + $0x24] sm:$0xf]
  %v28 = vld [vmem:[%s1 + $0x28] sm:$0xf]
  %v29 = vld [vmem:[%s1 + $0x2c] sm:$0xf]
  %v30 = vld [vmem:[%s1 + $0x30] sm:$0xf]
  %v31 = vld [vmem:[%s1 + $0x34] sm:$0xf]
  %v32 = vld [vmem:[%s1 + $0x38] sm:$0xf]
  %v33 = vld [vmem:[%s1 + $0x3c] sm:$0xf]
  %v34 = vld [vmem:[%s1 + $0x40] sm:$0xf]
  %v35 = vld [vmem:[%s1 + $0x44] sm:$0xf]
  %v36 = vld [vmem:[%s1 + $0x48] sm:$0xf]
  %v37 = vld [vmem:[%s1 + $0x4c] sm:$0xf]
  %v38 = vld [vmem:[%s1 + $0x50] sm:$0xf]
  %v39 = vld [vmem:[%s1 + $0x54] sm:$0xf]
  %v40 = vld [vmem:[%s1 + $0x58] sm:$0xf]
  %v41 = vld [vmem:[%s1 + $0x5c] sm:$0xf]
  %v42 = vld [vmem:[%s1 + $0x60] sm:$0xf]
  %v43 = vld [vmem:[%s1 + $0x64] sm:$0xf]
  %v44 = vld [vmem:[%s1 + $0x68] sm:$0xf]
  %v45 = vld [vmem:[%s1 + $0x6c] sm:$0xf]
  %v46 = vld [vmem:[%s1 + $0x70] sm:$0xf]
  %v47 = vld [vmem:[%s1 + $0x74] sm:$0xf]
  %v48 = vld [vmem:[%s1 + $0x78] sm:$0xf]
  %v49 = vld [vmem:[%s1 + $0x7c] sm:$0xf]
  %v50 = vld [vmem:[%s1 + $0x80] sm:$0xf]
  %v51 = vld [vmem:[%s1 + $0x84] sm:$0xf]
  %v52 = vld [vmem:[%s1 + $0x88] sm:$0xf]
  %v53 = vld [vmem:[%s1 + $0x8c] sm:$0xf]
  %v54 = vld [vmem:[%s1 + $0x90] sm:$0xf]
  %v55 = vld [vmem:[%s1 + $0x94] sm:$0xf]
  %v56 = vld [vmem:[%s1 + $0x98] sm:$0xf]
  %v57 = vld [vmem:[%s1 + $0x9c] sm:$0xf]
  %v58 = vld [vmem:[%s1 + $0xa0] sm:$0xf]
  %v59 = vld [vmem:[%s1 + $0xa4] sm:$0xf]
  %v60 = vld [vmem:[%s1 + $0xa8] sm:$0xf]
  %v61 = vld [vmem:[%s1 + $0xac] sm:$0xf]
  %v62 = vld [vmem:[%s1 + $0xb0] sm:$0xf]
  %v63 = vld [vmem:[%s1 + $0xb4] sm:$0xf]
  %v64 = vld [vmem:[%s1 + $0xb8] sm:$0xf]
  %v65 = vld [vmem:[%s1 + $0xbc] sm:$0xf]
  %v66 = vld [vmem:[%s1 + $0xc0] sm:$0xf]
  %v67 = vld [vmem:[%s1 + $0xc4] sm:$0xf]
  %v68 = vld [vmem:[%s1 + $0xc8] sm:$0xf]
  %v69 = vld [vmem:[%s1 + $0xcc] sm:$0xf]
  %v70 = vld [vmem:[%s1 + $0xd0] sm:$0xf]
  %v71 = vld [vmem:[%s1 + $0xd4] sm:$0xf]
  %v72 = vld [vmem:[%s1 + $0xd8] sm:$0xf]
  %v73 = vld [vmem:[%s1 + $0xdc] sm:$0xf]
  %v74 = vld [vmem:[%s1 + $0xe0] sm:$0xf]
  %v75 = vld [vmem:[%s1 + $0xe4] sm:$0xf]
  %v76 = vld [vmem:[%s1 + $0xe8] sm:$0xf]
  %v77 = vld [vmem:[%s1 + $0xec] sm:$0xf]
  %v78 = vld [vmem:[%s1 + $0xf0] sm:$0xf]
  %v79 = vld [vmem:[%s1 + $0xf4] sm:$0xf]
  %v80 = vld [vmem:[%s1 + $0xf8] sm:$0xf]
  %v81 = vld [vmem:[%s1 + $0xfc] sm:$0xf]
  %v82 = vld [vmem:[%s1 + $0x100] sm:$0xf]
  %v83 = vld [vmem:[%s1 + $0x104] sm:$0xf]
  %v84 = vld [vmem:[%s1 + $0x108] sm:$0xf]
  %v85 = vld [vmem:[%s1 + $0x10c] sm:$0xf]
  %v86 = vld [vmem:[%s1 + $0x110] sm:$0xf]
  %v87 = vld [vmem:[%s1 + $0x114] sm:$0xf]
  %v88 = vld [vmem:[%s1 + $0x118] sm:$0xf]
  %v89 = vld [vmem:[%s1 + $0x11c] sm:$0xf]
  %v90 = vld [vmem:[%s2] sm:$0x1]
  %v91 = vld [vmem:[%s3] sm:$0x1]
  %v92 = vld [vmem:[%s0] sm:$0xff]
  %v93 = vld [vmem:[%s0 + $0x8] sm:$0xff]
  %v94 = vld [vmem:[%s0 + $0x10] sm:$0xf]
  %v95 = vld [vmem:[%s0 + $0x14] sm:$0xff]
  %v96 = vld [vmem:[%s0 + $0x1c] sm:$0xff]
  %v97 = vld [vmem:[%s0 + $0x24] sm:$0xf]
  %v98 = vld [vmem:[%s0 + $0x28] sm:$0xff]
  %v99 = vld [vmem:[%s0 + $0x30] sm:$0xff]
  %v100 = vld [vmem:[%s0 + $0x38] sm:$0xf]
  %v101 = vld [vmem:[%s0 + $0x3c] sm:$0xff]
  %v102 = vld [vmem:[%s0 + $0x44] sm:$0xff]
  %v103 = vld [vmem:[%s0 + $0x4c] sm:$0xf]
  %v104 = vld [vmem:[%s0 + $0x50] sm:$0xff]
  %v105 = vld [vmem:[%s0 + $0x58] sm:$0xff]
  %v106 = vld [vmem:[%s0 + $0x60] sm:$0xf]
  %v107 = vld [vmem:[%s0 + $0x64] sm:$0xff]
  %v108 = vld [vmem:[%s0 + $0x6c] sm:$0xff]
  %v109 = vld [vmem:[%s0 + $0x74] sm:$0xf]
  %v110 = vld [vmem:[%s0 + $0x78] sm:$0xff]
  %v111 = vld [vmem:[%s0 + $0x80] sm:$0xff]
  %v112 = vld [vmem:[%s0 + $0x88] sm:$0xf]
  %v113 = vld [vmem:[%s0 + $0x8c] sm:$0xff]
  %v114 = vld [vmem:[%s0 + $0x94] sm:$0xff]
  %v115 = vld [vmem:[%s0 + $0x9c] sm:$0xf]
  %v140 = vunpack.c.l.b16 %v92
  %v141 = vunpack.c.h.b16 %v92
  %v142 = vunpack.c.l.b16 %v93
  %v143 = vunpack.c.h.b16 %v93
  %v144 = vunpack.c.l.b16 %v94
  %v145 = vunpack.c.l.b16 %v95
  %v146 = vunpack.c.h.b16 %v95
  %v147 = vunpack.c.l.b16 %v96
  %v148 = vunpack.c.h.b16 %v96
  %v149 = vunpack.c.l.b16 %v97
  %v150 = vunpack.c.l.b16 %v98
  %v151 = vunpack.c.h.b16 %v98
  %v152 = vunpack.c.l.b16 %v99
  %v153 = vunpack.c.h.b16 %v99
  %v154 = vunpack.c.l.b16 %v100
  %v155 = vunpack.c.l.b16 %v101
  %v156 = vunpack.c.h.b16 %v101
  %v157 = vunpack.c.l.b16 %v102
  %v158 = vunpack.c.h.b16 %v102
  %v159 = vunpack.c.l.b16 %v103
  %v160 = vunpack.c.l.b16 %v104
  %v161 = vunpack.c.h.b16 %v104
  %v162 = vunpack.c.l.b16 %v105
  %v163 = vunpack.c.h.b16 %v105
  %v164 = vunpack.c.l.b16 %v106
  %v165 = vunpack.c.l.b16 %v107
  %v166 = vunpack.c.h.b16 %v107
  %v167 = vunpack.c.l.b16 %v108
  %v168 = vunpack.c.h.b16 %v108
  %v169 = vunpack.c.l.b16 %v109
  %v170 = vunpack.c.l.b16 %v110
  %v171 = vunpack.c.h.b16 %v110
  %v172 = vunpack.c.l.b16 %v111
  %v173 = vunpack.c.h.b16 %v111
  %v174 = vunpack.c.l.b16 %v112
  %v175 = vunpack.c.l.b16 %v113
  %v176 = vunpack.c.h.b16 %v113
  %v177 = vunpack.c.l.b16 %v114
  %v178 = vunpack.c.h.b16 %v114
  %v179 = vunpack.c.l.b16 %v115
  %v180 = vpack.c.b16 %v145, %v140
  %v181 = vpack.c.b16 %v146, %v141
  %v182 = vpack.c.b16 %v147, %v142
  %v183 = vpack.c.b16 %v148, %v143
  %v184 = vpack.c.b16 %v149, %v144
  %v185 = vpack.c.b16 %v155, %v150
  %v186 = vpack.c.b16 %v156, %v151
  %v187 = vpack.c.b16 %v157, %v152
  %v188 = vpack.c.b16 %v158, %v153
  %v189 = vpack.c.b16 %v159, %v154
  %v190 = vpack.c.b16 %v165, %v160
  %v191 = vpack.c.b16 %v166, %v161
  %v192 = vpack.c.b16 %v167, %v162
  %v193 = vpack.c.b16 %v168, %v163
  %v194 = vpack.c.b16 %v169, %v164
  %v195 = vpack.c.b16 %v175, %v170
  %v196 = vpack.c.b16 %v176, %v171
  %v197 = vpack.c.b16 %v177, %v172
  %v198 = vpack.c.b16 %v178, %v173
  %v199 = vpack.c.b16 %v179, %v174
  %v288 = vunpack.c.l.b16 %v18
  %v289 = vunpack.c.l.b16 %v19
  %v290 = vunpack.c.l.b16 %v20
  %v291 = vunpack.c.l.b16 %v21
  %v292 = vunpack.c.l.b16 %v22
  %v293 = vunpack.c.l.b16 %v23
  %v294 = vunpack.c.l.b16 %v24
  %v295 = vunpack.c.l.b16 %v25
  %v296 = vunpack.c.l.b16 %v26
  %v297 = vunpack.c.l.b16 %v27
  %v298 = vunpack.c.l.b16 %v28
  %v299 = vunpack.c.l.b16 %v29
  %v300 = vunpack.c.l.b16 %v30
  %v301 = vunpack.c.l.b16 %v31
  %v302 = vunpack.c.l.b16 %v32
  %v303 = vunpack.c.l.b16 %v33
  %v304 = vunpack.c.l.b16 %v34
  %v305 = vunpack.c.l.b16 %v35
  %v306 = vunpack.c.l.b16 %v36
  %v307 = vunpack.c.l.b16 %v37
  %v308 = vunpack.c.l.b16 %v38
  %v309 = vunpack.c.l.b16 %v39
  %v310 = vunpack.c.l.b16 %v40
  %v311 = vunpack.c.l.b16 %v41
  %v312 = vunpack.c.l.b16 %v42
  %v313 = vunpack.c.l.b16 %v43
  %v314 = vunpack.c.l.b16 %v44
  %v315 = vunpack.c.l.b16 %v45
  %v316 = vunpack.c.l.b16 %v46
  %v317 = vunpack.c.l.b16 %v47
  %v318 = vunpack.c.l.b16 %v48
  %v319 = vunpack.c.l.b16 %v49
  %v320 = vunpack.c.l.b16 %v50
  %v321 = vunpack.c.l.b16 %v51
  %v322 = vunpack.c.l.b16 %v52
  %v323 = vunpack.c.l.b16 %v53
  %v324 = vunpack.c.l.b16 %v54
  %v325 = vunpack.c.l.b16 %v55
  %v326 = vunpack.c.l.b16 %v56
  %v327 = vunpack.c.l.b16 %v57
  %v328 = vunpack.c.l.b16 %v58
  %v329 = vunpack.c.l.b16 %v59
  %v330 = vunpack.c.l.b16 %v60
  %v331 = vunpack.c.l.b16 %v61
  %v332 = vunpack.c.l.b16 %v62
  %v333 = vunpack.c.l.b16 %v63
  %v334 = vunpack.c.l.b16 %v64
  %v335 = vunpack.c.l.b16 %v65
  %v336 = vunpack.c.l.b16 %v66
  %v337 = vunpack.c.l.b16 %v67
  %v338 = vunpack.c.l.b16 %v68
  %v339 = vunpack.c.l.b16 %v69
  %v340 = vunpack.c.l.b16 %v70
  %v341 = vunpack.c.l.b16 %v71
  %v342 = vunpack.c.l.b16 %v72
  %v343 = vunpack.c.l.b16 %v73
  %v344 = vunpack.c.l.b16 %v74
  %v345 = vunpack.c.l.b16 %v75
  %v346 = vunpack.c.l.b16 %v76
  %v347 = vunpack.c.l.b16 %v77
  %v348 = vunpack.c.l.b16 %v78
  %v349 = vunpack.c.l.b16 %v79
  %v350 = vunpack.c.l.b16 %v80
  %v351 = vunpack.c.l.b16 %v81
  %v352 = vunpack.c.l.b16 %v82
  %v353 = vunpack.c.l.b16 %v83
  %v354 = vunpack.c.l.b16 %v84
  %v355 = vunpack.c.l.b16 %v85
  %v356 = vunpack.c.l.b16 %v86
  %v357 = vunpack.c.l.b16 %v87
  %v358 = vunpack.c.l.b16 %v88
  %v359 = vunpack.c.l.b16 %v89
  %v360 = vpack.c.b16 %v289, %v288
  %v361 = vpack.c.b16 %v291, %v290
  %v362 = vpack.c.b16 %v293, %v292
  %v363 = vpack.c.b16 %v295, %v294
  %v364 = vpack.c.b16 %v297, %v296
  %v365 = vpack.c.b16 %v299, %v298
  %v366 = vpack.c.b16 %v301, %v300
  %v367 = vpack.c.b16 %v303, %v302
  %v368 = vpack.c.b16 %v305, %v304
  %v369 = vpack.c.b16 %v307, %v306
  %v370 = vpack.c.b16 %v309, %v308
  %v371 = vpack.c.b16 %v311, %v310
  %v372 = vpack.c.b16 %v313, %v312
  %v373 = vpack.c.b16 %v315, %v314
  %v374 = vpack.c.b16 %v317, %v316
  %v375 = vpack.c.b16 %v319, %v318
  %v376 = vpack.c.b16 %v321, %v320
  %v377 = vpack.c.b16 %v323, %v322
  %v378 = vpack.c.b16 %v325, %v324
  %v379 = vpack.c.b16 %v327, %v326
  %v380 = vpack.c.b16 %v329, %v328
  %v381 = vpack.c.b16 %v331, %v330
  %v382 = vpack.c.b16 %v333, %v332
  %v383 = vpack.c.b16 %v335, %v334
  %v384 = vpack.c.b16 %v337, %v336
  %v385 = vpack.c.b16 %v339, %v338
  %v386 = vpack.c.b16 %v341, %v340
  %v387 = vpack.c.b16 %v343, %v342
  %v388 = vpack.c.b16 %v345, %v344
  %v389 = vpack.c.b16 %v347, %v346
  %v390 = vpack.c.b16 %v349, %v348
  %v391 = vpack.c.b16 %v351, %v350
  %v392 = vpack.c.b16 %v353, %v352
  %v393 = vpack.c.b16 %v355, %v354
  %v394 = vpack.c.b16 %v357, %v356
  %v395 = vpack.c.b16 %v359, %v358
  %vm432 = vcmask 523264
  %v434 = vsel %vm432, %v184, 0
  %v437 = vsel %vm432, %v189, 0
  %v440 = vsel %vm432, %v194, 0
  %v443 = vsel %vm432, %v199, 0
  %445 = vmatprep.subr.bf16.mxu0 0
  %446 = vmatpush1.bf16.msra.mxu0 %v360
  %447 = vmatprep.subr.bf16.mxu0 0
  %448 = vmatpush1.bf16.msra.mxu0 %v361
  %449 = vmatprep.subr.bf16.mxu0 0
  %450 = vmatpush1.bf16.msra.mxu0 %v362
  %451 = vmatprep.subr.bf16.mxu0 0
  %452 = vmatpush1.bf16.msra.mxu0 %v363
  %453 = vmatprep.subr.bf16.mxu0 0
  %454 = vmatpush1.bf16.msra.mxu0 %v364
  %455 = vmatprep.subr.bf16.mxu0 0
  %456 = vmatpush1.bf16.msra.mxu0 %v365
  %457 = vmatprep.subr.bf16.mxu0 0
  %458 = vmatpush1.bf16.msra.mxu0 %v366
  %459 = vmatprep.subr.bf16.mxu0 0
  %460 = vmatpush1.bf16.msra.mxu0 %v367
  %461 = vmatprep.subr.bf16.mxu0 0
  %462 = vmatpush1.bf16.msra.mxu0 %v368
  %463 = vmatprep.subr.bf16.mxu0 0
  %464 = vmatpush1.bf16.msra.mxu0 %v369
  %465 = vmatprep.subr.bf16.mxu0 0
  %466 = vmatpush1.bf16.msra.mxu0 %v370
  %467 = vmatprep.subr.bf16.mxu0 0
  %468 = vmatpush1.bf16.msra.mxu0 %v371
  %469 = vmatprep.subr.bf16.mxu0 0
  %470 = vmatpush1.bf16.msra.mxu0 %v372
  %471 = vmatprep.subr.bf16.mxu0 0
  %472 = vmatpush1.bf16.msra.mxu0 %v373
  %473 = vmatprep.subr.bf16.mxu0 0
  %474 = vmatpush1.bf16.msra.mxu0 %v374
  %475 = vmatprep.subr.bf16.mxu0 0
  %476 = vmatpush1.bf16.msra.mxu0 %v375
  %477 = vmatprep.mubr.bf16.mxu0 %v181
  %478 = vmatmul.mubr.bf16.gmra.mrb[0].mxu0 %v180
  %v479 = vpop.f32.mrb[0].mxu0
  %v480 = vadd.f32 0.0, %v479
  %v481 = vpop.f32.mrb[0].mxu0
  %v482 = vpop.f32.mrb[0].mxu0
  %v483 = vadd.f32 0.0, %v482
  %v484 = vpop.f32.mrb[0].mxu0
  %485 = vmatprep.mubr.bf16.mxu0 %v186
  %486 = vmatmul.mubr.bf16.gmra.mrb[0].mxu0 %v185
  %v487 = vpop.f32.mrb[0].mxu0
  %v488 = vadd.f32 0.0, %v487
  %v489 = vpop.f32.mrb[0].mxu0
  %v490 = vpop.f32.mrb[0].mxu0
  %v491 = vadd.f32 0.0, %v490
  %v492 = vpop.f32.mrb[0].mxu0
  %493 = vmatprep.mubr.bf16.mxu0 %v191
  %494 = vmatmul.mubr.bf16.gmra.mrb[0].mxu0 %v190
  %v495 = vpop.f32.mrb[0].mxu0
  %v496 = vadd.f32 0.0, %v495
  %v497 = vpop.f32.mrb[0].mxu0
  %v498 = vpop.f32.mrb[0].mxu0
  %v499 = vadd.f32 0.0, %v498
  %v500 = vpop.f32.mrb[0].mxu0
  %501 = vmatprep.mubr.bf16.mxu0 %v196
  %502 = vmatmul.mubr.bf16.gmra.mrb[0].mxu0 %v195
  %v503 = vpop.f32.mrb[0].mxu0
  %v504 = vadd.f32 0.0, %v503
  %v505 = vpop.f32.mrb[0].mxu0
  %v506 = vpop.f32.mrb[0].mxu0
  %v507 = vadd.f32 0.0, %v506
  %v508 = vpop.f32.mrb[0].mxu0
  %509 = vdwg.mxu0
  %510 = vmatprep.subr.bf16.mxu0 0
  %511 = vmatpush1.bf16.msra.mxu0 %v376
  %512 = vmatprep.subr.bf16.mxu0 0
  %513 = vmatpush1.bf16.msra.mxu0 %v377
  %514 = vmatprep.subr.bf16.mxu0 0
  %515 = vmatpush1.bf16.msra.mxu0 %v378
  %516 = vmatprep.subr.bf16.mxu0 0
  %517 = vmatpush1.bf16.msra.mxu0 %v379
  %518 = vmatprep.subr.bf16.mxu0 0
  %519 = vmatpush1.bf16.msra.mxu0 %v380
  %520 = vmatprep.subr.bf16.mxu0 0
  %521 = vmatpush1.bf16.msra.mxu0 %v381
  %522 = vmatprep.subr.bf16.mxu0 0
  %523 = vmatpush1.bf16.msra.mxu0 %v382
  %524 = vmatprep.subr.bf16.mxu0 0
  %525 = vmatpush1.bf16.msra.mxu0 %v383
  %526 = vmatprep.subr.bf16.mxu0 0
  %527 = vmatpush1.bf16.msra.mxu0 %v384
  %528 = vmatprep.subr.bf16.mxu0 0
  %529 = vmatpush1.bf16.msra.mxu0 %v385
  %530 = vmatprep.subr.bf16.mxu0 0
  %531 = vmatpush1.bf16.msra.mxu0 %v386
  %532 = vmatprep.subr.bf16.mxu0 0
  %533 = vmatpush1.bf16.msra.mxu0 %v387
  %534 = vmatprep.subr.bf16.mxu0 0
  %535 = vmatpush1.bf16.msra.mxu0 %v388
  %536 = vmatprep.subr.bf16.mxu0 0
  %537 = vmatpush1.bf16.msra.mxu0 %v389
  %538 = vmatprep.subr.bf16.mxu0 0
  %539 = vmatpush1.bf16.msra.mxu0 %v390
  %540 = vmatprep.subr.bf16.mxu0 0
  %541 = vmatpush1.bf16.msra.mxu0 %v391
  %542 = vmatprep.mubr.bf16.mxu0 %v183
  %543 = vmatmul.mubr.bf16.gmra.mrb[0].mxu0 %v182
  %v544 = vpop.f32.mrb[0].mxu0
  %v545 = vadd.f32 %v480, %v544
  %v546 = vpop.f32.mrb[0].mxu0
  %v547 = vpop.f32.mrb[0].mxu0
  %v548 = vadd.f32 %v483, %v547
  %v549 = vpop.f32.mrb[0].mxu0
  %550 = vmatprep.mubr.bf16.mxu0 %v188
  %551 = vmatmul.mubr.bf16.gmra.mrb[0].mxu0 %v187
  %v552 = vpop.f32.mrb[0].mxu0
  %v553 = vadd.f32 %v488, %v552
  %v554 = vpop.f32.mrb[0].mxu0
  %v555 = vpop.f32.mrb[0].mxu0
  %v556 = vadd.f32 %v491, %v555
  %v557 = vpop.f32.mrb[0].mxu0
  %558 = vmatprep.mubr.bf16.mxu0 %v193
  %559 = vmatmul.mubr.bf16.gmra.mrb[0].mxu0 %v192
  %v560 = vpop.f32.mrb[0].mxu0
  %v561 = vadd.f32 %v496, %v560
  %v562 = vpop.f32.mrb[0].mxu0
  %v563 = vpop.f32.mrb[0].mxu0
  %v564 = vadd.f32 %v499, %v563
  %v565 = vpop.f32.mrb[0].mxu0
  %566 = vmatprep.mubr.bf16.mxu0 %v198
  %567 = vmatmul.mubr.bf16.gmra.mrb[0].mxu0 %v197
  %v568 = vpop.f32.mrb[0].mxu0
  %v569 = vadd.f32 %v504, %v568
  %v570 = vpop.f32.mrb[0].mxu0
  %v571 = vpop.f32.mrb[0].mxu0
  %v572 = vadd.f32 %v507, %v571
  %v573 = vpop.f32.mrb[0].mxu0
  %574 = vdwg.mxu0
  %575 = vmatprep.subr.bf16.mxu0 0
  %576 = vmatpush1.bf16.msra.mxu0 %v392
  %577 = vmatprep.subr.bf16.mxu0 0
  %578 = vmatpush1.bf16.msra.mxu0 %v393
  %579 = vmatprep.subr.bf16.mxu0 0
  %580 = vmatpush1.bf16.msra.mxu0 %v394
  %581 = vmatprep.subr.bf16.mxu0 0
  %582 = vmatpush1.bf16.msra.mxu0 %v395
  %583 = vmatprep.subr.bf16.mxu0 0
  %584 = vmatpush1.bf16.msra.mxu0 0
  %585 = vmatprep.subr.bf16.mxu0 0
  %586 = vmatpush1.bf16.msra.mxu0 0
  %587 = vmatprep.subr.bf16.mxu0 0
  %588 = vmatpush1.bf16.msra.mxu0 0
  %589 = vmatprep.subr.bf16.mxu0 0
  %590 = vmatpush1.bf16.msra.mxu0 0
  %591 = vmatprep.subr.bf16.mxu0 0
  %592 = vmatpush1.bf16.msra.mxu0 0
  %593 = vmatprep.subr.bf16.mxu0 0
  %594 = vmatpush1.bf16.msra.mxu0 0
  %595 = vmatprep.subr.bf16.mxu0 0
  %596 = vmatpush1.bf16.msra.mxu0 0
  %597 = vmatprep.subr.bf16.mxu0 0
  %598 = vmatpush1.bf16.msra.mxu0 0
  %599 = vmatprep.subr.bf16.mxu0 0
  %600 = vmatpush1.bf16.msra.mxu0 0
  %601 = vmatprep.subr.bf16.mxu0 0
  %602 = vmatpush1.bf16.msra.mxu0 0
  %603 = vmatprep.subr.bf16.mxu0 0
  %604 = vmatpush1.bf16.msra.mxu0 0
  %605 = vmatprep.subr.bf16.mxu0 0
  %606 = vmatpush1.bf16.msra.mxu0 0
  %607 = vmatprep.mubr.bf16.mxu0 0
  %608 = vmatmul.mubr.bf16.gmra.mrb[0].mxu0 %v434
  %v609 = vpop.f32.mrb[0].mxu0
  %v610 = vadd.f32 %v545, %v609
  %v611 = vpop.f32.mrb[0].mxu0
  %v612 = vpop.f32.mrb[0].mxu0
  %v613 = vadd.f32 %v548, %v612
  %v614 = vpop.f32.mrb[0].mxu0
  %615 = vmatprep.mubr.bf16.mxu0 0
  %616 = vmatmul.mubr.bf16.gmra.mrb[0].mxu0 %v437
  %v617 = vpop.f32.mrb[0].mxu0
  %v618 = vadd.f32 %v553, %v617
  %v619 = vpop.f32.mrb[0].mxu0
  %v620 = vpop.f32.mrb[0].mxu0
  %v621 = vadd.f32 %v556, %v620
  %v622 = vpop.f32.mrb[0].mxu0
  %623 = vmatprep.mubr.bf16.mxu0 0
  %624 = vmatmul.mubr.bf16.gmra.mrb[0].mxu0 %v440
  %v625 = vpop.f32.mrb[0].mxu0
  %v626 = vadd.f32 %v561, %v625
  %v627 = vpop.f32.mrb[0].mxu0
  %v628 = vpop.f32.mrb[0].mxu0
  %v629 = vadd.f32 %v564, %v628
  %v630 = vpop.f32.mrb[0].mxu0
  %631 = vmatprep.mubr.bf16.mxu0 0
  %632 = vmatmul.mubr.bf16.gmra.mrb[0].mxu0 %v443
  %v633 = vpop.f32.mrb[0].mxu0
  %v634 = vadd.f32 %v569, %v633
  %v635 = vpop.f32.mrb[0].mxu0
  %v636 = vpop.f32.mrb[0].mxu0
  %v637 = vadd.f32 %v572, %v636
  %v638 = vpop.f32.mrb[0].mxu0
  %639 = vdwg.mxu0
  %v641 = vlaneseq
  %v642 = vshrl.u32 %v641, 7
  %v643 = vsub.s32 0, %v642
  %v644 = vrot.slane %v90, %v643
  %v646 = vmul.f32 %v610, %v644
  %v647 = vmul.f32 %v613, %v644
  %v648 = vmul.f32 %v618, %v644
  %v649 = vmul.f32 %v621, %v644
  %v650 = vmul.f32 %v626, %v644
  %v651 = vmul.f32 %v629, %v644
  %v652 = vmul.f32 %v634, %v644
  %v653 = vmul.f32 %v637, %v644
  %v655 = vlaneseq
  %v656 = vshrl.u32 %v655, 7
  %v657 = vsub.s32 0, %v656
  %v658 = vrot.slane %v91, %v657
  %v660 = vadd.f32 %v646, %v658
  %v661 = vadd.f32 %v647, %v658
  %v662 = vadd.f32 %v648, %v658
  %v663 = vadd.f32 %v649, %v658
  %v664 = vadd.f32 %v650, %v658
  %v665 = vadd.f32 %v651, %v658
  %v666 = vadd.f32 %v652, %v658
  %v667 = vadd.f32 %v653, %v658
  %v668 = vmax.f32 %v660, 0.0
  %v669 = vmax.f32 %v661, 0.0
  %v670 = vmax.f32 %v662, 0.0
  %v671 = vmax.f32 %v663, 0.0
  %v672 = vmax.f32 %v664, 0.0
  %v673 = vmax.f32 %v665, 0.0
  %v674 = vmax.f32 %v666, 0.0
  %v675 = vmax.f32 %v667, 0.0
  %s676 = scalar_lea.vmem %s0, 160
  %v677 = vld [vmem:[%s676] sm:$0xff]
  %v678 = vld [vmem:[%s676 + $0x8] sm:$0xff]
  %v679 = vld [vmem:[%s676 + $0x10] sm:$0xf]
  %v680 = vld [vmem:[%s676 + $0x14] sm:$0xff]
  %v681 = vld [vmem:[%s676 + $0x1c] sm:$0xff]
  %v682 = vld [vmem:[%s676 + $0x24] sm:$0xf]
  %v683 = vld [vmem:[%s676 + $0x28] sm:$0xff]
  %v684 = vld [vmem:[%s676 + $0x30] sm:$0xff]
  %v685 = vld [vmem:[%s676 + $0x38] sm:$0xf]
  %v686 = vld [vmem:[%s676 + $0x3c] sm:$0xff]
  %v687 = vld [vmem:[%s676 + $0x44] sm:$0xff]
  %v688 = vld [vmem:[%s676 + $0x4c] sm:$0xf]
  %v689 = vld [vmem:[%s676 + $0x50] sm:$0xff]
  %v690 = vld [vmem:[%s676 + $0x58] sm:$0xff]
  %v691 = vld [vmem:[%s676 + $0x60] sm:$0xf]
  %v692 = vld [vmem:[%s676 + $0x64] sm:$0xff]
  %v693 = vld [vmem:[%s676 + $0x6c] sm:$0xff]
  %v694 = vld [vmem:[%s676 + $0x74] sm:$0xf]
  %v695 = vld [vmem:[%s676 + $0x78] sm:$0xff]
  %v696 = vld [vmem:[%s676 + $0x80] sm:$0xff]
  %v697 = vld [vmem:[%s676 + $0x88] sm:$0xf]
  %v698 = vld [vmem:[%s676 + $0x8c] sm:$0xff]
  %v699 = vld [vmem:[%s676 + $0x94] sm:$0xff]
  %v700 = vld [vmem:[%s676 + $0x9c] sm:$0xf]
  %v725 = vunpack.c.l.b16 %v677
  %v726 = vunpack.c.h.b16 %v677
  %v727 = vunpack.c.l.b16 %v678
  %v728 = vunpack.c.h.b16 %v678
  %v729 = vunpack.c.l.b16 %v679
  %v730 = vunpack.c.l.b16 %v680
  %v731 = vunpack.c.h.b16 %v680
  %v732 = vunpack.c.l.b16 %v681
  %v733 = vunpack.c.h.b16 %v681
  %v734 = vunpack.c.l.b16 %v682
  %v735 = vunpack.c.l.b16 %v683
  %v736 = vunpack.c.h.b16 %v683
  %v737 = vunpack.c.l.b16 %v684
  %v738 = vunpack.c.h.b16 %v684
  %v739 = vunpack.c.l.b16 %v685
  %v740 = vunpack.c.l.b16 %v686
  %v741 = vunpack.c.h.b16 %v686
  %v742 = vunpack.c.l.b16 %v687
  %v743 = vunpack.c.h.b16 %v687
  %v744 = vunpack.c.l.b16 %v688
  %v745 = vunpack.c.l.b16 %v689
  %v746 = vunpack.c.h.b16 %v689
  %v747 = vunpack.c.l.b16 %v690
  %v748 = vunpack.c.h.b16 %v690
  %v749 = vunpack.c.l.b16 %v691
  %v750 = vunpack.c.l.b16 %v692
  %v751 = vunpack.c.h.b16 %v692
  %v752 = vunpack.c.l.b16 %v693
  %v753 = vunpack.c.h.b16 %v693
  %v754 = vunpack.c.l.b16 %v694
  %v755 = vunpack.c.l.b16 %v695
  %v756 = vunpack.c.h.b16 %v695
  %v757 = vunpack.c.l.b16 %v696
  %v758 = vunpack.c.h.b16 %v696
  %v759 = vunpack.c.l.b16 %v697
  %v760 = vunpack.c.l.b16 %v698
  %v761 = vunpack.c.h.b16 %v698
  %v762 = vunpack.c.l.b16 %v699
  %v763 = vunpack.c.h.b16 %v699
  %v764 = vunpack.c.l.b16 %v700
  %v765 = vpack.c.b16 %v730, %v725
  %v766 = vpack.c.b16 %v731, %v726
  %v767 = vpack.c.b16 %v732, %v727
  %v768 = vpack.c.b16 %v733, %v728
  %v769 = vpack.c.b16 %v734, %v729
  %v770 = vpack.c.b16 %v740, %v735
  %v771 = vpack.c.b16 %v741, %v736
  %v772 = vpack.c.b16 %v742, %v737
  %v773 = vpack.c.b16 %v743, %v738
  %v774 = vpack.c.b16 %v744, %v739
  %v775 = vpack.c.b16 %v750, %v745
  %v776 = vpack.c.b16 %v751, %v746
  %v777 = vpack.c.b16 %v752, %v747
  %v778 = vpack.c.b16 %v753, %v748
  %v779 = vpack.c.b16 %v754, %v749
  %v780 = vpack.c.b16 %v760, %v755
  %v781 = vpack.c.b16 %v761, %v756
  %v782 = vpack.c.b16 %v762, %v757
  %v783 = vpack.c.b16 %v763, %v758
  %v784 = vpack.c.b16 %v764, %v759
  %v802 = vsel %vm432, %v769, 0
  %v805 = vsel %vm432, %v774, 0
  %v808 = vsel %vm432, %v779, 0
  %v811 = vsel %vm432, %v784, 0
  %813 = vmatprep.subr.bf16.mxu0 0
  %814 = vmatpush1.bf16.msra.mxu0 %v360
  %815 = vmatprep.subr.bf16.mxu0 0
  %816 = vmatpush1.bf16.msra.mxu0 %v361
  %817 = vmatprep.subr.bf16.mxu0 0
  %818 = vmatpush1.bf16.msra.mxu0 %v362
  %819 = vmatprep.subr.bf16.mxu0 0
  %820 = vmatpush1.bf16.msra.mxu0 %v363
  %821 = vmatprep.subr.bf16.mxu0 0
  %822 = vmatpush1.bf16.msra.mxu0 %v364
  %823 = vmatprep.subr.bf16.mxu0 0
  %824 = vmatpush1.bf16.msra.mxu0 %v365
  %825 = vmatprep.subr.bf16.mxu0 0
  %826 = vmatpush1.bf16.msra.mxu0 %v366
  %827 = vmatprep.subr.bf16.mxu0 0
  %828 = vmatpush1.bf16.msra.mxu0 %v367
  %829 = vmatprep.subr.bf16.mxu0 0
  %830 = vmatpush1.bf16.msra.mxu0 %v368
  %831 = vmatprep.subr.bf16.mxu0 0
  %832 = vmatpush1.bf16.msra.mxu0 %v369
  %833 = vmatprep.subr.bf16.mxu0 0
  %834 = vmatpush1.bf16.msra.mxu0 %v370
  %835 = vmatprep.subr.bf16.mxu0 0
  %836 = vmatpush1.bf16.msra.mxu0 %v371
  %837 = vmatprep.subr.bf16.mxu0 0
  %838 = vmatpush1.bf16.msra.mxu0 %v372
  %839 = vmatprep.subr.bf16.mxu0 0
  %840 = vmatpush1.bf16.msra.mxu0 %v373
  %841 = vmatprep.subr.bf16.mxu0 0
  %842 = vmatpush1.bf16.msra.mxu0 %v374
  %843 = vmatprep.subr.bf16.mxu0 0
  %844 = vmatpush1.bf16.msra.mxu0 %v375
  %845 = vmatprep.mubr.bf16.mxu0 %v766
  %846 = vmatmul.mubr.bf16.gmra.mrb[0].mxu0 %v765
  %v847 = vpop.f32.mrb[0].mxu0
  %v848 = vadd.f32 0.0, %v847
  %v849 = vpop.f32.mrb[0].mxu0
  %v850 = vpop.f32.mrb[0].mxu0
  %v851 = vadd.f32 0.0, %v850
  %v852 = vpop.f32.mrb[0].mxu0
  %853 = vmatprep.mubr.bf16.mxu0 %v771
  %854 = vmatmul.mubr.bf16.gmra.mrb[0].mxu0 %v770
  %v855 = vpop.f32.mrb[0].mxu0
  %v856 = vadd.f32 0.0, %v855
  %v857 = vpop.f32.mrb[0].mxu0
  %v858 = vpop.f32.mrb[0].mxu0
  %v859 = vadd.f32 0.0, %v858
  %v860 = vpop.f32.mrb[0].mxu0
  %861 = vmatprep.mubr.bf16.mxu0 %v776
  %862 = vmatmul.mubr.bf16.gmra.mrb[0].mxu0 %v775
  %v863 = vpop.f32.mrb[0].mxu0
  %v864 = vadd.f32 0.0, %v863
  %v865 = vpop.f32.mrb[0].mxu0
  %v866 = vpop.f32.mrb[0].mxu0
  %v867 = vadd.f32 0.0, %v866
  %v868 = vpop.f32.mrb[0].mxu0
  %869 = vmatprep.mubr.bf16.mxu0 %v781
  %870 = vmatmul.mubr.bf16.gmra.mrb[0].mxu0 %v780
  %v871 = vpop.f32.mrb[0].mxu0
  %v872 = vadd.f32 0.0, %v871
  %v873 = vpop.f32.mrb[0].mxu0
  %v874 = vpop.f32.mrb[0].mxu0
  %v875 = vadd.f32 0.0, %v874
  %v876 = vpop.f32.mrb[0].mxu0
  %877 = vdwg.mxu0
  %878 = vmatprep.subr.bf16.mxu0 0
  %879 = vmatpush1.bf16.msra.mxu0 %v376
  %880 = vmatprep.subr.bf16.mxu0 0
  %881 = vmatpush1.bf16.msra.mxu0 %v377
  %882 = vmatprep.subr.bf16.mxu0 0
  %883 = vmatpush1.bf16.msra.mxu0 %v378
  %884 = vmatprep.subr.bf16.mxu0 0
  %885 = vmatpush1.bf16.msra.mxu0 %v379
  %886 = vmatprep.subr.bf16.mxu0 0
  %887 = vmatpush1.bf16.msra.mxu0 %v380
  %888 = vmatprep.subr.bf16.mxu0 0
  %889 = vmatpush1.bf16.msra.mxu0 %v381
  %890 = vmatprep.subr.bf16.mxu0 0
  %891 = vmatpush1.bf16.msra.mxu0 %v382
  %892 = vmatprep.subr.bf16.mxu0 0
  %893 = vmatpush1.bf16.msra.mxu0 %v383
  %894 = vmatprep.subr.bf16.mxu0 0
  %895 = vmatpush1.bf16.msra.mxu0 %v384
  %896 = vmatprep.subr.bf16.mxu0 0
  %897 = vmatpush1.bf16.msra.mxu0 %v385
  %898 = vmatprep.subr.bf16.mxu0 0
  %899 = vmatpush1.bf16.msra.mxu0 %v386
  %900 = vmatprep.subr.bf16.mxu0 0
  %901 = vmatpush1.bf16.msra.mxu0 %v387
  %902 = vmatprep.subr.bf16.mxu0 0
  %903 = vmatpush1.bf16.msra.mxu0 %v388
  %904 = vmatprep.subr.bf16.mxu0 0
  %905 = vmatpush1.bf16.msra.mxu0 %v389
  %906 = vmatprep.subr.bf16.mxu0 0
  %907 = vmatpush1.bf16.msra.mxu0 %v390
  %908 = vmatprep.subr.bf16.mxu0 0
  %909 = vmatpush1.bf16.msra.mxu0 %v391
  %910 = vmatprep.mubr.bf16.mxu0 %v768
  %911 = vmatmul.mubr.bf16.gmra.mrb[0].mxu0 %v767
  %v912 = vpop.f32.mrb[0].mxu0
  %v913 = vadd.f32 %v848, %v912
  %v914 = vpop.f32.mrb[0].mxu0
  %v915 = vpop.f32.mrb[0].mxu0
  %v916 = vadd.f32 %v851, %v915
  %v917 = vpop.f32.mrb[0].mxu0
  %918 = vmatprep.mubr.bf16.mxu0 %v773
  %919 = vmatmul.mubr.bf16.gmra.mrb[0].mxu0 %v772
  %v920 = vpop.f32.mrb[0].mxu0
  %v921 = vadd.f32 %v856, %v920
  %v922 = vpop.f32.mrb[0].mxu0
  %v923 = vpop.f32.mrb[0].mxu0
  %v924 = vadd.f32 %v859, %v923
  %v925 = vpop.f32.mrb[0].mxu0
  %926 = vmatprep.mubr.bf16.mxu0 %v778
  %927 = vmatmul.mubr.bf16.gmra.mrb[0].mxu0 %v777
  %v928 = vpop.f32.mrb[0].mxu0
  %v929 = vadd.f32 %v864, %v928
  %v930 = vpop.f32.mrb[0].mxu0
  %v931 = vpop.f32.mrb[0].mxu0
  %v932 = vadd.f32 %v867, %v931
  %v933 = vpop.f32.mrb[0].mxu0
  %934 = vmatprep.mubr.bf16.mxu0 %v783
  %935 = vmatmul.mubr.bf16.gmra.mrb[0].mxu0 %v782
  %v936 = vpop.f32.mrb[0].mxu0
  %v937 = vadd.f32 %v872, %v936
  %v938 = vpop.f32.mrb[0].mxu0
  %v939 = vpop.f32.mrb[0].mxu0
  %v940 = vadd.f32 %v875, %v939
  %v941 = vpop.f32.mrb[0].mxu0
  %942 = vdwg.mxu0
  %943 = vmatprep.subr.bf16.mxu0 0
  %944 = vmatpush1.bf16.msra.mxu0 %v392
  %945 = vmatprep.subr.bf16.mxu0 0
  %946 = vmatpush1.bf16.msra.mxu0 %v393
  %947 = vmatprep.subr.bf16.mxu0 0
  %948 = vmatpush1.bf16.msra.mxu0 %v394
  %949 = vmatprep.subr.bf16.mxu0 0
  %950 = vmatpush1.bf16.msra.mxu0 %v395
  %951 = vmatprep.subr.bf16.mxu0 0
  %952 = vmatpush1.bf16.msra.mxu0 0
  %953 = vmatprep.subr.bf16.mxu0 0
  %954 = vmatpush1.bf16.msra.mxu0 0
  %955 = vmatprep.subr.bf16.mxu0 0
  %956 = vmatpush1.bf16.msra.mxu0 0
  %957 = vmatprep.subr.bf16.mxu0 0
  %958 = vmatpush1.bf16.msra.mxu0 0
  %959 = vmatprep.subr.bf16.mxu0 0
  %960 = vmatpush1.bf16.msra.mxu0 0
  %961 = vmatprep.subr.bf16.mxu0 0
  %962 = vmatpush1.bf16.msra.mxu0 0
  %963 = vmatprep.subr.bf16.mxu0 0
  %964 = vmatpush1.bf16.msra.mxu0 0
  %965 = vmatprep.subr.bf16.mxu0 0
  %966 = vmatpush1.bf16.msra.mxu0 0
  %967 = vmatprep.subr.bf16.mxu0 0
  %968 = vmatpush1.bf16.msra.mxu0 0
  %969 = vmatprep.subr.bf16.mxu0 0
  %970 = vmatpush1.bf16.msra.mxu0 0
  %971 = vmatprep.subr.bf16.mxu0 0
  %972 = vmatpush1.bf16.msra.mxu0 0
  %973 = vmatprep.subr.bf16.mxu0 0
  %974 = vmatpush1.bf16.msra.mxu0 0
  %975 = vmatprep.mubr.bf16.mxu0 0
  %976 = vmatmul.mubr.bf16.gmra.mrb[0].mxu0 %v802
  %v977 = vpop.f32.mrb[0].mxu0
  %v978 = vadd.f32 %v913, %v977
  %v979 = vpop.f32.mrb[0].mxu0
  %v980 = vpop.f32.mrb[0].mxu0
  %v981 = vadd.f32 %v916, %v980
  %v982 = vpop.f32.mrb[0].mxu0
  %983 = vmatprep.mubr.bf16.mxu0 0
  %984 = vmatmul.mubr.bf16.gmra.mrb[0].mxu0 %v805
  %v985 = vpop.f32.mrb[0].mxu0
  %v986 = vadd.f32 %v921, %v985
  %v987 = vpop.f32.mrb[0].mxu0
  %v988 = vpop.f32.mrb[0].mxu0
  %v989 = vadd.f32 %v924, %v988
  %v990 = vpop.f32.mrb[0].mxu0
  %991 = vmatprep.mubr.bf16.mxu0 0
  %992 = vmatmul.mubr.bf16.gmra.mrb[0].mxu0 %v808
  %v993 = vpop.f32.mrb[0].mxu0
  %v994 = vadd.f32 %v929, %v993
  %v995 = vpop.f32.mrb[0].mxu0
  %v996 = vpop.f32.mrb[0].mxu0
  %v997 = vadd.f32 %v932, %v996
  %v998 = vpop.f32.mrb[0].mxu0
  %999 = vmatprep.mubr.bf16.mxu0 0
  %1000 = vmatmul.mubr.bf16.gmra.mrb[0].mxu0 %v811
  %v1001 = vpop.f32.mrb[0].mxu0
  %v1002 = vadd.f32 %v937, %v1001
  %v1003 = vpop.f32.mrb[0].mxu0
  %v1004 = vpop.f32.mrb[0].mxu0
  %v1005 = vadd.f32 %v940, %v1004
  %v1006 = vpop.f32.mrb[0].mxu0
  %1007 = vdwg.mxu0
  %v1008 = vmul.f32 %v978, %v644
  %v1009 = vmul.f32 %v981, %v644
  %v1010 = vmul.f32 %v986, %v644
  %v1011 = vmul.f32 %v989, %v644
  %v1012 = vmul.f32 %v994, %v644
  %v1013 = vmul.f32 %v997, %v644
  %v1014 = vmul.f32 %v1002, %v644
  %v1015 = vmul.f32 %v1005, %v644
  %v1016 = vadd.f32 %v1008, %v658
  %v1017 = vadd.f32 %v1009, %v658
  %v1018 = vadd.f32 %v1010, %v658
  %v1019 = vadd.f32 %v1011, %v658
  %v1020 = vadd.f32 %v1012, %v658
  %v1021 = vadd.f32 %v1013, %v658
  %v1022 = vadd.f32 %v1014, %v658
  %v1023 = vadd.f32 %v1015, %v658
  %v1024 = vmax.f32 %v1016, 0.0
  %v1025 = vmax.f32 %v1017, 0.0
  %v1026 = vmax.f32 %v1018, 0.0
  %v1027 = vmax.f32 %v1019, 0.0
  %v1028 = vmax.f32 %v1020, 0.0
  %v1029 = vmax.f32 %v1021, 0.0
  %v1030 = vmax.f32 %v1022, 0.0
  %v1031 = vmax.f32 %v1023, 0.0
  %v1032 = vmax.f32 %v668, %v1024
  %v1033 = vmax.f32 %v669, %v1025
  %v1034 = vmax.f32 %v670, %v1026
  %v1035 = vmax.f32 %v671, %v1027
  %v1036 = vmax.f32 %v672, %v1028
  %v1037 = vmax.f32 %v673, %v1029
  %v1038 = vmax.f32 %v674, %v1030
  %v1039 = vmax.f32 %v675, %v1031
  %s1040 = scalar_lea.vmem %s0, 320
  %v1041 = vld [vmem:[%s1040] sm:$0xff]
  %v1042 = vld [vmem:[%s1040 + $0x8] sm:$0xff]
  %v1043 = vld [vmem:[%s1040 + $0x10] sm:$0xf]
  %v1044 = vld [vmem:[%s1040 + $0x14] sm:$0xff]
  %v1045 = vld [vmem:[%s1040 + $0x1c] sm:$0xff]
  %v1046 = vld [vmem:[%s1040 + $0x24] sm:$0xf]
  %v1047 = vld [vmem:[%s1040 + $0x28] sm:$0xff]
  %v1048 = vld [vmem:[%s1040 + $0x30] sm:$0xff]
  %v1049 = vld [vmem:[%s1040 + $0x38] sm:$0xf]
  %v1050 = vld [vmem:[%s1040 + $0x3c] sm:$0xff]
  %v1051 = vld [vmem:[%s1040 + $0x44] sm:$0xff]
  %v1052 = vld [vmem:[%s1040 + $0x4c] sm:$0xf]
  %v1053 = vld [vmem:[%s1040 + $0x50] sm:$0xff]
  %v1054 = vld [vmem:[%s1040 + $0x58] sm:$0xff]
  %v1055 = vld [vmem:[%s1040 + $0x60] sm:$0xf]
  %v1056 = vld [vmem:[%s1040 + $0x64] sm:$0xff]
  %v1057 = vld [vmem:[%s1040 + $0x6c] sm:$0xff]
  %v1058 = vld [vmem:[%s1040 + $0x74] sm:$0xf]
  %v1059 = vld [vmem:[%s1040 + $0x78] sm:$0xff]
  %v1060 = vld [vmem:[%s1040 + $0x80] sm:$0xff]
  %v1061 = vld [vmem:[%s1040 + $0x88] sm:$0xf]
  %v1062 = vld [vmem:[%s1040 + $0x8c] sm:$0xff]
  %v1063 = vld [vmem:[%s1040 + $0x94] sm:$0xff]
  %v1064 = vld [vmem:[%s1040 + $0x9c] sm:$0xf]
  %v1089 = vunpack.c.l.b16 %v1041
  %v1090 = vunpack.c.h.b16 %v1041
  %v1091 = vunpack.c.l.b16 %v1042
  %v1092 = vunpack.c.h.b16 %v1042
  %v1093 = vunpack.c.l.b16 %v1043
  %v1094 = vunpack.c.l.b16 %v1044
  %v1095 = vunpack.c.h.b16 %v1044
  %v1096 = vunpack.c.l.b16 %v1045
  %v1097 = vunpack.c.h.b16 %v1045
  %v1098 = vunpack.c.l.b16 %v1046
  %v1099 = vunpack.c.l.b16 %v1047
  %v1100 = vunpack.c.h.b16 %v1047
  %v1101 = vunpack.c.l.b16 %v1048
  %v1102 = vunpack.c.h.b16 %v1048
  %v1103 = vunpack.c.l.b16 %v1049
  %v1104 = vunpack.c.l.b16 %v1050
  %v1105 = vunpack.c.h.b16 %v1050
  %v1106 = vunpack.c.l.b16 %v1051
  %v1107 = vunpack.c.h.b16 %v1051
  %v1108 = vunpack.c.l.b16 %v1052
  %v1109 = vunpack.c.l.b16 %v1053
  %v1110 = vunpack.c.h.b16 %v1053
  %v1111 = vunpack.c.l.b16 %v1054
  %v1112 = vunpack.c.h.b16 %v1054
  %v1113 = vunpack.c.l.b16 %v1055
  %v1114 = vunpack.c.l.b16 %v1056
  %v1115 = vunpack.c.h.b16 %v1056
  %v1116 = vunpack.c.l.b16 %v1057
  %v1117 = vunpack.c.h.b16 %v1057
  %v1118 = vunpack.c.l.b16 %v1058
  %v1119 = vunpack.c.l.b16 %v1059
  %v1120 = vunpack.c.h.b16 %v1059
  %v1121 = vunpack.c.l.b16 %v1060
  %v1122 = vunpack.c.h.b16 %v1060
  %v1123 = vunpack.c.l.b16 %v1061
  %v1124 = vunpack.c.l.b16 %v1062
  %v1125 = vunpack.c.h.b16 %v1062
  %v1126 = vunpack.c.l.b16 %v1063
  %v1127 = vunpack.c.h.b16 %v1063
  %v1128 = vunpack.c.l.b16 %v1064
  %v1129 = vpack.c.b16 %v1094, %v1089
  %v1130 = vpack.c.b16 %v1095, %v1090
  %v1131 = vpack.c.b16 %v1096, %v1091
  %v1132 = vpack.c.b16 %v1097, %v1092
  %v1133 = vpack.c.b16 %v1098, %v1093
  %v1134 = vpack.c.b16 %v1104, %v1099
  %v1135 = vpack.c.b16 %v1105, %v1100
  %v1136 = vpack.c.b16 %v1106, %v1101
  %v1137 = vpack.c.b16 %v1107, %v1102
  %v1138 = vpack.c.b16 %v1108, %v1103
  %v1139 = vpack.c.b16 %v1114, %v1109
  %v1140 = vpack.c.b16 %v1115, %v1110
  %v1141 = vpack.c.b16 %v1116, %v1111
  %v1142 = vpack.c.b16 %v1117, %v1112
  %v1143 = vpack.c.b16 %v1118, %v1113
  %v1144 = vpack.c.b16 %v1124, %v1119
  %v1145 = vpack.c.b16 %v1125, %v1120
  %v1146 = vpack.c.b16 %v1126, %v1121
  %v1147 = vpack.c.b16 %v1127, %v1122
  %v1148 = vpack.c.b16 %v1128, %v1123
  %v1166 = vsel %vm432, %v1133, 0
  %v1169 = vsel %vm432, %v1138, 0
  %v1172 = vsel %vm432, %v1143, 0
  %v1175 = vsel %vm432, %v1148, 0
  %1177 = vmatprep.subr.bf16.mxu0 0
  %1178 = vmatpush1.bf16.msra.mxu0 %v360
  %1179 = vmatprep.subr.bf16.mxu0 0
  %1180 = vmatpush1.bf16.msra.mxu0 %v361
  %1181 = vmatprep.subr.bf16.mxu0 0
  %1182 = vmatpush1.bf16.msra.mxu0 %v362
  %1183 = vmatprep.subr.bf16.mxu0 0
  %1184 = vmatpush1.bf16.msra.mxu0 %v363
  %1185 = vmatprep.subr.bf16.mxu0 0
  %1186 = vmatpush1.bf16.msra.mxu0 %v364
  %1187 = vmatprep.subr.bf16.mxu0 0
  %1188 = vmatpush1.bf16.msra.mxu0 %v365
  %1189 = vmatprep.subr.bf16.mxu0 0
  %1190 = vmatpush1.bf16.msra.mxu0 %v366
  %1191 = vmatprep.subr.bf16.mxu0 0
  %1192 = vmatpush1.bf16.msra.mxu0 %v367
  %1193 = vmatprep.subr.bf16.mxu0 0
  %1194 = vmatpush1.bf16.msra.mxu0 %v368
  %1195 = vmatprep.subr.bf16.mxu0 0
  %1196 = vmatpush1.bf16.msra.mxu0 %v369
  %1197 = vmatprep.subr.bf16.mxu0 0
  %1198 = vmatpush1.bf16.msra.mxu0 %v370
  %1199 = vmatprep.subr.bf16.mxu0 0
  %1200 = vmatpush1.bf16.msra.mxu0 %v371
  %1201 = vmatprep.subr.bf16.mxu0 0
  %1202 = vmatpush1.bf16.msra.mxu0 %v372
  %1203 = vmatprep.subr.bf16.mxu0 0
  %1204 = vmatpush1.bf16.msra.mxu0 %v373
  %1205 = vmatprep.subr.bf16.mxu0 0
  %1206 = vmatpush1.bf16.msra.mxu0 %v374
  %1207 = vmatprep.subr.bf16.mxu0 0
  %1208 = vmatpush1.bf16.msra.mxu0 %v375
  %1209 = vmatprep.mubr.bf16.mxu0 %v1130
  %1210 = vmatmul.mubr.bf16.gmra.mrb[0].mxu0 %v1129
  %v1211 = vpop.f32.mrb[0].mxu0
  %v1212 = vadd.f32 0.0, %v1211
  %v1213 = vpop.f32.mrb[0].mxu0
  %v1214 = vpop.f32.mrb[0].mxu0
  %v1215 = vadd.f32 0.0, %v1214
  %v1216 = vpop.f32.mrb[0].mxu0
  %1217 = vmatprep.mubr.bf16.mxu0 %v1135
  %1218 = vmatmul.mubr.bf16.gmra.mrb[0].mxu0 %v1134
  %v1219 = vpop.f32.mrb[0].mxu0
  %v1220 = vadd.f32 0.0, %v1219
  %v1221 = vpop.f32.mrb[0].mxu0
  %v1222 = vpop.f32.mrb[0].mxu0
  %v1223 = vadd.f32 0.0, %v1222
  %v1224 = vpop.f32.mrb[0].mxu0
  %1225 = vmatprep.mubr.bf16.mxu0 %v1140
  %1226 = vmatmul.mubr.bf16.gmra.mrb[0].mxu0 %v1139
  %v1227 = vpop.f32.mrb[0].mxu0
  %v1228 = vadd.f32 0.0, %v1227
  %v1229 = vpop.f32.mrb[0].mxu0
  %v1230 = vpop.f32.mrb[0].mxu0
  %v1231 = vadd.f32 0.0, %v1230
  %v1232 = vpop.f32.mrb[0].mxu0
  %1233 = vmatprep.mubr.bf16.mxu0 %v1145
  %1234 = vmatmul.mubr.bf16.gmra.mrb[0].mxu0 %v1144
  %v1235 = vpop.f32.mrb[0].mxu0
  %v1236 = vadd.f32 0.0, %v1235
  %v1237 = vpop.f32.mrb[0].mxu0
  %v1238 = vpop.f32.mrb[0].mxu0
  %v1239 = vadd.f32 0.0, %v1238
  %v1240 = vpop.f32.mrb[0].mxu0
  %1241 = vdwg.mxu0
  %1242 = vmatprep.subr.bf16.mxu0 0
  %1243 = vmatpush1.bf16.msra.mxu0 %v376
  %1244 = vmatprep.subr.bf16.mxu0 0
  %1245 = vmatpush1.bf16.msra.mxu0 %v377
  %1246 = vmatprep.subr.bf16.mxu0 0
  %1247 = vmatpush1.bf16.msra.mxu0 %v378
  %1248 = vmatprep.subr.bf16.mxu0 0
  %1249 = vmatpush1.bf16.msra.mxu0 %v379
  %1250 = vmatprep.subr.bf16.mxu0 0
  %1251 = vmatpush1.bf16.msra.mxu0 %v380
  %1252 = vmatprep.subr.bf16.mxu0 0
  %1253 = vmatpush1.bf16.msra.mxu0 %v381
  %1254 = vmatprep.subr.bf16.mxu0 0
  %1255 = vmatpush1.bf16.msra.mxu0 %v382
  %1256 = vmatprep.subr.bf16.mxu0 0
  %1257 = vmatpush1.bf16.msra.mxu0 %v383
  %1258 = vmatprep.subr.bf16.mxu0 0
  %1259 = vmatpush1.bf16.msra.mxu0 %v384
  %1260 = vmatprep.subr.bf16.mxu0 0
  %1261 = vmatpush1.bf16.msra.mxu0 %v385
  %1262 = vmatprep.subr.bf16.mxu0 0
  %1263 = vmatpush1.bf16.msra.mxu0 %v386
  %1264 = vmatprep.subr.bf16.mxu0 0
  %1265 = vmatpush1.bf16.msra.mxu0 %v387
  %1266 = vmatprep.subr.bf16.mxu0 0
  %1267 = vmatpush1.bf16.msra.mxu0 %v388
  %1268 = vmatprep.subr.bf16.mxu0 0
  %1269 = vmatpush1.bf16.msra.mxu0 %v389
  %1270 = vmatprep.subr.bf16.mxu0 0
  %1271 = vmatpush1.bf16.msra.mxu0 %v390
  %1272 = vmatprep.subr.bf16.mxu0 0
  %1273 = vmatpush1.bf16.msra.mxu0 %v391
  %1274 = vmatprep.mubr.bf16.mxu0 %v1132
  %1275 = vmatmul.mubr.bf16.gmra.mrb[0].mxu0 %v1131
  %v1276 = vpop.f32.mrb[0].mxu0
  %v1277 = vadd.f32 %v1212, %v1276
  %v1278 = vpop.f32.mrb[0].mxu0
  %v1279 = vpop.f32.mrb[0].mxu0
  %v1280 = vadd.f32 %v1215, %v1279
  %v1281 = vpop.f32.mrb[0].mxu0
  %1282 = vmatprep.mubr.bf16.mxu0 %v1137
  %1283 = vmatmul.mubr.bf16.gmra.mrb[0].mxu0 %v1136
  %v1284 = vpop.f32.mrb[0].mxu0
  %v1285 = vadd.f32 %v1220, %v1284
  %v1286 = vpop.f32.mrb[0].mxu0
  %v1287 = vpop.f32.mrb[0].mxu0
  %v1288 = vadd.f32 %v1223, %v1287
  %v1289 = vpop.f32.mrb[0].mxu0
  %1290 = vmatprep.mubr.bf16.mxu0 %v1142
  %1291 = vmatmul.mubr.bf16.gmra.mrb[0].mxu0 %v1141
  %v1292 = vpop.f32.mrb[0].mxu0
  %v1293 = vadd.f32 %v1228, %v1292
  %v1294 = vpop.f32.mrb[0].mxu0
  %v1295 = vpop.f32.mrb[0].mxu0
  %v1296 = vadd.f32 %v1231, %v1295
  %v1297 = vpop.f32.mrb[0].mxu0
  %1298 = vmatprep.mubr.bf16.mxu0 %v1147
  %1299 = vmatmul.mubr.bf16.gmra.mrb[0].mxu0 %v1146
  %v1300 = vpop.f32.mrb[0].mxu0
  %v1301 = vadd.f32 %v1236, %v1300
  %v1302 = vpop.f32.mrb[0].mxu0
  %v1303 = vpop.f32.mrb[0].mxu0
  %v1304 = vadd.f32 %v1239, %v1303
  %v1305 = vpop.f32.mrb[0].mxu0
  %1306 = vdwg.mxu0
  %1307 = vmatprep.subr.bf16.mxu0 0
  %1308 = vmatpush1.bf16.msra.mxu0 %v392
  %1309 = vmatprep.subr.bf16.mxu0 0
  %1310 = vmatpush1.bf16.msra.mxu0 %v393
  %1311 = vmatprep.subr.bf16.mxu0 0
  %1312 = vmatpush1.bf16.msra.mxu0 %v394
  %1313 = vmatprep.subr.bf16.mxu0 0
  %1314 = vmatpush1.bf16.msra.mxu0 %v395
  %1315 = vmatprep.subr.bf16.mxu0 0
  %1316 = vmatpush1.bf16.msra.mxu0 0
  %1317 = vmatprep.subr.bf16.mxu0 0
  %1318 = vmatpush1.bf16.msra.mxu0 0
  %1319 = vmatprep.subr.bf16.mxu0 0
  %1320 = vmatpush1.bf16.msra.mxu0 0
  %1321 = vmatprep.subr.bf16.mxu0 0
  %1322 = vmatpush1.bf16.msra.mxu0 0
  %1323 = vmatprep.subr.bf16.mxu0 0
  %1324 = vmatpush1.bf16.msra.mxu0 0
  %1325 = vmatprep.subr.bf16.mxu0 0
  %1326 = vmatpush1.bf16.msra.mxu0 0
  %1327 = vmatprep.subr.bf16.mxu0 0
  %1328 = vmatpush1.bf16.msra.mxu0 0
  %1329 = vmatprep.subr.bf16.mxu0 0
  %1330 = vmatpush1.bf16.msra.mxu0 0
  %1331 = vmatprep.subr.bf16.mxu0 0
  %1332 = vmatpush1.bf16.msra.mxu0 0
  %1333 = vmatprep.subr.bf16.mxu0 0
  %1334 = vmatpush1.bf16.msra.mxu0 0
  %1335 = vmatprep.subr.bf16.mxu0 0
  %1336 = vmatpush1.bf16.msra.mxu0 0
  %1337 = vmatprep.subr.bf16.mxu0 0
  %1338 = vmatpush1.bf16.msra.mxu0 0
  %1339 = vmatprep.mubr.bf16.mxu0 0
  %1340 = vmatmul.mubr.bf16.gmra.mrb[0].mxu0 %v1166
  %v1341 = vpop.f32.mrb[0].mxu0
  %v1342 = vadd.f32 %v1277, %v1341
  %v1343 = vpop.f32.mrb[0].mxu0
  %v1344 = vpop.f32.mrb[0].mxu0
  %v1345 = vadd.f32 %v1280, %v1344
  %v1346 = vpop.f32.mrb[0].mxu0
  %1347 = vmatprep.mubr.bf16.mxu0 0
  %1348 = vmatmul.mubr.bf16.gmra.mrb[0].mxu0 %v1169
  %v1349 = vpop.f32.mrb[0].mxu0
  %v1350 = vadd.f32 %v1285, %v1349
  %v1351 = vpop.f32.mrb[0].mxu0
  %v1352 = vpop.f32.mrb[0].mxu0
  %v1353 = vadd.f32 %v1288, %v1352
  %v1354 = vpop.f32.mrb[0].mxu0
  %1355 = vmatprep.mubr.bf16.mxu0 0
  %1356 = vmatmul.mubr.bf16.gmra.mrb[0].mxu0 %v1172
  %v1357 = vpop.f32.mrb[0].mxu0
  %v1358 = vadd.f32 %v1293, %v1357
  %v1359 = vpop.f32.mrb[0].mxu0
  %v1360 = vpop.f32.mrb[0].mxu0
  %v1361 = vadd.f32 %v1296, %v1360
  %v1362 = vpop.f32.mrb[0].mxu0
  %1363 = vmatprep.mubr.bf16.mxu0 0
  %1364 = vmatmul.mubr.bf16.gmra.mrb[0].mxu0 %v1175
  %v1365 = vpop.f32.mrb[0].mxu0
  %v1366 = vadd.f32 %v1301, %v1365
  %v1367 = vpop.f32.mrb[0].mxu0
  %v1368 = vpop.f32.mrb[0].mxu0
  %v1369 = vadd.f32 %v1304, %v1368
  %v1370 = vpop.f32.mrb[0].mxu0
  %1371 = vdwg.mxu0
  %v1372 = vmul.f32 %v1342, %v644
  %v1373 = vmul.f32 %v1345, %v644
  %v1374 = vmul.f32 %v1350, %v644
  %v1375 = vmul.f32 %v1353, %v644
  %v1376 = vmul.f32 %v1358, %v644
  %v1377 = vmul.f32 %v1361, %v644
  %v1378 = vmul.f32 %v1366, %v644
  %v1379 = vmul.f32 %v1369, %v644
  %v1380 = vadd.f32 %v1372, %v658
  %v1381 = vadd.f32 %v1373, %v658
  %v1382 = vadd.f32 %v1374, %v658
  %v1383 = vadd.f32 %v1375, %v658
  %v1384 = vadd.f32 %v1376, %v658
  %v1385 = vadd.f32 %v1377, %v658
  %v1386 = vadd.f32 %v1378, %v658
  %v1387 = vadd.f32 %v1379, %v658
  %v1388 = vmax.f32 %v1380, 0.0
  %v1389 = vmax.f32 %v1381, 0.0
  %v1390 = vmax.f32 %v1382, 0.0
  %v1391 = vmax.f32 %v1383, 0.0
  %v1392 = vmax.f32 %v1384, 0.0
  %v1393 = vmax.f32 %v1385, 0.0
  %v1394 = vmax.f32 %v1386, 0.0
  %v1395 = vmax.f32 %v1387, 0.0
  %v1396 = vmax.f32 %v1032, %v1388
  %v1397 = vmax.f32 %v1033, %v1389
  %v1398 = vmax.f32 %v1034, %v1390
  %v1399 = vmax.f32 %v1035, %v1391
  %v1400 = vmax.f32 %v1036, %v1392
  %v1401 = vmax.f32 %v1037, %v1393
  %v1402 = vmax.f32 %v1038, %v1394
  %v1403 = vmax.f32 %v1039, %v1395
  %s1404 = scalar_lea.vmem %s0, 480
  %v1405 = vld [vmem:[%s1404] sm:$0xff]
  %v1406 = vld [vmem:[%s1404 + $0x8] sm:$0xff]
  %v1407 = vld [vmem:[%s1404 + $0x10] sm:$0xf]
  %v1408 = vld [vmem:[%s1404 + $0x14] sm:$0xff]
  %v1409 = vld [vmem:[%s1404 + $0x1c] sm:$0xff]
  %v1410 = vld [vmem:[%s1404 + $0x24] sm:$0xf]
  %v1411 = vld [vmem:[%s1404 + $0x28] sm:$0xff]
  %v1412 = vld [vmem:[%s1404 + $0x30] sm:$0xff]
  %v1413 = vld [vmem:[%s1404 + $0x38] sm:$0xf]
  %v1414 = vld [vmem:[%s1404 + $0x3c] sm:$0xff]
  %v1415 = vld [vmem:[%s1404 + $0x44] sm:$0xff]
  %v1416 = vld [vmem:[%s1404 + $0x4c] sm:$0xf]
  %v1417 = vld [vmem:[%s1404 + $0x50] sm:$0xff]
  %v1418 = vld [vmem:[%s1404 + $0x58] sm:$0xff]
  %v1419 = vld [vmem:[%s1404 + $0x60] sm:$0xf]
  %v1420 = vld [vmem:[%s1404 + $0x64] sm:$0xff]
  %v1421 = vld [vmem:[%s1404 + $0x6c] sm:$0xff]
  %v1422 = vld [vmem:[%s1404 + $0x74] sm:$0xf]
  %v1423 = vld [vmem:[%s1404 + $0x78] sm:$0xff]
  %v1424 = vld [vmem:[%s1404 + $0x80] sm:$0xff]
  %v1425 = vld [vmem:[%s1404 + $0x88] sm:$0xf]
  %v1426 = vld [vmem:[%s1404 + $0x8c] sm:$0xff]
  %v1427 = vld [vmem:[%s1404 + $0x94] sm:$0xff]
  %v1428 = vld [vmem:[%s1404 + $0x9c] sm:$0xf]
  %v1453 = vunpack.c.l.b16 %v1405
  %v1454 = vunpack.c.h.b16 %v1405
  %v1455 = vunpack.c.l.b16 %v1406
  %v1456 = vunpack.c.h.b16 %v1406
  %v1457 = vunpack.c.l.b16 %v1407
  %v1458 = vunpack.c.l.b16 %v1408
  %v1459 = vunpack.c.h.b16 %v1408
  %v1460 = vunpack.c.l.b16 %v1409
  %v1461 = vunpack.c.h.b16 %v1409
  %v1462 = vunpack.c.l.b16 %v1410
  %v1463 = vunpack.c.l.b16 %v1411
  %v1464 = vunpack.c.h.b16 %v1411
  %v1465 = vunpack.c.l.b16 %v1412
  %v1466 = vunpack.c.h.b16 %v1412
  %v1467 = vunpack.c.l.b16 %v1413
  %v1468 = vunpack.c.l.b16 %v1414
  %v1469 = vunpack.c.h.b16 %v1414
  %v1470 = vunpack.c.l.b16 %v1415
  %v1471 = vunpack.c.h.b16 %v1415
  %v1472 = vunpack.c.l.b16 %v1416
  %v1473 = vunpack.c.l.b16 %v1417
  %v1474 = vunpack.c.h.b16 %v1417
  %v1475 = vunpack.c.l.b16 %v1418
  %v1476 = vunpack.c.h.b16 %v1418
  %v1477 = vunpack.c.l.b16 %v1419
  %v1478 = vunpack.c.l.b16 %v1420
  %v1479 = vunpack.c.h.b16 %v1420
  %v1480 = vunpack.c.l.b16 %v1421
  %v1481 = vunpack.c.h.b16 %v1421
  %v1482 = vunpack.c.l.b16 %v1422
  %v1483 = vunpack.c.l.b16 %v1423
  %v1484 = vunpack.c.h.b16 %v1423
  %v1485 = vunpack.c.l.b16 %v1424
  %v1486 = vunpack.c.h.b16 %v1424
  %v1487 = vunpack.c.l.b16 %v1425
  %v1488 = vunpack.c.l.b16 %v1426
  %v1489 = vunpack.c.h.b16 %v1426
  %v1490 = vunpack.c.l.b16 %v1427
  %v1491 = vunpack.c.h.b16 %v1427
  %v1492 = vunpack.c.l.b16 %v1428
  %v1493 = vpack.c.b16 %v1458, %v1453
  %v1494 = vpack.c.b16 %v1459, %v1454
  %v1495 = vpack.c.b16 %v1460, %v1455
  %v1496 = vpack.c.b16 %v1461, %v1456
  %v1497 = vpack.c.b16 %v1462, %v1457
  %v1498 = vpack.c.b16 %v1468, %v1463
  %v1499 = vpack.c.b16 %v1469, %v1464
  %v1500 = vpack.c.b16 %v1470, %v1465
  %v1501 = vpack.c.b16 %v1471, %v1466
  %v1502 = vpack.c.b16 %v1472, %v1467
  %v1503 = vpack.c.b16 %v1478, %v1473
  %v1504 = vpack.c.b16 %v1479, %v1474
  %v1505 = vpack.c.b16 %v1480, %v1475
  %v1506 = vpack.c.b16 %v1481, %v1476
  %v1507 = vpack.c.b16 %v1482, %v1477
  %v1508 = vpack.c.b16 %v1488, %v1483
  %v1509 = vpack.c.b16 %v1489, %v1484
  %v1510 = vpack.c.b16 %v1490, %v1485
  %v1511 = vpack.c.b16 %v1491, %v1486
  %v1512 = vpack.c.b16 %v1492, %v1487
  %v1530 = vsel %vm432, %v1497, 0
  %v1533 = vsel %vm432, %v1502, 0
  %v1536 = vsel %vm432, %v1507, 0
  %v1539 = vsel %vm432, %v1512, 0
  %1541 = vmatprep.subr.bf16.mxu0 0
  %1542 = vmatpush1.bf16.msra.mxu0 %v360
  %1543 = vmatprep.subr.bf16.mxu0 0
  %1544 = vmatpush1.bf16.msra.mxu0 %v361
  %1545 = vmatprep.subr.bf16.mxu0 0
  %1546 = vmatpush1.bf16.msra.mxu0 %v362
  %1547 = vmatprep.subr.bf16.mxu0 0
  %1548 = vmatpush1.bf16.msra.mxu0 %v363
  %1549 = vmatprep.subr.bf16.mxu0 0
  %1550 = vmatpush1.bf16.msra.mxu0 %v364
  %1551 = vmatprep.subr.bf16.mxu0 0
  %1552 = vmatpush1.bf16.msra.mxu0 %v365
  %1553 = vmatprep.subr.bf16.mxu0 0
  %1554 = vmatpush1.bf16.msra.mxu0 %v366
  %1555 = vmatprep.subr.bf16.mxu0 0
  %1556 = vmatpush1.bf16.msra.mxu0 %v367
  %1557 = vmatprep.subr.bf16.mxu0 0
  %1558 = vmatpush1.bf16.msra.mxu0 %v368
  %1559 = vmatprep.subr.bf16.mxu0 0
  %1560 = vmatpush1.bf16.msra.mxu0 %v369
  %1561 = vmatprep.subr.bf16.mxu0 0
  %1562 = vmatpush1.bf16.msra.mxu0 %v370
  %1563 = vmatprep.subr.bf16.mxu0 0
  %1564 = vmatpush1.bf16.msra.mxu0 %v371
  %1565 = vmatprep.subr.bf16.mxu0 0
  %1566 = vmatpush1.bf16.msra.mxu0 %v372
  %1567 = vmatprep.subr.bf16.mxu0 0
  %1568 = vmatpush1.bf16.msra.mxu0 %v373
  %1569 = vmatprep.subr.bf16.mxu0 0
  %1570 = vmatpush1.bf16.msra.mxu0 %v374
  %1571 = vmatprep.subr.bf16.mxu0 0
  %1572 = vmatpush1.bf16.msra.mxu0 %v375
  %1573 = vmatprep.mubr.bf16.mxu0 %v1494
  %1574 = vmatmul.mubr.bf16.gmra.mrb[0].mxu0 %v1493
  %v1575 = vpop.f32.mrb[0].mxu0
  %v1576 = vadd.f32 0.0, %v1575
  %v1577 = vpop.f32.mrb[0].mxu0
  %v1578 = vpop.f32.mrb[0].mxu0
  %v1579 = vadd.f32 0.0, %v1578
  %v1580 = vpop.f32.mrb[0].mxu0
  %1581 = vmatprep.mubr.bf16.mxu0 %v1499
  %1582 = vmatmul.mubr.bf16.gmra.mrb[0].mxu0 %v1498
  %v1583 = vpop.f32.mrb[0].mxu0
  %v1584 = vadd.f32 0.0, %v1583
  %v1585 = vpop.f32.mrb[0].mxu0
  %v1586 = vpop.f32.mrb[0].mxu0
  %v1587 = vadd.f32 0.0, %v1586
  %v1588 = vpop.f32.mrb[0].mxu0
  %1589 = vmatprep.mubr.bf16.mxu0 %v1504
  %1590 = vmatmul.mubr.bf16.gmra.mrb[0].mxu0 %v1503
  %v1591 = vpop.f32.mrb[0].mxu0
  %v1592 = vadd.f32 0.0, %v1591
  %v1593 = vpop.f32.mrb[0].mxu0
  %v1594 = vpop.f32.mrb[0].mxu0
  %v1595 = vadd.f32 0.0, %v1594
  %v1596 = vpop.f32.mrb[0].mxu0
  %1597 = vmatprep.mubr.bf16.mxu0 %v1509
  %1598 = vmatmul.mubr.bf16.gmra.mrb[0].mxu0 %v1508
  %v1599 = vpop.f32.mrb[0].mxu0
  %v1600 = vadd.f32 0.0, %v1599
  %v1601 = vpop.f32.mrb[0].mxu0
  %v1602 = vpop.f32.mrb[0].mxu0
  %v1603 = vadd.f32 0.0, %v1602
  %v1604 = vpop.f32.mrb[0].mxu0
  %1605 = vdwg.mxu0
  %1606 = vmatprep.subr.bf16.mxu0 0
  %1607 = vmatpush1.bf16.msra.mxu0 %v376
  %1608 = vmatprep.subr.bf16.mxu0 0
  %1609 = vmatpush1.bf16.msra.mxu0 %v377
  %1610 = vmatprep.subr.bf16.mxu0 0
  %1611 = vmatpush1.bf16.msra.mxu0 %v378
  %1612 = vmatprep.subr.bf16.mxu0 0
  %1613 = vmatpush1.bf16.msra.mxu0 %v379
  %1614 = vmatprep.subr.bf16.mxu0 0
  %1615 = vmatpush1.bf16.msra.mxu0 %v380
  %1616 = vmatprep.subr.bf16.mxu0 0
  %1617 = vmatpush1.bf16.msra.mxu0 %v381
  %1618 = vmatprep.subr.bf16.mxu0 0
  %1619 = vmatpush1.bf16.msra.mxu0 %v382
  %1620 = vmatprep.subr.bf16.mxu0 0
  %1621 = vmatpush1.bf16.msra.mxu0 %v383
  %1622 = vmatprep.subr.bf16.mxu0 0
  %1623 = vmatpush1.bf16.msra.mxu0 %v384
  %1624 = vmatprep.subr.bf16.mxu0 0
  %1625 = vmatpush1.bf16.msra.mxu0 %v385
  %1626 = vmatprep.subr.bf16.mxu0 0
  %1627 = vmatpush1.bf16.msra.mxu0 %v386
  %1628 = vmatprep.subr.bf16.mxu0 0
  %1629 = vmatpush1.bf16.msra.mxu0 %v387
  %1630 = vmatprep.subr.bf16.mxu0 0
  %1631 = vmatpush1.bf16.msra.mxu0 %v388
  %1632 = vmatprep.subr.bf16.mxu0 0
  %1633 = vmatpush1.bf16.msra.mxu0 %v389
  %1634 = vmatprep.subr.bf16.mxu0 0
  %1635 = vmatpush1.bf16.msra.mxu0 %v390
  %1636 = vmatprep.subr.bf16.mxu0 0
  %1637 = vmatpush1.bf16.msra.mxu0 %v391
  %1638 = vmatprep.mubr.bf16.mxu0 %v1496
  %1639 = vmatmul.mubr.bf16.gmra.mrb[0].mxu0 %v1495
  %v1640 = vpop.f32.mrb[0].mxu0
  %v1641 = vadd.f32 %v1576, %v1640
  %v1642 = vpop.f32.mrb[0].mxu0
  %v1643 = vpop.f32.mrb[0].mxu0
  %v1644 = vadd.f32 %v1579, %v1643
  %v1645 = vpop.f32.mrb[0].mxu0
  %1646 = vmatprep.mubr.bf16.mxu0 %v1501
  %1647 = vmatmul.mubr.bf16.gmra.mrb[0].mxu0 %v1500
  %v1648 = vpop.f32.mrb[0].mxu0
  %v1649 = vadd.f32 %v1584, %v1648
  %v1650 = vpop.f32.mrb[0].mxu0
  %v1651 = vpop.f32.mrb[0].mxu0
  %v1652 = vadd.f32 %v1587, %v1651
  %v1653 = vpop.f32.mrb[0].mxu0
  %1654 = vmatprep.mubr.bf16.mxu0 %v1506
  %1655 = vmatmul.mubr.bf16.gmra.mrb[0].mxu0 %v1505
  %v1656 = vpop.f32.mrb[0].mxu0
  %v1657 = vadd.f32 %v1592, %v1656
  %v1658 = vpop.f32.mrb[0].mxu0
  %v1659 = vpop.f32.mrb[0].mxu0
  %v1660 = vadd.f32 %v1595, %v1659
  %v1661 = vpop.f32.mrb[0].mxu0
  %1662 = vmatprep.mubr.bf16.mxu0 %v1511
  %1663 = vmatmul.mubr.bf16.gmra.mrb[0].mxu0 %v1510
  %v1664 = vpop.f32.mrb[0].mxu0
  %v1665 = vadd.f32 %v1600, %v1664
  %v1666 = vpop.f32.mrb[0].mxu0
  %v1667 = vpop.f32.mrb[0].mxu0
  %v1668 = vadd.f32 %v1603, %v1667
  %v1669 = vpop.f32.mrb[0].mxu0
  %1670 = vdwg.mxu0
  %1671 = vmatprep.subr.bf16.mxu0 0
  %1672 = vmatpush1.bf16.msra.mxu0 %v392
  %1673 = vmatprep.subr.bf16.mxu0 0
  %1674 = vmatpush1.bf16.msra.mxu0 %v393
  %1675 = vmatprep.subr.bf16.mxu0 0
  %1676 = vmatpush1.bf16.msra.mxu0 %v394
  %1677 = vmatprep.subr.bf16.mxu0 0
  %1678 = vmatpush1.bf16.msra.mxu0 %v395
  %1679 = vmatprep.subr.bf16.mxu0 0
  %1680 = vmatpush1.bf16.msra.mxu0 0
  %1681 = vmatprep.subr.bf16.mxu0 0
  %1682 = vmatpush1.bf16.msra.mxu0 0
  %1683 = vmatprep.subr.bf16.mxu0 0
  %1684 = vmatpush1.bf16.msra.mxu0 0
  %1685 = vmatprep.subr.bf16.mxu0 0
  %1686 = vmatpush1.bf16.msra.mxu0 0
  %1687 = vmatprep.subr.bf16.mxu0 0
  %1688 = vmatpush1.bf16.msra.mxu0 0
  %1689 = vmatprep.subr.bf16.mxu0 0
  %1690 = vmatpush1.bf16.msra.mxu0 0
  %1691 = vmatprep.subr.bf16.mxu0 0
  %1692 = vmatpush1.bf16.msra.mxu0 0
  %1693 = vmatprep.subr.bf16.mxu0 0
  %1694 = vmatpush1.bf16.msra.mxu0 0
  %1695 = vmatprep.subr.bf16.mxu0 0
  %1696 = vmatpush1.bf16.msra.mxu0 0
  %1697 = vmatprep.subr.bf16.mxu0 0
  %1698 = vmatpush1.bf16.msra.mxu0 0
  %1699 = vmatprep.subr.bf16.mxu0 0
  %1700 = vmatpush1.bf16.msra.mxu0 0
  %1701 = vmatprep.subr.bf16.mxu0 0
  %1702 = vmatpush1.bf16.msra.mxu0 0
  %1703 = vmatprep.mubr.bf16.mxu0 0
  %1704 = vmatmul.mubr.bf16.gmra.mrb[0].mxu0 %v1530
  %v1705 = vpop.f32.mrb[0].mxu0
  %v1706 = vadd.f32 %v1641, %v1705
  %v1707 = vpop.f32.mrb[0].mxu0
  %v1708 = vpop.f32.mrb[0].mxu0
  %v1709 = vadd.f32 %v1644, %v1708
  %v1710 = vpop.f32.mrb[0].mxu0
  %1711 = vmatprep.mubr.bf16.mxu0 0
  %1712 = vmatmul.mubr.bf16.gmra.mrb[0].mxu0 %v1533
  %v1713 = vpop.f32.mrb[0].mxu0
  %v1714 = vadd.f32 %v1649, %v1713
  %v1715 = vpop.f32.mrb[0].mxu0
  %v1716 = vpop.f32.mrb[0].mxu0
  %v1717 = vadd.f32 %v1652, %v1716
  %v1718 = vpop.f32.mrb[0].mxu0
  %1719 = vmatprep.mubr.bf16.mxu0 0
  %1720 = vmatmul.mubr.bf16.gmra.mrb[0].mxu0 %v1536
  %v1721 = vpop.f32.mrb[0].mxu0
  %v1722 = vadd.f32 %v1657, %v1721
  %v1723 = vpop.f32.mrb[0].mxu0
  %v1724 = vpop.f32.mrb[0].mxu0
  %v1725 = vadd.f32 %v1660, %v1724
  %v1726 = vpop.f32.mrb[0].mxu0
  %1727 = vmatprep.mubr.bf16.mxu0 0
  %1728 = vmatmul.mubr.bf16.gmra.mrb[0].mxu0 %v1539
  %v1729 = vpop.f32.mrb[0].mxu0
  %v1730 = vadd.f32 %v1665, %v1729
  %v1731 = vpop.f32.mrb[0].mxu0
  %v1732 = vpop.f32.mrb[0].mxu0
  %v1733 = vadd.f32 %v1668, %v1732
  %v1734 = vpop.f32.mrb[0].mxu0
  %1735 = vdwg.mxu0
  %v1736 = vmul.f32 %v1706, %v644
  %v1737 = vmul.f32 %v1709, %v644
  %v1738 = vmul.f32 %v1714, %v644
  %v1739 = vmul.f32 %v1717, %v644
  %v1740 = vmul.f32 %v1722, %v644
  %v1741 = vmul.f32 %v1725, %v644
  %v1742 = vmul.f32 %v1730, %v644
  %v1743 = vmul.f32 %v1733, %v644
  %v1744 = vadd.f32 %v1736, %v658
  %v1745 = vadd.f32 %v1737, %v658
  %v1746 = vadd.f32 %v1738, %v658
  %v1747 = vadd.f32 %v1739, %v658
  %v1748 = vadd.f32 %v1740, %v658
  %v1749 = vadd.f32 %v1741, %v658
  %v1750 = vadd.f32 %v1742, %v658
  %v1751 = vadd.f32 %v1743, %v658
  %v1752 = vmax.f32 %v1744, 0.0
  %v1753 = vmax.f32 %v1745, 0.0
  %v1754 = vmax.f32 %v1746, 0.0
  %v1755 = vmax.f32 %v1747, 0.0
  %v1756 = vmax.f32 %v1748, 0.0
  %v1757 = vmax.f32 %v1749, 0.0
  %v1758 = vmax.f32 %v1750, 0.0
  %v1759 = vmax.f32 %v1751, 0.0
  %v1760 = vmax.f32 %v1396, %v1752
  %v1761 = vmax.f32 %v1397, %v1753
  %v1762 = vmax.f32 %v1398, %v1754
  %v1763 = vmax.f32 %v1399, %v1755
  %v1764 = vmax.f32 %v1400, %v1756
  %v1765 = vmax.f32 %v1401, %v1757
  %v1766 = vmax.f32 %v1402, %v1758
  %v1767 = vmax.f32 %v1403, %v1759
  %v1768 = vpack.c.bf16 %v1761, %v1760
  %v1769 = vpack.c.bf16 %v1763, %v1762
  %v1770 = vpack.c.bf16 %v1765, %v1764
  %v1771 = vpack.c.bf16 %v1767, %v1766
  %v1776 = vunpack.c.l.b16 %v1768
  %v1777 = vunpack.c.h.b16 %v1768
  %v1778 = vunpack.c.l.b16 %v1769
  %v1779 = vunpack.c.h.b16 %v1769
  %v1780 = vunpack.c.l.b16 %v1770
  %v1781 = vunpack.c.h.b16 %v1770
  %v1782 = vunpack.c.l.b16 %v1771
  %v1783 = vunpack.c.h.b16 %v1771
  %v1784 = vpack.c.b16 %v1776, %v1776
  %v1785 = vpack.c.b16 %v1777, %v1777
  %v1786 = vpack.c.b16 %v1778, %v1778
  %v1787 = vpack.c.b16 %v1779, %v1779
  %v1788 = vpack.c.b16 %v1780, %v1780
  %v1789 = vpack.c.b16 %v1781, %v1781
  %v1790 = vpack.c.b16 %v1782, %v1782
  %v1791 = vpack.c.b16 %v1783, %v1783
  %vm1800 = vcmask 519168
  %1801 = vst.msk [vmem:[%s4] sm:$0xf] %vm1800, %v1784
  %1802 = vst.msk [vmem:[%s4 + $0x4] sm:$0xf] %vm1800, %v1785
  %1803 = vst.msk [vmem:[%s4 + $0x8] sm:$0xf] %vm1800, %v1786
  %1804 = vst.msk [vmem:[%s4 + $0xc] sm:$0xf] %vm1800, %v1787
  %1805 = vst.msk [vmem:[%s4 + $0x10] sm:$0xf] %vm1800, %v1788
  %1806 = vst.msk [vmem:[%s4 + $0x14] sm:$0xf] %vm1800, %v1789
  %1807 = vst.msk [vmem:[%s4 + $0x18] sm:$0xf] %vm1800, %v1790
  %1808 = vst.msk [vmem:[%s4 + $0x1c] sm:$0xf] %vm1800, %v1791
  // Predicated region
  $region18: #{_lambda_.10} parent=0 // pred_check
    _
  $region19: #{_lambda_.10} parent=0 // pred_check_branch
    %1810 = sbr.rel (0) target = $region21
  $region20: #{_lambda_.10} parent=0 // pred_region
    _
  $region21: #{_lambda_.10} parent=0 // pred_fallthru
    _
  // Predicated region
  $region22: #{_lambda_.10} parent=0 // pred_check
    _
  $region23: #{_lambda_.10} parent=0 // pred_check_branch
    %1812 = sbr.rel (0) target = $region25
  $region24: #{_lambda_.10} parent=0 // pred_region
    _
  $region25: #{_lambda_.10} parent=0 // pred_fallthru
    _

// kernel: _lambda_.11
$region0: #{_lambda_.11}
  #allocation0 [shape = 'u32[]', space=smem, size = 0x4, offset = 0x4, fixed_abs, tag = 'smem constant byte address 0x4 - core index']
  #allocation1 [shape = 'u32[144,128]{1,0:T(1,128)}', space=vmem, size = 0x12000, scoped, tag = 'internal scratch']
  %s0 = inlined_call_operand.vmem [shape: bf16[8,1600], index: 0, kind: input, shape index: {}]
  %s1 = inlined_call_operand.vmem [shape: bf16[1600,128], index: 1, kind: input, shape index: {}]
  %s2 = inlined_call_operand.vmem [shape: f32[1,128], index: 2, kind: input, shape index: {}]
  %s3 = inlined_call_operand.vmem [shape: bf16[128,128], index: 3, kind: input, shape index: {}]
  %s4 = inlined_call_operand.vmem [shape: f32[1,128], index: 4, kind: input, shape index: {}]
  %s5 = inlined_call_operand.vmem [shape: bf16[128,23], index: 5, kind: input, shape index: {}]
  %s6 = inlined_call_operand.vmem [shape: f32[1,23], index: 6, kind: input, shape index: {}]
  %s7 = inlined_call_operand.vmem [shape: f32[8,23], index: 7, kind: output, shape index: {}]
  %s8 = sld [smem:[#allocation0]]
  $region38: #{_lambda_.11} parent=0
    _
  %s10 = ssub.s32 1, %s8
  %s11 = scalar_select 0, %s10, %s8
  // Predicated region
  $region2: #{_lambda_.11} parent=0 // pred_check
    _
  $region3: #{_lambda_.11} parent=0 // pred_check_branch
    %13 = sbr.rel (0) target = $region5
  $region4: #{_lambda_.11} parent=0 // pred_region
    _
  $region5: #{_lambda_.11} parent=0 // pred_fallthru
    _
  // Predicated region
  $region6: #{_lambda_.11} parent=0 // pred_check
    _
  $region7: #{_lambda_.11} parent=0 // pred_check_branch
    %15 = sbr.rel (0) target = $region9
  $region8: #{_lambda_.11} parent=0 // pred_region
    _
  $region9: #{_lambda_.11} parent=0 // pred_fallthru
    _
  // Predicated region
  $region10: #{_lambda_.11} parent=0 // pred_check
    _
  $region11: #{_lambda_.11} parent=0 // pred_check_branch
    %17 = sbr.rel (0) target = $region13
  $region12: #{_lambda_.11} parent=0 // pred_region
    _
  $region13: #{_lambda_.11} parent=0 // pred_fallthru
    _
  // Predicated region
  $region14: #{_lambda_.11} parent=0 // pred_check
    _
  $region15: #{_lambda_.11} parent=0 // pred_check_branch
    %19 = sbr.rel (0) target = $region17
  $region16: #{_lambda_.11} parent=0 // pred_region
    _
  $region17: #{_lambda_.11} parent=0 // pred_fallthru
    _
  // Predicated region
  $region18: #{_lambda_.11} parent=0 // pred_check
    _
  $region19: #{_lambda_.11} parent=0 // pred_check_branch
    %21 = sbr.rel (0) target = $region21
  $region20: #{_lambda_.11} parent=0 // pred_region
    _
  $region21: #{_lambda_.11} parent=0 // pred_fallthru
    _
  // Predicated region
  $region22: #{_lambda_.11} parent=0 // pred_check
    _
  $region23: #{_lambda_.11} parent=0 // pred_check_branch
    %23 = sbr.rel (0) target = $region25
  $region24: #{_lambda_.11} parent=0 // pred_region
    _
  $region25: #{_lambda_.11} parent=0 // pred_fallthru
    _
  // Predicated region
  $region26: #{_lambda_.11} parent=0 // pred_check
    _
  $region27: #{_lambda_.11} parent=0 // pred_check_branch
    %25 = sbr.rel (0) target = $region29
  $region28: #{_lambda_.11} parent=0 // pred_region
    _
  $region29: #{_lambda_.11} parent=0 // pred_fallthru
    _
  %v27 = vld [vmem:[%s0] sm:$0xff]
  %v28 = vld [vmem:[%s0 + $0x8] sm:$0xff]
  %v29 = vld [vmem:[%s0 + $0x10] sm:$0xff]
  %v30 = vld [vmem:[%s0 + $0x18] sm:$0xff]
  %v31 = vld [vmem:[%s0 + $0x20] sm:$0xff]
  %v32 = vld [vmem:[%s0 + $0x28] sm:$0xff]
  %v33 = vld [vmem:[%s0 + $0x30] sm:$0xf]
  %v34 = vld [vmem:[%s1] sm:$0xf]
  %v35 = vld [vmem:[%s1 + $0x4] sm:$0xf]
  %v36 = vld [vmem:[%s1 + $0x8] sm:$0xf]
  %v37 = vld [vmem:[%s1 + $0xc] sm:$0xf]
  %v38 = vld [vmem:[%s1 + $0x10] sm:$0xf]
  %v39 = vld [vmem:[%s1 + $0x14] sm:$0xf]
  %v40 = vld [vmem:[%s1 + $0x18] sm:$0xf]
  %v41 = vld [vmem:[%s1 + $0x1c] sm:$0xf]
  %v42 = vld [vmem:[%s1 + $0x20] sm:$0xf]
  %v43 = vld [vmem:[%s1 + $0x24] sm:$0xf]
  %v44 = vld [vmem:[%s1 + $0x28] sm:$0xf]
  %v45 = vld [vmem:[%s1 + $0x2c] sm:$0xf]
  %v46 = vld [vmem:[%s1 + $0x30] sm:$0xf]
  %v47 = vld [vmem:[%s1 + $0x34] sm:$0xf]
  %v48 = vld [vmem:[%s1 + $0x38] sm:$0xf]
  %v49 = vld [vmem:[%s1 + $0x3c] sm:$0xf]
  %v50 = vld [vmem:[%s1 + $0x40] sm:$0xf]
  %v51 = vld [vmem:[%s1 + $0x44] sm:$0xf]
  %v52 = vld [vmem:[%s1 + $0x48] sm:$0xf]
  %v53 = vld [vmem:[%s1 + $0x4c] sm:$0xf]
  %v54 = vld [vmem:[%s1 + $0x50] sm:$0xf]
  %v55 = vld [vmem:[%s1 + $0x54] sm:$0xf]
  %v56 = vld [vmem:[%s1 + $0x58] sm:$0xf]
  %v57 = vld [vmem:[%s1 + $0x5c] sm:$0xf]
  %v58 = vld [vmem:[%s1 + $0x60] sm:$0xf]
  %v59 = vld [vmem:[%s1 + $0x64] sm:$0xf]
  %v60 = vld [vmem:[%s1 + $0x68] sm:$0xf]
  %v61 = vld [vmem:[%s1 + $0x6c] sm:$0xf]
  %v62 = vld [vmem:[%s1 + $0x70] sm:$0xf]
  %v63 = vld [vmem:[%s1 + $0x74] sm:$0xf]
  %v64 = vld [vmem:[%s1 + $0x78] sm:$0xf]
  %v65 = vld [vmem:[%s1 + $0x7c] sm:$0xf]
  %v66 = vld [vmem:[%s1 + $0x80] sm:$0xf]
  %v67 = vld [vmem:[%s1 + $0x84] sm:$0xf]
  %v68 = vld [vmem:[%s1 + $0x88] sm:$0xf]
  %v69 = vld [vmem:[%s1 + $0x8c] sm:$0xf]
  %v70 = vld [vmem:[%s1 + $0x90] sm:$0xf]
  %v71 = vld [vmem:[%s1 + $0x94] sm:$0xf]
  %v72 = vld [vmem:[%s1 + $0x98] sm:$0xf]
  %v73 = vld [vmem:[%s1 + $0x9c] sm:$0xf]
  %v74 = vld [vmem:[%s1 + $0xa0] sm:$0xf]
  %v75 = vld [vmem:[%s1 + $0xa4] sm:$0xf]
  %v76 = vld [vmem:[%s1 + $0xa8] sm:$0xf]
  %v77 = vld [vmem:[%s1 + $0xac] sm:$0xf]
  %v78 = vld [vmem:[%s1 + $0xb0] sm:$0xf]
  %v79 = vld [vmem:[%s1 + $0xb4] sm:$0xf]
  %v80 = vld [vmem:[%s1 + $0xb8] sm:$0xf]
  %v81 = vld [vmem:[%s1 + $0xbc] sm:$0xf]
  %v82 = vld [vmem:[%s1 + $0xc0] sm:$0xf]
  %v83 = vld [vmem:[%s1 + $0xc4] sm:$0xf]
  %v84 = vld [vmem:[%s1 + $0xc8] sm:$0xf]
  %v85 = vld [vmem:[%s1 + $0xcc] sm:$0xf]
  %v86 = vld [vmem:[%s1 + $0xd0] sm:$0xf]
  %v87 = vld [vmem:[%s1 + $0xd4] sm:$0xf]
  %v88 = vld [vmem:[%s1 + $0xd8] sm:$0xf]
  %v89 = vld [vmem:[%s1 + $0xdc] sm:$0xf]
  %v90 = vld [vmem:[%s1 + $0xe0] sm:$0xf]
  %v91 = vld [vmem:[%s1 + $0xe4] sm:$0xf]
  %v92 = vld [vmem:[%s1 + $0xe8] sm:$0xf]
  %v93 = vld [vmem:[%s1 + $0xec] sm:$0xf]
  %v94 = vld [vmem:[%s1 + $0xf0] sm:$0xf]
  %v95 = vld [vmem:[%s1 + $0xf4] sm:$0xf]
  %v96 = vld [vmem:[%s1 + $0xf8] sm:$0xf]
  %v97 = vld [vmem:[%s1 + $0xfc] sm:$0xf]
  %v98 = vld [vmem:[%s1 + $0x100] sm:$0xf]
  %v99 = vld [vmem:[%s1 + $0x104] sm:$0xf]
  %v100 = vld [vmem:[%s1 + $0x108] sm:$0xf]
  %v101 = vld [vmem:[%s1 + $0x10c] sm:$0xf]
  %v102 = vld [vmem:[%s1 + $0x110] sm:$0xf]
  %v103 = vld [vmem:[%s1 + $0x114] sm:$0xf]
  %v104 = vld [vmem:[%s1 + $0x118] sm:$0xf]
  %v105 = vld [vmem:[%s1 + $0x11c] sm:$0xf]
  %v106 = vld [vmem:[%s1 + $0x120] sm:$0xf]
  %v107 = vld [vmem:[%s1 + $0x124] sm:$0xf]
  %v108 = vld [vmem:[%s1 + $0x128] sm:$0xf]
  %v109 = vld [vmem:[%s1 + $0x12c] sm:$0xf]
  %v110 = vld [vmem:[%s1 + $0x130] sm:$0xf]
  %v111 = vld [vmem:[%s1 + $0x134] sm:$0xf]
  %v112 = vld [vmem:[%s1 + $0x138] sm:$0xf]
  %v113 = vld [vmem:[%s1 + $0x13c] sm:$0xf]
  %v114 = vld [vmem:[%s1 + $0x140] sm:$0xf]
  %v115 = vld [vmem:[%s1 + $0x144] sm:$0xf]
  %v116 = vld [vmem:[%s1 + $0x148] sm:$0xf]
  %v117 = vld [vmem:[%s1 + $0x14c] sm:$0xf]
  %v118 = vld [vmem:[%s1 + $0x150] sm:$0xf]
  %v119 = vld [vmem:[%s1 + $0x154] sm:$0xf]
  %v120 = vld [vmem:[%s1 + $0x158] sm:$0xf]
  %v121 = vld [vmem:[%s1 + $0x15c] sm:$0xf]
  %v122 = vld [vmem:[%s1 + $0x160] sm:$0xf]
  %v123 = vld [vmem:[%s1 + $0x164] sm:$0xf]
  %v124 = vld [vmem:[%s1 + $0x168] sm:$0xf]
  %v125 = vld [vmem:[%s1 + $0x16c] sm:$0xf]
  %v126 = vld [vmem:[%s1 + $0x170] sm:$0xf]
  %v127 = vld [vmem:[%s1 + $0x174] sm:$0xf]
  %v128 = vld [vmem:[%s1 + $0x178] sm:$0xf]
  %v129 = vld [vmem:[%s1 + $0x17c] sm:$0xf]
  %v130 = vld [vmem:[%s1 + $0x180] sm:$0xf]
  %v131 = vld [vmem:[%s1 + $0x184] sm:$0xf]
  %v132 = vld [vmem:[%s1 + $0x188] sm:$0xf]
  %v133 = vld [vmem:[%s1 + $0x18c] sm:$0xf]
  %v134 = vld [vmem:[%s1 + $0x190] sm:$0xf]
  %v135 = vld [vmem:[%s1 + $0x194] sm:$0xf]
  %v136 = vld [vmem:[%s1 + $0x198] sm:$0xf]
  %v137 = vld [vmem:[%s1 + $0x19c] sm:$0xf]
  %v138 = vld [vmem:[%s1 + $0x1a0] sm:$0xf]
  %v139 = vld [vmem:[%s1 + $0x1a4] sm:$0xf]
  %v140 = vld [vmem:[%s1 + $0x1a8] sm:$0xf]
  %v141 = vld [vmem:[%s1 + $0x1ac] sm:$0xf]
  %v142 = vld [vmem:[%s1 + $0x1b0] sm:$0xf]
  %v143 = vld [vmem:[%s1 + $0x1b4] sm:$0xf]
  %v144 = vld [vmem:[%s1 + $0x1b8] sm:$0xf]
  %v145 = vld [vmem:[%s1 + $0x1bc] sm:$0xf]
  %v146 = vld [vmem:[%s1 + $0x1c0] sm:$0xf]
  %v147 = vld [vmem:[%s1 + $0x1c4] sm:$0xf]
  %v148 = vld [vmem:[%s1 + $0x1c8] sm:$0xf]
  %v149 = vld [vmem:[%s1 + $0x1cc] sm:$0xf]
  %v150 = vld [vmem:[%s1 + $0x1d0] sm:$0xf]
  %v151 = vld [vmem:[%s1 + $0x1d4] sm:$0xf]
  %v152 = vld [vmem:[%s1 + $0x1d8] sm:$0xf]
  %v153 = vld [vmem:[%s1 + $0x1dc] sm:$0xf]
  %v154 = vld [vmem:[%s1 + $0x1e0] sm:$0xf]
  %v155 = vld [vmem:[%s1 + $0x1e4] sm:$0xf]
  %v156 = vld [vmem:[%s1 + $0x1e8] sm:$0xf]
  %v157 = vld [vmem:[%s1 + $0x1ec] sm:$0xf]
  %v158 = vld [vmem:[%s1 + $0x1f0] sm:$0xf]
  %v159 = vld [vmem:[%s1 + $0x1f4] sm:$0xf]
  %v160 = vld [vmem:[%s1 + $0x1f8] sm:$0xf]
  %v161 = vld [vmem:[%s1 + $0x1fc] sm:$0xf]
  %v162 = vld [vmem:[%s1 + $0x200] sm:$0xf]
  %v163 = vld [vmem:[%s1 + $0x204] sm:$0xf]
  %v164 = vld [vmem:[%s1 + $0x208] sm:$0xf]
  %v165 = vld [vmem:[%s1 + $0x20c] sm:$0xf]
  %v166 = vld [vmem:[%s1 + $0x210] sm:$0xf]
  %v167 = vld [vmem:[%s1 + $0x214] sm:$0xf]
  %v168 = vld [vmem:[%s1 + $0x218] sm:$0xf]
  %v169 = vld [vmem:[%s1 + $0x21c] sm:$0xf]
  %v170 = vld [vmem:[%s1 + $0x220] sm:$0xf]
  %v171 = vld [vmem:[%s1 + $0x224] sm:$0xf]
  %v172 = vld [vmem:[%s1 + $0x228] sm:$0xf]
  %v173 = vld [vmem:[%s1 + $0x22c] sm:$0xf]
  %v174 = vld [vmem:[%s1 + $0x230] sm:$0xf]
  %v175 = vld [vmem:[%s1 + $0x234] sm:$0xf]
  %v176 = vld [vmem:[%s1 + $0x238] sm:$0xf]
  %v177 = vld [vmem:[%s1 + $0x23c] sm:$0xf]
  %v178 = vld [vmem:[%s1 + $0x240] sm:$0xf]
  %v179 = vld [vmem:[%s1 + $0x244] sm:$0xf]
  %v180 = vld [vmem:[%s1 + $0x248] sm:$0xf]
  %v181 = vld [vmem:[%s1 + $0x24c] sm:$0xf]
  %v182 = vld [vmem:[%s1 + $0x250] sm:$0xf]
  %v183 = vld [vmem:[%s1 + $0x254] sm:$0xf]
  %v184 = vld [vmem:[%s1 + $0x258] sm:$0xf]
  %v185 = vld [vmem:[%s1 + $0x25c] sm:$0xf]
  %v186 = vld [vmem:[%s1 + $0x260] sm:$0xf]
  %v187 = vld [vmem:[%s1 + $0x264] sm:$0xf]
  %v188 = vld [vmem:[%s1 + $0x268] sm:$0xf]
  %v189 = vld [vmem:[%s1 + $0x26c] sm:$0xf]
  %v190 = vld [vmem:[%s1 + $0x270] sm:$0xf]
  %v191 = vld [vmem:[%s1 + $0x274] sm:$0xf]
  %v192 = vld [vmem:[%s1 + $0x278] sm:$0xf]
  %v193 = vld [vmem:[%s1 + $0x27c] sm:$0xf]
  %v194 = vld [vmem:[%s1 + $0x280] sm:$0xf]
  %v195 = vld [vmem:[%s1 + $0x284] sm:$0xf]
  %v196 = vld [vmem:[%s1 + $0x288] sm:$0xf]
  %v197 = vld [vmem:[%s1 + $0x28c] sm:$0xf]
  %v198 = vld [vmem:[%s1 + $0x290] sm:$0xf]
  %v199 = vld [vmem:[%s1 + $0x294] sm:$0xf]
  %v200 = vld [vmem:[%s1 + $0x298] sm:$0xf]
  %v201 = vld [vmem:[%s1 + $0x29c] sm:$0xf]
  %v202 = vld [vmem:[%s1 + $0x2a0] sm:$0xf]
  %v203 = vld [vmem:[%s1 + $0x2a4] sm:$0xf]
  %v204 = vld [vmem:[%s1 + $0x2a8] sm:$0xf]
  %v205 = vld [vmem:[%s1 + $0x2ac] sm:$0xf]
  %v206 = vld [vmem:[%s1 + $0x2b0] sm:$0xf]
  %v207 = vld [vmem:[%s1 + $0x2b4] sm:$0xf]
  %v208 = vld [vmem:[%s1 + $0x2b8] sm:$0xf]
  %v209 = vld [vmem:[%s1 + $0x2bc] sm:$0xf]
  %v210 = vld [vmem:[%s1 + $0x2c0] sm:$0xf]
  %v211 = vld [vmem:[%s1 + $0x2c4] sm:$0xf]
  %v212 = vld [vmem:[%s1 + $0x2c8] sm:$0xf]
  %v213 = vld [vmem:[%s1 + $0x2cc] sm:$0xf]
  %v214 = vld [vmem:[%s1 + $0x2d0] sm:$0xf]
  %v215 = vld [vmem:[%s1 + $0x2d4] sm:$0xf]
  %v216 = vld [vmem:[%s1 + $0x2d8] sm:$0xf]
  %v217 = vld [vmem:[%s1 + $0x2dc] sm:$0xf]
  %v218 = vld [vmem:[%s1 + $0x2e0] sm:$0xf]
  %v219 = vld [vmem:[%s1 + $0x2e4] sm:$0xf]
  %v220 = vld [vmem:[%s1 + $0x2e8] sm:$0xf]
  %v221 = vld [vmem:[%s1 + $0x2ec] sm:$0xf]
  %v222 = vld [vmem:[%s1 + $0x2f0] sm:$0xf]
  %v223 = vld [vmem:[%s1 + $0x2f4] sm:$0xf]
  %v224 = vld [vmem:[%s1 + $0x2f8] sm:$0xf]
  %v225 = vld [vmem:[%s1 + $0x2fc] sm:$0xf]
  %v226 = vld [vmem:[%s1 + $0x300] sm:$0xf]
  %v227 = vld [vmem:[%s1 + $0x304] sm:$0xf]
  %v228 = vld [vmem:[%s1 + $0x308] sm:$0xf]
  %v229 = vld [vmem:[%s1 + $0x30c] sm:$0xf]
  %v230 = vld [vmem:[%s1 + $0x310] sm:$0xf]
  %v231 = vld [vmem:[%s1 + $0x314] sm:$0xf]
  %v232 = vld [vmem:[%s1 + $0x318] sm:$0xf]
  %v233 = vld [vmem:[%s1 + $0x31c] sm:$0xf]
  %v234 = vld [vmem:[%s2] sm:$0x1]
  %v236 = vlaneseq
  %v237 = vshrl.u32 %v236, 7
  %v238 = vsub.s32 0, %v237
  %v239 = vrot.slane %v234, %v238
  %v248 = vunpack.c.l.b16 %v27
  %v249 = vunpack.c.h.b16 %v27
  %v250 = vunpack.c.l.b16 %v28
  %v251 = vunpack.c.h.b16 %v28
  %v252 = vunpack.c.l.b16 %v29
  %v253 = vunpack.c.h.b16 %v29
  %v254 = vunpack.c.l.b16 %v30
  %v255 = vunpack.c.h.b16 %v30
  %v256 = vunpack.c.l.b16 %v31
  %v257 = vunpack.c.h.b16 %v31
  %v258 = vunpack.c.l.b16 %v32
  %v259 = vunpack.c.h.b16 %v32
  %v260 = vunpack.c.l.b16 %v33
  %v261 = vpack.c.b16 %v248, %v248
  %v262 = vpack.c.b16 %v249, %v249
  %v263 = vpack.c.b16 %v250, %v250
  %v264 = vpack.c.b16 %v251, %v251
  %v265 = vpack.c.b16 %v252, %v252
  %v266 = vpack.c.b16 %v253, %v253
  %v267 = vpack.c.b16 %v254, %v254
  %v268 = vpack.c.b16 %v255, %v255
  %v269 = vpack.c.b16 %v256, %v256
  %v270 = vpack.c.b16 %v257, %v257
  %v271 = vpack.c.b16 %v258, %v258
  %v272 = vpack.c.b16 %v259, %v259
  %v273 = vpack.c.b16 %v260, %v260
  %v486 = vunpack.c.l.b16 %v34
  %v487 = vunpack.c.l.b16 %v35
  %v488 = vunpack.c.l.b16 %v36
  %v489 = vunpack.c.l.b16 %v37
  %v490 = vunpack.c.l.b16 %v38
  %v491 = vunpack.c.l.b16 %v39
  %v492 = vunpack.c.l.b16 %v40
  %v493 = vunpack.c.l.b16 %v41
  %v494 = vunpack.c.l.b16 %v42
  %v495 = vunpack.c.l.b16 %v43
  %v496 = vunpack.c.l.b16 %v44
  %v497 = vunpack.c.l.b16 %v45
  %v498 = vunpack.c.l.b16 %v46
  %v499 = vunpack.c.l.b16 %v47
  %v500 = vunpack.c.l.b16 %v48
  %v501 = vunpack.c.l.b16 %v49
  %v502 = vunpack.c.l.b16 %v50
  %v503 = vunpack.c.l.b16 %v51
  %v504 = vunpack.c.l.b16 %v52
  %v505 = vunpack.c.l.b16 %v53
  %v506 = vunpack.c.l.b16 %v54
  %v507 = vunpack.c.l.b16 %v55
  %v508 = vunpack.c.l.b16 %v56
  %v509 = vunpack.c.l.b16 %v57
  %v510 = vunpack.c.l.b16 %v58
  %v511 = vunpack.c.l.b16 %v59
  %v512 = vunpack.c.l.b16 %v60
  %v513 = vunpack.c.l.b16 %v61
  %v514 = vunpack.c.l.b16 %v62
  %v515 = vunpack.c.l.b16 %v63
  %v516 = vunpack.c.l.b16 %v64
  %v517 = vunpack.c.l.b16 %v65
  %v518 = vunpack.c.l.b16 %v66
  %v519 = vunpack.c.l.b16 %v67
  %v520 = vunpack.c.l.b16 %v68
  %v521 = vunpack.c.l.b16 %v69
  %v522 = vunpack.c.l.b16 %v70
  %v523 = vunpack.c.l.b16 %v71
  %v524 = vunpack.c.l.b16 %v72
  %v525 = vunpack.c.l.b16 %v73
  %v526 = vunpack.c.l.b16 %v74
  %v527 = vunpack.c.l.b16 %v75
  %v528 = vunpack.c.l.b16 %v76
  %v529 = vunpack.c.l.b16 %v77
  %v530 = vunpack.c.l.b16 %v78
  %v531 = vunpack.c.l.b16 %v79
  %v532 = vunpack.c.l.b16 %v80
  %v533 = vunpack.c.l.b16 %v81
  %v534 = vunpack.c.l.b16 %v82
  %v535 = vunpack.c.l.b16 %v83
  %v536 = vunpack.c.l.b16 %v84
  %v537 = vunpack.c.l.b16 %v85
  %v538 = vunpack.c.l.b16 %v86
  %v539 = vunpack.c.l.b16 %v87
  %v540 = vunpack.c.l.b16 %v88
  %v541 = vunpack.c.l.b16 %v89
  %v542 = vunpack.c.l.b16 %v90
  %v543 = vunpack.c.l.b16 %v91
  %v544 = vunpack.c.l.b16 %v92
  %v545 = vunpack.c.l.b16 %v93
  %v546 = vunpack.c.l.b16 %v94
  %v547 = vunpack.c.l.b16 %v95
  %v548 = vunpack.c.l.b16 %v96
  %v549 = vunpack.c.l.b16 %v97
  %v550 = vunpack.c.l.b16 %v98
  %v551 = vunpack.c.l.b16 %v99
  %v552 = vunpack.c.l.b16 %v100
  %v553 = vunpack.c.l.b16 %v101
  %v554 = vunpack.c.l.b16 %v102
  %v555 = vunpack.c.l.b16 %v103
  %v556 = vunpack.c.l.b16 %v104
  %v557 = vunpack.c.l.b16 %v105
  %v558 = vunpack.c.l.b16 %v106
  %v559 = vunpack.c.l.b16 %v107
  %v560 = vunpack.c.l.b16 %v108
  %v561 = vunpack.c.l.b16 %v109
  %v562 = vunpack.c.l.b16 %v110
  %v563 = vunpack.c.l.b16 %v111
  %v564 = vunpack.c.l.b16 %v112
  %v565 = vunpack.c.l.b16 %v113
  %v566 = vunpack.c.l.b16 %v114
  %v567 = vunpack.c.l.b16 %v115
  %v568 = vunpack.c.l.b16 %v116
  %v569 = vunpack.c.l.b16 %v117
  %v570 = vunpack.c.l.b16 %v118
  %v571 = vunpack.c.l.b16 %v119
  %v572 = vunpack.c.l.b16 %v120
  %v573 = vunpack.c.l.b16 %v121
  %v574 = vunpack.c.l.b16 %v122
  %v575 = vunpack.c.l.b16 %v123
  %v576 = vunpack.c.l.b16 %v124
  %v577 = vunpack.c.l.b16 %v125
  %v578 = vunpack.c.l.b16 %v126
  %v579 = vunpack.c.l.b16 %v127
  %v580 = vunpack.c.l.b16 %v128
  %v581 = vunpack.c.l.b16 %v129
  %v582 = vunpack.c.l.b16 %v130
  %v583 = vunpack.c.l.b16 %v131
  %v584 = vunpack.c.l.b16 %v132
  %v585 = vunpack.c.l.b16 %v133
  %v586 = vunpack.c.l.b16 %v134
  %v587 = vunpack.c.l.b16 %v135
  %v588 = vunpack.c.l.b16 %v136
  %v589 = vunpack.c.l.b16 %v137
  %v590 = vunpack.c.l.b16 %v138
  %v591 = vunpack.c.l.b16 %v139
  %v592 = vunpack.c.l.b16 %v140
  %v593 = vunpack.c.l.b16 %v141
  %v594 = vunpack.c.l.b16 %v142
  %v595 = vunpack.c.l.b16 %v143
  %v596 = vunpack.c.l.b16 %v144
  %v597 = vunpack.c.l.b16 %v145
  %v598 = vunpack.c.l.b16 %v146
  %v599 = vunpack.c.l.b16 %v147
  %v600 = vunpack.c.l.b16 %v148
  %v601 = vunpack.c.l.b16 %v149
  %v602 = vunpack.c.l.b16 %v150
  %v603 = vunpack.c.l.b16 %v151
  %v604 = vunpack.c.l.b16 %v152
  %v605 = vunpack.c.l.b16 %v153
  %v606 = vunpack.c.l.b16 %v154
  %v607 = vunpack.c.l.b16 %v155
  %v608 = vunpack.c.l.b16 %v156
  %v609 = vunpack.c.l.b16 %v157
  %v610 = vunpack.c.l.b16 %v158
  %v611 = vunpack.c.l.b16 %v159
  %v612 = vunpack.c.l.b16 %v160
  %v613 = vunpack.c.l.b16 %v161
  %v614 = vunpack.c.l.b16 %v162
  %v615 = vunpack.c.l.b16 %v163
  %v616 = vunpack.c.l.b16 %v164
  %v617 = vunpack.c.l.b16 %v165
  %v618 = vunpack.c.l.b16 %v166
  %v619 = vunpack.c.l.b16 %v167
  %v620 = vunpack.c.l.b16 %v168
  %v621 = vunpack.c.l.b16 %v169
  %v622 = vunpack.c.l.b16 %v170
  %v623 = vunpack.c.l.b16 %v171
  %v624 = vunpack.c.l.b16 %v172
  %v625 = vunpack.c.l.b16 %v173
  %v626 = vunpack.c.l.b16 %v174
  %v627 = vunpack.c.l.b16 %v175
  %v628 = vunpack.c.l.b16 %v176
  %v629 = vunpack.c.l.b16 %v177
  %v630 = vunpack.c.l.b16 %v178
  %v631 = vunpack.c.l.b16 %v179
  %v632 = vunpack.c.l.b16 %v180
  %v633 = vunpack.c.l.b16 %v181
  %v634 = vunpack.c.l.b16 %v182
  %v635 = vunpack.c.l.b16 %v183
  %v636 = vunpack.c.l.b16 %v184
  %v637 = vunpack.c.l.b16 %v185
  %v638 = vunpack.c.l.b16 %v186
  %v639 = vunpack.c.l.b16 %v187
  %v640 = vunpack.c.l.b16 %v188
  %v641 = vunpack.c.l.b16 %v189
  %v642 = vunpack.c.l.b16 %v190
  %v643 = vunpack.c.l.b16 %v191
  %v644 = vunpack.c.l.b16 %v192
  %v645 = vunpack.c.l.b16 %v193
  %v646 = vunpack.c.l.b16 %v194
  %v647 = vunpack.c.l.b16 %v195
  %v648 = vunpack.c.l.b16 %v196
  %v649 = vunpack.c.l.b16 %v197
  %v650 = vunpack.c.l.b16 %v198
  %v651 = vunpack.c.l.b16 %v199
  %v652 = vunpack.c.l.b16 %v200
  %v653 = vunpack.c.l.b16 %v201
  %v654 = vunpack.c.l.b16 %v202
  %v655 = vunpack.c.l.b16 %v203
  %v656 = vunpack.c.l.b16 %v204
  %v657 = vunpack.c.l.b16 %v205
  %v658 = vunpack.c.l.b16 %v206
  %v659 = vunpack.c.l.b16 %v207
  %v660 = vunpack.c.l.b16 %v208
  %v661 = vunpack.c.l.b16 %v209
  %v662 = vunpack.c.l.b16 %v210
  %v663 = vunpack.c.l.b16 %v211
  %v664 = vunpack.c.l.b16 %v212
  %v665 = vunpack.c.l.b16 %v213
  %v666 = vunpack.c.l.b16 %v214
  %v667 = vunpack.c.l.b16 %v215
  %v668 = vunpack.c.l.b16 %v216
  %v669 = vunpack.c.l.b16 %v217
  %v670 = vunpack.c.l.b16 %v218
  %v671 = vunpack.c.l.b16 %v219
  %v672 = vunpack.c.l.b16 %v220
  %v673 = vunpack.c.l.b16 %v221
  %v674 = vunpack.c.l.b16 %v222
  %v675 = vunpack.c.l.b16 %v223
  %v676 = vunpack.c.l.b16 %v224
  %v677 = vunpack.c.l.b16 %v225
  %v678 = vunpack.c.l.b16 %v226
  %v679 = vunpack.c.l.b16 %v227
  %v680 = vunpack.c.l.b16 %v228
  %v681 = vunpack.c.l.b16 %v229
  %v682 = vunpack.c.l.b16 %v230
  %v683 = vunpack.c.l.b16 %v231
  %v684 = vunpack.c.l.b16 %v232
  %v685 = vunpack.c.l.b16 %v233
  %v686 = vpack.c.b16 %v487, %v486
  %v687 = vpack.c.b16 %v489, %v488
  %v688 = vpack.c.b16 %v491, %v490
  %v689 = vpack.c.b16 %v493, %v492
  %v690 = vpack.c.b16 %v495, %v494
  %v691 = vpack.c.b16 %v497, %v496
  %v692 = vpack.c.b16 %v499, %v498
  %v693 = vpack.c.b16 %v501, %v500
  %v694 = vpack.c.b16 %v503, %v502
  %v695 = vpack.c.b16 %v505, %v504
  %v696 = vpack.c.b16 %v507, %v506
  %v697 = vpack.c.b16 %v509, %v508
  %v698 = vpack.c.b16 %v511, %v510
  %v699 = vpack.c.b16 %v513, %v512
  %v700 = vpack.c.b16 %v515, %v514
  %v701 = vpack.c.b16 %v517, %v516
  %v702 = vpack.c.b16 %v519, %v518
  %v703 = vpack.c.b16 %v521, %v520
  %v704 = vpack.c.b16 %v523, %v522
  %v705 = vpack.c.b16 %v525, %v524
  %v706 = vpack.c.b16 %v527, %v526
  %v707 = vpack.c.b16 %v529, %v528
  %v708 = vpack.c.b16 %v531, %v530
  %v709 = vpack.c.b16 %v533, %v532
  %v710 = vpack.c.b16 %v535, %v534
  %v711 = vpack.c.b16 %v537, %v536
  %v712 = vpack.c.b16 %v539, %v538
  %v713 = vpack.c.b16 %v541, %v540
  %v714 = vpack.c.b16 %v543, %v542
  %v715 = vpack.c.b16 %v545, %v544
  %v716 = vpack.c.b16 %v547, %v546
  %v717 = vpack.c.b16 %v549, %v548
  %v718 = vpack.c.b16 %v551, %v550
  %v719 = vpack.c.b16 %v553, %v552
  %v720 = vpack.c.b16 %v555, %v554
  %v721 = vpack.c.b16 %v557, %v556
  %v722 = vpack.c.b16 %v559, %v558
  %v723 = vpack.c.b16 %v561, %v560
  %v724 = vpack.c.b16 %v563, %v562
  %v725 = vpack.c.b16 %v565, %v564
  %v726 = vpack.c.b16 %v567, %v566
  %v727 = vpack.c.b16 %v569, %v568
  %v728 = vpack.c.b16 %v571, %v570
  %v729 = vpack.c.b16 %v573, %v572
  %v730 = vpack.c.b16 %v575, %v574
  %v731 = vpack.c.b16 %v577, %v576
  %v732 = vpack.c.b16 %v579, %v578
  %v733 = vpack.c.b16 %v581, %v580
  %v734 = vpack.c.b16 %v583, %v582
  %v735 = vpack.c.b16 %v585, %v584
  %v736 = vpack.c.b16 %v587, %v586
  %v737 = vpack.c.b16 %v589, %v588
  %v738 = vpack.c.b16 %v591, %v590
  %v739 = vpack.c.b16 %v593, %v592
  %v740 = vpack.c.b16 %v595, %v594
  %v741 = vpack.c.b16 %v597, %v596
  %v742 = vpack.c.b16 %v599, %v598
  %v743 = vpack.c.b16 %v601, %v600
  %v744 = vpack.c.b16 %v603, %v602
  %v745 = vpack.c.b16 %v605, %v604
  %v746 = vpack.c.b16 %v607, %v606
  %v747 = vpack.c.b16 %v609, %v608
  %v748 = vpack.c.b16 %v611, %v610
  %v749 = vpack.c.b16 %v613, %v612
  %v750 = vpack.c.b16 %v615, %v614
  %v751 = vpack.c.b16 %v617, %v616
  %v752 = vpack.c.b16 %v619, %v618
  %v753 = vpack.c.b16 %v621, %v620
  %v754 = vpack.c.b16 %v623, %v622
  %v755 = vpack.c.b16 %v625, %v624
  %v756 = vpack.c.b16 %v627, %v626
  %v757 = vpack.c.b16 %v629, %v628
  %v758 = vpack.c.b16 %v631, %v630
  %v759 = vpack.c.b16 %v633, %v632
  %v760 = vpack.c.b16 %v635, %v634
  %v761 = vpack.c.b16 %v637, %v636
  %v762 = vpack.c.b16 %v639, %v638
  %v763 = vpack.c.b16 %v641, %v640
  %v764 = vpack.c.b16 %v643, %v642
  %v765 = vpack.c.b16 %v645, %v644
  %v766 = vpack.c.b16 %v647, %v646
  %v767 = vpack.c.b16 %v649, %v648
  %v768 = vpack.c.b16 %v651, %v650
  %v769 = vpack.c.b16 %v653, %v652
  %v770 = vpack.c.b16 %v655, %v654
  %v771 = vpack.c.b16 %v657, %v656
  %v772 = vpack.c.b16 %v659, %v658
  %v773 = vpack.c.b16 %v661, %v660
  %v774 = vpack.c.b16 %v663, %v662
  %v775 = vpack.c.b16 %v665, %v664
  %v776 = vpack.c.b16 %v667, %v666
  %v777 = vpack.c.b16 %v669, %v668
  %v778 = vpack.c.b16 %v671, %v670
  %v779 = vpack.c.b16 %v673, %v672
  %v780 = vpack.c.b16 %v675, %v674
  %v781 = vpack.c.b16 %v677, %v676
  %v782 = vpack.c.b16 %v679, %v678
  %v783 = vpack.c.b16 %v681, %v680
  %v784 = vpack.c.b16 %v683, %v682
  %v785 = vpack.c.b16 %v685, %v684
  %vm886 = vcmask 523264
  %v888 = vsel %vm886, %v273, 0
  %890 = vmatprep.subr.bf16.mxu0 0
  %891 = vmatpush1.bf16.msra.mxu0 %v686
  %892 = vmatprep.subr.bf16.mxu0 0
  %893 = vmatpush1.bf16.msra.mxu0 %v687
  %894 = vmatprep.subr.bf16.mxu0 0
  %895 = vmatpush1.bf16.msra.mxu0 %v688
  %896 = vmatprep.subr.bf16.mxu0 0
  %897 = vmatpush1.bf16.msra.mxu0 %v689
  %898 = vmatprep.subr.bf16.mxu0 0
  %899 = vmatpush1.bf16.msra.mxu0 %v690
  %900 = vmatprep.subr.bf16.mxu0 0
  %901 = vmatpush1.bf16.msra.mxu0 %v691
  %902 = vmatprep.subr.bf16.mxu0 0
  %903 = vmatpush1.bf16.msra.mxu0 %v692
  %904 = vmatprep.subr.bf16.mxu0 0
  %905 = vmatpush1.bf16.msra.mxu0 %v693
  %906 = vmatprep.subr.bf16.mxu0 0
  %907 = vmatpush1.bf16.msra.mxu0 %v694
  %908 = vmatprep.subr.bf16.mxu0 0
  %909 = vmatpush1.bf16.msra.mxu0 %v695
  %910 = vmatprep.subr.bf16.mxu0 0
  %911 = vmatpush1.bf16.msra.mxu0 %v696
  %912 = vmatprep.subr.bf16.mxu0 0
  %913 = vmatpush1.bf16.msra.mxu0 %v697
  %914 = vmatprep.subr.bf16.mxu0 0
  %915 = vmatpush1.bf16.msra.mxu0 %v698
  %916 = vmatprep.subr.bf16.mxu0 0
  %917 = vmatpush1.bf16.msra.mxu0 %v699
  %918 = vmatprep.subr.bf16.mxu0 0
  %919 = vmatpush1.bf16.msra.mxu0 %v700
  %920 = vmatprep.subr.bf16.mxu0 0
  %921 = vmatpush1.bf16.msra.mxu0 %v701
  %922 = vmatprep.mubr.bf16.mxu0 %v262
  %923 = vmatmul.mubr.bf16.gmra.mrb[0].mxu0 %v261
  %v924 = vpop.f32.mrb[0].mxu0
  %v925 = vadd.f32 %v239, %v924
  %v926 = vpop.f32.mrb[0].mxu0
  %v927 = vpop.f32.mrb[0].mxu0
  %v928 = vpop.f32.mrb[0].mxu0
  %929 = vdwg.mxu0
  %930 = vmatprep.subr.bf16.mxu0 0
  %931 = vmatpush1.bf16.msra.mxu0 %v702
  %932 = vmatprep.subr.bf16.mxu0 0
  %933 = vmatpush1.bf16.msra.mxu0 %v703
  %934 = vmatprep.subr.bf16.mxu0 0
  %935 = vmatpush1.bf16.msra.mxu0 %v704
  %936 = vmatprep.subr.bf16.mxu0 0
  %937 = vmatpush1.bf16.msra.mxu0 %v705
  %938 = vmatprep.subr.bf16.mxu0 0
  %939 = vmatpush1.bf16.msra.mxu0 %v706
  %940 = vmatprep.subr.bf16.mxu0 0
  %941 = vmatpush1.bf16.msra.mxu0 %v707
  %942 = vmatprep.subr.bf16.mxu0 0
  %943 = vmatpush1.bf16.msra.mxu0 %v708
  %944 = vmatprep.subr.bf16.mxu0 0
  %945 = vmatpush1.bf16.msra.mxu0 %v709
  %946 = vmatprep.subr.bf16.mxu0 0
  %947 = vmatpush1.bf16.msra.mxu0 %v710
  %948 = vmatprep.subr.bf16.mxu0 0
  %949 = vmatpush1.bf16.msra.mxu0 %v711
  %950 = vmatprep.subr.bf16.mxu0 0
  %951 = vmatpush1.bf16.msra.mxu0 %v712
  %952 = vmatprep.subr.bf16.mxu0 0
  %953 = vmatpush1.bf16.msra.mxu0 %v713
  %954 = vmatprep.subr.bf16.mxu0 0
  %955 = vmatpush1.bf16.msra.mxu0 %v714
  %956 = vmatprep.subr.bf16.mxu0 0
  %957 = vmatpush1.bf16.msra.mxu0 %v715
  %958 = vmatprep.subr.bf16.mxu0 0
  %959 = vmatpush1.bf16.msra.mxu0 %v716
  %960 = vmatprep.subr.bf16.mxu0 0
  %961 = vmatpush1.bf16.msra.mxu0 %v717
  %962 = vmatprep.mubr.bf16.mxu0 %v264
  %963 = vmatmul.mubr.bf16.gmra.mrb[0].mxu0 %v263
  %v964 = vpop.f32.mrb[0].mxu0
  %v965 = vadd.f32 %v925, %v964
  %v966 = vpop.f32.mrb[0].mxu0
  %v967 = vpop.f32.mrb[0].mxu0
  %v968 = vpop.f32.mrb[0].mxu0
  %969 = vdwg.mxu0
  %970 = vmatprep.subr.bf16.mxu0 0
  %971 = vmatpush1.bf16.msra.mxu0 %v718
  %972 = vmatprep.subr.bf16.mxu0 0
  %973 = vmatpush1.bf16.msra.mxu0 %v719
  %974 = vmatprep.subr.bf16.mxu0 0
  %975 = vmatpush1.bf16.msra.mxu0 %v720
  %976 = vmatprep.subr.bf16.mxu0 0
  %977 = vmatpush1.bf16.msra.mxu0 %v721
  %978 = vmatprep.subr.bf16.mxu0 0
  %979 = vmatpush1.bf16.msra.mxu0 %v722
  %980 = vmatprep.subr.bf16.mxu0 0
  %981 = vmatpush1.bf16.msra.mxu0 %v723
  %982 = vmatprep.subr.bf16.mxu0 0
  %983 = vmatpush1.bf16.msra.mxu0 %v724
  %984 = vmatprep.subr.bf16.mxu0 0
  %985 = vmatpush1.bf16.msra.mxu0 %v725
  %986 = vmatprep.subr.bf16.mxu0 0
  %987 = vmatpush1.bf16.msra.mxu0 %v726
  %988 = vmatprep.subr.bf16.mxu0 0
  %989 = vmatpush1.bf16.msra.mxu0 %v727
  %990 = vmatprep.subr.bf16.mxu0 0
  %991 = vmatpush1.bf16.msra.mxu0 %v728
  %992 = vmatprep.subr.bf16.mxu0 0
  %993 = vmatpush1.bf16.msra.mxu0 %v729
  %994 = vmatprep.subr.bf16.mxu0 0
  %995 = vmatpush1.bf16.msra.mxu0 %v730
  %996 = vmatprep.subr.bf16.mxu0 0
  %997 = vmatpush1.bf16.msra.mxu0 %v731
  %998 = vmatprep.subr.bf16.mxu0 0
  %999 = vmatpush1.bf16.msra.mxu0 %v732
  %1000 = vmatprep.subr.bf16.mxu0 0
  %1001 = vmatpush1.bf16.msra.mxu0 %v733
  %1002 = vmatprep.mubr.bf16.mxu0 %v266
  %1003 = vmatmul.mubr.bf16.gmra.mrb[0].mxu0 %v265
  %v1004 = vpop.f32.mrb[0].mxu0
  %v1005 = vadd.f32 %v965, %v1004
  %v1006 = vpop.f32.mrb[0].mxu0
  %v1007 = vpop.f32.mrb[0].mxu0
  %v1008 = vpop.f32.mrb[0].mxu0
  %1009 = vdwg.mxu0
  %1010 = vmatprep.subr.bf16.mxu0 0
  %1011 = vmatpush1.bf16.msra.mxu0 %v734
  %1012 = vmatprep.subr.bf16.mxu0 0
  %1013 = vmatpush1.bf16.msra.mxu0 %v735
  %1014 = vmatprep.subr.bf16.mxu0 0
  %1015 = vmatpush1.bf16.msra.mxu0 %v736
  %1016 = vmatprep.subr.bf16.mxu0 0
  %1017 = vmatpush1.bf16.msra.mxu0 %v737
  %1018 = vmatprep.subr.bf16.mxu0 0
  %1019 = vmatpush1.bf16.msra.mxu0 %v738
  %1020 = vmatprep.subr.bf16.mxu0 0
  %1021 = vmatpush1.bf16.msra.mxu0 %v739
  %1022 = vmatprep.subr.bf16.mxu0 0
  %1023 = vmatpush1.bf16.msra.mxu0 %v740
  %1024 = vmatprep.subr.bf16.mxu0 0
  %1025 = vmatpush1.bf16.msra.mxu0 %v741
  %1026 = vmatprep.subr.bf16.mxu0 0
  %1027 = vmatpush1.bf16.msra.mxu0 %v742
  %1028 = vmatprep.subr.bf16.mxu0 0
  %1029 = vmatpush1.bf16.msra.mxu0 %v743
  %1030 = vmatprep.subr.bf16.mxu0 0
  %1031 = vmatpush1.bf16.msra.mxu0 %v744
  %1032 = vmatprep.subr.bf16.mxu0 0
  %1033 = vmatpush1.bf16.msra.mxu0 %v745
  %1034 = vmatprep.subr.bf16.mxu0 0
  %1035 = vmatpush1.bf16.msra.mxu0 %v746
  %1036 = vmatprep.subr.bf16.mxu0 0
  %1037 = vmatpush1.bf16.msra.mxu0 %v747
  %1038 = vmatprep.subr.bf16.mxu0 0
  %1039 = vmatpush1.bf16.msra.mxu0 %v748
  %1040 = vmatprep.subr.bf16.mxu0 0
  %1041 = vmatpush1.bf16.msra.mxu0 %v749
  %1042 = vmatprep.mubr.bf16.mxu0 %v268
  %1043 = vmatmul.mubr.bf16.gmra.mrb[0].mxu0 %v267
  %v1044 = vpop.f32.mrb[0].mxu0
  %v1045 = vadd.f32 %v1005, %v1044
  %v1046 = vpop.f32.mrb[0].mxu0
  %v1047 = vpop.f32.mrb[0].mxu0
  %v1048 = vpop.f32.mrb[0].mxu0
  %1049 = vdwg.mxu0
  %1050 = vmatprep.subr.bf16.mxu0 0
  %1051 = vmatpush1.bf16.msra.mxu0 %v750
  %1052 = vmatprep.subr.bf16.mxu0 0
  %1053 = vmatpush1.bf16.msra.mxu0 %v751
  %1054 = vmatprep.subr.bf16.mxu0 0
  %1055 = vmatpush1.bf16.msra.mxu0 %v752
  %1056 = vmatprep.subr.bf16.mxu0 0
  %1057 = vmatpush1.bf16.msra.mxu0 %v753
  %1058 = vmatprep.subr.bf16.mxu0 0
  %1059 = vmatpush1.bf16.msra.mxu0 %v754
  %1060 = vmatprep.subr.bf16.mxu0 0
  %1061 = vmatpush1.bf16.msra.mxu0 %v755
  %1062 = vmatprep.subr.bf16.mxu0 0
  %1063 = vmatpush1.bf16.msra.mxu0 %v756
  %1064 = vmatprep.subr.bf16.mxu0 0
  %1065 = vmatpush1.bf16.msra.mxu0 %v757
  %1066 = vmatprep.subr.bf16.mxu0 0
  %1067 = vmatpush1.bf16.msra.mxu0 %v758
  %1068 = vmatprep.subr.bf16.mxu0 0
  %1069 = vmatpush1.bf16.msra.mxu0 %v759
  %1070 = vmatprep.subr.bf16.mxu0 0
  %1071 = vmatpush1.bf16.msra.mxu0 %v760
  %1072 = vmatprep.subr.bf16.mxu0 0
  %1073 = vmatpush1.bf16.msra.mxu0 %v761
  %1074 = vmatprep.subr.bf16.mxu0 0
  %1075 = vmatpush1.bf16.msra.mxu0 %v762
  %1076 = vmatprep.subr.bf16.mxu0 0
  %1077 = vmatpush1.bf16.msra.mxu0 %v763
  %1078 = vmatprep.subr.bf16.mxu0 0
  %1079 = vmatpush1.bf16.msra.mxu0 %v764
  %1080 = vmatprep.subr.bf16.mxu0 0
  %1081 = vmatpush1.bf16.msra.mxu0 %v765
  %1082 = vmatprep.mubr.bf16.mxu0 %v270
  %1083 = vmatmul.mubr.bf16.gmra.mrb[0].mxu0 %v269
  %v1084 = vpop.f32.mrb[0].mxu0
  %v1085 = vadd.f32 %v1045, %v1084
  %v1086 = vpop.f32.mrb[0].mxu0
  %v1087 = vpop.f32.mrb[0].mxu0
  %v1088 = vpop.f32.mrb[0].mxu0
  %1089 = vdwg.mxu0
  %1090 = vmatprep.subr.bf16.mxu0 0
  %1091 = vmatpush1.bf16.msra.mxu0 %v766
  %1092 = vmatprep.subr.bf16.mxu0 0
  %1093 = vmatpush1.bf16.msra.mxu0 %v767
  %1094 = vmatprep.subr.bf16.mxu0 0
  %1095 = vmatpush1.bf16.msra.mxu0 %v768
  %1096 = vmatprep.subr.bf16.mxu0 0
  %1097 = vmatpush1.bf16.msra.mxu0 %v769
  %1098 = vmatprep.subr.bf16.mxu0 0
  %1099 = vmatpush1.bf16.msra.mxu0 %v770
  %1100 = vmatprep.subr.bf16.mxu0 0
  %1101 = vmatpush1.bf16.msra.mxu0 %v771
  %1102 = vmatprep.subr.bf16.mxu0 0
  %1103 = vmatpush1.bf16.msra.mxu0 %v772
  %1104 = vmatprep.subr.bf16.mxu0 0
  %1105 = vmatpush1.bf16.msra.mxu0 %v773
  %1106 = vmatprep.subr.bf16.mxu0 0
  %1107 = vmatpush1.bf16.msra.mxu0 %v774
  %1108 = vmatprep.subr.bf16.mxu0 0
  %1109 = vmatpush1.bf16.msra.mxu0 %v775
  %1110 = vmatprep.subr.bf16.mxu0 0
  %1111 = vmatpush1.bf16.msra.mxu0 %v776
  %1112 = vmatprep.subr.bf16.mxu0 0
  %1113 = vmatpush1.bf16.msra.mxu0 %v777
  %1114 = vmatprep.subr.bf16.mxu0 0
  %1115 = vmatpush1.bf16.msra.mxu0 %v778
  %1116 = vmatprep.subr.bf16.mxu0 0
  %1117 = vmatpush1.bf16.msra.mxu0 %v779
  %1118 = vmatprep.subr.bf16.mxu0 0
  %1119 = vmatpush1.bf16.msra.mxu0 %v780
  %1120 = vmatprep.subr.bf16.mxu0 0
  %1121 = vmatpush1.bf16.msra.mxu0 %v781
  %1122 = vmatprep.mubr.bf16.mxu0 %v272
  %1123 = vmatmul.mubr.bf16.gmra.mrb[0].mxu0 %v271
  %v1124 = vpop.f32.mrb[0].mxu0
  %v1125 = vadd.f32 %v1085, %v1124
  %v1126 = vpop.f32.mrb[0].mxu0
  %v1127 = vpop.f32.mrb[0].mxu0
  %v1128 = vpop.f32.mrb[0].mxu0
  %1129 = vdwg.mxu0
  %1130 = vmatprep.subr.bf16.mxu0 0
  %1131 = vmatpush1.bf16.msra.mxu0 %v782
  %1132 = vmatprep.subr.bf16.mxu0 0
  %1133 = vmatpush1.bf16.msra.mxu0 %v783
  %1134 = vmatprep.subr.bf16.mxu0 0
  %1135 = vmatpush1.bf16.msra.mxu0 %v784
  %1136 = vmatprep.subr.bf16.mxu0 0
  %1137 = vmatpush1.bf16.msra.mxu0 %v785
  %1138 = vmatprep.subr.bf16.mxu0 0
  %1139 = vmatpush1.bf16.msra.mxu0 0
  %1140 = vmatprep.subr.bf16.mxu0 0
  %1141 = vmatpush1.bf16.msra.mxu0 0
  %1142 = vmatprep.subr.bf16.mxu0 0
  %1143 = vmatpush1.bf16.msra.mxu0 0
  %1144 = vmatprep.subr.bf16.mxu0 0
  %1145 = vmatpush1.bf16.msra.mxu0 0
  %1146 = vmatprep.subr.bf16.mxu0 0
  %1147 = vmatpush1.bf16.msra.mxu0 0
  %1148 = vmatprep.subr.bf16.mxu0 0
  %1149 = vmatpush1.bf16.msra.mxu0 0
  %1150 = vmatprep.subr.bf16.mxu0 0
  %1151 = vmatpush1.bf16.msra.mxu0 0
  %1152 = vmatprep.subr.bf16.mxu0 0
  %1153 = vmatpush1.bf16.msra.mxu0 0
  %1154 = vmatprep.subr.bf16.mxu0 0
  %1155 = vmatpush1.bf16.msra.mxu0 0
  %1156 = vmatprep.subr.bf16.mxu0 0
  %1157 = vmatpush1.bf16.msra.mxu0 0
  %1158 = vmatprep.subr.bf16.mxu0 0
  %1159 = vmatpush1.bf16.msra.mxu0 0
  %1160 = vmatprep.subr.bf16.mxu0 0
  %1161 = vmatpush1.bf16.msra.mxu0 0
  %1162 = vmatprep.mubr.bf16.mxu0 0
  %1163 = vmatmul.mubr.bf16.gmra.mrb[0].mxu0 %v888
  %v1164 = vpop.f32.mrb[0].mxu0
  %v1165 = vadd.f32 %v1125, %v1164
  %v1166 = vpop.f32.mrb[0].mxu0
  %v1167 = vpop.f32.mrb[0].mxu0
  %v1168 = vpop.f32.mrb[0].mxu0
  %1169 = vdwg.mxu0
  %v1170 = vmax.f32 %v1165, 0.0
  %v1171 = vpack.c.bf16 %v1170, %v1170
  %v1172 = vld [vmem:[%s3] sm:$0xf]
  %v1173 = vld [vmem:[%s3 + $0x4] sm:$0xf]
  %v1174 = vld [vmem:[%s3 + $0x8] sm:$0xf]
  %v1175 = vld [vmem:[%s3 + $0xc] sm:$0xf]
  %v1176 = vld [vmem:[%s3 + $0x10] sm:$0xf]
  %v1177 = vld [vmem:[%s3 + $0x14] sm:$0xf]
  %v1178 = vld [vmem:[%s3 + $0x18] sm:$0xf]
  %v1179 = vld [vmem:[%s3 + $0x1c] sm:$0xf]
  %v1180 = vld [vmem:[%s3 + $0x20] sm:$0xf]
  %v1181 = vld [vmem:[%s3 + $0x24] sm:$0xf]
  %v1182 = vld [vmem:[%s3 + $0x28] sm:$0xf]
  %v1183 = vld [vmem:[%s3 + $0x2c] sm:$0xf]
  %v1184 = vld [vmem:[%s3 + $0x30] sm:$0xf]
  %v1185 = vld [vmem:[%s3 + $0x34] sm:$0xf]
  %v1186 = vld [vmem:[%s3 + $0x38] sm:$0xf]
  %v1187 = vld [vmem:[%s3 + $0x3c] sm:$0xf]
  %v1188 = vld [vmem:[%s4] sm:$0x1]
  %v1190 = vlaneseq
  %v1191 = vshrl.u32 %v1190, 7
  %v1192 = vsub.s32 0, %v1191
  %v1193 = vrot.slane %v1188, %v1192
  %v1211 = vunpack.c.l.b16 %v1172
  %v1212 = vunpack.c.l.b16 %v1173
  %v1213 = vunpack.c.l.b16 %v1174
  %v1214 = vunpack.c.l.b16 %v1175
  %v1215 = vunpack.c.l.b16 %v1176
  %v1216 = vunpack.c.l.b16 %v1177
  %v1217 = vunpack.c.l.b16 %v1178
  %v1218 = vunpack.c.l.b16 %v1179
  %v1219 = vunpack.c.l.b16 %v1180
  %v1220 = vunpack.c.l.b16 %v1181
  %v1221 = vunpack.c.l.b16 %v1182
  %v1222 = vunpack.c.l.b16 %v1183
  %v1223 = vunpack.c.l.b16 %v1184
  %v1224 = vunpack.c.l.b16 %v1185
  %v1225 = vunpack.c.l.b16 %v1186
  %v1226 = vunpack.c.l.b16 %v1187
  %v1227 = vpack.c.b16 %v1212, %v1211
  %v1228 = vpack.c.b16 %v1214, %v1213
  %v1229 = vpack.c.b16 %v1216, %v1215
  %v1230 = vpack.c.b16 %v1218, %v1217
  %v1231 = vpack.c.b16 %v1220, %v1219
  %v1232 = vpack.c.b16 %v1222, %v1221
  %v1233 = vpack.c.b16 %v1224, %v1223
  %v1234 = vpack.c.b16 %v1226, %v1225
  %1243 = vmatprep.subr.bf16.mxu0 0
  %1244 = vmatpush1.bf16.msra.mxu0 %v1227
  %1245 = vmatprep.subr.bf16.mxu0 0
  %1246 = vmatpush1.bf16.msra.mxu0 %v1228
  %1247 = vmatprep.subr.bf16.mxu0 0
  %1248 = vmatpush1.bf16.msra.mxu0 %v1229
  %1249 = vmatprep.subr.bf16.mxu0 0
  %1250 = vmatpush1.bf16.msra.mxu0 %v1230
  %1251 = vmatprep.subr.bf16.mxu0 0
  %1252 = vmatpush1.bf16.msra.mxu0 %v1231
  %1253 = vmatprep.subr.bf16.mxu0 0
  %1254 = vmatpush1.bf16.msra.mxu0 %v1232
  %1255 = vmatprep.subr.bf16.mxu0 0
  %1256 = vmatpush1.bf16.msra.mxu0 %v1233
  %1257 = vmatprep.subr.bf16.mxu0 0
  %1258 = vmatpush1.bf16.msra.mxu0 %v1234
  %1259 = vmatprep.subr.bf16.mxu0 0
  %1260 = vmatpush1.bf16.msra.mxu0 0
  %1261 = vmatprep.subr.bf16.mxu0 0
  %1262 = vmatpush1.bf16.msra.mxu0 0
  %1263 = vmatprep.subr.bf16.mxu0 0
  %1264 = vmatpush1.bf16.msra.mxu0 0
  %1265 = vmatprep.subr.bf16.mxu0 0
  %1266 = vmatpush1.bf16.msra.mxu0 0
  %1267 = vmatprep.subr.bf16.mxu0 0
  %1268 = vmatpush1.bf16.msra.mxu0 0
  %1269 = vmatprep.subr.bf16.mxu0 0
  %1270 = vmatpush1.bf16.msra.mxu0 0
  %1271 = vmatprep.subr.bf16.mxu0 0
  %1272 = vmatpush1.bf16.msra.mxu0 0
  %1273 = vmatprep.subr.bf16.mxu0 0
  %1274 = vmatpush1.bf16.msra.mxu0 0
  %1275 = vmatprep.mubr.bf16.mxu0 0
  %1276 = vmatmul.mubr.bf16.gmra.mrb[0].mxu0 %v1171
  %v1277 = vpop.f32.mrb[0].mxu0
  %v1278 = vadd.f32 %v1193, %v1277
  %v1279 = vpop.f32.mrb[0].mxu0
  %v1280 = vpop.f32.mrb[0].mxu0
  %v1281 = vpop.f32.mrb[0].mxu0
  %1282 = vdwg.mxu0
  %v1283 = vmax.f32 %v1278, 0.0
  %v1284 = vpack.c.bf16 %v1283, %v1283
  %v1285 = vld [vmem:[%s5] sm:$0xf]
  %v1286 = vld [vmem:[%s5 + $0x4] sm:$0xf]
  %v1287 = vld [vmem:[%s5 + $0x8] sm:$0xf]
  %v1288 = vld [vmem:[%s5 + $0xc] sm:$0xf]
  %v1289 = vld [vmem:[%s5 + $0x10] sm:$0xf]
  %v1290 = vld [vmem:[%s5 + $0x14] sm:$0xf]
  %v1291 = vld [vmem:[%s5 + $0x18] sm:$0xf]
  %v1292 = vld [vmem:[%s5 + $0x1c] sm:$0xf]
  %v1293 = vld [vmem:[%s5 + $0x20] sm:$0xf]
  %v1294 = vld [vmem:[%s5 + $0x24] sm:$0xf]
  %v1295 = vld [vmem:[%s5 + $0x28] sm:$0xf]
  %v1296 = vld [vmem:[%s5 + $0x2c] sm:$0xf]
  %v1297 = vld [vmem:[%s5 + $0x30] sm:$0xf]
  %v1298 = vld [vmem:[%s5 + $0x34] sm:$0xf]
  %v1299 = vld [vmem:[%s5 + $0x38] sm:$0xf]
  %v1300 = vld [vmem:[%s5 + $0x3c] sm:$0xf]
  %v1301 = vld [vmem:[%s6] sm:$0x1]
  %v1303 = vlaneseq
  %v1304 = vshrl.u32 %v1303, 7
  %v1305 = vsub.s32 0, %v1304
  %v1306 = vrot.slane %v1301, %v1305
  %v1324 = vunpack.c.l.b16 %v1285
  %v1325 = vunpack.c.l.b16 %v1286
  %v1326 = vunpack.c.l.b16 %v1287
  %v1327 = vunpack.c.l.b16 %v1288
  %v1328 = vunpack.c.l.b16 %v1289
  %v1329 = vunpack.c.l.b16 %v1290
  %v1330 = vunpack.c.l.b16 %v1291
  %v1331 = vunpack.c.l.b16 %v1292
  %v1332 = vunpack.c.l.b16 %v1293
  %v1333 = vunpack.c.l.b16 %v1294
  %v1334 = vunpack.c.l.b16 %v1295
  %v1335 = vunpack.c.l.b16 %v1296
  %v1336 = vunpack.c.l.b16 %v1297
  %v1337 = vunpack.c.l.b16 %v1298
  %v1338 = vunpack.c.l.b16 %v1299
  %v1339 = vunpack.c.l.b16 %v1300
  %v1340 = vpack.c.b16 %v1325, %v1324
  %v1341 = vpack.c.b16 %v1327, %v1326
  %v1342 = vpack.c.b16 %v1329, %v1328
  %v1343 = vpack.c.b16 %v1331, %v1330
  %v1344 = vpack.c.b16 %v1333, %v1332
  %v1345 = vpack.c.b16 %v1335, %v1334
  %v1346 = vpack.c.b16 %v1337, %v1336
  %v1347 = vpack.c.b16 %v1339, %v1338
  %1356 = vmatprep.subr.bf16.mxu0 0
  %1357 = vmatpush1.bf16.msra.mxu0 %v1340
  %1358 = vmatprep.subr.bf16.mxu0 0
  %1359 = vmatpush1.bf16.msra.mxu0 %v1341
  %1360 = vmatprep.subr.bf16.mxu0 0
  %1361 = vmatpush1.bf16.msra.mxu0 %v1342
  %1362 = vmatprep.subr.bf16.mxu0 0
  %1363 = vmatpush1.bf16.msra.mxu0 %v1343
  %1364 = vmatprep.subr.bf16.mxu0 0
  %1365 = vmatpush1.bf16.msra.mxu0 %v1344
  %1366 = vmatprep.subr.bf16.mxu0 0
  %1367 = vmatpush1.bf16.msra.mxu0 %v1345
  %1368 = vmatprep.subr.bf16.mxu0 0
  %1369 = vmatpush1.bf16.msra.mxu0 %v1346
  %1370 = vmatprep.subr.bf16.mxu0 0
  %1371 = vmatpush1.bf16.msra.mxu0 %v1347
  %1372 = vmatprep.subr.bf16.mxu0 0
  %1373 = vmatpush1.bf16.msra.mxu0 0
  %1374 = vmatprep.subr.bf16.mxu0 0
  %1375 = vmatpush1.bf16.msra.mxu0 0
  %1376 = vmatprep.subr.bf16.mxu0 0
  %1377 = vmatpush1.bf16.msra.mxu0 0
  %1378 = vmatprep.subr.bf16.mxu0 0
  %1379 = vmatpush1.bf16.msra.mxu0 0
  %1380 = vmatprep.subr.bf16.mxu0 0
  %1381 = vmatpush1.bf16.msra.mxu0 0
  %1382 = vmatprep.subr.bf16.mxu0 0
  %1383 = vmatpush1.bf16.msra.mxu0 0
  %1384 = vmatprep.subr.bf16.mxu0 0
  %1385 = vmatpush1.bf16.msra.mxu0 0
  %1386 = vmatprep.subr.bf16.mxu0 0
  %1387 = vmatpush1.bf16.msra.mxu0 0
  %1388 = vmatprep.mubr.bf16.mxu0 0
  %1389 = vmatmul.mubr.bf16.gmra.mrb[0].mxu0 %v1284
  %v1390 = vpop.f32.mrb[0].mxu0
  %v1391 = vadd.f32 %v1306, %v1390
  %v1392 = vpop.f32.mrb[0].mxu0
  %v1393 = vpop.f32.mrb[0].mxu0
  %v1394 = vpop.f32.mrb[0].mxu0
  %1395 = vdwg.mxu0
  %vm1396 = vcmask 187392
  %1397 = vst.msk [vmem:[%s7] sm:$0xff] %vm1396, %v1391
  // Predicated region
  $region30: #{_lambda_.11} parent=0 // pred_check
    _
  $region31: #{_lambda_.11} parent=0 // pred_check_branch
    %1399 = sbr.rel (0) target = $region33
  $region32: #{_lambda_.11} parent=0 // pred_region
    _
  $region33: #{_lambda_.11} parent=0 // pred_fallthru
    _
  // Predicated region
  $region34: #{_lambda_.11} parent=0 // pred_check
    _
  $region35: #{_lambda_.11} parent=0 // pred_check_branch
    %1401 = sbr.rel (0) target = $region37
  $region36: #{_lambda_.11} parent=0 // pred_region
    _
  $region37: #{_lambda_.11} parent=0 // pred_fallthru
    _

</llo_original>
